<compile_context>
chip_gen: v7x
topology: tpu7x:2x2x1
jax: 0.10.0
libtpu: 0.0.40
codegen_flags: <defaults>
</compile_context>

<pallas_src>
import numpy as np
import jax
import jax.numpy as jnp
from jax.experimental import pallas as pl
from jax.experimental.pallas import tpu as pltpu

_G = 16      # output columns packed per conv matmul group (=> _G * hidden = 128 lanes)
_EPS = 1e-5  # BatchNorm eps (PyTorch default)


# ----------------------------- fused kernel --------------------------------

def _tinyvgg_fused_kernel(x_ref, w1_ref, b1_ref, w2_ref, b2_ref, w3_ref,
                          b3_ref, w4_ref, b4_ref, s1e_ref, s1o_ref, s2e_ref,
                          s2o_ref, fcw_ref, fcb_ref, out_ref,
                          pad1_ref, pad2_ref, pad3_ref):
    """Whole TinyVGG forward for one image; everything stays in VMEM."""
    C = b1_ref.shape[1] // _G                 # hidden channels
    H = pad1_ref.shape[0] - 2
    W = pad1_ref.shape[1] // C - 2
    CIN = x_ref.shape[1] // (W + 2)           # (zero-)padded input channels
    H2, W2 = H // 2, W // 2

    def conv(src_ref, w_ref, b_ref, h, wo, cin):
        """3x3 conv + folded-BN bias + ReLU on a padded (h+2,(wo+2)*cin) ref.

        Grouped banded matmuls: per group of _G output columns and per ky tap
        one (h, (_G+2)*cin) x ((_G+2)*cin, _G*C) dot; kx shift and channel mix
        live in the banded weight, so no per-tap relayout copies are made and
        the output is lane-dense (h, wo*C).
        """
        ng = wo // _G
        bias = b_ref[...]                      # (1, _G*C)
        wk = [w_ref[k] for k in range(3)]      # 3 x ((_G+2)*cin, _G*C)
        cols = []
        for g in range(ng):
            acc = None
            for ky in range(3):
                xs = src_ref[pl.ds(ky, h),
                             pl.ds(g * _G * cin, (_G + 2) * cin)]
                d = jnp.dot(xs, wk[ky], preferred_element_type=jnp.float32)
                acc = d if acc is None else acc + d
            cols.append(jnp.maximum(acc + bias, 0.0))
        return cols[0] if ng == 1 else jnp.concatenate(cols, axis=1)

    def pool2x2(o, h, wo, se_ref, so_ref):
        """2x2/2 max pool on a lane-dense (h, wo*C) activation.

        Row pairs: leading-dim split + max.  Column pairs + compaction: two
        0/1 selection matmuls (stays lane-dense, no gathers / strided reads).
        """
        rowm = jnp.max(o.reshape(h // 2, 2, wo * C), axis=1)
        even = jnp.dot(rowm, se_ref[...], preferred_element_type=jnp.float32)
        odd = jnp.dot(rowm, so_ref[...], preferred_element_type=jnp.float32)
        return jnp.maximum(even, odd)

    # ---- conv block 1 (H x W) ----
    o1 = conv(x_ref, w1_ref, b1_ref, H, W, CIN)            # (H, W*C)
    pad1_ref[...] = jnp.zeros(pad1_ref.shape, jnp.float32)  # halo for conv2
    pad1_ref[pl.ds(1, H), pl.ds(C, W * C)] = o1
    o2 = conv(pad1_ref, w2_ref, b2_ref, H, W, C)            # (H, W*C)
    p1 = pool2x2(o2, H, W, s1e_ref, s1o_ref)                # (H/2, W/2*C)
    # Dropout(0.3): eval-mode identity.

    # ---- conv block 2 (H/2 x W/2) ----
    pad2_ref[...] = jnp.zeros(pad2_ref.shape, jnp.float32)
    pad2_ref[pl.ds(1, H2), pl.ds(C, W2 * C)] = p1
    o3 = conv(pad2_ref, w3_ref, b3_ref, H2, W2, C)
    pad3_ref[...] = jnp.zeros(pad3_ref.shape, jnp.float32)
    pad3_ref[pl.ds(1, H2), pl.ds(C, W2 * C)] = o3
    o4 = conv(pad3_ref, w4_ref, b4_ref, H2, W2, C)
    p2 = pool2x2(o4, H2, W2, s2e_ref, s2o_ref)              # (H/4, W/4*C)
    # Dropout(0.3): eval-mode identity.

    # ---- classifier (fc weight pre-permuted to this NHWC flatten order) ----
    feat = p2.reshape(1, (H2 // 2) * (W2 // 2) * C)
    out_ref[...] = (jnp.dot(feat, fcw_ref[...],
                            preferred_element_type=jnp.float32)
                    + fcb_ref[...])


# ----------------------------- wrapper --------------------------------------

@jax.jit
def tiny_vgg_forward(prep, x_nchw):
    n, cin, h, w = x_nchw.shape
    C = prep["b1"].shape[1] // _G
    O = prep["fc_b"].shape[1]
    cpad = prep["w1"].shape[1] // (_G + 2)   # conv1 input channels after zero-pad

    # NCHW -> lane-dense padded rows (N, H+2, (W+2)*cpad); tiny boundary work.
    x = jnp.transpose(x_nchw, (0, 2, 3, 1)).astype(jnp.float32)
    x = jnp.pad(x, ((0, 0), (1, 1), (1, 1), (0, cpad - cin)))
    x = x.reshape(n, h + 2, (w + 2) * cpad)

    consts = (prep["w1"], prep["b1"], prep["w2"], prep["b2"],
              prep["w3"], prep["b3"], prep["w4"], prep["b4"],
              prep["s1e"], prep["s1o"], prep["s2e"], prep["s2o"],
              prep["fc_w"], prep["fc_b"])

    def _const_spec(a):
        # Full-array block, constant index_map -> fetched once (block index
        # never changes across the grid), shared by every image.
        return pl.BlockSpec(a.shape, lambda i, nd=a.ndim: (0,) * nd)

    out = pl.pallas_call(
        _tinyvgg_fused_kernel,
        out_shape=jax.ShapeDtypeStruct((n, 1, O), jnp.float32),
        grid=(n,),
        in_specs=[pl.BlockSpec((None, h + 2, (w + 2) * cpad),
                               lambda i: (i, 0, 0))]
                 + [_const_spec(a) for a in consts],
        out_specs=pl.BlockSpec((None, 1, O), lambda i: (i, 0, 0)),
        scratch_shapes=[
            pltpu.VMEM((h + 2, (w + 2) * C), jnp.float32),          # conv2 in
            pltpu.VMEM((h // 2 + 2, (w // 2 + 2) * C), jnp.float32),  # conv3 in
            pltpu.VMEM((h // 2 + 2, (w // 2 + 2) * C), jnp.float32),  # conv4 in
        ],
        compiler_params=pltpu.CompilerParams(
            dimension_semantics=("parallel",),      # one image per TensorCore
            vmem_limit_bytes=32 * 1024 * 1024),
    )(x, *consts)
    return out.reshape(n, O)


# ----------------------------- parameter prep -------------------------------

def prepare_params(params):
    """One-time (outside jit) prep: BN folding, banded conv weights,
    pooling selection matrices, fc weight permutation."""

    def fold(p):
        w, b, gamma, beta, mean, var = (np.asarray(t, np.float32) for t in p)
        scale = gamma / np.sqrt(var + _EPS)                 # (cout,)
        wf = np.transpose(w, (2, 3, 1, 0)) * scale          # (ky,kx,ci,co)
        bf = (b - mean) * scale + beta
        return wf.astype(np.float32), bf.astype(np.float32)

    def band(wf, cin_pad):
        # Banded weight: B[ky, (p+kx)*cin+ci, p*cout+co] = wf[ky,kx,ci,co]
        _, _, cin, cout = wf.shape
        wfp = np.zeros((3, 3, cin_pad, cout), np.float32)
        wfp[:, :, :cin, :] = wf
        B = np.zeros((3, (_G + 2) * cin_pad, _G * cout), np.float32)
        for ky in range(3):
            for kx in range(3):
                for p in range(_G):
                    q = p + kx
                    B[ky, q * cin_pad:(q + 1) * cin_pad,
                      p * cout:(p + 1) * cout] = wfp[ky, kx]
        return B

    def pool_select(wo, c):
        se = np.zeros((wo * c, (wo // 2) * c), np.float32)
        so = np.zeros_like(se)
        for x in range(wo // 2):
            for ci in range(c):
                se[(2 * x) * c + ci, x * c + ci] = 1.0
                so[(2 * x + 1) * c + ci, x * c + ci] = 1.0
        return se, so

    hidden = params["c1"][0].shape[0]
    in_ch = params["c1"][0].shape[1]
    cin_pad = max(in_ch, hidden)            # lane-align conv1's input groups

    o_cls, kfc = params["fc_w"].shape
    hw4 = int(round((kfc // hidden) ** 0.5))  # pooled spatial size (16)
    W = hw4 * 4                               # input spatial size (64)

    wf1, bf1 = fold(params["c1"])
    wf2, bf2 = fold(params["c2"])
    wf3, bf3 = fold(params["c3"])
    wf4, bf4 = fold(params["c4"])

    s1e, s1o = pool_select(W, hidden)
    s2e, s2o = pool_select(W // 2, hidden)

    # torch Flatten order is (c,h,w); our features flatten as (h,w,c):
    # permute classifier weight columns once here, pre-transpose to (K, O).
    fcw = np.asarray(params["fc_w"], np.float32).reshape(o_cls, hidden, hw4, hw4)
    fcw = np.transpose(fcw, (0, 2, 3, 1)).reshape(o_cls, hw4 * hw4 * hidden)
    fc_w = np.ascontiguousarray(fcw.T)
    fc_b = np.asarray(params["fc_b"], np.float32).reshape(1, o_cls)

    prep = {
        "w1": band(wf1, cin_pad), "b1": np.tile(bf1, _G).reshape(1, -1),
        "w2": band(wf2, hidden),  "b2": np.tile(bf2, _G).reshape(1, -1),
        "w3": band(wf3, hidden),  "b3": np.tile(bf3, _G).reshape(1, -1),
        "w4": band(wf4, hidden),  "b4": np.tile(bf4, _G).reshape(1, -1),
        "s1e": s1e, "s1o": s1o, "s2e": s2e, "s2o": s2o,
        "fc_w": fc_w, "fc_b": fc_b,
    }
    return {k: jnp.asarray(v) for k, v in prep.items()}


# ----------------------------- reference (pure JAX) -------------------------

def _reference_forward(params, x):
    """Eval-mode TinyVGG with plain XLA ops, for numerics validation."""
    def conv_bn_relu(x, p):
        w, b, gamma, beta, mean, var = p
        y = jax.lax.conv_general_dilated(
            x, w, window_strides=(1, 1), padding=((1, 1), (1, 1)),
            dimension_numbers=("NCHW", "OIHW", "NCHW"))
        y = y + b[None, :, None, None]
        scale = gamma / jnp.sqrt(var + _EPS)
        y = (scale[None, :, None, None] * (y - mean[None, :, None, None])
             + beta[None, :, None, None])
        return jnp.maximum(y, 0.0)

    def pool(x):
        n, c, h, w = x.shape
        return x.reshape(n, c, h // 2, 2, w // 2, 2).max(axis=(3, 5))

    x = pool(conv_bn_relu(conv_bn_relu(x, params["c1"]), params["c2"]))
    x = pool(conv_bn_relu(conv_bn_relu(x, params["c3"]), params["c4"]))
    n = x.shape[0]
    return x.reshape(n, -1) @ params["fc_w"].T + params["fc_b"][None, :]


# ----------------------------- parameter init -------------------------------

def _conv_bn_params(key, cin, cout):
    k1, k2, k3, k4, k5, k6 = jax.random.split(key, 6)
    w = 0.1 * jax.random.normal(k1, (cout, cin, 3, 3), jnp.float32)
    b = 0.1 * jax.random.normal(k2, (cout,), jnp.float32)
    gamma = 1.0 + 0.1 * jax.random.normal(k3, (cout,), jnp.float32)
    beta = 0.1 * jax.random.normal(k4, (cout,), jnp.float32)
    r_mean = 0.1 * jax.random.normal(k5, (cout,), jnp.float32)
    r_var = jax.random.uniform(k6, (cout,), jnp.float32, 0.5, 1.5)
    return (w, b, gamma, beta, r_mean, r_var)


def init_params(key, input_shape, hidden_units, output_shape):
    k1, k2, k3, k4, k5, k6 = jax.random.split(key, 6)
    return {
        "c1": _conv_bn_params(k1, input_shape, hidden_units),
        "c2": _conv_bn_params(k2, hidden_units, hidden_units),
        "c3": _conv_bn_params(k3, hidden_units, hidden_units),
        "c4": _conv_bn_params(k4, hidden_units, hidden_units),
        "fc_w": 0.02 * jax.random.normal(
            k5, (output_shape, hidden_units * 16 * 16), jnp.float32),
        "fc_b": 0.02 * jax.random.normal(k6, (output_shape,), jnp.float32),
    }


# ----------------------------- main ------------------------------------------

if __name__ == "__main__":
    # Classifier expects hidden_units*16*16 features => input spatial is 64x64
    # (two MaxPool2d(2) layers: 64 -> 32 -> 16).
    batch, in_ch, hidden, n_classes = 2, 3, 8, 10
    H = W = 64

    key = jax.random.PRNGKey(0)
    kp, kx = jax.random.split(key)
    params = init_params(kp, in_ch, hidden, n_classes)
    prep = prepare_params(params)
    x = jax.random.normal(kx, (batch, in_ch, H, W), jnp.float32)  # NCHW like torch

    logits = tiny_vgg_forward(prep, x)
    jax.block_until_ready(logits)
    assert logits.shape == (batch, n_classes), logits.shape

    # Sanity check against a pure-JAX eval-mode reference (tolerance covers
    # MXU rounding differences; structural errors would be O(logit scale)).
    ref = jax.jit(_reference_forward)(params, x)
    err = float(jnp.max(jnp.abs(logits - ref)))
    scale = float(jnp.max(jnp.abs(ref)))
    assert err <= 0.05 + 0.1 * scale, f"mismatch: err={err}, ref scale={scale}"

    print("KERNEL_OK")
</pallas_src>

<mosaic_0001>
module attributes {stable_mosaic.version = 11 : i64} {
  func.func @_tinyvgg_fused_kernel(%arg0: i32, %arg1: memref<1x66x528xf32, #tpu.memory_space<vmem>>, %arg2: memref<3x144x128xf32, #tpu.memory_space<vmem>>, %arg3: memref<1x128xf32, #tpu.memory_space<vmem>>, %arg4: memref<3x144x128xf32, #tpu.memory_space<vmem>>, %arg5: memref<1x128xf32, #tpu.memory_space<vmem>>, %arg6: memref<3x144x128xf32, #tpu.memory_space<vmem>>, %arg7: memref<1x128xf32, #tpu.memory_space<vmem>>, %arg8: memref<3x144x128xf32, #tpu.memory_space<vmem>>, %arg9: memref<1x128xf32, #tpu.memory_space<vmem>>, %arg10: memref<512x256xf32, #tpu.memory_space<vmem>>, %arg11: memref<512x256xf32, #tpu.memory_space<vmem>>, %arg12: memref<256x128xf32, #tpu.memory_space<vmem>>, %arg13: memref<256x128xf32, #tpu.memory_space<vmem>>, %arg14: memref<2048x10xf32, #tpu.memory_space<vmem>>, %arg15: memref<1x10xf32, #tpu.memory_space<vmem>>, %arg16: memref<1x1x10xf32, #tpu.memory_space<vmem>>, %arg17: memref<66x528xf32, #tpu.memory_space<vmem>>, %arg18: memref<34x272xf32, #tpu.memory_space<vmem>>, %arg19: memref<34x272xf32, #tpu.memory_space<vmem>>) attributes {dimension_semantics = [#tpu.dimension_semantics<parallel>], iteration_bounds = array<i64: 2>, scalar_prefetch = 0 : i64, scratch_operands = 3 : i64, tpu.core_type = #tpu.core_type<tc>, window_params = [{transform_indices = @transform_0, window_bounds = array<i64: 1, 66, 528>}, {pipeline_mode = #tpu.pipeline_mode<synchronous>, transform_indices = @transform_1, window_bounds = array<i64: 3, 144, 128>}, {pipeline_mode = #tpu.pipeline_mode<synchronous>, transform_indices = @transform_2, window_bounds = array<i64: 1, 128>}, {pipeline_mode = #tpu.pipeline_mode<synchronous>, transform_indices = @transform_3, window_bounds = array<i64: 3, 144, 128>}, {pipeline_mode = #tpu.pipeline_mode<synchronous>, transform_indices = @transform_4, window_bounds = array<i64: 1, 128>}, {pipeline_mode = #tpu.pipeline_mode<synchronous>, transform_indices = @transform_5, window_bounds = array<i64: 3, 144, 128>}, {pipeline_mode = #tpu.pipeline_mode<synchronous>, transform_indices = @transform_6, window_bounds = array<i64: 1, 128>}, {pipeline_mode = #tpu.pipeline_mode<synchronous>, transform_indices = @transform_7, window_bounds = array<i64: 3, 144, 128>}, {pipeline_mode = #tpu.pipeline_mode<synchronous>, transform_indices = @transform_8, window_bounds = array<i64: 1, 128>}, {pipeline_mode = #tpu.pipeline_mode<synchronous>, transform_indices = @transform_9, window_bounds = array<i64: 512, 256>}, {pipeline_mode = #tpu.pipeline_mode<synchronous>, transform_indices = @transform_10, window_bounds = array<i64: 512, 256>}, {pipeline_mode = #tpu.pipeline_mode<synchronous>, transform_indices = @transform_11, window_bounds = array<i64: 256, 128>}, {pipeline_mode = #tpu.pipeline_mode<synchronous>, transform_indices = @transform_12, window_bounds = array<i64: 256, 128>}, {pipeline_mode = #tpu.pipeline_mode<synchronous>, transform_indices = @transform_13, window_bounds = array<i64: 2048, 10>}, {pipeline_mode = #tpu.pipeline_mode<synchronous>, transform_indices = @transform_14, window_bounds = array<i64: 1, 10>}, {transform_indices = @transform_15, window_bounds = array<i64: 1, 1, 10>}]} {
    %c0 = arith.constant 0 : index
    %c0_0 = arith.constant 0 : index
    %0 = vector.load %arg3[%c0, %c0_0] : memref<1x128xf32, #tpu.memory_space<vmem>>, vector<1x128xf32>
    %c0_1 = arith.constant 0 : index
    %c0_2 = arith.constant 0 : index
    %c0_3 = arith.constant 0 : index
    %1 = vector.load %arg2[%c0_1, %c0_2, %c0_3] : memref<3x144x128xf32, #tpu.memory_space<vmem>>, vector<1x144x128xf32>
    %2 = vector.shape_cast %1 : vector<1x144x128xf32> to vector<144x128xf32>
    %c1 = arith.constant 1 : index
    %c0_4 = arith.constant 0 : index
    %c0_5 = arith.constant 0 : index
    %3 = vector.load %arg2[%c1, %c0_4, %c0_5] : memref<3x144x128xf32, #tpu.memory_space<vmem>>, vector<1x144x128xf32>
    %4 = vector.shape_cast %3 : vector<1x144x128xf32> to vector<144x128xf32>
    %c2 = arith.constant 2 : index
    %c0_6 = arith.constant 0 : index
    %c0_7 = arith.constant 0 : index
    %5 = vector.load %arg2[%c2, %c0_6, %c0_7] : memref<3x144x128xf32, #tpu.memory_space<vmem>>, vector<1x144x128xf32>
    %6 = vector.shape_cast %5 : vector<1x144x128xf32> to vector<144x128xf32>
    %c0_8 = arith.constant 0 : index
    %c0_9 = arith.constant 0 : index
    %c0_10 = arith.constant 0 : index
    %7 = vector.load %arg1[%c0_8, %c0_9, %c0_10] : memref<1x66x528xf32, #tpu.memory_space<vmem>>, vector<1x64x144xf32>
    %8 = vector.shape_cast %7 : vector<1x64x144xf32> to vector<64x144xf32>
    %cst = arith.constant dense<0.000000e+00> : vector<64x128xf32>
    %9 = tpu.matmul %8, %2, %cst {dimension_numbers = #tpu.dot_dimension_numbers<[1], [0], [0], [1], [0, 0, 1, 1], [], []>} : vector<64x144xf32>, vector<144x128xf32>, vector<64x128xf32> -> vector<64x128xf32>
    %c0_11 = arith.constant 0 : index
    %c1_12 = arith.constant 1 : index
    %c0_13 = arith.constant 0 : index
    %10 = vector.load %arg1[%c0_11, %c1_12, %c0_13] : memref<1x66x528xf32, #tpu.memory_space<vmem>>, vector<1x64x144xf32>
    %11 = vector.shape_cast %10 : vector<1x64x144xf32> to vector<64x144xf32>
    %cst_14 = arith.constant dense<0.000000e+00> : vector<64x128xf32>
    %12 = tpu.matmul %11, %4, %cst_14 {dimension_numbers = #tpu.dot_dimension_numbers<[1], [0], [0], [1], [0, 0, 1, 1], [], []>} : vector<64x144xf32>, vector<144x128xf32>, vector<64x128xf32> -> vector<64x128xf32>
    %13 = arith.addf %9, %12 : vector<64x128xf32>
    %c0_15 = arith.constant 0 : index
    %c2_16 = arith.constant 2 : index
    %c0_17 = arith.constant 0 : index
    %14 = vector.load %arg1[%c0_15, %c2_16, %c0_17] : memref<1x66x528xf32, #tpu.memory_space<vmem>>, vector<1x64x144xf32>
    %15 = vector.shape_cast %14 : vector<1x64x144xf32> to vector<64x144xf32>
    %cst_18 = arith.constant dense<0.000000e+00> : vector<64x128xf32>
    %16 = tpu.matmul %15, %6, %cst_18 {dimension_numbers = #tpu.dot_dimension_numbers<[1], [0], [0], [1], [0, 0, 1, 1], [], []>} : vector<64x144xf32>, vector<144x128xf32>, vector<64x128xf32> -> vector<64x128xf32>
    %17 = arith.addf %13, %16 : vector<64x128xf32>
    %18 = vector.broadcast %0 : vector<1x128xf32> to vector<64x128xf32>
    %19 = arith.addf %17, %18 : vector<64x128xf32>
    %cst_19 = arith.constant 0.000000e+00 : f32
    %20 = vector.broadcast %cst_19 : f32 to vector<64x128xf32>
    %21 = arith.maximumf %19, %20 : vector<64x128xf32>
    %c0_20 = arith.constant 0 : index
    %c0_21 = arith.constant 0 : index
    %c128 = arith.constant 128 : index
    %22 = vector.load %arg1[%c0_20, %c0_21, %c128] : memref<1x66x528xf32, #tpu.memory_space<vmem>>, vector<1x64x144xf32>
    %23 = vector.shape_cast %22 : vector<1x64x144xf32> to vector<64x144xf32>
    %cst_22 = arith.constant dense<0.000000e+00> : vector<64x128xf32>
    %24 = tpu.matmul %23, %2, %cst_22 {dimension_numbers = #tpu.dot_dimension_numbers<[1], [0], [0], [1], [0, 0, 1, 1], [], []>} : vector<64x144xf32>, vector<144x128xf32>, vector<64x128xf32> -> vector<64x128xf32>
    %c0_23 = arith.constant 0 : index
    %c1_24 = arith.constant 1 : index
    %c128_25 = arith.constant 128 : index
    %25 = vector.load %arg1[%c0_23, %c1_24, %c128_25] : memref<1x66x528xf32, #tpu.memory_space<vmem>>, vector<1x64x144xf32>
    %26 = vector.shape_cast %25 : vector<1x64x144xf32> to vector<64x144xf32>
    %cst_26 = arith.constant dense<0.000000e+00> : vector<64x128xf32>
    %27 = tpu.matmul %26, %4, %cst_26 {dimension_numbers = #tpu.dot_dimension_numbers<[1], [0], [0], [1], [0, 0, 1, 1], [], []>} : vector<64x144xf32>, vector<144x128xf32>, vector<64x128xf32> -> vector<64x128xf32>
    %28 = arith.addf %24, %27 : vector<64x128xf32>
    %c0_27 = arith.constant 0 : index
    %c2_28 = arith.constant 2 : index
    %c128_29 = arith.constant 128 : index
    %29 = vector.load %arg1[%c0_27, %c2_28, %c128_29] : memref<1x66x528xf32, #tpu.memory_space<vmem>>, vector<1x64x144xf32>
    %30 = vector.shape_cast %29 : vector<1x64x144xf32> to vector<64x144xf32>
    %cst_30 = arith.constant dense<0.000000e+00> : vector<64x128xf32>
    %31 = tpu.matmul %30, %6, %cst_30 {dimension_numbers = #tpu.dot_dimension_numbers<[1], [0], [0], [1], [0, 0, 1, 1], [], []>} : vector<64x144xf32>, vector<144x128xf32>, vector<64x128xf32> -> vector<64x128xf32>
    %32 = arith.addf %28, %31 : vector<64x128xf32>
    %33 = vector.broadcast %0 : vector<1x128xf32> to vector<64x128xf32>
    %34 = arith.addf %32, %33 : vector<64x128xf32>
    %cst_31 = arith.constant 0.000000e+00 : f32
    %35 = vector.broadcast %cst_31 : f32 to vector<64x128xf32>
    %36 = arith.maximumf %34, %35 : vector<64x128xf32>
    %c0_32 = arith.constant 0 : index
    %c0_33 = arith.constant 0 : index
    %c256 = arith.constant 256 : index
    %37 = vector.load %arg1[%c0_32, %c0_33, %c256] : memref<1x66x528xf32, #tpu.memory_space<vmem>>, vector<1x64x144xf32>
    %38 = vector.shape_cast %37 : vector<1x64x144xf32> to vector<64x144xf32>
    %cst_34 = arith.constant dense<0.000000e+00> : vector<64x128xf32>
    %39 = tpu.matmul %38, %2, %cst_34 {dimension_numbers = #tpu.dot_dimension_numbers<[1], [0], [0], [1], [0, 0, 1, 1], [], []>} : vector<64x144xf32>, vector<144x128xf32>, vector<64x128xf32> -> vector<64x128xf32>
    %c0_35 = arith.constant 0 : index
    %c1_36 = arith.constant 1 : index
    %c256_37 = arith.constant 256 : index
    %40 = vector.load %arg1[%c0_35, %c1_36, %c256_37] : memref<1x66x528xf32, #tpu.memory_space<vmem>>, vector<1x64x144xf32>
    %41 = vector.shape_cast %40 : vector<1x64x144xf32> to vector<64x144xf32>
    %cst_38 = arith.constant dense<0.000000e+00> : vector<64x128xf32>
    %42 = tpu.matmul %41, %4, %cst_38 {dimension_numbers = #tpu.dot_dimension_numbers<[1], [0], [0], [1], [0, 0, 1, 1], [], []>} : vector<64x144xf32>, vector<144x128xf32>, vector<64x128xf32> -> vector<64x128xf32>
    %43 = arith.addf %39, %42 : vector<64x128xf32>
    %c0_39 = arith.constant 0 : index
    %c2_40 = arith.constant 2 : index
    %c256_41 = arith.constant 256 : index
    %44 = vector.load %arg1[%c0_39, %c2_40, %c256_41] : memref<1x66x528xf32, #tpu.memory_space<vmem>>, vector<1x64x144xf32>
    %45 = vector.shape_cast %44 : vector<1x64x144xf32> to vector<64x144xf32>
    %cst_42 = arith.constant dense<0.000000e+00> : vector<64x128xf32>
    %46 = tpu.matmul %45, %6, %cst_42 {dimension_numbers = #tpu.dot_dimension_numbers<[1], [0], [0], [1], [0, 0, 1, 1], [], []>} : vector<64x144xf32>, vector<144x128xf32>, vector<64x128xf32> -> vector<64x128xf32>
    %47 = arith.addf %43, %46 : vector<64x128xf32>
    %48 = vector.broadcast %0 : vector<1x128xf32> to vector<64x128xf32>
    %49 = arith.addf %47, %48 : vector<64x128xf32>
    %cst_43 = arith.constant 0.000000e+00 : f32
    %50 = vector.broadcast %cst_43 : f32 to vector<64x128xf32>
    %51 = arith.maximumf %49, %50 : vector<64x128xf32>
    %c0_44 = arith.constant 0 : index
    %c0_45 = arith.constant 0 : index
    %c384 = arith.constant 384 : index
    %52 = vector.load %arg1[%c0_44, %c0_45, %c384] : memref<1x66x528xf32, #tpu.memory_space<vmem>>, vector<1x64x144xf32>
    %53 = vector.shape_cast %52 : vector<1x64x144xf32> to vector<64x144xf32>
    %cst_46 = arith.constant dense<0.000000e+00> : vector<64x128xf32>
    %54 = tpu.matmul %53, %2, %cst_46 {dimension_numbers = #tpu.dot_dimension_numbers<[1], [0], [0], [1], [0, 0, 1, 1], [], []>} : vector<64x144xf32>, vector<144x128xf32>, vector<64x128xf32> -> vector<64x128xf32>
    %c0_47 = arith.constant 0 : index
    %c1_48 = arith.constant 1 : index
    %c384_49 = arith.constant 384 : index
    %55 = vector.load %arg1[%c0_47, %c1_48, %c384_49] : memref<1x66x528xf32, #tpu.memory_space<vmem>>, vector<1x64x144xf32>
    %56 = vector.shape_cast %55 : vector<1x64x144xf32> to vector<64x144xf32>
    %cst_50 = arith.constant dense<0.000000e+00> : vector<64x128xf32>
    %57 = tpu.matmul %56, %4, %cst_50 {dimension_numbers = #tpu.dot_dimension_numbers<[1], [0], [0], [1], [0, 0, 1, 1], [], []>} : vector<64x144xf32>, vector<144x128xf32>, vector<64x128xf32> -> vector<64x128xf32>
    %58 = arith.addf %54, %57 : vector<64x128xf32>
    %c0_51 = arith.constant 0 : index
    %c2_52 = arith.constant 2 : index
    %c384_53 = arith.constant 384 : index
    %59 = vector.load %arg1[%c0_51, %c2_52, %c384_53] : memref<1x66x528xf32, #tpu.memory_space<vmem>>, vector<1x64x144xf32>
    %60 = vector.shape_cast %59 : vector<1x64x144xf32> to vector<64x144xf32>
    %cst_54 = arith.constant dense<0.000000e+00> : vector<64x128xf32>
    %61 = tpu.matmul %60, %6, %cst_54 {dimension_numbers = #tpu.dot_dimension_numbers<[1], [0], [0], [1], [0, 0, 1, 1], [], []>} : vector<64x144xf32>, vector<144x128xf32>, vector<64x128xf32> -> vector<64x128xf32>
    %62 = arith.addf %58, %61 : vector<64x128xf32>
    %63 = vector.broadcast %0 : vector<1x128xf32> to vector<64x128xf32>
    %64 = arith.addf %62, %63 : vector<64x128xf32>
    %cst_55 = arith.constant 0.000000e+00 : f32
    %65 = vector.broadcast %cst_55 : f32 to vector<64x128xf32>
    %66 = arith.maximumf %64, %65 : vector<64x128xf32>
    %67 = tpu.concatenate %21, %36, %51, %66 in 1 : vector<64x128xf32>, vector<64x128xf32>, vector<64x128xf32>, vector<64x128xf32> -> vector<64x512xf32>
    %cst_56 = arith.constant 0.000000e+00 : f32
    %68 = vector.broadcast %cst_56 : f32 to vector<66x528xf32>
    %c0_57 = arith.constant 0 : index
    %c0_58 = arith.constant 0 : index
    %69 = vector.load %arg17[%c0_57, %c0_58] : memref<66x528xf32, #tpu.memory_space<vmem>>, vector<66x528xf32>
    tpu.vector_store %arg17[%c0_57, %c0_58], %68 {strides = array<i32>} : memref<66x528xf32, #tpu.memory_space<vmem>>, vector<66x528xf32>,
    %c1_59 = arith.constant 1 : index
    %c8 = arith.constant 8 : index
    %70 = vector.load %arg17[%c1_59, %c8] : memref<66x528xf32, #tpu.memory_space<vmem>>, vector<64x512xf32>
    tpu.vector_store %arg17[%c1_59, %c8], %67 {strides = array<i32>} : memref<66x528xf32, #tpu.memory_space<vmem>>, vector<64x512xf32>,
    %c0_60 = arith.constant 0 : index
    %c0_61 = arith.constant 0 : index
    %71 = vector.load %arg5[%c0_60, %c0_61] : memref<1x128xf32, #tpu.memory_space<vmem>>, vector<1x128xf32>
    %c0_62 = arith.constant 0 : index
    %c0_63 = arith.constant 0 : index
    %c0_64 = arith.constant 0 : index
    %72 = vector.load %arg4[%c0_62, %c0_63, %c0_64] : memref<3x144x128xf32, #tpu.memory_space<vmem>>, vector<1x144x128xf32>
    %73 = vector.shape_cast %72 : vector<1x144x128xf32> to vector<144x128xf32>
    %c1_65 = arith.constant 1 : index
    %c0_66 = arith.constant 0 : index
    %c0_67 = arith.constant 0 : index
    %74 = vector.load %arg4[%c1_65, %c0_66, %c0_67] : memref<3x144x128xf32, #tpu.memory_space<vmem>>, vector<1x144x128xf32>
    %75 = vector.shape_cast %74 : vector<1x144x128xf32> to vector<144x128xf32>
    %c2_68 = arith.constant 2 : index
    %c0_69 = arith.constant 0 : index
    %c0_70 = arith.constant 0 : index
    %76 = vector.load %arg4[%c2_68, %c0_69, %c0_70] : memref<3x144x128xf32, #tpu.memory_space<vmem>>, vector<1x144x128xf32>
    %77 = vector.shape_cast %76 : vector<1x144x128xf32> to vector<144x128xf32>
    %c0_71 = arith.constant 0 : index
    %c0_72 = arith.constant 0 : index
    %78 = vector.load %arg17[%c0_71, %c0_72] : memref<66x528xf32, #tpu.memory_space<vmem>>, vector<64x144xf32>
    %cst_73 = arith.constant dense<0.000000e+00> : vector<64x128xf32>
    %79 = tpu.matmul %78, %73, %cst_73 {dimension_numbers = #tpu.dot_dimension_numbers<[1], [0], [0], [1], [0, 0, 1, 1], [], []>} : vector<64x144xf32>, vector<144x128xf32>, vector<64x128xf32> -> vector<64x128xf32>
    %c1_74 = arith.constant 1 : index
    %c0_75 = arith.constant 0 : index
    %80 = vector.load %arg17[%c1_74, %c0_75] : memref<66x528xf32, #tpu.memory_space<vmem>>, vector<64x144xf32>
    %cst_76 = arith.constant dense<0.000000e+00> : vector<64x128xf32>
    %81 = tpu.matmul %80, %75, %cst_76 {dimension_numbers = #tpu.dot_dimension_numbers<[1], [0], [0], [1], [0, 0, 1, 1], [], []>} : vector<64x144xf32>, vector<144x128xf32>, vector<64x128xf32> -> vector<64x128xf32>
    %82 = arith.addf %79, %81 : vector<64x128xf32>
    %c2_77 = arith.constant 2 : index
    %c0_78 = arith.constant 0 : index
    %83 = vector.load %arg17[%c2_77, %c0_78] : memref<66x528xf32, #tpu.memory_space<vmem>>, vector<64x144xf32>
    %cst_79 = arith.constant dense<0.000000e+00> : vector<64x128xf32>
    %84 = tpu.matmul %83, %77, %cst_79 {dimension_numbers = #tpu.dot_dimension_numbers<[1], [0], [0], [1], [0, 0, 1, 1], [], []>} : vector<64x144xf32>, vector<144x128xf32>, vector<64x128xf32> -> vector<64x128xf32>
    %85 = arith.addf %82, %84 : vector<64x128xf32>
    %86 = vector.broadcast %71 : vector<1x128xf32> to vector<64x128xf32>
    %87 = arith.addf %85, %86 : vector<64x128xf32>
    %cst_80 = arith.constant 0.000000e+00 : f32
    %88 = vector.broadcast %cst_80 : f32 to vector<64x128xf32>
    %89 = arith.maximumf %87, %88 : vector<64x128xf32>
    %c0_81 = arith.constant 0 : index
    %c128_82 = arith.constant 128 : index
    %90 = vector.load %arg17[%c0_81, %c128_82] : memref<66x528xf32, #tpu.memory_space<vmem>>, vector<64x144xf32>
    %cst_83 = arith.constant dense<0.000000e+00> : vector<64x128xf32>
    %91 = tpu.matmul %90, %73, %cst_83 {dimension_numbers = #tpu.dot_dimension_numbers<[1], [0], [0], [1], [0, 0, 1, 1], [], []>} : vector<64x144xf32>, vector<144x128xf32>, vector<64x128xf32> -> vector<64x128xf32>
    %c1_84 = arith.constant 1 : index
    %c128_85 = arith.constant 128 : index
    %92 = vector.load %arg17[%c1_84, %c128_85] : memref<66x528xf32, #tpu.memory_space<vmem>>, vector<64x144xf32>
    %cst_86 = arith.constant dense<0.000000e+00> : vector<64x128xf32>
    %93 = tpu.matmul %92, %75, %cst_86 {dimension_numbers = #tpu.dot_dimension_numbers<[1], [0], [0], [1], [0, 0, 1, 1], [], []>} : vector<64x144xf32>, vector<144x128xf32>, vector<64x128xf32> -> vector<64x128xf32>
    %94 = arith.addf %91, %93 : vector<64x128xf32>
    %c2_87 = arith.constant 2 : index
    %c128_88 = arith.constant 128 : index
    %95 = vector.load %arg17[%c2_87, %c128_88] : memref<66x528xf32, #tpu.memory_space<vmem>>, vector<64x144xf32>
    %cst_89 = arith.constant dense<0.000000e+00> : vector<64x128xf32>
    %96 = tpu.matmul %95, %77, %cst_89 {dimension_numbers = #tpu.dot_dimension_numbers<[1], [0], [0], [1], [0, 0, 1, 1], [], []>} : vector<64x144xf32>, vector<144x128xf32>, vector<64x128xf32> -> vector<64x128xf32>
    %97 = arith.addf %94, %96 : vector<64x128xf32>
    %98 = vector.broadcast %71 : vector<1x128xf32> to vector<64x128xf32>
    %99 = arith.addf %97, %98 : vector<64x128xf32>
    %cst_90 = arith.constant 0.000000e+00 : f32
    %100 = vector.broadcast %cst_90 : f32 to vector<64x128xf32>
    %101 = arith.maximumf %99, %100 : vector<64x128xf32>
    %c0_91 = arith.constant 0 : index
    %c256_92 = arith.constant 256 : index
    %102 = vector.load %arg17[%c0_91, %c256_92] : memref<66x528xf32, #tpu.memory_space<vmem>>, vector<64x144xf32>
    %cst_93 = arith.constant dense<0.000000e+00> : vector<64x128xf32>
    %103 = tpu.matmul %102, %73, %cst_93 {dimension_numbers = #tpu.dot_dimension_numbers<[1], [0], [0], [1], [0, 0, 1, 1], [], []>} : vector<64x144xf32>, vector<144x128xf32>, vector<64x128xf32> -> vector<64x128xf32>
    %c1_94 = arith.constant 1 : index
    %c256_95 = arith.constant 256 : index
    %104 = vector.load %arg17[%c1_94, %c256_95] : memref<66x528xf32, #tpu.memory_space<vmem>>, vector<64x144xf32>
    %cst_96 = arith.constant dense<0.000000e+00> : vector<64x128xf32>
    %105 = tpu.matmul %104, %75, %cst_96 {dimension_numbers = #tpu.dot_dimension_numbers<[1], [0], [0], [1], [0, 0, 1, 1], [], []>} : vector<64x144xf32>, vector<144x128xf32>, vector<64x128xf32> -> vector<64x128xf32>
    %106 = arith.addf %103, %105 : vector<64x128xf32>
    %c2_97 = arith.constant 2 : index
    %c256_98 = arith.constant 256 : index
    %107 = vector.load %arg17[%c2_97, %c256_98] : memref<66x528xf32, #tpu.memory_space<vmem>>, vector<64x144xf32>
    %cst_99 = arith.constant dense<0.000000e+00> : vector<64x128xf32>
    %108 = tpu.matmul %107, %77, %cst_99 {dimension_numbers = #tpu.dot_dimension_numbers<[1], [0], [0], [1], [0, 0, 1, 1], [], []>} : vector<64x144xf32>, vector<144x128xf32>, vector<64x128xf32> -> vector<64x128xf32>
    %109 = arith.addf %106, %108 : vector<64x128xf32>
    %110 = vector.broadcast %71 : vector<1x128xf32> to vector<64x128xf32>
    %111 = arith.addf %109, %110 : vector<64x128xf32>
    %cst_100 = arith.constant 0.000000e+00 : f32
    %112 = vector.broadcast %cst_100 : f32 to vector<64x128xf32>
    %113 = arith.maximumf %111, %112 : vector<64x128xf32>
    %c0_101 = arith.constant 0 : index
    %c384_102 = arith.constant 384 : index
    %114 = vector.load %arg17[%c0_101, %c384_102] : memref<66x528xf32, #tpu.memory_space<vmem>>, vector<64x144xf32>
    %cst_103 = arith.constant dense<0.000000e+00> : vector<64x128xf32>
    %115 = tpu.matmul %114, %73, %cst_103 {dimension_numbers = #tpu.dot_dimension_numbers<[1], [0], [0], [1], [0, 0, 1, 1], [], []>} : vector<64x144xf32>, vector<144x128xf32>, vector<64x128xf32> -> vector<64x128xf32>
    %c1_104 = arith.constant 1 : index
    %c384_105 = arith.constant 384 : index
    %116 = vector.load %arg17[%c1_104, %c384_105] : memref<66x528xf32, #tpu.memory_space<vmem>>, vector<64x144xf32>
    %cst_106 = arith.constant dense<0.000000e+00> : vector<64x128xf32>
    %117 = tpu.matmul %116, %75, %cst_106 {dimension_numbers = #tpu.dot_dimension_numbers<[1], [0], [0], [1], [0, 0, 1, 1], [], []>} : vector<64x144xf32>, vector<144x128xf32>, vector<64x128xf32> -> vector<64x128xf32>
    %118 = arith.addf %115, %117 : vector<64x128xf32>
    %c2_107 = arith.constant 2 : index
    %c384_108 = arith.constant 384 : index
    %119 = vector.load %arg17[%c2_107, %c384_108] : memref<66x528xf32, #tpu.memory_space<vmem>>, vector<64x144xf32>
    %cst_109 = arith.constant dense<0.000000e+00> : vector<64x128xf32>
    %120 = tpu.matmul %119, %77, %cst_109 {dimension_numbers = #tpu.dot_dimension_numbers<[1], [0], [0], [1], [0, 0, 1, 1], [], []>} : vector<64x144xf32>, vector<144x128xf32>, vector<64x128xf32> -> vector<64x128xf32>
    %121 = arith.addf %118, %120 : vector<64x128xf32>
    %122 = vector.broadcast %71 : vector<1x128xf32> to vector<64x128xf32>
    %123 = arith.addf %121, %122 : vector<64x128xf32>
    %cst_110 = arith.constant 0.000000e+00 : f32
    %124 = vector.broadcast %cst_110 : f32 to vector<64x128xf32>
    %125 = arith.maximumf %123, %124 : vector<64x128xf32>
    %126 = tpu.concatenate %89, %101, %113, %125 in 1 : vector<64x128xf32>, vector<64x128xf32>, vector<64x128xf32>, vector<64x128xf32> -> vector<64x512xf32>
    %127 = vector.shape_cast %126 : vector<64x512xf32> to vector<32x2x512xf32>
    %cst_111 = arith.constant dense<0xFF800000> : vector<32x512xf32>
    %128 = vector.multi_reduction <maximumf>, %127, %cst_111 [1] : vector<32x2x512xf32> to vector<32x512xf32>
    %c0_112 = arith.constant 0 : index
    %c0_113 = arith.constant 0 : index
    %129 = vector.load %arg10[%c0_112, %c0_113] : memref<512x256xf32, #tpu.memory_space<vmem>>, vector<512x256xf32>
    %cst_114 = arith.constant dense<0.000000e+00> : vector<32x256xf32>
    %130 = tpu.matmul %128, %129, %cst_114 {dimension_numbers = #tpu.dot_dimension_numbers<[1], [0], [0], [1], [0, 0, 1, 1], [], []>} : vector<32x512xf32>, vector<512x256xf32>, vector<32x256xf32> -> vector<32x256xf32>
    %c0_115 = arith.constant 0 : index
    %c0_116 = arith.constant 0 : index
    %131 = vector.load %arg11[%c0_115, %c0_116] : memref<512x256xf32, #tpu.memory_space<vmem>>, vector<512x256xf32>
    %cst_117 = arith.constant dense<0.000000e+00> : vector<32x256xf32>
    %132 = tpu.matmul %128, %131, %cst_117 {dimension_numbers = #tpu.dot_dimension_numbers<[1], [0], [0], [1], [0, 0, 1, 1], [], []>} : vector<32x512xf32>, vector<512x256xf32>, vector<32x256xf32> -> vector<32x256xf32>
    %133 = arith.maximumf %130, %132 : vector<32x256xf32>
    %cst_118 = arith.constant 0.000000e+00 : f32
    %134 = vector.broadcast %cst_118 : f32 to vector<34x272xf32>
    %c0_119 = arith.constant 0 : index
    %c0_120 = arith.constant 0 : index
    %135 = vector.load %arg18[%c0_119, %c0_120] : memref<34x272xf32, #tpu.memory_space<vmem>>, vector<34x272xf32>
    tpu.vector_store %arg18[%c0_119, %c0_120], %134 {strides = array<i32>} : memref<34x272xf32, #tpu.memory_space<vmem>>, vector<34x272xf32>,
    %c1_121 = arith.constant 1 : index
    %c8_122 = arith.constant 8 : index
    %136 = vector.load %arg18[%c1_121, %c8_122] : memref<34x272xf32, #tpu.memory_space<vmem>>, vector<32x256xf32>
    tpu.vector_store %arg18[%c1_121, %c8_122], %133 {strides = array<i32>} : memref<34x272xf32, #tpu.memory_space<vmem>>, vector<32x256xf32>,
    %c0_123 = arith.constant 0 : index
    %c0_124 = arith.constant 0 : index
    %137 = vector.load %arg7[%c0_123, %c0_124] : memref<1x128xf32, #tpu.memory_space<vmem>>, vector<1x128xf32>
    %c0_125 = arith.constant 0 : index
    %c0_126 = arith.constant 0 : index
    %c0_127 = arith.constant 0 : index
    %138 = vector.load %arg6[%c0_125, %c0_126, %c0_127] : memref<3x144x128xf32, #tpu.memory_space<vmem>>, vector<1x144x128xf32>
    %139 = vector.shape_cast %138 : vector<1x144x128xf32> to vector<144x128xf32>
    %c1_128 = arith.constant 1 : index
    %c0_129 = arith.constant 0 : index
    %c0_130 = arith.constant 0 : index
    %140 = vector.load %arg6[%c1_128, %c0_129, %c0_130] : memref<3x144x128xf32, #tpu.memory_space<vmem>>, vector<1x144x128xf32>
    %141 = vector.shape_cast %140 : vector<1x144x128xf32> to vector<144x128xf32>
    %c2_131 = arith.constant 2 : index
    %c0_132 = arith.constant 0 : index
    %c0_133 = arith.constant 0 : index
    %142 = vector.load %arg6[%c2_131, %c0_132, %c0_133] : memref<3x144x128xf32, #tpu.memory_space<vmem>>, vector<1x144x128xf32>
    %143 = vector.shape_cast %142 : vector<1x144x128xf32> to vector<144x128xf32>
    %c0_134 = arith.constant 0 : index
    %c0_135 = arith.constant 0 : index
    %144 = vector.load %arg18[%c0_134, %c0_135] : memref<34x272xf32, #tpu.memory_space<vmem>>, vector<32x144xf32>
    %cst_136 = arith.constant dense<0.000000e+00> : vector<32x128xf32>
    %145 = tpu.matmul %144, %139, %cst_136 {dimension_numbers = #tpu.dot_dimension_numbers<[1], [0], [0], [1], [0, 0, 1, 1], [], []>} : vector<32x144xf32>, vector<144x128xf32>, vector<32x128xf32> -> vector<32x128xf32>
    %c1_137 = arith.constant 1 : index
    %c0_138 = arith.constant 0 : index
    %146 = vector.load %arg18[%c1_137, %c0_138] : memref<34x272xf32, #tpu.memory_space<vmem>>, vector<32x144xf32>
    %cst_139 = arith.constant dense<0.000000e+00> : vector<32x128xf32>
    %147 = tpu.matmul %146, %141, %cst_139 {dimension_numbers = #tpu.dot_dimension_numbers<[1], [0], [0], [1], [0, 0, 1, 1], [], []>} : vector<32x144xf32>, vector<144x128xf32>, vector<32x128xf32> -> vector<32x128xf32>
    %148 = arith.addf %145, %147 : vector<32x128xf32>
    %c2_140 = arith.constant 2 : index
    %c0_141 = arith.constant 0 : index
    %149 = vector.load %arg18[%c2_140, %c0_141] : memref<34x272xf32, #tpu.memory_space<vmem>>, vector<32x144xf32>
    %cst_142 = arith.constant dense<0.000000e+00> : vector<32x128xf32>
    %150 = tpu.matmul %149, %143, %cst_142 {dimension_numbers = #tpu.dot_dimension_numbers<[1], [0], [0], [1], [0, 0, 1, 1], [], []>} : vector<32x144xf32>, vector<144x128xf32>, vector<32x128xf32> -> vector<32x128xf32>
    %151 = arith.addf %148, %150 : vector<32x128xf32>
    %152 = vector.broadcast %137 : vector<1x128xf32> to vector<32x128xf32>
    %153 = arith.addf %151, %152 : vector<32x128xf32>
    %cst_143 = arith.constant 0.000000e+00 : f32
    %154 = vector.broadcast %cst_143 : f32 to vector<32x128xf32>
    %155 = arith.maximumf %153, %154 : vector<32x128xf32>
    %c0_144 = arith.constant 0 : index
    %c128_145 = arith.constant 128 : index
    %156 = vector.load %arg18[%c0_144, %c128_145] : memref<34x272xf32, #tpu.memory_space<vmem>>, vector<32x144xf32>
    %cst_146 = arith.constant dense<0.000000e+00> : vector<32x128xf32>
    %157 = tpu.matmul %156, %139, %cst_146 {dimension_numbers = #tpu.dot_dimension_numbers<[1], [0], [0], [1], [0, 0, 1, 1], [], []>} : vector<32x144xf32>, vector<144x128xf32>, vector<32x128xf32> -> vector<32x128xf32>
    %c1_147 = arith.constant 1 : index
    %c128_148 = arith.constant 128 : index
    %158 = vector.load %arg18[%c1_147, %c128_148] : memref<34x272xf32, #tpu.memory_space<vmem>>, vector<32x144xf32>
    %cst_149 = arith.constant dense<0.000000e+00> : vector<32x128xf32>
    %159 = tpu.matmul %158, %141, %cst_149 {dimension_numbers = #tpu.dot_dimension_numbers<[1], [0], [0], [1], [0, 0, 1, 1], [], []>} : vector<32x144xf32>, vector<144x128xf32>, vector<32x128xf32> -> vector<32x128xf32>
    %160 = arith.addf %157, %159 : vector<32x128xf32>
    %c2_150 = arith.constant 2 : index
    %c128_151 = arith.constant 128 : index
    %161 = vector.load %arg18[%c2_150, %c128_151] : memref<34x272xf32, #tpu.memory_space<vmem>>, vector<32x144xf32>
    %cst_152 = arith.constant dense<0.000000e+00> : vector<32x128xf32>
    %162 = tpu.matmul %161, %143, %cst_152 {dimension_numbers = #tpu.dot_dimension_numbers<[1], [0], [0], [1], [0, 0, 1, 1], [], []>} : vector<32x144xf32>, vector<144x128xf32>, vector<32x128xf32> -> vector<32x128xf32>
    %163 = arith.addf %160, %162 : vector<32x128xf32>
    %164 = vector.broadcast %137 : vector<1x128xf32> to vector<32x128xf32>
    %165 = arith.addf %163, %164 : vector<32x128xf32>
    %cst_153 = arith.constant 0.000000e+00 : f32
    %166 = vector.broadcast %cst_153 : f32 to vector<32x128xf32>
    %167 = arith.maximumf %165, %166 : vector<32x128xf32>
    %168 = tpu.concatenate %155, %167 in 1 : vector<32x128xf32>, vector<32x128xf32> -> vector<32x256xf32>
    %cst_154 = arith.constant 0.000000e+00 : f32
    %169 = vector.broadcast %cst_154 : f32 to vector<34x272xf32>
    %c0_155 = arith.constant 0 : index
    %c0_156 = arith.constant 0 : index
    %170 = vector.load %arg19[%c0_155, %c0_156] : memref<34x272xf32, #tpu.memory_space<vmem>>, vector<34x272xf32>
    tpu.vector_store %arg19[%c0_155, %c0_156], %169 {strides = array<i32>} : memref<34x272xf32, #tpu.memory_space<vmem>>, vector<34x272xf32>,
    %c1_157 = arith.constant 1 : index
    %c8_158 = arith.constant 8 : index
    %171 = vector.load %arg19[%c1_157, %c8_158] : memref<34x272xf32, #tpu.memory_space<vmem>>, vector<32x256xf32>
    tpu.vector_store %arg19[%c1_157, %c8_158], %168 {strides = array<i32>} : memref<34x272xf32, #tpu.memory_space<vmem>>, vector<32x256xf32>,
    %c0_159 = arith.constant 0 : index
    %c0_160 = arith.constant 0 : index
    %172 = vector.load %arg9[%c0_159, %c0_160] : memref<1x128xf32, #tpu.memory_space<vmem>>, vector<1x128xf32>
    %c0_161 = arith.constant 0 : index
    %c0_162 = arith.constant 0 : index
    %c0_163 = arith.constant 0 : index
    %173 = vector.load %arg8[%c0_161, %c0_162, %c0_163] : memref<3x144x128xf32, #tpu.memory_space<vmem>>, vector<1x144x128xf32>
    %174 = vector.shape_cast %173 : vector<1x144x128xf32> to vector<144x128xf32>
    %c1_164 = arith.constant 1 : index
    %c0_165 = arith.constant 0 : index
    %c0_166 = arith.constant 0 : index
    %175 = vector.load %arg8[%c1_164, %c0_165, %c0_166] : memref<3x144x128xf32, #tpu.memory_space<vmem>>, vector<1x144x128xf32>
    %176 = vector.shape_cast %175 : vector<1x144x128xf32> to vector<144x128xf32>
    %c2_167 = arith.constant 2 : index
    %c0_168 = arith.constant 0 : index
    %c0_169 = arith.constant 0 : index
    %177 = vector.load %arg8[%c2_167, %c0_168, %c0_169] : memref<3x144x128xf32, #tpu.memory_space<vmem>>, vector<1x144x128xf32>
    %178 = vector.shape_cast %177 : vector<1x144x128xf32> to vector<144x128xf32>
    %c0_170 = arith.constant 0 : index
    %c0_171 = arith.constant 0 : index
    %179 = vector.load %arg19[%c0_170, %c0_171] : memref<34x272xf32, #tpu.memory_space<vmem>>, vector<32x144xf32>
    %cst_172 = arith.constant dense<0.000000e+00> : vector<32x128xf32>
    %180 = tpu.matmul %179, %174, %cst_172 {dimension_numbers = #tpu.dot_dimension_numbers<[1], [0], [0], [1], [0, 0, 1, 1], [], []>} : vector<32x144xf32>, vector<144x128xf32>, vector<32x128xf32> -> vector<32x128xf32>
    %c1_173 = arith.constant 1 : index
    %c0_174 = arith.constant 0 : index
    %181 = vector.load %arg19[%c1_173, %c0_174] : memref<34x272xf32, #tpu.memory_space<vmem>>, vector<32x144xf32>
    %cst_175 = arith.constant dense<0.000000e+00> : vector<32x128xf32>
    %182 = tpu.matmul %181, %176, %cst_175 {dimension_numbers = #tpu.dot_dimension_numbers<[1], [0], [0], [1], [0, 0, 1, 1], [], []>} : vector<32x144xf32>, vector<144x128xf32>, vector<32x128xf32> -> vector<32x128xf32>
    %183 = arith.addf %180, %182 : vector<32x128xf32>
    %c2_176 = arith.constant 2 : index
    %c0_177 = arith.constant 0 : index
    %184 = vector.load %arg19[%c2_176, %c0_177] : memref<34x272xf32, #tpu.memory_space<vmem>>, vector<32x144xf32>
    %cst_178 = arith.constant dense<0.000000e+00> : vector<32x128xf32>
    %185 = tpu.matmul %184, %178, %cst_178 {dimension_numbers = #tpu.dot_dimension_numbers<[1], [0], [0], [1], [0, 0, 1, 1], [], []>} : vector<32x144xf32>, vector<144x128xf32>, vector<32x128xf32> -> vector<32x128xf32>
    %186 = arith.addf %183, %185 : vector<32x128xf32>
    %187 = vector.broadcast %172 : vector<1x128xf32> to vector<32x128xf32>
    %188 = arith.addf %186, %187 : vector<32x128xf32>
    %cst_179 = arith.constant 0.000000e+00 : f32
    %189 = vector.broadcast %cst_179 : f32 to vector<32x128xf32>
    %190 = arith.maximumf %188, %189 : vector<32x128xf32>
    %c0_180 = arith.constant 0 : index
    %c128_181 = arith.constant 128 : index
    %191 = vector.load %arg19[%c0_180, %c128_181] : memref<34x272xf32, #tpu.memory_space<vmem>>, vector<32x144xf32>
    %cst_182 = arith.constant dense<0.000000e+00> : vector<32x128xf32>
    %192 = tpu.matmul %191, %174, %cst_182 {dimension_numbers = #tpu.dot_dimension_numbers<[1], [0], [0], [1], [0, 0, 1, 1], [], []>} : vector<32x144xf32>, vector<144x128xf32>, vector<32x128xf32> -> vector<32x128xf32>
    %c1_183 = arith.constant 1 : index
    %c128_184 = arith.constant 128 : index
    %193 = vector.load %arg19[%c1_183, %c128_184] : memref<34x272xf32, #tpu.memory_space<vmem>>, vector<32x144xf32>
    %cst_185 = arith.constant dense<0.000000e+00> : vector<32x128xf32>
    %194 = tpu.matmul %193, %176, %cst_185 {dimension_numbers = #tpu.dot_dimension_numbers<[1], [0], [0], [1], [0, 0, 1, 1], [], []>} : vector<32x144xf32>, vector<144x128xf32>, vector<32x128xf32> -> vector<32x128xf32>
    %195 = arith.addf %192, %194 : vector<32x128xf32>
    %c2_186 = arith.constant 2 : index
    %c128_187 = arith.constant 128 : index
    %196 = vector.load %arg19[%c2_186, %c128_187] : memref<34x272xf32, #tpu.memory_space<vmem>>, vector<32x144xf32>
    %cst_188 = arith.constant dense<0.000000e+00> : vector<32x128xf32>
    %197 = tpu.matmul %196, %178, %cst_188 {dimension_numbers = #tpu.dot_dimension_numbers<[1], [0], [0], [1], [0, 0, 1, 1], [], []>} : vector<32x144xf32>, vector<144x128xf32>, vector<32x128xf32> -> vector<32x128xf32>
    %198 = arith.addf %195, %197 : vector<32x128xf32>
    %199 = vector.broadcast %172 : vector<1x128xf32> to vector<32x128xf32>
    %200 = arith.addf %198, %199 : vector<32x128xf32>
    %cst_189 = arith.constant 0.000000e+00 : f32
    %201 = vector.broadcast %cst_189 : f32 to vector<32x128xf32>
    %202 = arith.maximumf %200, %201 : vector<32x128xf32>
    %203 = tpu.concatenate %190, %202 in 1 : vector<32x128xf32>, vector<32x128xf32> -> vector<32x256xf32>
    %204 = vector.shape_cast %203 : vector<32x256xf32> to vector<16x2x256xf32>
    %cst_190 = arith.constant dense<0xFF800000> : vector<16x256xf32>
    %205 = vector.multi_reduction <maximumf>, %204, %cst_190 [1] : vector<16x2x256xf32> to vector<16x256xf32>
    %c0_191 = arith.constant 0 : index
    %c0_192 = arith.constant 0 : index
    %206 = vector.load %arg12[%c0_191, %c0_192] : memref<256x128xf32, #tpu.memory_space<vmem>>, vector<256x128xf32>
    %cst_193 = arith.constant dense<0.000000e+00> : vector<16x128xf32>
    %207 = tpu.matmul %205, %206, %cst_193 {dimension_numbers = #tpu.dot_dimension_numbers<[1], [0], [0], [1], [0, 0, 1, 1], [], []>} : vector<16x256xf32>, vector<256x128xf32>, vector<16x128xf32> -> vector<16x128xf32>
    %c0_194 = arith.constant 0 : index
    %c0_195 = arith.constant 0 : index
    %208 = vector.load %arg13[%c0_194, %c0_195] : memref<256x128xf32, #tpu.memory_space<vmem>>, vector<256x128xf32>
    %cst_196 = arith.constant dense<0.000000e+00> : vector<16x128xf32>
    %209 = tpu.matmul %205, %208, %cst_196 {dimension_numbers = #tpu.dot_dimension_numbers<[1], [0], [0], [1], [0, 0, 1, 1], [], []>} : vector<16x256xf32>, vector<256x128xf32>, vector<16x128xf32> -> vector<16x128xf32>
    %210 = arith.maximumf %207, %209 : vector<16x128xf32>
    %211 = vector.shape_cast %210 : vector<16x128xf32> to vector<1x2048xf32>
    %c0_197 = arith.constant 0 : index
    %c0_198 = arith.constant 0 : index
    %212 = vector.load %arg14[%c0_197, %c0_198] : memref<2048x10xf32, #tpu.memory_space<vmem>>, vector<2048x10xf32>
    %cst_199 = arith.constant dense<0.000000e+00> : vector<1x10xf32>
    %213 = tpu.matmul %211, %212, %cst_199 {dimension_numbers = #tpu.dot_dimension_numbers<[1], [0], [0], [1], [0, 0, 1, 1], [], []>} : vector<1x2048xf32>, vector<2048x10xf32>, vector<1x10xf32> -> vector<1x10xf32>
    %c0_200 = arith.constant 0 : index
    %c0_201 = arith.constant 0 : index
    %214 = vector.load %arg15[%c0_200, %c0_201] : memref<1x10xf32, #tpu.memory_space<vmem>>, vector<1x10xf32>
    %215 = arith.addf %213, %214 : vector<1x10xf32>
    %c0_202 = arith.constant 0 : index
    %c0_203 = arith.constant 0 : index
    %c0_204 = arith.constant 0 : index
    %216 = vector.load %arg16[%c0_202, %c0_203, %c0_204] : memref<1x1x10xf32, #tpu.memory_space<vmem>>, vector<1x1x10xf32>
    %217 = vector.shape_cast %216 : vector<1x1x10xf32> to vector<1x10xf32>
    %218 = vector.shape_cast %215 : vector<1x10xf32> to vector<1x1x10xf32>
    tpu.vector_store %arg16[%c0_202, %c0_203, %c0_204], %218 {strides = array<i32>} : memref<1x1x10xf32, #tpu.memory_space<vmem>>, vector<1x1x10xf32>,
    return
  }
  func.func @transform_0(%arg0: i32) -> (i32, i32, i32) {
    %c0_i32 = arith.constant 0 : i32
    %c0_i32_0 = arith.constant 0 : i32
    %c0_i32_1 = arith.constant 0 : i32
    return %arg0, %c0_i32, %c0_i32_0 : i32, i32, i32
  }
  func.func @transform_1(%arg0: i32) -> (i32, i32, i32) {
    %c0_i32 = arith.constant 0 : i32
    %c0_i32_0 = arith.constant 0 : i32
    %c0_i32_1 = arith.constant 0 : i32
    %c0_i32_2 = arith.constant 0 : i32
    return %c0_i32, %c0_i32_0, %c0_i32_1 : i32, i32, i32
  }
  func.func @transform_2(%arg0: i32) -> (i32, i32) {
    %c0_i32 = arith.constant 0 : i32
    %c0_i32_0 = arith.constant 0 : i32
    %c0_i32_1 = arith.constant 0 : i32
    return %c0_i32, %c0_i32_0 : i32, i32
  }
  func.func @transform_3(%arg0: i32) -> (i32, i32, i32) {
    %c0_i32 = arith.constant 0 : i32
    %c0_i32_0 = arith.constant 0 : i32
    %c0_i32_1 = arith.constant 0 : i32
    %c0_i32_2 = arith.constant 0 : i32
    return %c0_i32, %c0_i32_0, %c0_i32_1 : i32, i32, i32
  }
  func.func @transform_4(%arg0: i32) -> (i32, i32) {
    %c0_i32 = arith.constant 0 : i32
    %c0_i32_0 = arith.constant 0 : i32
    %c0_i32_1 = arith.constant 0 : i32
    return %c0_i32, %c0_i32_0 : i32, i32
  }
  func.func @transform_5(%arg0: i32) -> (i32, i32, i32) {
    %c0_i32 = arith.constant 0 : i32
    %c0_i32_0 = arith.constant 0 : i32
    %c0_i32_1 = arith.constant 0 : i32
    %c0_i32_2 = arith.constant 0 : i32
    return %c0_i32, %c0_i32_0, %c0_i32_1 : i32, i32, i32
  }
  func.func @transform_6(%arg0: i32) -> (i32, i32) {
    %c0_i32 = arith.constant 0 : i32
    %c0_i32_0 = arith.constant 0 : i32
    %c0_i32_1 = arith.constant 0 : i32
    return %c0_i32, %c0_i32_0 : i32, i32
  }
  func.func @transform_7(%arg0: i32) -> (i32, i32, i32) {
    %c0_i32 = arith.constant 0 : i32
    %c0_i32_0 = arith.constant 0 : i32
    %c0_i32_1 = arith.constant 0 : i32
    %c0_i32_2 = arith.constant 0 : i32
    return %c0_i32, %c0_i32_0, %c0_i32_1 : i32, i32, i32
  }
  func.func @transform_8(%arg0: i32) -> (i32, i32) {
    %c0_i32 = arith.constant 0 : i32
    %c0_i32_0 = arith.constant 0 : i32
    %c0_i32_1 = arith.constant 0 : i32
    return %c0_i32, %c0_i32_0 : i32, i32
  }
  func.func @transform_9(%arg0: i32) -> (i32, i32) {
    %c0_i32 = arith.constant 0 : i32
    %c0_i32_0 = arith.constant 0 : i32
    %c0_i32_1 = arith.constant 0 : i32
    return %c0_i32, %c0_i32_0 : i32, i32
  }
  func.func @transform_10(%arg0: i32) -> (i32, i32) {
    %c0_i32 = arith.constant 0 : i32
    %c0_i32_0 = arith.constant 0 : i32
    %c0_i32_1 = arith.constant 0 : i32
    return %c0_i32, %c0_i32_0 : i32, i32
  }
  func.func @transform_11(%arg0: i32) -> (i32, i32) {
    %c0_i32 = arith.constant 0 : i32
    %c0_i32_0 = arith.constant 0 : i32
    %c0_i32_1 = arith.constant 0 : i32
    return %c0_i32, %c0_i32_0 : i32, i32
  }
  func.func @transform_12(%arg0: i32) -> (i32, i32) {
    %c0_i32 = arith.constant 0 : i32
    %c0_i32_0 = arith.constant 0 : i32
    %c0_i32_1 = arith.constant 0 : i32
    return %c0_i32, %c0_i32_0 : i32, i32
  }
  func.func @transform_13(%arg0: i32) -> (i32, i32) {
    %c0_i32 = arith.constant 0 : i32
    %c0_i32_0 = arith.constant 0 : i32
    %c0_i32_1 = arith.constant 0 : i32
    return %c0_i32, %c0_i32_0 : i32, i32
  }
  func.func @transform_14(%arg0: i32) -> (i32, i32) {
    %c0_i32 = arith.constant 0 : i32
    %c0_i32_0 = arith.constant 0 : i32
    %c0_i32_1 = arith.constant 0 : i32
    return %c0_i32, %c0_i32_0 : i32, i32
  }
  func.func @transform_15(%arg0: i32) -> (i32, i32, i32) {
    %c0_i32 = arith.constant 0 : i32
    %c0_i32_0 = arith.constant 0 : i32
    %c0_i32_1 = arith.constant 0 : i32
    return %arg0, %c0_i32, %c0_i32_0 : i32, i32, i32
  }
}

</mosaic_0001>

<llo_original>
// kernel: tiny_vgg_forward.1
$region0: #{tiny_vgg_forward.1}
  #allocation0 [shape = 'u32[]', space=smem, size = 0x4, offset = 0x4, fixed_abs, tag = 'smem constant byte address 0x4 - core index']
  #allocation1 [shape = 'u32[144,128]{1,0:T(1,128)}', space=vmem, size = 0x12000, scoped, tag = 'internal scratch']
  #allocation2 [shape = 'f32[66,528]{1,0:T(8,128)}', space=vmem, size = 0x2d000, scoped, tag = 'scratch operand']
  #allocation3 [shape = 'f32[34,272]{1,0:T(8,128)}', space=vmem, size = 0xf000, scoped, tag = 'scratch operand']
  #allocation4 [shape = 'f32[34,272]{1,0:T(8,128)}', space=vmem, size = 0xf000, scoped, tag = 'scratch operand']
  %s0 = inlined_call_operand.vmem [shape: f32[2,66,528], index: 0, kind: input, shape index: {}]
  %s1 = inlined_call_operand.vmem [shape: f32[3,144,128], index: 1, kind: input, shape index: {}]
  %s2 = inlined_call_operand.vmem [shape: f32[1,128], index: 2, kind: input, shape index: {}]
  %s3 = inlined_call_operand.vmem [shape: f32[3,144,128], index: 3, kind: input, shape index: {}]
  %s4 = inlined_call_operand.vmem [shape: f32[1,128], index: 4, kind: input, shape index: {}]
  %s5 = inlined_call_operand.vmem [shape: f32[3,144,128], index: 5, kind: input, shape index: {}]
  %s6 = inlined_call_operand.vmem [shape: f32[1,128], index: 6, kind: input, shape index: {}]
  %s7 = inlined_call_operand.vmem [shape: f32[3,144,128], index: 7, kind: input, shape index: {}]
  %s8 = inlined_call_operand.vmem [shape: f32[1,128], index: 8, kind: input, shape index: {}]
  %s9 = inlined_call_operand.vmem [shape: f32[512,256], index: 9, kind: input, shape index: {}]
  %s10 = inlined_call_operand.vmem [shape: f32[512,256], index: 10, kind: input, shape index: {}]
  %s11 = inlined_call_operand.vmem [shape: f32[256,128], index: 11, kind: input, shape index: {}]
  %s12 = inlined_call_operand.vmem [shape: f32[256,128], index: 12, kind: input, shape index: {}]
  %s13 = inlined_call_operand.vmem [shape: f32[2048,10], index: 13, kind: input, shape index: {}]
  %s14 = inlined_call_operand.vmem [shape: f32[1,10], index: 14, kind: input, shape index: {}]
  %s15 = inlined_call_operand.hbm [shape: f32[2,1,10], index: 15, kind: output, shape index: {}]
  %s16 = sld [smem:[#allocation0]]
  $region93: #{tiny_vgg_forward.1} parent=0
    _
  %s18 = ssub.s32 1, %s16
  %s19 = scalar_select 0, %s18, %s16
  $region1: #{tiny_vgg_forward.1} parent=0
    #allocation5 [shape = 'u8[1024]{0}', space=vmem, size = 0x400, scoped, tag = 'output window, operand 0']
    #allocation6 [shape = 's32[2]{0}', space=sflag, size = 0x8, scoped, tag = 'scoped memory for tiny_vgg_forward.1']
    %20 = vsyncpa [#allocation6], 0
    %s21 = scalar_lea.sflag [#allocation6], 1
    %22 = vsyncpa %s21, 0
    loop: start=0, step=1, limit=4
    $region2: #{tiny_vgg_forward.1} parent=1 // loop_pre_header
      _
    $region3: #{tiny_vgg_forward.1} parent=1 // loop_header
      %s24 = sphi 0, %s28
      %p25 = scmp.ge.s32.totalorder %s24, 4
      %s34 = sphi 0, %s36
      %s37 = sphi 0, %s34
      %s38 = sphi 0, %s37
      %s54 = sphi 0, %s38
      %s58 = sphi 0, %s58
      %s60 = sphi 0, %s58
      %s61 = sphi 0, %s60
      %s75 = sphi 0, %s61
      %s79 = sphi 0, %s79
      %s81 = sphi 0, %s79
      %s82 = sphi 0, %s81
      %s96 = sphi 0, %s82
      %s100 = sphi 0, %s100
      %s102 = sphi 0, %s100
      %s103 = sphi 0, %s102
      %s117 = sphi 0, %s103
      %s121 = sphi 0, %s121
      %s123 = sphi 0, %s121
      %s124 = sphi 0, %s123
      %s138 = sphi 0, %s124
      %s142 = sphi 0, %s142
      %s144 = sphi 0, %s142
      %s145 = sphi 0, %s144
      %s159 = sphi 0, %s145
      %s163 = sphi 0, %s163
      %s165 = sphi 0, %s163
      %s166 = sphi 0, %s165
      %s180 = sphi 0, %s166
      %s184 = sphi 0, %s184
      %s186 = sphi 0, %s184
      %s187 = sphi 0, %s186
      %s201 = sphi 0, %s187
      %s205 = sphi 0, %s205
      %s207 = sphi 0, %s205
      %s208 = sphi 0, %s207
      %s222 = sphi 0, %s208
      %s226 = sphi 0, %s226
      %s228 = sphi 0, %s226
      %s229 = sphi 0, %s228
      %s243 = sphi 0, %s229
      %s247 = sphi 0, %s247
      %s249 = sphi 0, %s247
      %s250 = sphi 0, %s249
      %s264 = sphi 0, %s250
      %s268 = sphi 0, %s268
      %s270 = sphi 0, %s268
      %s271 = sphi 0, %s270
      %s285 = sphi 0, %s271
      %s289 = sphi 0, %s289
      %s291 = sphi 0, %s289
      %s292 = sphi 0, %s291
      %s306 = sphi 0, %s292
      %s310 = sphi 0, %s310
      %s312 = sphi 0, %s310
      %s313 = sphi 0, %s312
      %s327 = sphi 0, %s313
      %s331 = sphi 0, %s331
      %s333 = sphi 0, %s331
      %s334 = sphi 0, %s333
      %s348 = sphi 0, %s334
      %s354 = sphi 0, %s356
      %s357 = sphi 0, %s354
      %s358 = sphi 0, %s357
      %s374 = sphi 0, %s358
    $region4: #{tiny_vgg_forward.1} parent=1 // loop_header_branch
      %27 = sbr.rel (%p25) target = $region8
    $region5: #{tiny_vgg_forward.1} parent=1 // loop_body
      %s29 = ssub.s32 %s24, 1
      %s30 = ssub.s32 %s24, 2
      %s31 = sadd.s32 %s24, 1
      %s32 = ssub.s32 %s24, %s31
      %p33 = scmp.eq.s32.totalorder %s32, 0
      %s35 = sadd.s32 %s34, 1
      %s36 = scalar_select %p33, %s34, %s35
      %p39 = pneg %p33
      %p40 = scmp.eq.s32.totalorder %s24, 1
      %p41 = por %p39, %p40
      %p42 = scmp.ne.s32.totalorder %s34, %s37
      %p43 = scmp.eq.s32.totalorder %s24, 0
      %p44 = por %p42, %p43
      %p45 = scmp.ne.s32.totalorder %s34, %s37
      %p46 = scmp.eq.s32.totalorder %s29, 1
      %p47 = por %p45, %p46
      %p48 = scmp.ne.s32.totalorder %s37, %s38
      %p49 = scmp.eq.s32.totalorder %s29, 0
      %p50 = por %p48, %p49
      %p51 = scmp.ne.s32.totalorder %s37, %s38
      %p52 = scmp.eq.s32.totalorder %s30, 1
      %p53 = por %p51, %p52
      %p55 = scmp.ne.s32.totalorder %s38, %s54
      %p56 = scmp.eq.s32.totalorder %s30, 0
      %p57 = por %p55, %p56
      %s59 = sadd.s32 %s58, 1
      %p62 = scmp.eq.s32.totalorder %s24, 1
      %p63 = scmp.ne.s32.totalorder %s58, %s60
      %p64 = scmp.eq.s32.totalorder %s24, 0
      %p65 = por %p63, %p64
      %p66 = scmp.ne.s32.totalorder %s58, %s60
      %p67 = scmp.eq.s32.totalorder %s29, 1
      %p68 = por %p66, %p67
      %p69 = scmp.ne.s32.totalorder %s60, %s61
      %p70 = scmp.eq.s32.totalorder %s29, 0
      %p71 = por %p69, %p70
      %p72 = scmp.ne.s32.totalorder %s60, %s61
      %p73 = scmp.eq.s32.totalorder %s30, 1
      %p74 = por %p72, %p73
      %p76 = scmp.ne.s32.totalorder %s61, %s75
      %p77 = scmp.eq.s32.totalorder %s30, 0
      %p78 = por %p76, %p77
      %s80 = sadd.s32 %s79, 1
      %p83 = scmp.eq.s32.totalorder %s24, 1
      %p84 = scmp.ne.s32.totalorder %s79, %s81
      %p85 = scmp.eq.s32.totalorder %s24, 0
      %p86 = por %p84, %p85
      %p87 = scmp.ne.s32.totalorder %s79, %s81
      %p88 = scmp.eq.s32.totalorder %s29, 1
      %p89 = por %p87, %p88
      %p90 = scmp.ne.s32.totalorder %s81, %s82
      %p91 = scmp.eq.s32.totalorder %s29, 0
      %p92 = por %p90, %p91
      %p93 = scmp.ne.s32.totalorder %s81, %s82
      %p94 = scmp.eq.s32.totalorder %s30, 1
      %p95 = por %p93, %p94
      %p97 = scmp.ne.s32.totalorder %s82, %s96
      %p98 = scmp.eq.s32.totalorder %s30, 0
      %p99 = por %p97, %p98
      %s101 = sadd.s32 %s100, 1
      %p104 = scmp.eq.s32.totalorder %s24, 1
      %p105 = scmp.ne.s32.totalorder %s100, %s102
      %p106 = scmp.eq.s32.totalorder %s24, 0
      %p107 = por %p105, %p106
      %p108 = scmp.ne.s32.totalorder %s100, %s102
      %p109 = scmp.eq.s32.totalorder %s29, 1
      %p110 = por %p108, %p109
      %p111 = scmp.ne.s32.totalorder %s102, %s103
      %p112 = scmp.eq.s32.totalorder %s29, 0
      %p113 = por %p111, %p112
      %p114 = scmp.ne.s32.totalorder %s102, %s103
      %p115 = scmp.eq.s32.totalorder %s30, 1
      %p116 = por %p114, %p115
      %p118 = scmp.ne.s32.totalorder %s103, %s117
      %p119 = scmp.eq.s32.totalorder %s30, 0
      %p120 = por %p118, %p119
      %s122 = sadd.s32 %s121, 1
      %p125 = scmp.eq.s32.totalorder %s24, 1
      %p126 = scmp.ne.s32.totalorder %s121, %s123
      %p127 = scmp.eq.s32.totalorder %s24, 0
      %p128 = por %p126, %p127
      %p129 = scmp.ne.s32.totalorder %s121, %s123
      %p130 = scmp.eq.s32.totalorder %s29, 1
      %p131 = por %p129, %p130
      %p132 = scmp.ne.s32.totalorder %s123, %s124
      %p133 = scmp.eq.s32.totalorder %s29, 0
      %p134 = por %p132, %p133
      %p135 = scmp.ne.s32.totalorder %s123, %s124
      %p136 = scmp.eq.s32.totalorder %s30, 1
      %p137 = por %p135, %p136
      %p139 = scmp.ne.s32.totalorder %s124, %s138
      %p140 = scmp.eq.s32.totalorder %s30, 0
      %p141 = por %p139, %p140
      %s143 = sadd.s32 %s142, 1
      %p146 = scmp.eq.s32.totalorder %s24, 1
      %p147 = scmp.ne.s32.totalorder %s142, %s144
      %p148 = scmp.eq.s32.totalorder %s24, 0
      %p149 = por %p147, %p148
      %p150 = scmp.ne.s32.totalorder %s142, %s144
      %p151 = scmp.eq.s32.totalorder %s29, 1
      %p152 = por %p150, %p151
      %p153 = scmp.ne.s32.totalorder %s144, %s145
      %p154 = scmp.eq.s32.totalorder %s29, 0
      %p155 = por %p153, %p154
      %p156 = scmp.ne.s32.totalorder %s144, %s145
      %p157 = scmp.eq.s32.totalorder %s30, 1
      %p158 = por %p156, %p157
      %p160 = scmp.ne.s32.totalorder %s145, %s159
      %p161 = scmp.eq.s32.totalorder %s30, 0
      %p162 = por %p160, %p161
      %s164 = sadd.s32 %s163, 1
      %p167 = scmp.eq.s32.totalorder %s24, 1
      %p168 = scmp.ne.s32.totalorder %s163, %s165
      %p169 = scmp.eq.s32.totalorder %s24, 0
      %p170 = por %p168, %p169
      %p171 = scmp.ne.s32.totalorder %s163, %s165
      %p172 = scmp.eq.s32.totalorder %s29, 1
      %p173 = por %p171, %p172
      %p174 = scmp.ne.s32.totalorder %s165, %s166
      %p175 = scmp.eq.s32.totalorder %s29, 0
      %p176 = por %p174, %p175
      %p177 = scmp.ne.s32.totalorder %s165, %s166
      %p178 = scmp.eq.s32.totalorder %s30, 1
      %p179 = por %p177, %p178
      %p181 = scmp.ne.s32.totalorder %s166, %s180
      %p182 = scmp.eq.s32.totalorder %s30, 0
      %p183 = por %p181, %p182
      %s185 = sadd.s32 %s184, 1
      %p188 = scmp.eq.s32.totalorder %s24, 1
      %p189 = scmp.ne.s32.totalorder %s184, %s186
      %p190 = scmp.eq.s32.totalorder %s24, 0
      %p191 = por %p189, %p190
      %p192 = scmp.ne.s32.totalorder %s184, %s186
      %p193 = scmp.eq.s32.totalorder %s29, 1
      %p194 = por %p192, %p193
      %p195 = scmp.ne.s32.totalorder %s186, %s187
      %p196 = scmp.eq.s32.totalorder %s29, 0
      %p197 = por %p195, %p196
      %p198 = scmp.ne.s32.totalorder %s186, %s187
      %p199 = scmp.eq.s32.totalorder %s30, 1
      %p200 = por %p198, %p199
      %p202 = scmp.ne.s32.totalorder %s187, %s201
      %p203 = scmp.eq.s32.totalorder %s30, 0
      %p204 = por %p202, %p203
      %s206 = sadd.s32 %s205, 1
      %p209 = scmp.eq.s32.totalorder %s24, 1
      %p210 = scmp.ne.s32.totalorder %s205, %s207
      %p211 = scmp.eq.s32.totalorder %s24, 0
      %p212 = por %p210, %p211
      %p213 = scmp.ne.s32.totalorder %s205, %s207
      %p214 = scmp.eq.s32.totalorder %s29, 1
      %p215 = por %p213, %p214
      %p216 = scmp.ne.s32.totalorder %s207, %s208
      %p217 = scmp.eq.s32.totalorder %s29, 0
      %p218 = por %p216, %p217
      %p219 = scmp.ne.s32.totalorder %s207, %s208
      %p220 = scmp.eq.s32.totalorder %s30, 1
      %p221 = por %p219, %p220
      %p223 = scmp.ne.s32.totalorder %s208, %s222
      %p224 = scmp.eq.s32.totalorder %s30, 0
      %p225 = por %p223, %p224
      %s227 = sadd.s32 %s226, 1
      %p230 = scmp.eq.s32.totalorder %s24, 1
      %p231 = scmp.ne.s32.totalorder %s226, %s228
      %p232 = scmp.eq.s32.totalorder %s24, 0
      %p233 = por %p231, %p232
      %p234 = scmp.ne.s32.totalorder %s226, %s228
      %p235 = scmp.eq.s32.totalorder %s29, 1
      %p236 = por %p234, %p235
      %p237 = scmp.ne.s32.totalorder %s228, %s229
      %p238 = scmp.eq.s32.totalorder %s29, 0
      %p239 = por %p237, %p238
      %p240 = scmp.ne.s32.totalorder %s228, %s229
      %p241 = scmp.eq.s32.totalorder %s30, 1
      %p242 = por %p240, %p241
      %p244 = scmp.ne.s32.totalorder %s229, %s243
      %p245 = scmp.eq.s32.totalorder %s30, 0
      %p246 = por %p244, %p245
      %s248 = sadd.s32 %s247, 1
      %p251 = scmp.eq.s32.totalorder %s24, 1
      %p252 = scmp.ne.s32.totalorder %s247, %s249
      %p253 = scmp.eq.s32.totalorder %s24, 0
      %p254 = por %p252, %p253
      %p255 = scmp.ne.s32.totalorder %s247, %s249
      %p256 = scmp.eq.s32.totalorder %s29, 1
      %p257 = por %p255, %p256
      %p258 = scmp.ne.s32.totalorder %s249, %s250
      %p259 = scmp.eq.s32.totalorder %s29, 0
      %p260 = por %p258, %p259
      %p261 = scmp.ne.s32.totalorder %s249, %s250
      %p262 = scmp.eq.s32.totalorder %s30, 1
      %p263 = por %p261, %p262
      %p265 = scmp.ne.s32.totalorder %s250, %s264
      %p266 = scmp.eq.s32.totalorder %s30, 0
      %p267 = por %p265, %p266
      %s269 = sadd.s32 %s268, 1
      %p272 = scmp.eq.s32.totalorder %s24, 1
      %p273 = scmp.ne.s32.totalorder %s268, %s270
      %p274 = scmp.eq.s32.totalorder %s24, 0
      %p275 = por %p273, %p274
      %p276 = scmp.ne.s32.totalorder %s268, %s270
      %p277 = scmp.eq.s32.totalorder %s29, 1
      %p278 = por %p276, %p277
      %p279 = scmp.ne.s32.totalorder %s270, %s271
      %p280 = scmp.eq.s32.totalorder %s29, 0
      %p281 = por %p279, %p280
      %p282 = scmp.ne.s32.totalorder %s270, %s271
      %p283 = scmp.eq.s32.totalorder %s30, 1
      %p284 = por %p282, %p283
      %p286 = scmp.ne.s32.totalorder %s271, %s285
      %p287 = scmp.eq.s32.totalorder %s30, 0
      %p288 = por %p286, %p287
      %s290 = sadd.s32 %s289, 1
      %p293 = scmp.eq.s32.totalorder %s24, 1
      %p294 = scmp.ne.s32.totalorder %s289, %s291
      %p295 = scmp.eq.s32.totalorder %s24, 0
      %p296 = por %p294, %p295
      %p297 = scmp.ne.s32.totalorder %s289, %s291
      %p298 = scmp.eq.s32.totalorder %s29, 1
      %p299 = por %p297, %p298
      %p300 = scmp.ne.s32.totalorder %s291, %s292
      %p301 = scmp.eq.s32.totalorder %s29, 0
      %p302 = por %p300, %p301
      %p303 = scmp.ne.s32.totalorder %s291, %s292
      %p304 = scmp.eq.s32.totalorder %s30, 1
      %p305 = por %p303, %p304
      %p307 = scmp.ne.s32.totalorder %s292, %s306
      %p308 = scmp.eq.s32.totalorder %s30, 0
      %p309 = por %p307, %p308
      %s311 = sadd.s32 %s310, 1
      %p314 = scmp.eq.s32.totalorder %s24, 1
      %p315 = scmp.ne.s32.totalorder %s310, %s312
      %p316 = scmp.eq.s32.totalorder %s24, 0
      %p317 = por %p315, %p316
      %p318 = scmp.ne.s32.totalorder %s310, %s312
      %p319 = scmp.eq.s32.totalorder %s29, 1
      %p320 = por %p318, %p319
      %p321 = scmp.ne.s32.totalorder %s312, %s313
      %p322 = scmp.eq.s32.totalorder %s29, 0
      %p323 = por %p321, %p322
      %p324 = scmp.ne.s32.totalorder %s312, %s313
      %p325 = scmp.eq.s32.totalorder %s30, 1
      %p326 = por %p324, %p325
      %p328 = scmp.ne.s32.totalorder %s313, %s327
      %p329 = scmp.eq.s32.totalorder %s30, 0
      %p330 = por %p328, %p329
      %s332 = sadd.s32 %s331, 1
      %p335 = scmp.eq.s32.totalorder %s24, 1
      %p336 = scmp.ne.s32.totalorder %s331, %s333
      %p337 = scmp.eq.s32.totalorder %s24, 0
      %p338 = por %p336, %p337
      %p339 = scmp.ne.s32.totalorder %s331, %s333
      %p340 = scmp.eq.s32.totalorder %s29, 1
      %p341 = por %p339, %p340
      %p342 = scmp.ne.s32.totalorder %s333, %s334
      %p343 = scmp.eq.s32.totalorder %s29, 0
      %p344 = por %p342, %p343
      %p345 = scmp.ne.s32.totalorder %s333, %s334
      %p346 = scmp.eq.s32.totalorder %s30, 1
      %p347 = por %p345, %p346
      %p349 = scmp.ne.s32.totalorder %s334, %s348
      %p350 = scmp.eq.s32.totalorder %s30, 0
      %p351 = por %p349, %p350
      %s352 = ssub.s32 %s24, %s31
      %p353 = scmp.eq.s32.totalorder %s352, 0
      %s355 = sadd.s32 %s354, 1
      %s356 = scalar_select %p353, %s354, %s355
      %p359 = pneg %p353
      %p360 = scmp.eq.s32.totalorder %s24, 1
      %p361 = por %p359, %p360
      %p362 = scmp.ne.s32.totalorder %s354, %s357
      %p363 = scmp.eq.s32.totalorder %s24, 0
      %p364 = por %p362, %p363
      %p365 = scmp.ne.s32.totalorder %s354, %s357
      %p366 = scmp.eq.s32.totalorder %s29, 1
      %p367 = por %p365, %p366
      %p368 = scmp.ne.s32.totalorder %s357, %s358
      %p369 = scmp.eq.s32.totalorder %s29, 0
      %p370 = por %p368, %p369
      %p371 = scmp.ne.s32.totalorder %s357, %s358
      %p372 = scmp.eq.s32.totalorder %s30, 1
      %p373 = por %p371, %p372
      %p375 = scmp.ne.s32.totalorder %s358, %s374
      %p376 = scmp.eq.s32.totalorder %s30, 0
      %p377 = por %p375, %p376
      %p378 = scmp.le.s32.totalorder 1, %s24
      %p379 = scmp.lt.s32.totalorder %s24, 3
      %p380 = pnand %p378, %p379
      %p381 = pneg %p380
      // Predicated region
      $region9: #{tiny_vgg_forward.1} parent=5 // pred_check
        _
      $region10: #{tiny_vgg_forward.1} parent=5 // pred_check_branch
        %383 = sbr.rel (%p380) target = $region12
      $region11: #{tiny_vgg_forward.1} parent=5 // pred_region
        %s384 = ssub.s32 %s24, 1
        // Predicated region
        $region13: #{tiny_vgg_forward.1} parent=11 // pred_check
          %p385 = pneg %p71
        $region14: #{tiny_vgg_forward.1} parent=11 // pred_check_branch
          %387 = sbr.rel (%p385) target = $region16
        $region15: #{tiny_vgg_forward.1} parent=11 // pred_region
          _
        $region16: #{tiny_vgg_forward.1} parent=11 // pred_fallthru
          _
        // Predicated region
        $region17: #{tiny_vgg_forward.1} parent=11 // pred_check
          %p388 = pneg %p92
        $region18: #{tiny_vgg_forward.1} parent=11 // pred_check_branch
          %390 = sbr.rel (%p388) target = $region20
        $region19: #{tiny_vgg_forward.1} parent=11 // pred_region
          _
        $region20: #{tiny_vgg_forward.1} parent=11 // pred_fallthru
          _
        // Predicated region
        $region21: #{tiny_vgg_forward.1} parent=11 // pred_check
          %p391 = pneg %p113
        $region22: #{tiny_vgg_forward.1} parent=11 // pred_check_branch
          %393 = sbr.rel (%p391) target = $region24
        $region23: #{tiny_vgg_forward.1} parent=11 // pred_region
          _
        $region24: #{tiny_vgg_forward.1} parent=11 // pred_fallthru
          _
        // Predicated region
        $region25: #{tiny_vgg_forward.1} parent=11 // pred_check
          %p394 = pneg %p134
        $region26: #{tiny_vgg_forward.1} parent=11 // pred_check_branch
          %396 = sbr.rel (%p394) target = $region28
        $region27: #{tiny_vgg_forward.1} parent=11 // pred_region
          _
        $region28: #{tiny_vgg_forward.1} parent=11 // pred_fallthru
          _
        // Predicated region
        $region29: #{tiny_vgg_forward.1} parent=11 // pred_check
          %p397 = pneg %p155
        $region30: #{tiny_vgg_forward.1} parent=11 // pred_check_branch
          %399 = sbr.rel (%p397) target = $region32
        $region31: #{tiny_vgg_forward.1} parent=11 // pred_region
          _
        $region32: #{tiny_vgg_forward.1} parent=11 // pred_fallthru
          _
        // Predicated region
        $region33: #{tiny_vgg_forward.1} parent=11 // pred_check
          %p400 = pneg %p176
        $region34: #{tiny_vgg_forward.1} parent=11 // pred_check_branch
          %402 = sbr.rel (%p400) target = $region36
        $region35: #{tiny_vgg_forward.1} parent=11 // pred_region
          _
        $region36: #{tiny_vgg_forward.1} parent=11 // pred_fallthru
          _
        // Predicated region
        $region37: #{tiny_vgg_forward.1} parent=11 // pred_check
          %p403 = pneg %p197
        $region38: #{tiny_vgg_forward.1} parent=11 // pred_check_branch
          %405 = sbr.rel (%p403) target = $region40
        $region39: #{tiny_vgg_forward.1} parent=11 // pred_region
          _
        $region40: #{tiny_vgg_forward.1} parent=11 // pred_fallthru
          _
        // Predicated region
        $region41: #{tiny_vgg_forward.1} parent=11 // pred_check
          %p406 = pneg %p218
        $region42: #{tiny_vgg_forward.1} parent=11 // pred_check_branch
          %408 = sbr.rel (%p406) target = $region44
        $region43: #{tiny_vgg_forward.1} parent=11 // pred_region
          _
        $region44: #{tiny_vgg_forward.1} parent=11 // pred_fallthru
          _
        // Predicated region
        $region45: #{tiny_vgg_forward.1} parent=11 // pred_check
          %p409 = pneg %p239
        $region46: #{tiny_vgg_forward.1} parent=11 // pred_check_branch
          %411 = sbr.rel (%p409) target = $region48
        $region47: #{tiny_vgg_forward.1} parent=11 // pred_region
          _
        $region48: #{tiny_vgg_forward.1} parent=11 // pred_fallthru
          _
        // Predicated region
        $region49: #{tiny_vgg_forward.1} parent=11 // pred_check
          %p412 = pneg %p260
        $region50: #{tiny_vgg_forward.1} parent=11 // pred_check_branch
          %414 = sbr.rel (%p412) target = $region52
        $region51: #{tiny_vgg_forward.1} parent=11 // pred_region
          _
        $region52: #{tiny_vgg_forward.1} parent=11 // pred_fallthru
          _
        // Predicated region
        $region53: #{tiny_vgg_forward.1} parent=11 // pred_check
          %p415 = pneg %p281
        $region54: #{tiny_vgg_forward.1} parent=11 // pred_check_branch
          %417 = sbr.rel (%p415) target = $region56
        $region55: #{tiny_vgg_forward.1} parent=11 // pred_region
          _
        $region56: #{tiny_vgg_forward.1} parent=11 // pred_fallthru
          _
        // Predicated region
        $region57: #{tiny_vgg_forward.1} parent=11 // pred_check
          %p418 = pneg %p302
        $region58: #{tiny_vgg_forward.1} parent=11 // pred_check_branch
          %420 = sbr.rel (%p418) target = $region60
        $region59: #{tiny_vgg_forward.1} parent=11 // pred_region
          _
        $region60: #{tiny_vgg_forward.1} parent=11 // pred_fallthru
          _
        // Predicated region
        $region61: #{tiny_vgg_forward.1} parent=11 // pred_check
          %p421 = pneg %p323
        $region62: #{tiny_vgg_forward.1} parent=11 // pred_check_branch
          %423 = sbr.rel (%p421) target = $region64
        $region63: #{tiny_vgg_forward.1} parent=11 // pred_region
          _
        $region64: #{tiny_vgg_forward.1} parent=11 // pred_fallthru
          _
        // Predicated region
        $region65: #{tiny_vgg_forward.1} parent=11 // pred_check
          %p424 = pneg %p344
        $region66: #{tiny_vgg_forward.1} parent=11 // pred_check_branch
          %426 = sbr.rel (%p424) target = $region68
        $region67: #{tiny_vgg_forward.1} parent=11 // pred_region
          _
        $region68: #{tiny_vgg_forward.1} parent=11 // pred_fallthru
          _
      $region12: #{tiny_vgg_forward.1} parent=5 // pred_fallthru
        _
      %p427 = scmp.lt.s32.totalorder %s24, 2
      // Predicated region
      $region69: #{tiny_vgg_forward.1} parent=5 // pred_check
        %p428 = pneg %p427
      $region70: #{tiny_vgg_forward.1} parent=5 // pred_check_branch
        %430 = sbr.rel (%p428) target = $region72
      $region71: #{tiny_vgg_forward.1} parent=5 // pred_region
        // Predicated region
        $region73: #{tiny_vgg_forward.1} parent=71 // pred_check
          %p431 = pneg %p44
        $region74: #{tiny_vgg_forward.1} parent=71 // pred_check_branch
          %433 = sbr.rel (%p431) target = $region76
        $region75: #{tiny_vgg_forward.1} parent=71 // pred_region
          %p434 = scmp.lt.s32.totalorder %s24, 1
          %s435 = scalar_select %p434, %s24, 1
          %s436 = smul.addr %s435, 45
          %s437 = smul.addr %s436, 8
          %s438 = scalar_lea.vmem %s0, %s437
        $region76: #{tiny_vgg_forward.1} parent=71 // pred_fallthru
          _
      $region72: #{tiny_vgg_forward.1} parent=5 // pred_fallthru
        _
      %p439 = scmp.le.s32.totalorder 1, %s24
      %p440 = scmp.lt.s32.totalorder %s24, 3
      %p441 = pnand %p439, %p440
      %p442 = pneg %p441
      // Predicated region
      $region77: #{tiny_vgg_forward.1} parent=5 // pred_check
        _
      $region78: #{tiny_vgg_forward.1} parent=5 // pred_check_branch
        %444 = sbr.rel (%p441) target = $region80
      $region79: #{tiny_vgg_forward.1} parent=5 // pred_region
        %s445 = ssub.s32 %s24, 1
        %p446 = scmp.lt.s32.totalorder %s29, 1
        %s447 = scalar_select %p446, %s29, 1
        %s448 = smul.addr %s447, 45
        %s449 = smul.addr %s448, 8
        %s450 = scalar_lea.vmem %s0, %s449
        %p451 = pneg %p50
        %p452 = pneg %p47
        %p453 = pneg %p71
        %p454 = pneg %p68
        %p455 = pneg %p92
        %p456 = pneg %p89
        %p457 = pneg %p113
        %p458 = pneg %p110
        %p459 = pneg %p134
        %p460 = pneg %p131
        %p461 = pneg %p155
        %p462 = pneg %p152
        %p463 = pneg %p176
        %p464 = pneg %p173
        %p465 = pneg %p197
        %p466 = pneg %p194
        %p467 = pneg %p218
        %p468 = pneg %p215
        %p469 = pneg %p239
        %p470 = pneg %p236
        %p471 = pneg %p260
        %p472 = pneg %p257
        %p473 = pneg %p281
        %p474 = pneg %p278
        %p475 = pneg %p302
        %p476 = pneg %p299
        %p477 = pneg %p323
        %p478 = pneg %p320
        %p479 = pneg %p344
        %p480 = pneg %p341
        %p481 = pneg %p370
        %p482 = pneg %p367
        %s483 = sand.u32 %s357, 1
        %s484 = scalar_lea.sflag [#allocation6], %s483
        %s485 = sand.u32 %s357, 1
        %s486 = scalar_lea.vmem [#allocation5], %s485
        %p487 = scmp.lt.s32.totalorder %s29, 1
        %s488 = scalar_select %p487, %s29, 1
        %s489 = smul.addr %s488, 45
        %s490 = smul.addr %s489, 8
        %s491 = scalar_lea.vmem %s0, %s490
        %v492 = vld [vmem:[%s2] sm:$0x1]
        %v493 = vld [vmem:[%s1] sm:$0xff]
        %v494 = vld [vmem:[%s1 + $0x8] sm:$0xff]
        %v495 = vld [vmem:[%s1 + $0x10] sm:$0xff]
        %v496 = vld [vmem:[%s1 + $0x18] sm:$0xff]
        %v497 = vld [vmem:[%s1 + $0x20] sm:$0xff]
        %v498 = vld [vmem:[%s1 + $0x28] sm:$0xff]
        %v499 = vld [vmem:[%s1 + $0x30] sm:$0xff]
        %v500 = vld [vmem:[%s1 + $0x38] sm:$0xff]
        %v501 = vld [vmem:[%s1 + $0x40] sm:$0xff]
        %v502 = vld [vmem:[%s1 + $0x48] sm:$0xff]
        %v503 = vld [vmem:[%s1 + $0x50] sm:$0xff]
        %v504 = vld [vmem:[%s1 + $0x58] sm:$0xff]
        %v505 = vld [vmem:[%s1 + $0x60] sm:$0xff]
        %v506 = vld [vmem:[%s1 + $0x68] sm:$0xff]
        %v507 = vld [vmem:[%s1 + $0x70] sm:$0xff]
        %v508 = vld [vmem:[%s1 + $0x78] sm:$0xff]
        %v509 = vld [vmem:[%s1 + $0x80] sm:$0xff]
        %v510 = vld [vmem:[%s1 + $0x88] sm:$0xff]
        %s511 = scalar_lea.vmem %s1, 144
        %v512 = vld [vmem:[%s511] sm:$0xff]
        %v513 = vld [vmem:[%s511 + $0x8] sm:$0xff]
        %v514 = vld [vmem:[%s511 + $0x10] sm:$0xff]
        %v515 = vld [vmem:[%s511 + $0x18] sm:$0xff]
        %v516 = vld [vmem:[%s511 + $0x20] sm:$0xff]
        %v517 = vld [vmem:[%s511 + $0x28] sm:$0xff]
        %v518 = vld [vmem:[%s511 + $0x30] sm:$0xff]
        %v519 = vld [vmem:[%s511 + $0x38] sm:$0xff]
        %v520 = vld [vmem:[%s511 + $0x40] sm:$0xff]
        %v521 = vld [vmem:[%s511 + $0x48] sm:$0xff]
        %v522 = vld [vmem:[%s511 + $0x50] sm:$0xff]
        %v523 = vld [vmem:[%s511 + $0x58] sm:$0xff]
        %v524 = vld [vmem:[%s511 + $0x60] sm:$0xff]
        %v525 = vld [vmem:[%s511 + $0x68] sm:$0xff]
        %v526 = vld [vmem:[%s511 + $0x70] sm:$0xff]
        %v527 = vld [vmem:[%s511 + $0x78] sm:$0xff]
        %v528 = vld [vmem:[%s511 + $0x80] sm:$0xff]
        %v529 = vld [vmem:[%s511 + $0x88] sm:$0xff]
        %s530 = scalar_lea.vmem %s1, 288
        %v531 = vld [vmem:[%s530] sm:$0xff]
        %v532 = vld [vmem:[%s530 + $0x8] sm:$0xff]
        %v533 = vld [vmem:[%s530 + $0x10] sm:$0xff]
        %v534 = vld [vmem:[%s530 + $0x18] sm:$0xff]
        %v535 = vld [vmem:[%s530 + $0x20] sm:$0xff]
        %v536 = vld [vmem:[%s530 + $0x28] sm:$0xff]
        %v537 = vld [vmem:[%s530 + $0x30] sm:$0xff]
        %v538 = vld [vmem:[%s530 + $0x38] sm:$0xff]
        %v539 = vld [vmem:[%s530 + $0x40] sm:$0xff]
        %v540 = vld [vmem:[%s530 + $0x48] sm:$0xff]
        %v541 = vld [vmem:[%s530 + $0x50] sm:$0xff]
        %v542 = vld [vmem:[%s530 + $0x58] sm:$0xff]
        %v543 = vld [vmem:[%s530 + $0x60] sm:$0xff]
        %v544 = vld [vmem:[%s530 + $0x68] sm:$0xff]
        %v545 = vld [vmem:[%s530 + $0x70] sm:$0xff]
        %v546 = vld [vmem:[%s530 + $0x78] sm:$0xff]
        %v547 = vld [vmem:[%s530 + $0x80] sm:$0xff]
        %v548 = vld [vmem:[%s530 + $0x88] sm:$0xff]
        %v549 = vld [vmem:[%s491] sm:$0xff]
        %v550 = vld [vmem:[%s491 + $0x8] sm:$0xff]
        %v551 = vld [vmem:[%s491 + $0x28] sm:$0xff]
        %v552 = vld [vmem:[%s491 + $0x30] sm:$0xff]
        %v553 = vld [vmem:[%s491 + $0x50] sm:$0xff]
        %v554 = vld [vmem:[%s491 + $0x58] sm:$0xff]
        %v555 = vld [vmem:[%s491 + $0x78] sm:$0xff]
        %v556 = vld [vmem:[%s491 + $0x80] sm:$0xff]
        %v557 = vld [vmem:[%s491 + $0xa0] sm:$0xff]
        %v558 = vld [vmem:[%s491 + $0xa8] sm:$0xff]
        %v559 = vld [vmem:[%s491 + $0xc8] sm:$0xff]
        %v560 = vld [vmem:[%s491 + $0xd0] sm:$0xff]
        %v561 = vld [vmem:[%s491 + $0xf0] sm:$0xff]
        %v562 = vld [vmem:[%s491 + $0xf8] sm:$0xff]
        %v563 = vld [vmem:[%s491 + $0x118] sm:$0xff]
        %v564 = vld [vmem:[%s491 + $0x120] sm:$0xff]
        %v565 = vld [vmem:[%s491] sm:$0xfe]
        %v566 = vld [vmem:[%s491 + $0x8] sm:$0xfe]
        %v567 = vld [vmem:[%s491 + $0x140] sm:$0x1]
        %v568 = vld [vmem:[%s491 + $0x148] sm:$0x1]
        %vm587 = vcmask 1046528
        %v588 = vrot.slane %v565, 1
        %v589 = vrot.slane %v551, 1
        %v590 = vsel %vm587, %v588, %v589
        %v591 = vrot.slane %v566, 1
        %v592 = vrot.slane %v552, 1
        %v593 = vsel %vm587, %v591, %v592
        %v594 = vrot.slane %v553, 1
        %v595 = vsel %vm587, %v589, %v594
        %v596 = vrot.slane %v554, 1
        %v597 = vsel %vm587, %v592, %v596
        %v598 = vrot.slane %v555, 1
        %v599 = vsel %vm587, %v594, %v598
        %v600 = vrot.slane %v556, 1
        %v601 = vsel %vm587, %v596, %v600
        %v602 = vrot.slane %v557, 1
        %v603 = vsel %vm587, %v598, %v602
        %v604 = vrot.slane %v558, 1
        %v605 = vsel %vm587, %v600, %v604
        %v606 = vrot.slane %v559, 1
        %v607 = vsel %vm587, %v602, %v606
        %v608 = vrot.slane %v560, 1
        %v609 = vsel %vm587, %v604, %v608
        %v610 = vrot.slane %v561, 1
        %v611 = vsel %vm587, %v606, %v610
        %v612 = vrot.slane %v562, 1
        %v613 = vsel %vm587, %v608, %v612
        %v614 = vrot.slane %v563, 1
        %v615 = vsel %vm587, %v610, %v614
        %v616 = vrot.slane %v564, 1
        %v617 = vsel %vm587, %v612, %v616
        %v618 = vrot.slane %v567, 1
        %v619 = vsel %vm587, %v614, %v618
        %v620 = vrot.slane %v568, 1
        %v621 = vsel %vm587, %v616, %v620
        %vm630 = vcmask 130048
        %v631 = vsel %vm630, %v593, 0
        %v633 = vsel %vm630, %v597, 0
        %v635 = vsel %vm630, %v601, 0
        %v637 = vsel %vm630, %v605, 0
        %v639 = vsel %vm630, %v609, 0
        %v641 = vsel %vm630, %v613, 0
        %v643 = vsel %vm630, %v617, 0
        %v645 = vsel %vm630, %v621, 0
        %647 = vmatprep.subr.mxu0 0.0
        %648 = vmatpush1.msra.mxu0 %v512
        %649 = vmatprep.subr.mxu0 0.0
        %650 = vmatpush1.msra.mxu0 %v513
        %651 = vmatprep.subr.mxu0 0.0
        %652 = vmatpush1.msra.mxu0 %v514
        %653 = vmatprep.subr.mxu0 0.0
        %654 = vmatpush1.msra.mxu0 %v515
        %655 = vmatprep.subr.mxu0 0.0
        %656 = vmatpush1.msra.mxu0 %v516
        %657 = vmatprep.subr.mxu0 0.0
        %658 = vmatpush1.msra.mxu0 %v517
        %659 = vmatprep.subr.mxu0 0.0
        %660 = vmatpush1.msra.mxu0 %v518
        %661 = vmatprep.subr.mxu0 0.0
        %662 = vmatpush1.msra.mxu0 %v519
        %663 = vmatprep.subr.mxu0 0.0
        %664 = vmatpush1.msra.mxu0 %v520
        %665 = vmatprep.subr.mxu0 0.0
        %666 = vmatpush1.msra.mxu0 %v521
        %667 = vmatprep.subr.mxu0 0.0
        %668 = vmatpush1.msra.mxu0 %v522
        %669 = vmatprep.subr.mxu0 0.0
        %670 = vmatpush1.msra.mxu0 %v523
        %671 = vmatprep.subr.mxu0 0.0
        %672 = vmatpush1.msra.mxu0 %v524
        %673 = vmatprep.subr.mxu0 0.0
        %674 = vmatpush1.msra.mxu0 %v525
        %675 = vmatprep.subr.mxu0 0.0
        %676 = vmatpush1.msra.mxu0 %v526
        %677 = vmatprep.subr.mxu0 0.0
        %678 = vmatpush1.msra.mxu0 %v527
        %679 = vmatprep.subr.mxu0 0.0
        %680 = vmatpush1.msra.mxu0 %v528
        %681 = vmatprep.subr.mxu0 0.0
        %682 = vmatpush1.msra.mxu0 %v529
        %683 = vmatprep.subr.mxu0 0.0
        %684 = vmatpush1.msra.mxu0 0.0
        %685 = vmatprep.subr.mxu0 0.0
        %686 = vmatpush1.msra.mxu0 0.0
        %687 = vmatprep.subr.mxu0 0.0
        %688 = vmatpush1.msra.mxu0 0.0
        %689 = vmatprep.subr.mxu0 0.0
        %690 = vmatpush1.msra.mxu0 0.0
        %691 = vmatprep.subr.mxu0 0.0
        %692 = vmatpush1.msra.mxu0 0.0
        %693 = vmatprep.subr.mxu0 0.0
        %694 = vmatpush1.msra.mxu0 0.0
        %695 = vmatprep.subr.mxu0 0.0
        %696 = vmatpush1.msra.mxu0 0.0
        %697 = vmatprep.subr.mxu0 0.0
        %698 = vmatpush1.msra.mxu0 0.0
        %699 = vmatprep.subr.mxu0 0.0
        %700 = vmatpush1.msra.mxu0 0.0
        %701 = vmatprep.subr.mxu0 0.0
        %702 = vmatpush1.msra.mxu0 0.0
        %703 = vmatprep.subr.mxu0 0.0
        %704 = vmatpush1.msra.mxu0 0.0
        %705 = vmatprep.subr.mxu0 0.0
        %706 = vmatpush1.msra.mxu0 0.0
        %707 = vmatprep.subr.mxu0 0.0
        %708 = vmatpush1.msra.mxu0 0.0
        %709 = vmatprep.subr.mxu0 0.0
        %710 = vmatpush1.msra.mxu0 0.0
        %711 = vmatprep.mubr.f32.mxu0 %v631
        %712 = vmatmul.mubr.f32.gmra.mrb[0].mxu0 %v590
        %v713 = vpop.f32.mrb[0].mxu0
        %v714 = vadd.f32 0.0, %v713
        %v715 = vpop.f32.mrb[0].mxu0
        %716 = vmatprep.mubr.f32.mxu0 %v633
        %717 = vmatmul.mubr.f32.gmra.mrb[0].mxu0 %v595
        %v718 = vpop.f32.mrb[0].mxu0
        %v719 = vadd.f32 0.0, %v718
        %v720 = vpop.f32.mrb[0].mxu0
        %721 = vmatprep.mubr.f32.mxu0 %v635
        %722 = vmatmul.mubr.f32.gmra.mrb[0].mxu0 %v599
        %v723 = vpop.f32.mrb[0].mxu0
        %v724 = vadd.f32 0.0, %v723
        %v725 = vpop.f32.mrb[0].mxu0
        %726 = vmatprep.mubr.f32.mxu0 %v637
        %727 = vmatmul.mubr.f32.gmra.mrb[0].mxu0 %v603
        %v728 = vpop.f32.mrb[0].mxu0
        %v729 = vadd.f32 0.0, %v728
        %v730 = vpop.f32.mrb[0].mxu0
        %731 = vmatprep.mubr.f32.mxu0 %v639
        %732 = vmatmul.mubr.f32.gmra.mrb[0].mxu0 %v607
        %v733 = vpop.f32.mrb[0].mxu0
        %v734 = vadd.f32 0.0, %v733
        %v735 = vpop.f32.mrb[0].mxu0
        %736 = vmatprep.mubr.f32.mxu0 %v641
        %737 = vmatmul.mubr.f32.gmra.mrb[0].mxu0 %v611
        %v738 = vpop.f32.mrb[0].mxu0
        %v739 = vadd.f32 0.0, %v738
        %v740 = vpop.f32.mrb[0].mxu0
        %741 = vmatprep.mubr.f32.mxu0 %v643
        %742 = vmatmul.mubr.f32.gmra.mrb[0].mxu0 %v615
        %v743 = vpop.f32.mrb[0].mxu0
        %v744 = vadd.f32 0.0, %v743
        %v745 = vpop.f32.mrb[0].mxu0
        %746 = vmatprep.mubr.f32.mxu0 %v645
        %747 = vmatmul.mubr.f32.gmra.mrb[0].mxu0 %v619
        %v748 = vpop.f32.mrb[0].mxu0
        %v749 = vadd.f32 0.0, %v748
        %v750 = vpop.f32.mrb[0].mxu0
        %751 = vdwg.mxu0
        %v753 = vsel %vm630, %v550, 0
        %v755 = vsel %vm630, %v552, 0
        %v757 = vsel %vm630, %v554, 0
        %v759 = vsel %vm630, %v556, 0
        %v761 = vsel %vm630, %v558, 0
        %v763 = vsel %vm630, %v560, 0
        %v765 = vsel %vm630, %v562, 0
        %v767 = vsel %vm630, %v564, 0
        %769 = vmatprep.subr.mxu0 0.0
        %770 = vmatpush1.msra.mxu0 %v493
        %771 = vmatprep.subr.mxu0 0.0
        %772 = vmatpush1.msra.mxu0 %v494
        %773 = vmatprep.subr.mxu0 0.0
        %774 = vmatpush1.msra.mxu0 %v495
        %775 = vmatprep.subr.mxu0 0.0
        %776 = vmatpush1.msra.mxu0 %v496
        %777 = vmatprep.subr.mxu0 0.0
        %778 = vmatpush1.msra.mxu0 %v497
        %779 = vmatprep.subr.mxu0 0.0
        %780 = vmatpush1.msra.mxu0 %v498
        %781 = vmatprep.subr.mxu0 0.0
        %782 = vmatpush1.msra.mxu0 %v499
        %783 = vmatprep.subr.mxu0 0.0
        %784 = vmatpush1.msra.mxu0 %v500
        %785 = vmatprep.subr.mxu0 0.0
        %786 = vmatpush1.msra.mxu0 %v501
        %787 = vmatprep.subr.mxu0 0.0
        %788 = vmatpush1.msra.mxu0 %v502
        %789 = vmatprep.subr.mxu0 0.0
        %790 = vmatpush1.msra.mxu0 %v503
        %791 = vmatprep.subr.mxu0 0.0
        %792 = vmatpush1.msra.mxu0 %v504
        %793 = vmatprep.subr.mxu0 0.0
        %794 = vmatpush1.msra.mxu0 %v505
        %795 = vmatprep.subr.mxu0 0.0
        %796 = vmatpush1.msra.mxu0 %v506
        %797 = vmatprep.subr.mxu0 0.0
        %798 = vmatpush1.msra.mxu0 %v507
        %799 = vmatprep.subr.mxu0 0.0
        %800 = vmatpush1.msra.mxu0 %v508
        %801 = vmatprep.subr.mxu0 0.0
        %802 = vmatpush1.msra.mxu0 %v509
        %803 = vmatprep.subr.mxu0 0.0
        %804 = vmatpush1.msra.mxu0 %v510
        %805 = vmatprep.subr.mxu0 0.0
        %806 = vmatpush1.msra.mxu0 0.0
        %807 = vmatprep.subr.mxu0 0.0
        %808 = vmatpush1.msra.mxu0 0.0
        %809 = vmatprep.subr.mxu0 0.0
        %810 = vmatpush1.msra.mxu0 0.0
        %811 = vmatprep.subr.mxu0 0.0
        %812 = vmatpush1.msra.mxu0 0.0
        %813 = vmatprep.subr.mxu0 0.0
        %814 = vmatpush1.msra.mxu0 0.0
        %815 = vmatprep.subr.mxu0 0.0
        %816 = vmatpush1.msra.mxu0 0.0
        %817 = vmatprep.subr.mxu0 0.0
        %818 = vmatpush1.msra.mxu0 0.0
        %819 = vmatprep.subr.mxu0 0.0
        %820 = vmatpush1.msra.mxu0 0.0
        %821 = vmatprep.subr.mxu0 0.0
        %822 = vmatpush1.msra.mxu0 0.0
        %823 = vmatprep.subr.mxu0 0.0
        %824 = vmatpush1.msra.mxu0 0.0
        %825 = vmatprep.subr.mxu0 0.0
        %826 = vmatpush1.msra.mxu0 0.0
        %827 = vmatprep.subr.mxu0 0.0
        %828 = vmatpush1.msra.mxu0 0.0
        %829 = vmatprep.subr.mxu0 0.0
        %830 = vmatpush1.msra.mxu0 0.0
        %831 = vmatprep.subr.mxu0 0.0
        %832 = vmatpush1.msra.mxu0 0.0
        %833 = vmatprep.mubr.f32.mxu0 %v753
        %834 = vmatmul.mubr.f32.gmra.mrb[0].mxu0 %v549
        %v835 = vpop.f32.mrb[0].mxu0
        %v836 = vadd.f32 %v714, %v835
        %v837 = vpop.f32.mrb[0].mxu0
        %838 = vmatprep.mubr.f32.mxu0 %v755
        %839 = vmatmul.mubr.f32.gmra.mrb[0].mxu0 %v551
        %v840 = vpop.f32.mrb[0].mxu0
        %v841 = vadd.f32 %v719, %v840
        %v842 = vpop.f32.mrb[0].mxu0
        %843 = vmatprep.mubr.f32.mxu0 %v757
        %844 = vmatmul.mubr.f32.gmra.mrb[0].mxu0 %v553
        %v845 = vpop.f32.mrb[0].mxu0
        %v846 = vadd.f32 %v724, %v845
        %v847 = vpop.f32.mrb[0].mxu0
        %848 = vmatprep.mubr.f32.mxu0 %v759
        %849 = vmatmul.mubr.f32.gmra.mrb[0].mxu0 %v555
        %v850 = vpop.f32.mrb[0].mxu0
        %v851 = vadd.f32 %v729, %v850
        %v852 = vpop.f32.mrb[0].mxu0
        %853 = vmatprep.mubr.f32.mxu0 %v761
        %854 = vmatmul.mubr.f32.gmra.mrb[0].mxu0 %v557
        %v855 = vpop.f32.mrb[0].mxu0
        %v856 = vadd.f32 %v734, %v855
        %v857 = vpop.f32.mrb[0].mxu0
        %858 = vmatprep.mubr.f32.mxu0 %v763
        %859 = vmatmul.mubr.f32.gmra.mrb[0].mxu0 %v559
        %v860 = vpop.f32.mrb[0].mxu0
        %v861 = vadd.f32 %v739, %v860
        %v862 = vpop.f32.mrb[0].mxu0
        %863 = vmatprep.mubr.f32.mxu0 %v765
        %864 = vmatmul.mubr.f32.gmra.mrb[0].mxu0 %v561
        %v865 = vpop.f32.mrb[0].mxu0
        %v866 = vadd.f32 %v744, %v865
        %v867 = vpop.f32.mrb[0].mxu0
        %868 = vmatprep.mubr.f32.mxu0 %v767
        %869 = vmatmul.mubr.f32.gmra.mrb[0].mxu0 %v563
        %v870 = vpop.f32.mrb[0].mxu0
        %v871 = vadd.f32 %v749, %v870
        %v872 = vpop.f32.mrb[0].mxu0
        %873 = vdwg.mxu0
        %v874 = vld [vmem:[%s491] sm:$0xfc]
        %v875 = vld [vmem:[%s491 + $0x8] sm:$0xfc]
        %v876 = vld [vmem:[%s491 + $0x140] sm:$0x3]
        %v877 = vld [vmem:[%s491 + $0x148] sm:$0x3]
        %vm882 = vcmask 1045504
        %v883 = vrot.slane %v874, 2
        %v884 = vrot.slane %v551, 2
        %v885 = vsel %vm882, %v883, %v884
        %v886 = vrot.slane %v875, 2
        %v887 = vrot.slane %v552, 2
        %v888 = vsel %vm882, %v886, %v887
        %v889 = vrot.slane %v553, 2
        %v890 = vsel %vm882, %v884, %v889
        %v891 = vrot.slane %v554, 2
        %v892 = vsel %vm882, %v887, %v891
        %v893 = vrot.slane %v555, 2
        %v894 = vsel %vm882, %v889, %v893
        %v895 = vrot.slane %v556, 2
        %v896 = vsel %vm882, %v891, %v895
        %v897 = vrot.slane %v557, 2
        %v898 = vsel %vm882, %v893, %v897
        %v899 = vrot.slane %v558, 2
        %v900 = vsel %vm882, %v895, %v899
        %v901 = vrot.slane %v559, 2
        %v902 = vsel %vm882, %v897, %v901
        %v903 = vrot.slane %v560, 2
        %v904 = vsel %vm882, %v899, %v903
        %v905 = vrot.slane %v561, 2
        %v906 = vsel %vm882, %v901, %v905
        %v907 = vrot.slane %v562, 2
        %v908 = vsel %vm882, %v903, %v907
        %v909 = vrot.slane %v563, 2
        %v910 = vsel %vm882, %v905, %v909
        %v911 = vrot.slane %v564, 2
        %v912 = vsel %vm882, %v907, %v911
        %v913 = vrot.slane %v876, 2
        %v914 = vsel %vm882, %v909, %v913
        %v915 = vrot.slane %v877, 2
        %v916 = vsel %vm882, %v911, %v915
        %v925 = vsel %vm630, %v888, 0
        %v927 = vsel %vm630, %v892, 0
        %v929 = vsel %vm630, %v896, 0
        %v931 = vsel %vm630, %v900, 0
        %v933 = vsel %vm630, %v904, 0
        %v935 = vsel %vm630, %v908, 0
        %v937 = vsel %vm630, %v912, 0
        %v939 = vsel %vm630, %v916, 0
        %941 = vmatprep.subr.mxu0 0.0
        %942 = vmatpush1.msra.mxu0 %v531
        %943 = vmatprep.subr.mxu0 0.0
        %944 = vmatpush1.msra.mxu0 %v532
        %945 = vmatprep.subr.mxu0 0.0
        %946 = vmatpush1.msra.mxu0 %v533
        %947 = vmatprep.subr.mxu0 0.0
        %948 = vmatpush1.msra.mxu0 %v534
        %949 = vmatprep.subr.mxu0 0.0
        %950 = vmatpush1.msra.mxu0 %v535
        %951 = vmatprep.subr.mxu0 0.0
        %952 = vmatpush1.msra.mxu0 %v536
        %953 = vmatprep.subr.mxu0 0.0
        %954 = vmatpush1.msra.mxu0 %v537
        %955 = vmatprep.subr.mxu0 0.0
        %956 = vmatpush1.msra.mxu0 %v538
        %957 = vmatprep.subr.mxu0 0.0
        %958 = vmatpush1.msra.mxu0 %v539
        %959 = vmatprep.subr.mxu0 0.0
        %960 = vmatpush1.msra.mxu0 %v540
        %961 = vmatprep.subr.mxu0 0.0
        %962 = vmatpush1.msra.mxu0 %v541
        %963 = vmatprep.subr.mxu0 0.0
        %964 = vmatpush1.msra.mxu0 %v542
        %965 = vmatprep.subr.mxu0 0.0
        %966 = vmatpush1.msra.mxu0 %v543
        %967 = vmatprep.subr.mxu0 0.0
        %968 = vmatpush1.msra.mxu0 %v544
        %969 = vmatprep.subr.mxu0 0.0
        %970 = vmatpush1.msra.mxu0 %v545
        %971 = vmatprep.subr.mxu0 0.0
        %972 = vmatpush1.msra.mxu0 %v546
        %973 = vmatprep.subr.mxu0 0.0
        %974 = vmatpush1.msra.mxu0 %v547
        %975 = vmatprep.subr.mxu0 0.0
        %976 = vmatpush1.msra.mxu0 %v548
        %977 = vmatprep.subr.mxu0 0.0
        %978 = vmatpush1.msra.mxu0 0.0
        %979 = vmatprep.subr.mxu0 0.0
        %980 = vmatpush1.msra.mxu0 0.0
        %981 = vmatprep.subr.mxu0 0.0
        %982 = vmatpush1.msra.mxu0 0.0
        %983 = vmatprep.subr.mxu0 0.0
        %984 = vmatpush1.msra.mxu0 0.0
        %985 = vmatprep.subr.mxu0 0.0
        %986 = vmatpush1.msra.mxu0 0.0
        %987 = vmatprep.subr.mxu0 0.0
        %988 = vmatpush1.msra.mxu0 0.0
        %989 = vmatprep.subr.mxu0 0.0
        %990 = vmatpush1.msra.mxu0 0.0
        %991 = vmatprep.subr.mxu0 0.0
        %992 = vmatpush1.msra.mxu0 0.0
        %993 = vmatprep.subr.mxu0 0.0
        %994 = vmatpush1.msra.mxu0 0.0
        %995 = vmatprep.subr.mxu0 0.0
        %996 = vmatpush1.msra.mxu0 0.0
        %997 = vmatprep.subr.mxu0 0.0
        %998 = vmatpush1.msra.mxu0 0.0
        %999 = vmatprep.subr.mxu0 0.0
        %1000 = vmatpush1.msra.mxu0 0.0
        %1001 = vmatprep.subr.mxu0 0.0
        %1002 = vmatpush1.msra.mxu0 0.0
        %1003 = vmatprep.subr.mxu0 0.0
        %1004 = vmatpush1.msra.mxu0 0.0
        %1005 = vmatprep.mubr.f32.mxu0 %v925
        %1006 = vmatmul.mubr.f32.gmra.mrb[0].mxu0 %v885
        %v1007 = vpop.f32.mrb[0].mxu0
        %v1008 = vadd.f32 0.0, %v1007
        %v1009 = vpop.f32.mrb[0].mxu0
        %1010 = vmatprep.mubr.f32.mxu0 %v927
        %1011 = vmatmul.mubr.f32.gmra.mrb[0].mxu0 %v890
        %v1012 = vpop.f32.mrb[0].mxu0
        %v1013 = vadd.f32 0.0, %v1012
        %v1014 = vpop.f32.mrb[0].mxu0
        %1015 = vmatprep.mubr.f32.mxu0 %v929
        %1016 = vmatmul.mubr.f32.gmra.mrb[0].mxu0 %v894
        %v1017 = vpop.f32.mrb[0].mxu0
        %v1018 = vadd.f32 0.0, %v1017
        %v1019 = vpop.f32.mrb[0].mxu0
        %1020 = vmatprep.mubr.f32.mxu0 %v931
        %1021 = vmatmul.mubr.f32.gmra.mrb[0].mxu0 %v898
        %v1022 = vpop.f32.mrb[0].mxu0
        %v1023 = vadd.f32 0.0, %v1022
        %v1024 = vpop.f32.mrb[0].mxu0
        %1025 = vmatprep.mubr.f32.mxu0 %v933
        %1026 = vmatmul.mubr.f32.gmra.mrb[0].mxu0 %v902
        %v1027 = vpop.f32.mrb[0].mxu0
        %v1028 = vadd.f32 0.0, %v1027
        %v1029 = vpop.f32.mrb[0].mxu0
        %1030 = vmatprep.mubr.f32.mxu0 %v935
        %1031 = vmatmul.mubr.f32.gmra.mrb[0].mxu0 %v906
        %v1032 = vpop.f32.mrb[0].mxu0
        %v1033 = vadd.f32 0.0, %v1032
        %v1034 = vpop.f32.mrb[0].mxu0
        %1035 = vmatprep.mubr.f32.mxu0 %v937
        %1036 = vmatmul.mubr.f32.gmra.mrb[0].mxu0 %v910
        %v1037 = vpop.f32.mrb[0].mxu0
        %v1038 = vadd.f32 0.0, %v1037
        %v1039 = vpop.f32.mrb[0].mxu0
        %1040 = vmatprep.mubr.f32.mxu0 %v939
        %1041 = vmatmul.mubr.f32.gmra.mrb[0].mxu0 %v914
        %v1042 = vpop.f32.mrb[0].mxu0
        %v1043 = vadd.f32 0.0, %v1042
        %v1044 = vpop.f32.mrb[0].mxu0
        %1045 = vdwg.mxu0
        %v1046 = vadd.f32 %v836, %v1008
        %v1047 = vadd.f32 %v841, %v1013
        %v1048 = vadd.f32 %v846, %v1018
        %v1049 = vadd.f32 %v851, %v1023
        %v1050 = vadd.f32 %v856, %v1028
        %v1051 = vadd.f32 %v861, %v1033
        %v1052 = vadd.f32 %v866, %v1038
        %v1053 = vadd.f32 %v871, %v1043
        %v1055 = vlaneseq
        %v1056 = vshrl.u32 %v1055, 7
        %v1057 = vsub.s32 0, %v1056
        %v1058 = vrot.slane %v492, %v1057
        %v1060 = vadd.f32 %v1046, %v1058
        %v1061 = vadd.f32 %v1047, %v1058
        %v1062 = vadd.f32 %v1048, %v1058
        %v1063 = vadd.f32 %v1049, %v1058
        %v1064 = vadd.f32 %v1050, %v1058
        %v1065 = vadd.f32 %v1051, %v1058
        %v1066 = vadd.f32 %v1052, %v1058
        %v1067 = vadd.f32 %v1053, %v1058
        %v1068 = vmax.f32 %v1060, 0.0
        %v1069 = vmax.f32 %v1061, 0.0
        %v1070 = vmax.f32 %v1062, 0.0
        %v1071 = vmax.f32 %v1063, 0.0
        %v1072 = vmax.f32 %v1064, 0.0
        %v1073 = vmax.f32 %v1065, 0.0
        %v1074 = vmax.f32 %v1066, 0.0
        %v1075 = vmax.f32 %v1067, 0.0
        %v1076 = vld [vmem:[%s491 + $0x8] sm:$0xff]
        %v1077 = vld [vmem:[%s491 + $0x10] sm:$0xff]
        %v1078 = vld [vmem:[%s491 + $0x30] sm:$0xff]
        %v1079 = vld [vmem:[%s491 + $0x38] sm:$0xff]
        %v1080 = vld [vmem:[%s491 + $0x58] sm:$0xff]
        %v1081 = vld [vmem:[%s491 + $0x60] sm:$0xff]
        %v1082 = vld [vmem:[%s491 + $0x80] sm:$0xff]
        %v1083 = vld [vmem:[%s491 + $0x88] sm:$0xff]
        %v1084 = vld [vmem:[%s491 + $0xa8] sm:$0xff]
        %v1085 = vld [vmem:[%s491 + $0xb0] sm:$0xff]
        %v1086 = vld [vmem:[%s491 + $0xd0] sm:$0xff]
        %v1087 = vld [vmem:[%s491 + $0xd8] sm:$0xff]
        %v1088 = vld [vmem:[%s491 + $0xf8] sm:$0xff]
        %v1089 = vld [vmem:[%s491 + $0x100] sm:$0xff]
        %v1090 = vld [vmem:[%s491 + $0x120] sm:$0xff]
        %v1091 = vld [vmem:[%s491 + $0x128] sm:$0xff]
        %v1092 = vld [vmem:[%s491 + $0x8] sm:$0xfe]
        %v1093 = vld [vmem:[%s491 + $0x10] sm:$0xfe]
        %v1094 = vld [vmem:[%s491 + $0x148] sm:$0x1]
        %v1095 = vld [vmem:[%s491 + $0x150] sm:$0x1]
        %v1114 = vrot.slane %v1092, 1
        %v1115 = vrot.slane %v1078, 1
        %v1116 = vsel %vm587, %v1114, %v1115
        %v1117 = vrot.slane %v1093, 1
        %v1118 = vrot.slane %v1079, 1
        %v1119 = vsel %vm587, %v1117, %v1118
        %v1120 = vrot.slane %v1080, 1
        %v1121 = vsel %vm587, %v1115, %v1120
        %v1122 = vrot.slane %v1081, 1
        %v1123 = vsel %vm587, %v1118, %v1122
        %v1124 = vrot.slane %v1082, 1
        %v1125 = vsel %vm587, %v1120, %v1124
        %v1126 = vrot.slane %v1083, 1
        %v1127 = vsel %vm587, %v1122, %v1126
        %v1128 = vrot.slane %v1084, 1
        %v1129 = vsel %vm587, %v1124, %v1128
        %v1130 = vrot.slane %v1085, 1
        %v1131 = vsel %vm587, %v1126, %v1130
        %v1132 = vrot.slane %v1086, 1
        %v1133 = vsel %vm587, %v1128, %v1132
        %v1134 = vrot.slane %v1087, 1
        %v1135 = vsel %vm587, %v1130, %v1134
        %v1136 = vrot.slane %v1088, 1
        %v1137 = vsel %vm587, %v1132, %v1136
        %v1138 = vrot.slane %v1089, 1
        %v1139 = vsel %vm587, %v1134, %v1138
        %v1140 = vrot.slane %v1090, 1
        %v1141 = vsel %vm587, %v1136, %v1140
        %v1142 = vrot.slane %v1091, 1
        %v1143 = vsel %vm587, %v1138, %v1142
        %v1144 = vrot.slane %v1094, 1
        %v1145 = vsel %vm587, %v1140, %v1144
        %v1146 = vrot.slane %v1095, 1
        %v1147 = vsel %vm587, %v1142, %v1146
        %v1156 = vsel %vm630, %v1119, 0
        %v1158 = vsel %vm630, %v1123, 0
        %v1160 = vsel %vm630, %v1127, 0
        %v1162 = vsel %vm630, %v1131, 0
        %v1164 = vsel %vm630, %v1135, 0
        %v1166 = vsel %vm630, %v1139, 0
        %v1168 = vsel %vm630, %v1143, 0
        %v1170 = vsel %vm630, %v1147, 0
        %1172 = vmatprep.subr.mxu0 0.0
        %1173 = vmatpush1.msra.mxu0 %v512
        %1174 = vmatprep.subr.mxu0 0.0
        %1175 = vmatpush1.msra.mxu0 %v513
        %1176 = vmatprep.subr.mxu0 0.0
        %1177 = vmatpush1.msra.mxu0 %v514
        %1178 = vmatprep.subr.mxu0 0.0
        %1179 = vmatpush1.msra.mxu0 %v515
        %1180 = vmatprep.subr.mxu0 0.0
        %1181 = vmatpush1.msra.mxu0 %v516
        %1182 = vmatprep.subr.mxu0 0.0
        %1183 = vmatpush1.msra.mxu0 %v517
        %1184 = vmatprep.subr.mxu0 0.0
        %1185 = vmatpush1.msra.mxu0 %v518
        %1186 = vmatprep.subr.mxu0 0.0
        %1187 = vmatpush1.msra.mxu0 %v519
        %1188 = vmatprep.subr.mxu0 0.0
        %1189 = vmatpush1.msra.mxu0 %v520
        %1190 = vmatprep.subr.mxu0 0.0
        %1191 = vmatpush1.msra.mxu0 %v521
        %1192 = vmatprep.subr.mxu0 0.0
        %1193 = vmatpush1.msra.mxu0 %v522
        %1194 = vmatprep.subr.mxu0 0.0
        %1195 = vmatpush1.msra.mxu0 %v523
        %1196 = vmatprep.subr.mxu0 0.0
        %1197 = vmatpush1.msra.mxu0 %v524
        %1198 = vmatprep.subr.mxu0 0.0
        %1199 = vmatpush1.msra.mxu0 %v525
        %1200 = vmatprep.subr.mxu0 0.0
        %1201 = vmatpush1.msra.mxu0 %v526
        %1202 = vmatprep.subr.mxu0 0.0
        %1203 = vmatpush1.msra.mxu0 %v527
        %1204 = vmatprep.subr.mxu0 0.0
        %1205 = vmatpush1.msra.mxu0 %v528
        %1206 = vmatprep.subr.mxu0 0.0
        %1207 = vmatpush1.msra.mxu0 %v529
        %1208 = vmatprep.subr.mxu0 0.0
        %1209 = vmatpush1.msra.mxu0 0.0
        %1210 = vmatprep.subr.mxu0 0.0
        %1211 = vmatpush1.msra.mxu0 0.0
        %1212 = vmatprep.subr.mxu0 0.0
        %1213 = vmatpush1.msra.mxu0 0.0
        %1214 = vmatprep.subr.mxu0 0.0
        %1215 = vmatpush1.msra.mxu0 0.0
        %1216 = vmatprep.subr.mxu0 0.0
        %1217 = vmatpush1.msra.mxu0 0.0
        %1218 = vmatprep.subr.mxu0 0.0
        %1219 = vmatpush1.msra.mxu0 0.0
        %1220 = vmatprep.subr.mxu0 0.0
        %1221 = vmatpush1.msra.mxu0 0.0
        %1222 = vmatprep.subr.mxu0 0.0
        %1223 = vmatpush1.msra.mxu0 0.0
        %1224 = vmatprep.subr.mxu0 0.0
        %1225 = vmatpush1.msra.mxu0 0.0
        %1226 = vmatprep.subr.mxu0 0.0
        %1227 = vmatpush1.msra.mxu0 0.0
        %1228 = vmatprep.subr.mxu0 0.0
        %1229 = vmatpush1.msra.mxu0 0.0
        %1230 = vmatprep.subr.mxu0 0.0
        %1231 = vmatpush1.msra.mxu0 0.0
        %1232 = vmatprep.subr.mxu0 0.0
        %1233 = vmatpush1.msra.mxu0 0.0
        %1234 = vmatprep.subr.mxu0 0.0
        %1235 = vmatpush1.msra.mxu0 0.0
        %1236 = vmatprep.mubr.f32.mxu0 %v1156
        %1237 = vmatmul.mubr.f32.gmra.mrb[0].mxu0 %v1116
        %v1238 = vpop.f32.mrb[0].mxu0
        %v1239 = vadd.f32 0.0, %v1238
        %v1240 = vpop.f32.mrb[0].mxu0
        %1241 = vmatprep.mubr.f32.mxu0 %v1158
        %1242 = vmatmul.mubr.f32.gmra.mrb[0].mxu0 %v1121
        %v1243 = vpop.f32.mrb[0].mxu0
        %v1244 = vadd.f32 0.0, %v1243
        %v1245 = vpop.f32.mrb[0].mxu0
        %1246 = vmatprep.mubr.f32.mxu0 %v1160
        %1247 = vmatmul.mubr.f32.gmra.mrb[0].mxu0 %v1125
        %v1248 = vpop.f32.mrb[0].mxu0
        %v1249 = vadd.f32 0.0, %v1248
        %v1250 = vpop.f32.mrb[0].mxu0
        %1251 = vmatprep.mubr.f32.mxu0 %v1162
        %1252 = vmatmul.mubr.f32.gmra.mrb[0].mxu0 %v1129
        %v1253 = vpop.f32.mrb[0].mxu0
        %v1254 = vadd.f32 0.0, %v1253
        %v1255 = vpop.f32.mrb[0].mxu0
        %1256 = vmatprep.mubr.f32.mxu0 %v1164
        %1257 = vmatmul.mubr.f32.gmra.mrb[0].mxu0 %v1133
        %v1258 = vpop.f32.mrb[0].mxu0
        %v1259 = vadd.f32 0.0, %v1258
        %v1260 = vpop.f32.mrb[0].mxu0
        %1261 = vmatprep.mubr.f32.mxu0 %v1166
        %1262 = vmatmul.mubr.f32.gmra.mrb[0].mxu0 %v1137
        %v1263 = vpop.f32.mrb[0].mxu0
        %v1264 = vadd.f32 0.0, %v1263
        %v1265 = vpop.f32.mrb[0].mxu0
        %1266 = vmatprep.mubr.f32.mxu0 %v1168
        %1267 = vmatmul.mubr.f32.gmra.mrb[0].mxu0 %v1141
        %v1268 = vpop.f32.mrb[0].mxu0
        %v1269 = vadd.f32 0.0, %v1268
        %v1270 = vpop.f32.mrb[0].mxu0
        %1271 = vmatprep.mubr.f32.mxu0 %v1170
        %1272 = vmatmul.mubr.f32.gmra.mrb[0].mxu0 %v1145
        %v1273 = vpop.f32.mrb[0].mxu0
        %v1274 = vadd.f32 0.0, %v1273
        %v1275 = vpop.f32.mrb[0].mxu0
        %1276 = vdwg.mxu0
        %v1278 = vsel %vm630, %v1077, 0
        %v1280 = vsel %vm630, %v1079, 0
        %v1282 = vsel %vm630, %v1081, 0
        %v1284 = vsel %vm630, %v1083, 0
        %v1286 = vsel %vm630, %v1085, 0
        %v1288 = vsel %vm630, %v1087, 0
        %v1290 = vsel %vm630, %v1089, 0
        %v1292 = vsel %vm630, %v1091, 0
        %1294 = vmatprep.subr.mxu0 0.0
        %1295 = vmatpush1.msra.mxu0 %v493
        %1296 = vmatprep.subr.mxu0 0.0
        %1297 = vmatpush1.msra.mxu0 %v494
        %1298 = vmatprep.subr.mxu0 0.0
        %1299 = vmatpush1.msra.mxu0 %v495
        %1300 = vmatprep.subr.mxu0 0.0
        %1301 = vmatpush1.msra.mxu0 %v496
        %1302 = vmatprep.subr.mxu0 0.0
        %1303 = vmatpush1.msra.mxu0 %v497
        %1304 = vmatprep.subr.mxu0 0.0
        %1305 = vmatpush1.msra.mxu0 %v498
        %1306 = vmatprep.subr.mxu0 0.0
        %1307 = vmatpush1.msra.mxu0 %v499
        %1308 = vmatprep.subr.mxu0 0.0
        %1309 = vmatpush1.msra.mxu0 %v500
        %1310 = vmatprep.subr.mxu0 0.0
        %1311 = vmatpush1.msra.mxu0 %v501
        %1312 = vmatprep.subr.mxu0 0.0
        %1313 = vmatpush1.msra.mxu0 %v502
        %1314 = vmatprep.subr.mxu0 0.0
        %1315 = vmatpush1.msra.mxu0 %v503
        %1316 = vmatprep.subr.mxu0 0.0
        %1317 = vmatpush1.msra.mxu0 %v504
        %1318 = vmatprep.subr.mxu0 0.0
        %1319 = vmatpush1.msra.mxu0 %v505
        %1320 = vmatprep.subr.mxu0 0.0
        %1321 = vmatpush1.msra.mxu0 %v506
        %1322 = vmatprep.subr.mxu0 0.0
        %1323 = vmatpush1.msra.mxu0 %v507
        %1324 = vmatprep.subr.mxu0 0.0
        %1325 = vmatpush1.msra.mxu0 %v508
        %1326 = vmatprep.subr.mxu0 0.0
        %1327 = vmatpush1.msra.mxu0 %v509
        %1328 = vmatprep.subr.mxu0 0.0
        %1329 = vmatpush1.msra.mxu0 %v510
        %1330 = vmatprep.subr.mxu0 0.0
        %1331 = vmatpush1.msra.mxu0 0.0
        %1332 = vmatprep.subr.mxu0 0.0
        %1333 = vmatpush1.msra.mxu0 0.0
        %1334 = vmatprep.subr.mxu0 0.0
        %1335 = vmatpush1.msra.mxu0 0.0
        %1336 = vmatprep.subr.mxu0 0.0
        %1337 = vmatpush1.msra.mxu0 0.0
        %1338 = vmatprep.subr.mxu0 0.0
        %1339 = vmatpush1.msra.mxu0 0.0
        %1340 = vmatprep.subr.mxu0 0.0
        %1341 = vmatpush1.msra.mxu0 0.0
        %1342 = vmatprep.subr.mxu0 0.0
        %1343 = vmatpush1.msra.mxu0 0.0
        %1344 = vmatprep.subr.mxu0 0.0
        %1345 = vmatpush1.msra.mxu0 0.0
        %1346 = vmatprep.subr.mxu0 0.0
        %1347 = vmatpush1.msra.mxu0 0.0
        %1348 = vmatprep.subr.mxu0 0.0
        %1349 = vmatpush1.msra.mxu0 0.0
        %1350 = vmatprep.subr.mxu0 0.0
        %1351 = vmatpush1.msra.mxu0 0.0
        %1352 = vmatprep.subr.mxu0 0.0
        %1353 = vmatpush1.msra.mxu0 0.0
        %1354 = vmatprep.subr.mxu0 0.0
        %1355 = vmatpush1.msra.mxu0 0.0
        %1356 = vmatprep.subr.mxu0 0.0
        %1357 = vmatpush1.msra.mxu0 0.0
        %1358 = vmatprep.mubr.f32.mxu0 %v1278
        %1359 = vmatmul.mubr.f32.gmra.mrb[0].mxu0 %v1076
        %v1360 = vpop.f32.mrb[0].mxu0
        %v1361 = vadd.f32 %v1239, %v1360
        %v1362 = vpop.f32.mrb[0].mxu0
        %1363 = vmatprep.mubr.f32.mxu0 %v1280
        %1364 = vmatmul.mubr.f32.gmra.mrb[0].mxu0 %v1078
        %v1365 = vpop.f32.mrb[0].mxu0
        %v1366 = vadd.f32 %v1244, %v1365
        %v1367 = vpop.f32.mrb[0].mxu0
        %1368 = vmatprep.mubr.f32.mxu0 %v1282
        %1369 = vmatmul.mubr.f32.gmra.mrb[0].mxu0 %v1080
        %v1370 = vpop.f32.mrb[0].mxu0
        %v1371 = vadd.f32 %v1249, %v1370
        %v1372 = vpop.f32.mrb[0].mxu0
        %1373 = vmatprep.mubr.f32.mxu0 %v1284
        %1374 = vmatmul.mubr.f32.gmra.mrb[0].mxu0 %v1082
        %v1375 = vpop.f32.mrb[0].mxu0
        %v1376 = vadd.f32 %v1254, %v1375
        %v1377 = vpop.f32.mrb[0].mxu0
        %1378 = vmatprep.mubr.f32.mxu0 %v1286
        %1379 = vmatmul.mubr.f32.gmra.mrb[0].mxu0 %v1084
        %v1380 = vpop.f32.mrb[0].mxu0
        %v1381 = vadd.f32 %v1259, %v1380
        %v1382 = vpop.f32.mrb[0].mxu0
        %1383 = vmatprep.mubr.f32.mxu0 %v1288
        %1384 = vmatmul.mubr.f32.gmra.mrb[0].mxu0 %v1086
        %v1385 = vpop.f32.mrb[0].mxu0
        %v1386 = vadd.f32 %v1264, %v1385
        %v1387 = vpop.f32.mrb[0].mxu0
        %1388 = vmatprep.mubr.f32.mxu0 %v1290
        %1389 = vmatmul.mubr.f32.gmra.mrb[0].mxu0 %v1088
        %v1390 = vpop.f32.mrb[0].mxu0
        %v1391 = vadd.f32 %v1269, %v1390
        %v1392 = vpop.f32.mrb[0].mxu0
        %1393 = vmatprep.mubr.f32.mxu0 %v1292
        %1394 = vmatmul.mubr.f32.gmra.mrb[0].mxu0 %v1090
        %v1395 = vpop.f32.mrb[0].mxu0
        %v1396 = vadd.f32 %v1274, %v1395
        %v1397 = vpop.f32.mrb[0].mxu0
        %1398 = vdwg.mxu0
        %v1399 = vld [vmem:[%s491 + $0x8] sm:$0xfc]
        %v1400 = vld [vmem:[%s491 + $0x10] sm:$0xfc]
        %v1401 = vld [vmem:[%s491 + $0x148] sm:$0x3]
        %v1402 = vld [vmem:[%s491 + $0x150] sm:$0x3]
        %v1407 = vrot.slane %v1399, 2
        %v1408 = vrot.slane %v1078, 2
        %v1409 = vsel %vm882, %v1407, %v1408
        %v1410 = vrot.slane %v1400, 2
        %v1411 = vrot.slane %v1079, 2
        %v1412 = vsel %vm882, %v1410, %v1411
        %v1413 = vrot.slane %v1080, 2
        %v1414 = vsel %vm882, %v1408, %v1413
        %v1415 = vrot.slane %v1081, 2
        %v1416 = vsel %vm882, %v1411, %v1415
        %v1417 = vrot.slane %v1082, 2
        %v1418 = vsel %vm882, %v1413, %v1417
        %v1419 = vrot.slane %v1083, 2
        %v1420 = vsel %vm882, %v1415, %v1419
        %v1421 = vrot.slane %v1084, 2
        %v1422 = vsel %vm882, %v1417, %v1421
        %v1423 = vrot.slane %v1085, 2
        %v1424 = vsel %vm882, %v1419, %v1423
        %v1425 = vrot.slane %v1086, 2
        %v1426 = vsel %vm882, %v1421, %v1425
        %v1427 = vrot.slane %v1087, 2
        %v1428 = vsel %vm882, %v1423, %v1427
        %v1429 = vrot.slane %v1088, 2
        %v1430 = vsel %vm882, %v1425, %v1429
        %v1431 = vrot.slane %v1089, 2
        %v1432 = vsel %vm882, %v1427, %v1431
        %v1433 = vrot.slane %v1090, 2
        %v1434 = vsel %vm882, %v1429, %v1433
        %v1435 = vrot.slane %v1091, 2
        %v1436 = vsel %vm882, %v1431, %v1435
        %v1437 = vrot.slane %v1401, 2
        %v1438 = vsel %vm882, %v1433, %v1437
        %v1439 = vrot.slane %v1402, 2
        %v1440 = vsel %vm882, %v1435, %v1439
        %v1449 = vsel %vm630, %v1412, 0
        %v1451 = vsel %vm630, %v1416, 0
        %v1453 = vsel %vm630, %v1420, 0
        %v1455 = vsel %vm630, %v1424, 0
        %v1457 = vsel %vm630, %v1428, 0
        %v1459 = vsel %vm630, %v1432, 0
        %v1461 = vsel %vm630, %v1436, 0
        %v1463 = vsel %vm630, %v1440, 0
        %1465 = vmatprep.subr.mxu0 0.0
        %1466 = vmatpush1.msra.mxu0 %v531
        %1467 = vmatprep.subr.mxu0 0.0
        %1468 = vmatpush1.msra.mxu0 %v532
        %1469 = vmatprep.subr.mxu0 0.0
        %1470 = vmatpush1.msra.mxu0 %v533
        %1471 = vmatprep.subr.mxu0 0.0
        %1472 = vmatpush1.msra.mxu0 %v534
        %1473 = vmatprep.subr.mxu0 0.0
        %1474 = vmatpush1.msra.mxu0 %v535
        %1475 = vmatprep.subr.mxu0 0.0
        %1476 = vmatpush1.msra.mxu0 %v536
        %1477 = vmatprep.subr.mxu0 0.0
        %1478 = vmatpush1.msra.mxu0 %v537
        %1479 = vmatprep.subr.mxu0 0.0
        %1480 = vmatpush1.msra.mxu0 %v538
        %1481 = vmatprep.subr.mxu0 0.0
        %1482 = vmatpush1.msra.mxu0 %v539
        %1483 = vmatprep.subr.mxu0 0.0
        %1484 = vmatpush1.msra.mxu0 %v540
        %1485 = vmatprep.subr.mxu0 0.0
        %1486 = vmatpush1.msra.mxu0 %v541
        %1487 = vmatprep.subr.mxu0 0.0
        %1488 = vmatpush1.msra.mxu0 %v542
        %1489 = vmatprep.subr.mxu0 0.0
        %1490 = vmatpush1.msra.mxu0 %v543
        %1491 = vmatprep.subr.mxu0 0.0
        %1492 = vmatpush1.msra.mxu0 %v544
        %1493 = vmatprep.subr.mxu0 0.0
        %1494 = vmatpush1.msra.mxu0 %v545
        %1495 = vmatprep.subr.mxu0 0.0
        %1496 = vmatpush1.msra.mxu0 %v546
        %1497 = vmatprep.subr.mxu0 0.0
        %1498 = vmatpush1.msra.mxu0 %v547
        %1499 = vmatprep.subr.mxu0 0.0
        %1500 = vmatpush1.msra.mxu0 %v548
        %1501 = vmatprep.subr.mxu0 0.0
        %1502 = vmatpush1.msra.mxu0 0.0
        %1503 = vmatprep.subr.mxu0 0.0
        %1504 = vmatpush1.msra.mxu0 0.0
        %1505 = vmatprep.subr.mxu0 0.0
        %1506 = vmatpush1.msra.mxu0 0.0
        %1507 = vmatprep.subr.mxu0 0.0
        %1508 = vmatpush1.msra.mxu0 0.0
        %1509 = vmatprep.subr.mxu0 0.0
        %1510 = vmatpush1.msra.mxu0 0.0
        %1511 = vmatprep.subr.mxu0 0.0
        %1512 = vmatpush1.msra.mxu0 0.0
        %1513 = vmatprep.subr.mxu0 0.0
        %1514 = vmatpush1.msra.mxu0 0.0
        %1515 = vmatprep.subr.mxu0 0.0
        %1516 = vmatpush1.msra.mxu0 0.0
        %1517 = vmatprep.subr.mxu0 0.0
        %1518 = vmatpush1.msra.mxu0 0.0
        %1519 = vmatprep.subr.mxu0 0.0
        %1520 = vmatpush1.msra.mxu0 0.0
        %1521 = vmatprep.subr.mxu0 0.0
        %1522 = vmatpush1.msra.mxu0 0.0
        %1523 = vmatprep.subr.mxu0 0.0
        %1524 = vmatpush1.msra.mxu0 0.0
        %1525 = vmatprep.subr.mxu0 0.0
        %1526 = vmatpush1.msra.mxu0 0.0
        %1527 = vmatprep.subr.mxu0 0.0
        %1528 = vmatpush1.msra.mxu0 0.0
        %1529 = vmatprep.mubr.f32.mxu0 %v1449
        %1530 = vmatmul.mubr.f32.gmra.mrb[0].mxu0 %v1409
        %v1531 = vpop.f32.mrb[0].mxu0
        %v1532 = vadd.f32 0.0, %v1531
        %v1533 = vpop.f32.mrb[0].mxu0
        %1534 = vmatprep.mubr.f32.mxu0 %v1451
        %1535 = vmatmul.mubr.f32.gmra.mrb[0].mxu0 %v1414
        %v1536 = vpop.f32.mrb[0].mxu0
        %v1537 = vadd.f32 0.0, %v1536
        %v1538 = vpop.f32.mrb[0].mxu0
        %1539 = vmatprep.mubr.f32.mxu0 %v1453
        %1540 = vmatmul.mubr.f32.gmra.mrb[0].mxu0 %v1418
        %v1541 = vpop.f32.mrb[0].mxu0
        %v1542 = vadd.f32 0.0, %v1541
        %v1543 = vpop.f32.mrb[0].mxu0
        %1544 = vmatprep.mubr.f32.mxu0 %v1455
        %1545 = vmatmul.mubr.f32.gmra.mrb[0].mxu0 %v1422
        %v1546 = vpop.f32.mrb[0].mxu0
        %v1547 = vadd.f32 0.0, %v1546
        %v1548 = vpop.f32.mrb[0].mxu0
        %1549 = vmatprep.mubr.f32.mxu0 %v1457
        %1550 = vmatmul.mubr.f32.gmra.mrb[0].mxu0 %v1426
        %v1551 = vpop.f32.mrb[0].mxu0
        %v1552 = vadd.f32 0.0, %v1551
        %v1553 = vpop.f32.mrb[0].mxu0
        %1554 = vmatprep.mubr.f32.mxu0 %v1459
        %1555 = vmatmul.mubr.f32.gmra.mrb[0].mxu0 %v1430
        %v1556 = vpop.f32.mrb[0].mxu0
        %v1557 = vadd.f32 0.0, %v1556
        %v1558 = vpop.f32.mrb[0].mxu0
        %1559 = vmatprep.mubr.f32.mxu0 %v1461
        %1560 = vmatmul.mubr.f32.gmra.mrb[0].mxu0 %v1434
        %v1561 = vpop.f32.mrb[0].mxu0
        %v1562 = vadd.f32 0.0, %v1561
        %v1563 = vpop.f32.mrb[0].mxu0
        %1564 = vmatprep.mubr.f32.mxu0 %v1463
        %1565 = vmatmul.mubr.f32.gmra.mrb[0].mxu0 %v1438
        %v1566 = vpop.f32.mrb[0].mxu0
        %v1567 = vadd.f32 0.0, %v1566
        %v1568 = vpop.f32.mrb[0].mxu0
        %1569 = vdwg.mxu0
        %v1570 = vadd.f32 %v1361, %v1532
        %v1571 = vadd.f32 %v1366, %v1537
        %v1572 = vadd.f32 %v1371, %v1542
        %v1573 = vadd.f32 %v1376, %v1547
        %v1574 = vadd.f32 %v1381, %v1552
        %v1575 = vadd.f32 %v1386, %v1557
        %v1576 = vadd.f32 %v1391, %v1562
        %v1577 = vadd.f32 %v1396, %v1567
        %v1578 = vadd.f32 %v1570, %v1058
        %v1579 = vadd.f32 %v1571, %v1058
        %v1580 = vadd.f32 %v1572, %v1058
        %v1581 = vadd.f32 %v1573, %v1058
        %v1582 = vadd.f32 %v1574, %v1058
        %v1583 = vadd.f32 %v1575, %v1058
        %v1584 = vadd.f32 %v1576, %v1058
        %v1585 = vadd.f32 %v1577, %v1058
        %v1586 = vmax.f32 %v1578, 0.0
        %v1587 = vmax.f32 %v1579, 0.0
        %v1588 = vmax.f32 %v1580, 0.0
        %v1589 = vmax.f32 %v1581, 0.0
        %v1590 = vmax.f32 %v1582, 0.0
        %v1591 = vmax.f32 %v1583, 0.0
        %v1592 = vmax.f32 %v1584, 0.0
        %v1593 = vmax.f32 %v1585, 0.0
        %v1594 = vld [vmem:[%s491 + $0x10] sm:$0xff]
        %v1595 = vld [vmem:[%s491 + $0x18] sm:$0xff]
        %v1596 = vld [vmem:[%s491 + $0x38] sm:$0xff]
        %v1597 = vld [vmem:[%s491 + $0x40] sm:$0xff]
        %v1598 = vld [vmem:[%s491 + $0x60] sm:$0xff]
        %v1599 = vld [vmem:[%s491 + $0x68] sm:$0xff]
        %v1600 = vld [vmem:[%s491 + $0x88] sm:$0xff]
        %v1601 = vld [vmem:[%s491 + $0x90] sm:$0xff]
        %v1602 = vld [vmem:[%s491 + $0xb0] sm:$0xff]
        %v1603 = vld [vmem:[%s491 + $0xb8] sm:$0xff]
        %v1604 = vld [vmem:[%s491 + $0xd8] sm:$0xff]
        %v1605 = vld [vmem:[%s491 + $0xe0] sm:$0xff]
        %v1606 = vld [vmem:[%s491 + $0x100] sm:$0xff]
        %v1607 = vld [vmem:[%s491 + $0x108] sm:$0xff]
        %v1608 = vld [vmem:[%s491 + $0x128] sm:$0xff]
        %v1609 = vld [vmem:[%s491 + $0x130] sm:$0xff]
        %v1610 = vld [vmem:[%s491 + $0x10] sm:$0xfe]
        %v1611 = vld [vmem:[%s491 + $0x18] sm:$0xfe]
        %v1612 = vld [vmem:[%s491 + $0x150] sm:$0x1]
        %v1613 = vld [vmem:[%s491 + $0x158] sm:$0x1]
        %v1632 = vrot.slane %v1610, 1
        %v1633 = vrot.slane %v1596, 1
        %v1634 = vsel %vm587, %v1632, %v1633
        %v1635 = vrot.slane %v1611, 1
        %v1636 = vrot.slane %v1597, 1
        %v1637 = vsel %vm587, %v1635, %v1636
        %v1638 = vrot.slane %v1598, 1
        %v1639 = vsel %vm587, %v1633, %v1638
        %v1640 = vrot.slane %v1599, 1
        %v1641 = vsel %vm587, %v1636, %v1640
        %v1642 = vrot.slane %v1600, 1
        %v1643 = vsel %vm587, %v1638, %v1642
        %v1644 = vrot.slane %v1601, 1
        %v1645 = vsel %vm587, %v1640, %v1644
        %v1646 = vrot.slane %v1602, 1
        %v1647 = vsel %vm587, %v1642, %v1646
        %v1648 = vrot.slane %v1603, 1
        %v1649 = vsel %vm587, %v1644, %v1648
        %v1650 = vrot.slane %v1604, 1
        %v1651 = vsel %vm587, %v1646, %v1650
        %v1652 = vrot.slane %v1605, 1
        %v1653 = vsel %vm587, %v1648, %v1652
        %v1654 = vrot.slane %v1606, 1
        %v1655 = vsel %vm587, %v1650, %v1654
        %v1656 = vrot.slane %v1607, 1
        %v1657 = vsel %vm587, %v1652, %v1656
        %v1658 = vrot.slane %v1608, 1
        %v1659 = vsel %vm587, %v1654, %v1658
        %v1660 = vrot.slane %v1609, 1
        %v1661 = vsel %vm587, %v1656, %v1660
        %v1662 = vrot.slane %v1612, 1
        %v1663 = vsel %vm587, %v1658, %v1662
        %v1664 = vrot.slane %v1613, 1
        %v1665 = vsel %vm587, %v1660, %v1664
        %v1674 = vsel %vm630, %v1637, 0
        %v1676 = vsel %vm630, %v1641, 0
        %v1678 = vsel %vm630, %v1645, 0
        %v1680 = vsel %vm630, %v1649, 0
        %v1682 = vsel %vm630, %v1653, 0
        %v1684 = vsel %vm630, %v1657, 0
        %v1686 = vsel %vm630, %v1661, 0
        %v1688 = vsel %vm630, %v1665, 0
        %1690 = vmatprep.subr.mxu0 0.0
        %1691 = vmatpush1.msra.mxu0 %v512
        %1692 = vmatprep.subr.mxu0 0.0
        %1693 = vmatpush1.msra.mxu0 %v513
        %1694 = vmatprep.subr.mxu0 0.0
        %1695 = vmatpush1.msra.mxu0 %v514
        %1696 = vmatprep.subr.mxu0 0.0
        %1697 = vmatpush1.msra.mxu0 %v515
        %1698 = vmatprep.subr.mxu0 0.0
        %1699 = vmatpush1.msra.mxu0 %v516
        %1700 = vmatprep.subr.mxu0 0.0
        %1701 = vmatpush1.msra.mxu0 %v517
        %1702 = vmatprep.subr.mxu0 0.0
        %1703 = vmatpush1.msra.mxu0 %v518
        %1704 = vmatprep.subr.mxu0 0.0
        %1705 = vmatpush1.msra.mxu0 %v519
        %1706 = vmatprep.subr.mxu0 0.0
        %1707 = vmatpush1.msra.mxu0 %v520
        %1708 = vmatprep.subr.mxu0 0.0
        %1709 = vmatpush1.msra.mxu0 %v521
        %1710 = vmatprep.subr.mxu0 0.0
        %1711 = vmatpush1.msra.mxu0 %v522
        %1712 = vmatprep.subr.mxu0 0.0
        %1713 = vmatpush1.msra.mxu0 %v523
        %1714 = vmatprep.subr.mxu0 0.0
        %1715 = vmatpush1.msra.mxu0 %v524
        %1716 = vmatprep.subr.mxu0 0.0
        %1717 = vmatpush1.msra.mxu0 %v525
        %1718 = vmatprep.subr.mxu0 0.0
        %1719 = vmatpush1.msra.mxu0 %v526
        %1720 = vmatprep.subr.mxu0 0.0
        %1721 = vmatpush1.msra.mxu0 %v527
        %1722 = vmatprep.subr.mxu0 0.0
        %1723 = vmatpush1.msra.mxu0 %v528
        %1724 = vmatprep.subr.mxu0 0.0
        %1725 = vmatpush1.msra.mxu0 %v529
        %1726 = vmatprep.subr.mxu0 0.0
        %1727 = vmatpush1.msra.mxu0 0.0
        %1728 = vmatprep.subr.mxu0 0.0
        %1729 = vmatpush1.msra.mxu0 0.0
        %1730 = vmatprep.subr.mxu0 0.0
        %1731 = vmatpush1.msra.mxu0 0.0
        %1732 = vmatprep.subr.mxu0 0.0
        %1733 = vmatpush1.msra.mxu0 0.0
        %1734 = vmatprep.subr.mxu0 0.0
        %1735 = vmatpush1.msra.mxu0 0.0
        %1736 = vmatprep.subr.mxu0 0.0
        %1737 = vmatpush1.msra.mxu0 0.0
        %1738 = vmatprep.subr.mxu0 0.0
        %1739 = vmatpush1.msra.mxu0 0.0
        %1740 = vmatprep.subr.mxu0 0.0
        %1741 = vmatpush1.msra.mxu0 0.0
        %1742 = vmatprep.subr.mxu0 0.0
        %1743 = vmatpush1.msra.mxu0 0.0
        %1744 = vmatprep.subr.mxu0 0.0
        %1745 = vmatpush1.msra.mxu0 0.0
        %1746 = vmatprep.subr.mxu0 0.0
        %1747 = vmatpush1.msra.mxu0 0.0
        %1748 = vmatprep.subr.mxu0 0.0
        %1749 = vmatpush1.msra.mxu0 0.0
        %1750 = vmatprep.subr.mxu0 0.0
        %1751 = vmatpush1.msra.mxu0 0.0
        %1752 = vmatprep.subr.mxu0 0.0
        %1753 = vmatpush1.msra.mxu0 0.0
        %1754 = vmatprep.mubr.f32.mxu0 %v1674
        %1755 = vmatmul.mubr.f32.gmra.mrb[0].mxu0 %v1634
        %v1756 = vpop.f32.mrb[0].mxu0
        %v1757 = vadd.f32 0.0, %v1756
        %v1758 = vpop.f32.mrb[0].mxu0
        %1759 = vmatprep.mubr.f32.mxu0 %v1676
        %1760 = vmatmul.mubr.f32.gmra.mrb[0].mxu0 %v1639
        %v1761 = vpop.f32.mrb[0].mxu0
        %v1762 = vadd.f32 0.0, %v1761
        %v1763 = vpop.f32.mrb[0].mxu0
        %1764 = vmatprep.mubr.f32.mxu0 %v1678
        %1765 = vmatmul.mubr.f32.gmra.mrb[0].mxu0 %v1643
        %v1766 = vpop.f32.mrb[0].mxu0
        %v1767 = vadd.f32 0.0, %v1766
        %v1768 = vpop.f32.mrb[0].mxu0
        %1769 = vmatprep.mubr.f32.mxu0 %v1680
        %1770 = vmatmul.mubr.f32.gmra.mrb[0].mxu0 %v1647
        %v1771 = vpop.f32.mrb[0].mxu0
        %v1772 = vadd.f32 0.0, %v1771
        %v1773 = vpop.f32.mrb[0].mxu0
        %1774 = vmatprep.mubr.f32.mxu0 %v1682
        %1775 = vmatmul.mubr.f32.gmra.mrb[0].mxu0 %v1651
        %v1776 = vpop.f32.mrb[0].mxu0
        %v1777 = vadd.f32 0.0, %v1776
        %v1778 = vpop.f32.mrb[0].mxu0
        %1779 = vmatprep.mubr.f32.mxu0 %v1684
        %1780 = vmatmul.mubr.f32.gmra.mrb[0].mxu0 %v1655
        %v1781 = vpop.f32.mrb[0].mxu0
        %v1782 = vadd.f32 0.0, %v1781
        %v1783 = vpop.f32.mrb[0].mxu0
        %1784 = vmatprep.mubr.f32.mxu0 %v1686
        %1785 = vmatmul.mubr.f32.gmra.mrb[0].mxu0 %v1659
        %v1786 = vpop.f32.mrb[0].mxu0
        %v1787 = vadd.f32 0.0, %v1786
        %v1788 = vpop.f32.mrb[0].mxu0
        %1789 = vmatprep.mubr.f32.mxu0 %v1688
        %1790 = vmatmul.mubr.f32.gmra.mrb[0].mxu0 %v1663
        %v1791 = vpop.f32.mrb[0].mxu0
        %v1792 = vadd.f32 0.0, %v1791
        %v1793 = vpop.f32.mrb[0].mxu0
        %1794 = vdwg.mxu0
        %v1796 = vsel %vm630, %v1595, 0
        %v1798 = vsel %vm630, %v1597, 0
        %v1800 = vsel %vm630, %v1599, 0
        %v1802 = vsel %vm630, %v1601, 0
        %v1804 = vsel %vm630, %v1603, 0
        %v1806 = vsel %vm630, %v1605, 0
        %v1808 = vsel %vm630, %v1607, 0
        %v1810 = vsel %vm630, %v1609, 0
        %1812 = vmatprep.subr.mxu0 0.0
        %1813 = vmatpush1.msra.mxu0 %v493
        %1814 = vmatprep.subr.mxu0 0.0
        %1815 = vmatpush1.msra.mxu0 %v494
        %1816 = vmatprep.subr.mxu0 0.0
        %1817 = vmatpush1.msra.mxu0 %v495
        %1818 = vmatprep.subr.mxu0 0.0
        %1819 = vmatpush1.msra.mxu0 %v496
        %1820 = vmatprep.subr.mxu0 0.0
        %1821 = vmatpush1.msra.mxu0 %v497
        %1822 = vmatprep.subr.mxu0 0.0
        %1823 = vmatpush1.msra.mxu0 %v498
        %1824 = vmatprep.subr.mxu0 0.0
        %1825 = vmatpush1.msra.mxu0 %v499
        %1826 = vmatprep.subr.mxu0 0.0
        %1827 = vmatpush1.msra.mxu0 %v500
        %1828 = vmatprep.subr.mxu0 0.0
        %1829 = vmatpush1.msra.mxu0 %v501
        %1830 = vmatprep.subr.mxu0 0.0
        %1831 = vmatpush1.msra.mxu0 %v502
        %1832 = vmatprep.subr.mxu0 0.0
        %1833 = vmatpush1.msra.mxu0 %v503
        %1834 = vmatprep.subr.mxu0 0.0
        %1835 = vmatpush1.msra.mxu0 %v504
        %1836 = vmatprep.subr.mxu0 0.0
        %1837 = vmatpush1.msra.mxu0 %v505
        %1838 = vmatprep.subr.mxu0 0.0
        %1839 = vmatpush1.msra.mxu0 %v506
        %1840 = vmatprep.subr.mxu0 0.0
        %1841 = vmatpush1.msra.mxu0 %v507
        %1842 = vmatprep.subr.mxu0 0.0
        %1843 = vmatpush1.msra.mxu0 %v508
        %1844 = vmatprep.subr.mxu0 0.0
        %1845 = vmatpush1.msra.mxu0 %v509
        %1846 = vmatprep.subr.mxu0 0.0
        %1847 = vmatpush1.msra.mxu0 %v510
        %1848 = vmatprep.subr.mxu0 0.0
        %1849 = vmatpush1.msra.mxu0 0.0
        %1850 = vmatprep.subr.mxu0 0.0
        %1851 = vmatpush1.msra.mxu0 0.0
        %1852 = vmatprep.subr.mxu0 0.0
        %1853 = vmatpush1.msra.mxu0 0.0
        %1854 = vmatprep.subr.mxu0 0.0
        %1855 = vmatpush1.msra.mxu0 0.0
        %1856 = vmatprep.subr.mxu0 0.0
        %1857 = vmatpush1.msra.mxu0 0.0
        %1858 = vmatprep.subr.mxu0 0.0
        %1859 = vmatpush1.msra.mxu0 0.0
        %1860 = vmatprep.subr.mxu0 0.0
        %1861 = vmatpush1.msra.mxu0 0.0
        %1862 = vmatprep.subr.mxu0 0.0
        %1863 = vmatpush1.msra.mxu0 0.0
        %1864 = vmatprep.subr.mxu0 0.0
        %1865 = vmatpush1.msra.mxu0 0.0
        %1866 = vmatprep.subr.mxu0 0.0
        %1867 = vmatpush1.msra.mxu0 0.0
        %1868 = vmatprep.subr.mxu0 0.0
        %1869 = vmatpush1.msra.mxu0 0.0
        %1870 = vmatprep.subr.mxu0 0.0
        %1871 = vmatpush1.msra.mxu0 0.0
        %1872 = vmatprep.subr.mxu0 0.0
        %1873 = vmatpush1.msra.mxu0 0.0
        %1874 = vmatprep.subr.mxu0 0.0
        %1875 = vmatpush1.msra.mxu0 0.0
        %1876 = vmatprep.mubr.f32.mxu0 %v1796
        %1877 = vmatmul.mubr.f32.gmra.mrb[0].mxu0 %v1594
        %v1878 = vpop.f32.mrb[0].mxu0
        %v1879 = vadd.f32 %v1757, %v1878
        %v1880 = vpop.f32.mrb[0].mxu0
        %1881 = vmatprep.mubr.f32.mxu0 %v1798
        %1882 = vmatmul.mubr.f32.gmra.mrb[0].mxu0 %v1596
        %v1883 = vpop.f32.mrb[0].mxu0
        %v1884 = vadd.f32 %v1762, %v1883
        %v1885 = vpop.f32.mrb[0].mxu0
        %1886 = vmatprep.mubr.f32.mxu0 %v1800
        %1887 = vmatmul.mubr.f32.gmra.mrb[0].mxu0 %v1598
        %v1888 = vpop.f32.mrb[0].mxu0
        %v1889 = vadd.f32 %v1767, %v1888
        %v1890 = vpop.f32.mrb[0].mxu0
        %1891 = vmatprep.mubr.f32.mxu0 %v1802
        %1892 = vmatmul.mubr.f32.gmra.mrb[0].mxu0 %v1600
        %v1893 = vpop.f32.mrb[0].mxu0
        %v1894 = vadd.f32 %v1772, %v1893
        %v1895 = vpop.f32.mrb[0].mxu0
        %1896 = vmatprep.mubr.f32.mxu0 %v1804
        %1897 = vmatmul.mubr.f32.gmra.mrb[0].mxu0 %v1602
        %v1898 = vpop.f32.mrb[0].mxu0
        %v1899 = vadd.f32 %v1777, %v1898
        %v1900 = vpop.f32.mrb[0].mxu0
        %1901 = vmatprep.mubr.f32.mxu0 %v1806
        %1902 = vmatmul.mubr.f32.gmra.mrb[0].mxu0 %v1604
        %v1903 = vpop.f32.mrb[0].mxu0
        %v1904 = vadd.f32 %v1782, %v1903
        %v1905 = vpop.f32.mrb[0].mxu0
        %1906 = vmatprep.mubr.f32.mxu0 %v1808
        %1907 = vmatmul.mubr.f32.gmra.mrb[0].mxu0 %v1606
        %v1908 = vpop.f32.mrb[0].mxu0
        %v1909 = vadd.f32 %v1787, %v1908
        %v1910 = vpop.f32.mrb[0].mxu0
        %1911 = vmatprep.mubr.f32.mxu0 %v1810
        %1912 = vmatmul.mubr.f32.gmra.mrb[0].mxu0 %v1608
        %v1913 = vpop.f32.mrb[0].mxu0
        %v1914 = vadd.f32 %v1792, %v1913
        %v1915 = vpop.f32.mrb[0].mxu0
        %1916 = vdwg.mxu0
        %v1917 = vld [vmem:[%s491 + $0x10] sm:$0xfc]
        %v1918 = vld [vmem:[%s491 + $0x18] sm:$0xfc]
        %v1919 = vld [vmem:[%s491 + $0x150] sm:$0x3]
        %v1920 = vld [vmem:[%s491 + $0x158] sm:$0x3]
        %v1925 = vrot.slane %v1917, 2
        %v1926 = vrot.slane %v1596, 2
        %v1927 = vsel %vm882, %v1925, %v1926
        %v1928 = vrot.slane %v1918, 2
        %v1929 = vrot.slane %v1597, 2
        %v1930 = vsel %vm882, %v1928, %v1929
        %v1931 = vrot.slane %v1598, 2
        %v1932 = vsel %vm882, %v1926, %v1931
        %v1933 = vrot.slane %v1599, 2
        %v1934 = vsel %vm882, %v1929, %v1933
        %v1935 = vrot.slane %v1600, 2
        %v1936 = vsel %vm882, %v1931, %v1935
        %v1937 = vrot.slane %v1601, 2
        %v1938 = vsel %vm882, %v1933, %v1937
        %v1939 = vrot.slane %v1602, 2
        %v1940 = vsel %vm882, %v1935, %v1939
        %v1941 = vrot.slane %v1603, 2
        %v1942 = vsel %vm882, %v1937, %v1941
        %v1943 = vrot.slane %v1604, 2
        %v1944 = vsel %vm882, %v1939, %v1943
        %v1945 = vrot.slane %v1605, 2
        %v1946 = vsel %vm882, %v1941, %v1945
        %v1947 = vrot.slane %v1606, 2
        %v1948 = vsel %vm882, %v1943, %v1947
        %v1949 = vrot.slane %v1607, 2
        %v1950 = vsel %vm882, %v1945, %v1949
        %v1951 = vrot.slane %v1608, 2
        %v1952 = vsel %vm882, %v1947, %v1951
        %v1953 = vrot.slane %v1609, 2
        %v1954 = vsel %vm882, %v1949, %v1953
        %v1955 = vrot.slane %v1919, 2
        %v1956 = vsel %vm882, %v1951, %v1955
        %v1957 = vrot.slane %v1920, 2
        %v1958 = vsel %vm882, %v1953, %v1957
        %v1967 = vsel %vm630, %v1930, 0
        %v1969 = vsel %vm630, %v1934, 0
        %v1971 = vsel %vm630, %v1938, 0
        %v1973 = vsel %vm630, %v1942, 0
        %v1975 = vsel %vm630, %v1946, 0
        %v1977 = vsel %vm630, %v1950, 0
        %v1979 = vsel %vm630, %v1954, 0
        %v1981 = vsel %vm630, %v1958, 0
        %1983 = vmatprep.subr.mxu0 0.0
        %1984 = vmatpush1.msra.mxu0 %v531
        %1985 = vmatprep.subr.mxu0 0.0
        %1986 = vmatpush1.msra.mxu0 %v532
        %1987 = vmatprep.subr.mxu0 0.0
        %1988 = vmatpush1.msra.mxu0 %v533
        %1989 = vmatprep.subr.mxu0 0.0
        %1990 = vmatpush1.msra.mxu0 %v534
        %1991 = vmatprep.subr.mxu0 0.0
        %1992 = vmatpush1.msra.mxu0 %v535
        %1993 = vmatprep.subr.mxu0 0.0
        %1994 = vmatpush1.msra.mxu0 %v536
        %1995 = vmatprep.subr.mxu0 0.0
        %1996 = vmatpush1.msra.mxu0 %v537
        %1997 = vmatprep.subr.mxu0 0.0
        %1998 = vmatpush1.msra.mxu0 %v538
        %1999 = vmatprep.subr.mxu0 0.0
        %2000 = vmatpush1.msra.mxu0 %v539
        %2001 = vmatprep.subr.mxu0 0.0
        %2002 = vmatpush1.msra.mxu0 %v540
        %2003 = vmatprep.subr.mxu0 0.0
        %2004 = vmatpush1.msra.mxu0 %v541
        %2005 = vmatprep.subr.mxu0 0.0
        %2006 = vmatpush1.msra.mxu0 %v542
        %2007 = vmatprep.subr.mxu0 0.0
        %2008 = vmatpush1.msra.mxu0 %v543
        %2009 = vmatprep.subr.mxu0 0.0
        %2010 = vmatpush1.msra.mxu0 %v544
        %2011 = vmatprep.subr.mxu0 0.0
        %2012 = vmatpush1.msra.mxu0 %v545
        %2013 = vmatprep.subr.mxu0 0.0
        %2014 = vmatpush1.msra.mxu0 %v546
        %2015 = vmatprep.subr.mxu0 0.0
        %2016 = vmatpush1.msra.mxu0 %v547
        %2017 = vmatprep.subr.mxu0 0.0
        %2018 = vmatpush1.msra.mxu0 %v548
        %2019 = vmatprep.subr.mxu0 0.0
        %2020 = vmatpush1.msra.mxu0 0.0
        %2021 = vmatprep.subr.mxu0 0.0
        %2022 = vmatpush1.msra.mxu0 0.0
        %2023 = vmatprep.subr.mxu0 0.0
        %2024 = vmatpush1.msra.mxu0 0.0
        %2025 = vmatprep.subr.mxu0 0.0
        %2026 = vmatpush1.msra.mxu0 0.0
        %2027 = vmatprep.subr.mxu0 0.0
        %2028 = vmatpush1.msra.mxu0 0.0
        %2029 = vmatprep.subr.mxu0 0.0
        %2030 = vmatpush1.msra.mxu0 0.0
        %2031 = vmatprep.subr.mxu0 0.0
        %2032 = vmatpush1.msra.mxu0 0.0
        %2033 = vmatprep.subr.mxu0 0.0
        %2034 = vmatpush1.msra.mxu0 0.0
        %2035 = vmatprep.subr.mxu0 0.0
        %2036 = vmatpush1.msra.mxu0 0.0
        %2037 = vmatprep.subr.mxu0 0.0
        %2038 = vmatpush1.msra.mxu0 0.0
        %2039 = vmatprep.subr.mxu0 0.0
        %2040 = vmatpush1.msra.mxu0 0.0
        %2041 = vmatprep.subr.mxu0 0.0
        %2042 = vmatpush1.msra.mxu0 0.0
        %2043 = vmatprep.subr.mxu0 0.0
        %2044 = vmatpush1.msra.mxu0 0.0
        %2045 = vmatprep.subr.mxu0 0.0
        %2046 = vmatpush1.msra.mxu0 0.0
        %2047 = vmatprep.mubr.f32.mxu0 %v1967
        %2048 = vmatmul.mubr.f32.gmra.mrb[0].mxu0 %v1927
        %v2049 = vpop.f32.mrb[0].mxu0
        %v2050 = vadd.f32 0.0, %v2049
        %v2051 = vpop.f32.mrb[0].mxu0
        %2052 = vmatprep.mubr.f32.mxu0 %v1969
        %2053 = vmatmul.mubr.f32.gmra.mrb[0].mxu0 %v1932
        %v2054 = vpop.f32.mrb[0].mxu0
        %v2055 = vadd.f32 0.0, %v2054
        %v2056 = vpop.f32.mrb[0].mxu0
        %2057 = vmatprep.mubr.f32.mxu0 %v1971
        %2058 = vmatmul.mubr.f32.gmra.mrb[0].mxu0 %v1936
        %v2059 = vpop.f32.mrb[0].mxu0
        %v2060 = vadd.f32 0.0, %v2059
        %v2061 = vpop.f32.mrb[0].mxu0
        %2062 = vmatprep.mubr.f32.mxu0 %v1973
        %2063 = vmatmul.mubr.f32.gmra.mrb[0].mxu0 %v1940
        %v2064 = vpop.f32.mrb[0].mxu0
        %v2065 = vadd.f32 0.0, %v2064
        %v2066 = vpop.f32.mrb[0].mxu0
        %2067 = vmatprep.mubr.f32.mxu0 %v1975
        %2068 = vmatmul.mubr.f32.gmra.mrb[0].mxu0 %v1944
        %v2069 = vpop.f32.mrb[0].mxu0
        %v2070 = vadd.f32 0.0, %v2069
        %v2071 = vpop.f32.mrb[0].mxu0
        %2072 = vmatprep.mubr.f32.mxu0 %v1977
        %2073 = vmatmul.mubr.f32.gmra.mrb[0].mxu0 %v1948
        %v2074 = vpop.f32.mrb[0].mxu0
        %v2075 = vadd.f32 0.0, %v2074
        %v2076 = vpop.f32.mrb[0].mxu0
        %2077 = vmatprep.mubr.f32.mxu0 %v1979
        %2078 = vmatmul.mubr.f32.gmra.mrb[0].mxu0 %v1952
        %v2079 = vpop.f32.mrb[0].mxu0
        %v2080 = vadd.f32 0.0, %v2079
        %v2081 = vpop.f32.mrb[0].mxu0
        %2082 = vmatprep.mubr.f32.mxu0 %v1981
        %2083 = vmatmul.mubr.f32.gmra.mrb[0].mxu0 %v1956
        %v2084 = vpop.f32.mrb[0].mxu0
        %v2085 = vadd.f32 0.0, %v2084
        %v2086 = vpop.f32.mrb[0].mxu0
        %2087 = vdwg.mxu0
        %v2088 = vadd.f32 %v1879, %v2050
        %v2089 = vadd.f32 %v1884, %v2055
        %v2090 = vadd.f32 %v1889, %v2060
        %v2091 = vadd.f32 %v1894, %v2065
        %v2092 = vadd.f32 %v1899, %v2070
        %v2093 = vadd.f32 %v1904, %v2075
        %v2094 = vadd.f32 %v1909, %v2080
        %v2095 = vadd.f32 %v1914, %v2085
        %v2096 = vadd.f32 %v2088, %v1058
        %v2097 = vadd.f32 %v2089, %v1058
        %v2098 = vadd.f32 %v2090, %v1058
        %v2099 = vadd.f32 %v2091, %v1058
        %v2100 = vadd.f32 %v2092, %v1058
        %v2101 = vadd.f32 %v2093, %v1058
        %v2102 = vadd.f32 %v2094, %v1058
        %v2103 = vadd.f32 %v2095, %v1058
        %v2104 = vmax.f32 %v2096, 0.0
        %v2105 = vmax.f32 %v2097, 0.0
        %v2106 = vmax.f32 %v2098, 0.0
        %v2107 = vmax.f32 %v2099, 0.0
        %v2108 = vmax.f32 %v2100, 0.0
        %v2109 = vmax.f32 %v2101, 0.0
        %v2110 = vmax.f32 %v2102, 0.0
        %v2111 = vmax.f32 %v2103, 0.0
        %v2112 = vld [vmem:[%s491 + $0x18] sm:$0xff]
        %v2113 = vld [vmem:[%s491 + $0x20] sm:$0xff]
        %v2114 = vld [vmem:[%s491 + $0x40] sm:$0xff]
        %v2115 = vld [vmem:[%s491 + $0x48] sm:$0xff]
        %v2116 = vld [vmem:[%s491 + $0x68] sm:$0xff]
        %v2117 = vld [vmem:[%s491 + $0x70] sm:$0xff]
        %v2118 = vld [vmem:[%s491 + $0x90] sm:$0xff]
        %v2119 = vld [vmem:[%s491 + $0x98] sm:$0xff]
        %v2120 = vld [vmem:[%s491 + $0xb8] sm:$0xff]
        %v2121 = vld [vmem:[%s491 + $0xc0] sm:$0xff]
        %v2122 = vld [vmem:[%s491 + $0xe0] sm:$0xff]
        %v2123 = vld [vmem:[%s491 + $0xe8] sm:$0xff]
        %v2124 = vld [vmem:[%s491 + $0x108] sm:$0xff]
        %v2125 = vld [vmem:[%s491 + $0x110] sm:$0xff]
        %v2126 = vld [vmem:[%s491 + $0x130] sm:$0xff]
        %v2127 = vld [vmem:[%s491 + $0x138] sm:$0xff]
        %v2128 = vld [vmem:[%s491 + $0x18] sm:$0xfe]
        %v2129 = vld [vmem:[%s491 + $0x20] sm:$0xfe]
        %v2130 = vld [vmem:[%s491 + $0x158] sm:$0x1]
        %v2131 = vld [vmem:[%s491 + $0x160] sm:$0x1]
        %v2150 = vrot.slane %v2128, 1
        %v2151 = vrot.slane %v2114, 1
        %v2152 = vsel %vm587, %v2150, %v2151
        %v2153 = vrot.slane %v2129, 1
        %v2154 = vrot.slane %v2115, 1
        %v2155 = vsel %vm587, %v2153, %v2154
        %v2156 = vrot.slane %v2116, 1
        %v2157 = vsel %vm587, %v2151, %v2156
        %v2158 = vrot.slane %v2117, 1
        %v2159 = vsel %vm587, %v2154, %v2158
        %v2160 = vrot.slane %v2118, 1
        %v2161 = vsel %vm587, %v2156, %v2160
        %v2162 = vrot.slane %v2119, 1
        %v2163 = vsel %vm587, %v2158, %v2162
        %v2164 = vrot.slane %v2120, 1
        %v2165 = vsel %vm587, %v2160, %v2164
        %v2166 = vrot.slane %v2121, 1
        %v2167 = vsel %vm587, %v2162, %v2166
        %v2168 = vrot.slane %v2122, 1
        %v2169 = vsel %vm587, %v2164, %v2168
        %v2170 = vrot.slane %v2123, 1
        %v2171 = vsel %vm587, %v2166, %v2170
        %v2172 = vrot.slane %v2124, 1
        %v2173 = vsel %vm587, %v2168, %v2172
        %v2174 = vrot.slane %v2125, 1
        %v2175 = vsel %vm587, %v2170, %v2174
        %v2176 = vrot.slane %v2126, 1
        %v2177 = vsel %vm587, %v2172, %v2176
        %v2178 = vrot.slane %v2127, 1
        %v2179 = vsel %vm587, %v2174, %v2178
        %v2180 = vrot.slane %v2130, 1
        %v2181 = vsel %vm587, %v2176, %v2180
        %v2182 = vrot.slane %v2131, 1
        %v2183 = vsel %vm587, %v2178, %v2182
        %v2192 = vsel %vm630, %v2155, 0
        %v2194 = vsel %vm630, %v2159, 0
        %v2196 = vsel %vm630, %v2163, 0
        %v2198 = vsel %vm630, %v2167, 0
        %v2200 = vsel %vm630, %v2171, 0
        %v2202 = vsel %vm630, %v2175, 0
        %v2204 = vsel %vm630, %v2179, 0
        %v2206 = vsel %vm630, %v2183, 0
        %2208 = vmatprep.subr.mxu0 0.0
        %2209 = vmatpush1.msra.mxu0 %v512
        %2210 = vmatprep.subr.mxu0 0.0
        %2211 = vmatpush1.msra.mxu0 %v513
        %2212 = vmatprep.subr.mxu0 0.0
        %2213 = vmatpush1.msra.mxu0 %v514
        %2214 = vmatprep.subr.mxu0 0.0
        %2215 = vmatpush1.msra.mxu0 %v515
        %2216 = vmatprep.subr.mxu0 0.0
        %2217 = vmatpush1.msra.mxu0 %v516
        %2218 = vmatprep.subr.mxu0 0.0
        %2219 = vmatpush1.msra.mxu0 %v517
        %2220 = vmatprep.subr.mxu0 0.0
        %2221 = vmatpush1.msra.mxu0 %v518
        %2222 = vmatprep.subr.mxu0 0.0
        %2223 = vmatpush1.msra.mxu0 %v519
        %2224 = vmatprep.subr.mxu0 0.0
        %2225 = vmatpush1.msra.mxu0 %v520
        %2226 = vmatprep.subr.mxu0 0.0
        %2227 = vmatpush1.msra.mxu0 %v521
        %2228 = vmatprep.subr.mxu0 0.0
        %2229 = vmatpush1.msra.mxu0 %v522
        %2230 = vmatprep.subr.mxu0 0.0
        %2231 = vmatpush1.msra.mxu0 %v523
        %2232 = vmatprep.subr.mxu0 0.0
        %2233 = vmatpush1.msra.mxu0 %v524
        %2234 = vmatprep.subr.mxu0 0.0
        %2235 = vmatpush1.msra.mxu0 %v525
        %2236 = vmatprep.subr.mxu0 0.0
        %2237 = vmatpush1.msra.mxu0 %v526
        %2238 = vmatprep.subr.mxu0 0.0
        %2239 = vmatpush1.msra.mxu0 %v527
        %2240 = vmatprep.subr.mxu0 0.0
        %2241 = vmatpush1.msra.mxu0 %v528
        %2242 = vmatprep.subr.mxu0 0.0
        %2243 = vmatpush1.msra.mxu0 %v529
        %2244 = vmatprep.subr.mxu0 0.0
        %2245 = vmatpush1.msra.mxu0 0.0
        %2246 = vmatprep.subr.mxu0 0.0
        %2247 = vmatpush1.msra.mxu0 0.0
        %2248 = vmatprep.subr.mxu0 0.0
        %2249 = vmatpush1.msra.mxu0 0.0
        %2250 = vmatprep.subr.mxu0 0.0
        %2251 = vmatpush1.msra.mxu0 0.0
        %2252 = vmatprep.subr.mxu0 0.0
        %2253 = vmatpush1.msra.mxu0 0.0
        %2254 = vmatprep.subr.mxu0 0.0
        %2255 = vmatpush1.msra.mxu0 0.0
        %2256 = vmatprep.subr.mxu0 0.0
        %2257 = vmatpush1.msra.mxu0 0.0
        %2258 = vmatprep.subr.mxu0 0.0
        %2259 = vmatpush1.msra.mxu0 0.0
        %2260 = vmatprep.subr.mxu0 0.0
        %2261 = vmatpush1.msra.mxu0 0.0
        %2262 = vmatprep.subr.mxu0 0.0
        %2263 = vmatpush1.msra.mxu0 0.0
        %2264 = vmatprep.subr.mxu0 0.0
        %2265 = vmatpush1.msra.mxu0 0.0
        %2266 = vmatprep.subr.mxu0 0.0
        %2267 = vmatpush1.msra.mxu0 0.0
        %2268 = vmatprep.subr.mxu0 0.0
        %2269 = vmatpush1.msra.mxu0 0.0
        %2270 = vmatprep.subr.mxu0 0.0
        %2271 = vmatpush1.msra.mxu0 0.0
        %2272 = vmatprep.mubr.f32.mxu0 %v2192
        %2273 = vmatmul.mubr.f32.gmra.mrb[0].mxu0 %v2152
        %v2274 = vpop.f32.mrb[0].mxu0
        %v2275 = vadd.f32 0.0, %v2274
        %v2276 = vpop.f32.mrb[0].mxu0
        %2277 = vmatprep.mubr.f32.mxu0 %v2194
        %2278 = vmatmul.mubr.f32.gmra.mrb[0].mxu0 %v2157
        %v2279 = vpop.f32.mrb[0].mxu0
        %v2280 = vadd.f32 0.0, %v2279
        %v2281 = vpop.f32.mrb[0].mxu0
        %2282 = vmatprep.mubr.f32.mxu0 %v2196
        %2283 = vmatmul.mubr.f32.gmra.mrb[0].mxu0 %v2161
        %v2284 = vpop.f32.mrb[0].mxu0
        %v2285 = vadd.f32 0.0, %v2284
        %v2286 = vpop.f32.mrb[0].mxu0
        %2287 = vmatprep.mubr.f32.mxu0 %v2198
        %2288 = vmatmul.mubr.f32.gmra.mrb[0].mxu0 %v2165
        %v2289 = vpop.f32.mrb[0].mxu0
        %v2290 = vadd.f32 0.0, %v2289
        %v2291 = vpop.f32.mrb[0].mxu0
        %2292 = vmatprep.mubr.f32.mxu0 %v2200
        %2293 = vmatmul.mubr.f32.gmra.mrb[0].mxu0 %v2169
        %v2294 = vpop.f32.mrb[0].mxu0
        %v2295 = vadd.f32 0.0, %v2294
        %v2296 = vpop.f32.mrb[0].mxu0
        %2297 = vmatprep.mubr.f32.mxu0 %v2202
        %2298 = vmatmul.mubr.f32.gmra.mrb[0].mxu0 %v2173
        %v2299 = vpop.f32.mrb[0].mxu0
        %v2300 = vadd.f32 0.0, %v2299
        %v2301 = vpop.f32.mrb[0].mxu0
        %2302 = vmatprep.mubr.f32.mxu0 %v2204
        %2303 = vmatmul.mubr.f32.gmra.mrb[0].mxu0 %v2177
        %v2304 = vpop.f32.mrb[0].mxu0
        %v2305 = vadd.f32 0.0, %v2304
        %v2306 = vpop.f32.mrb[0].mxu0
        %2307 = vmatprep.mubr.f32.mxu0 %v2206
        %2308 = vmatmul.mubr.f32.gmra.mrb[0].mxu0 %v2181
        %v2309 = vpop.f32.mrb[0].mxu0
        %v2310 = vadd.f32 0.0, %v2309
        %v2311 = vpop.f32.mrb[0].mxu0
        %2312 = vdwg.mxu0
        %v2314 = vsel %vm630, %v2113, 0
        %v2316 = vsel %vm630, %v2115, 0
        %v2318 = vsel %vm630, %v2117, 0
        %v2320 = vsel %vm630, %v2119, 0
        %v2322 = vsel %vm630, %v2121, 0
        %v2324 = vsel %vm630, %v2123, 0
        %v2326 = vsel %vm630, %v2125, 0
        %v2328 = vsel %vm630, %v2127, 0
        %2330 = vmatprep.subr.mxu0 0.0
        %2331 = vmatpush1.msra.mxu0 %v493
        %2332 = vmatprep.subr.mxu0 0.0
        %2333 = vmatpush1.msra.mxu0 %v494
        %2334 = vmatprep.subr.mxu0 0.0
        %2335 = vmatpush1.msra.mxu0 %v495
        %2336 = vmatprep.subr.mxu0 0.0
        %2337 = vmatpush1.msra.mxu0 %v496
        %2338 = vmatprep.subr.mxu0 0.0
        %2339 = vmatpush1.msra.mxu0 %v497
        %2340 = vmatprep.subr.mxu0 0.0
        %2341 = vmatpush1.msra.mxu0 %v498
        %2342 = vmatprep.subr.mxu0 0.0
        %2343 = vmatpush1.msra.mxu0 %v499
        %2344 = vmatprep.subr.mxu0 0.0
        %2345 = vmatpush1.msra.mxu0 %v500
        %2346 = vmatprep.subr.mxu0 0.0
        %2347 = vmatpush1.msra.mxu0 %v501
        %2348 = vmatprep.subr.mxu0 0.0
        %2349 = vmatpush1.msra.mxu0 %v502
        %2350 = vmatprep.subr.mxu0 0.0
        %2351 = vmatpush1.msra.mxu0 %v503
        %2352 = vmatprep.subr.mxu0 0.0
        %2353 = vmatpush1.msra.mxu0 %v504
        %2354 = vmatprep.subr.mxu0 0.0
        %2355 = vmatpush1.msra.mxu0 %v505
        %2356 = vmatprep.subr.mxu0 0.0
        %2357 = vmatpush1.msra.mxu0 %v506
        %2358 = vmatprep.subr.mxu0 0.0
        %2359 = vmatpush1.msra.mxu0 %v507
        %2360 = vmatprep.subr.mxu0 0.0
        %2361 = vmatpush1.msra.mxu0 %v508
        %2362 = vmatprep.subr.mxu0 0.0
        %2363 = vmatpush1.msra.mxu0 %v509
        %2364 = vmatprep.subr.mxu0 0.0
        %2365 = vmatpush1.msra.mxu0 %v510
        %2366 = vmatprep.subr.mxu0 0.0
        %2367 = vmatpush1.msra.mxu0 0.0
        %2368 = vmatprep.subr.mxu0 0.0
        %2369 = vmatpush1.msra.mxu0 0.0
        %2370 = vmatprep.subr.mxu0 0.0
        %2371 = vmatpush1.msra.mxu0 0.0
        %2372 = vmatprep.subr.mxu0 0.0
        %2373 = vmatpush1.msra.mxu0 0.0
        %2374 = vmatprep.subr.mxu0 0.0
        %2375 = vmatpush1.msra.mxu0 0.0
        %2376 = vmatprep.subr.mxu0 0.0
        %2377 = vmatpush1.msra.mxu0 0.0
        %2378 = vmatprep.subr.mxu0 0.0
        %2379 = vmatpush1.msra.mxu0 0.0
        %2380 = vmatprep.subr.mxu0 0.0
        %2381 = vmatpush1.msra.mxu0 0.0
        %2382 = vmatprep.subr.mxu0 0.0
        %2383 = vmatpush1.msra.mxu0 0.0
        %2384 = vmatprep.subr.mxu0 0.0
        %2385 = vmatpush1.msra.mxu0 0.0
        %2386 = vmatprep.subr.mxu0 0.0
        %2387 = vmatpush1.msra.mxu0 0.0
        %2388 = vmatprep.subr.mxu0 0.0
        %2389 = vmatpush1.msra.mxu0 0.0
        %2390 = vmatprep.subr.mxu0 0.0
        %2391 = vmatpush1.msra.mxu0 0.0
        %2392 = vmatprep.subr.mxu0 0.0
        %2393 = vmatpush1.msra.mxu0 0.0
        %2394 = vmatprep.mubr.f32.mxu0 %v2314
        %2395 = vmatmul.mubr.f32.gmra.mrb[0].mxu0 %v2112
        %v2396 = vpop.f32.mrb[0].mxu0
        %v2397 = vadd.f32 %v2275, %v2396
        %v2398 = vpop.f32.mrb[0].mxu0
        %2399 = vmatprep.mubr.f32.mxu0 %v2316
        %2400 = vmatmul.mubr.f32.gmra.mrb[0].mxu0 %v2114
        %v2401 = vpop.f32.mrb[0].mxu0
        %v2402 = vadd.f32 %v2280, %v2401
        %v2403 = vpop.f32.mrb[0].mxu0
        %2404 = vmatprep.mubr.f32.mxu0 %v2318
        %2405 = vmatmul.mubr.f32.gmra.mrb[0].mxu0 %v2116
        %v2406 = vpop.f32.mrb[0].mxu0
        %v2407 = vadd.f32 %v2285, %v2406
        %v2408 = vpop.f32.mrb[0].mxu0
        %2409 = vmatprep.mubr.f32.mxu0 %v2320
        %2410 = vmatmul.mubr.f32.gmra.mrb[0].mxu0 %v2118
        %v2411 = vpop.f32.mrb[0].mxu0
        %v2412 = vadd.f32 %v2290, %v2411
        %v2413 = vpop.f32.mrb[0].mxu0
        %2414 = vmatprep.mubr.f32.mxu0 %v2322
        %2415 = vmatmul.mubr.f32.gmra.mrb[0].mxu0 %v2120
        %v2416 = vpop.f32.mrb[0].mxu0
        %v2417 = vadd.f32 %v2295, %v2416
        %v2418 = vpop.f32.mrb[0].mxu0
        %2419 = vmatprep.mubr.f32.mxu0 %v2324
        %2420 = vmatmul.mubr.f32.gmra.mrb[0].mxu0 %v2122
        %v2421 = vpop.f32.mrb[0].mxu0
        %v2422 = vadd.f32 %v2300, %v2421
        %v2423 = vpop.f32.mrb[0].mxu0
        %2424 = vmatprep.mubr.f32.mxu0 %v2326
        %2425 = vmatmul.mubr.f32.gmra.mrb[0].mxu0 %v2124
        %v2426 = vpop.f32.mrb[0].mxu0
        %v2427 = vadd.f32 %v2305, %v2426
        %v2428 = vpop.f32.mrb[0].mxu0
        %2429 = vmatprep.mubr.f32.mxu0 %v2328
        %2430 = vmatmul.mubr.f32.gmra.mrb[0].mxu0 %v2126
        %v2431 = vpop.f32.mrb[0].mxu0
        %v2432 = vadd.f32 %v2310, %v2431
        %v2433 = vpop.f32.mrb[0].mxu0
        %2434 = vdwg.mxu0
        %v2435 = vld [vmem:[%s491 + $0x18] sm:$0xfc]
        %v2436 = vld [vmem:[%s491 + $0x20] sm:$0xfc]
        %v2437 = vld [vmem:[%s491 + $0x158] sm:$0x3]
        %v2438 = vld [vmem:[%s491 + $0x160] sm:$0x3]
        %v2443 = vrot.slane %v2435, 2
        %v2444 = vrot.slane %v2114, 2
        %v2445 = vsel %vm882, %v2443, %v2444
        %v2446 = vrot.slane %v2436, 2
        %v2447 = vrot.slane %v2115, 2
        %v2448 = vsel %vm882, %v2446, %v2447
        %v2449 = vrot.slane %v2116, 2
        %v2450 = vsel %vm882, %v2444, %v2449
        %v2451 = vrot.slane %v2117, 2
        %v2452 = vsel %vm882, %v2447, %v2451
        %v2453 = vrot.slane %v2118, 2
        %v2454 = vsel %vm882, %v2449, %v2453
        %v2455 = vrot.slane %v2119, 2
        %v2456 = vsel %vm882, %v2451, %v2455
        %v2457 = vrot.slane %v2120, 2
        %v2458 = vsel %vm882, %v2453, %v2457
        %v2459 = vrot.slane %v2121, 2
        %v2460 = vsel %vm882, %v2455, %v2459
        %v2461 = vrot.slane %v2122, 2
        %v2462 = vsel %vm882, %v2457, %v2461
        %v2463 = vrot.slane %v2123, 2
        %v2464 = vsel %vm882, %v2459, %v2463
        %v2465 = vrot.slane %v2124, 2
        %v2466 = vsel %vm882, %v2461, %v2465
        %v2467 = vrot.slane %v2125, 2
        %v2468 = vsel %vm882, %v2463, %v2467
        %v2469 = vrot.slane %v2126, 2
        %v2470 = vsel %vm882, %v2465, %v2469
        %v2471 = vrot.slane %v2127, 2
        %v2472 = vsel %vm882, %v2467, %v2471
        %v2473 = vrot.slane %v2437, 2
        %v2474 = vsel %vm882, %v2469, %v2473
        %v2475 = vrot.slane %v2438, 2
        %v2476 = vsel %vm882, %v2471, %v2475
        %v2485 = vsel %vm630, %v2448, 0
        %v2487 = vsel %vm630, %v2452, 0
        %v2489 = vsel %vm630, %v2456, 0
        %v2491 = vsel %vm630, %v2460, 0
        %v2493 = vsel %vm630, %v2464, 0
        %v2495 = vsel %vm630, %v2468, 0
        %v2497 = vsel %vm630, %v2472, 0
        %v2499 = vsel %vm630, %v2476, 0
        %2501 = vmatprep.subr.mxu0 0.0
        %2502 = vmatpush1.msra.mxu0 %v531
        %2503 = vmatprep.subr.mxu0 0.0
        %2504 = vmatpush1.msra.mxu0 %v532
        %2505 = vmatprep.subr.mxu0 0.0
        %2506 = vmatpush1.msra.mxu0 %v533
        %2507 = vmatprep.subr.mxu0 0.0
        %2508 = vmatpush1.msra.mxu0 %v534
        %2509 = vmatprep.subr.mxu0 0.0
        %2510 = vmatpush1.msra.mxu0 %v535
        %2511 = vmatprep.subr.mxu0 0.0
        %2512 = vmatpush1.msra.mxu0 %v536
        %2513 = vmatprep.subr.mxu0 0.0
        %2514 = vmatpush1.msra.mxu0 %v537
        %2515 = vmatprep.subr.mxu0 0.0
        %2516 = vmatpush1.msra.mxu0 %v538
        %2517 = vmatprep.subr.mxu0 0.0
        %2518 = vmatpush1.msra.mxu0 %v539
        %2519 = vmatprep.subr.mxu0 0.0
        %2520 = vmatpush1.msra.mxu0 %v540
        %2521 = vmatprep.subr.mxu0 0.0
        %2522 = vmatpush1.msra.mxu0 %v541
        %2523 = vmatprep.subr.mxu0 0.0
        %2524 = vmatpush1.msra.mxu0 %v542
        %2525 = vmatprep.subr.mxu0 0.0
        %2526 = vmatpush1.msra.mxu0 %v543
        %2527 = vmatprep.subr.mxu0 0.0
        %2528 = vmatpush1.msra.mxu0 %v544
        %2529 = vmatprep.subr.mxu0 0.0
        %2530 = vmatpush1.msra.mxu0 %v545
        %2531 = vmatprep.subr.mxu0 0.0
        %2532 = vmatpush1.msra.mxu0 %v546
        %2533 = vmatprep.subr.mxu0 0.0
        %2534 = vmatpush1.msra.mxu0 %v547
        %2535 = vmatprep.subr.mxu0 0.0
        %2536 = vmatpush1.msra.mxu0 %v548
        %2537 = vmatprep.subr.mxu0 0.0
        %2538 = vmatpush1.msra.mxu0 0.0
        %2539 = vmatprep.subr.mxu0 0.0
        %2540 = vmatpush1.msra.mxu0 0.0
        %2541 = vmatprep.subr.mxu0 0.0
        %2542 = vmatpush1.msra.mxu0 0.0
        %2543 = vmatprep.subr.mxu0 0.0
        %2544 = vmatpush1.msra.mxu0 0.0
        %2545 = vmatprep.subr.mxu0 0.0
        %2546 = vmatpush1.msra.mxu0 0.0
        %2547 = vmatprep.subr.mxu0 0.0
        %2548 = vmatpush1.msra.mxu0 0.0
        %2549 = vmatprep.subr.mxu0 0.0
        %2550 = vmatpush1.msra.mxu0 0.0
        %2551 = vmatprep.subr.mxu0 0.0
        %2552 = vmatpush1.msra.mxu0 0.0
        %2553 = vmatprep.subr.mxu0 0.0
        %2554 = vmatpush1.msra.mxu0 0.0
        %2555 = vmatprep.subr.mxu0 0.0
        %2556 = vmatpush1.msra.mxu0 0.0
        %2557 = vmatprep.subr.mxu0 0.0
        %2558 = vmatpush1.msra.mxu0 0.0
        %2559 = vmatprep.subr.mxu0 0.0
        %2560 = vmatpush1.msra.mxu0 0.0
        %2561 = vmatprep.subr.mxu0 0.0
        %2562 = vmatpush1.msra.mxu0 0.0
        %2563 = vmatprep.subr.mxu0 0.0
        %2564 = vmatpush1.msra.mxu0 0.0
        %2565 = vmatprep.mubr.f32.mxu0 %v2485
        %2566 = vmatmul.mubr.f32.gmra.mrb[0].mxu0 %v2445
        %v2567 = vpop.f32.mrb[0].mxu0
        %v2568 = vadd.f32 0.0, %v2567
        %v2569 = vpop.f32.mrb[0].mxu0
        %2570 = vmatprep.mubr.f32.mxu0 %v2487
        %2571 = vmatmul.mubr.f32.gmra.mrb[0].mxu0 %v2450
        %v2572 = vpop.f32.mrb[0].mxu0
        %v2573 = vadd.f32 0.0, %v2572
        %v2574 = vpop.f32.mrb[0].mxu0
        %2575 = vmatprep.mubr.f32.mxu0 %v2489
        %2576 = vmatmul.mubr.f32.gmra.mrb[0].mxu0 %v2454
        %v2577 = vpop.f32.mrb[0].mxu0
        %v2578 = vadd.f32 0.0, %v2577
        %v2579 = vpop.f32.mrb[0].mxu0
        %2580 = vmatprep.mubr.f32.mxu0 %v2491
        %2581 = vmatmul.mubr.f32.gmra.mrb[0].mxu0 %v2458
        %v2582 = vpop.f32.mrb[0].mxu0
        %v2583 = vadd.f32 0.0, %v2582
        %v2584 = vpop.f32.mrb[0].mxu0
        %2585 = vmatprep.mubr.f32.mxu0 %v2493
        %2586 = vmatmul.mubr.f32.gmra.mrb[0].mxu0 %v2462
        %v2587 = vpop.f32.mrb[0].mxu0
        %v2588 = vadd.f32 0.0, %v2587
        %v2589 = vpop.f32.mrb[0].mxu0
        %2590 = vmatprep.mubr.f32.mxu0 %v2495
        %2591 = vmatmul.mubr.f32.gmra.mrb[0].mxu0 %v2466
        %v2592 = vpop.f32.mrb[0].mxu0
        %v2593 = vadd.f32 0.0, %v2592
        %v2594 = vpop.f32.mrb[0].mxu0
        %2595 = vmatprep.mubr.f32.mxu0 %v2497
        %2596 = vmatmul.mubr.f32.gmra.mrb[0].mxu0 %v2470
        %v2597 = vpop.f32.mrb[0].mxu0
        %v2598 = vadd.f32 0.0, %v2597
        %v2599 = vpop.f32.mrb[0].mxu0
        %2600 = vmatprep.mubr.f32.mxu0 %v2499
        %2601 = vmatmul.mubr.f32.gmra.mrb[0].mxu0 %v2474
        %v2602 = vpop.f32.mrb[0].mxu0
        %v2603 = vadd.f32 0.0, %v2602
        %v2604 = vpop.f32.mrb[0].mxu0
        %2605 = vdwg.mxu0
        %v2606 = vadd.f32 %v2397, %v2568
        %v2607 = vadd.f32 %v2402, %v2573
        %v2608 = vadd.f32 %v2407, %v2578
        %v2609 = vadd.f32 %v2412, %v2583
        %v2610 = vadd.f32 %v2417, %v2588
        %v2611 = vadd.f32 %v2422, %v2593
        %v2612 = vadd.f32 %v2427, %v2598
        %v2613 = vadd.f32 %v2432, %v2603
        %v2614 = vadd.f32 %v2606, %v1058
        %v2615 = vadd.f32 %v2607, %v1058
        %v2616 = vadd.f32 %v2608, %v1058
        %v2617 = vadd.f32 %v2609, %v1058
        %v2618 = vadd.f32 %v2610, %v1058
        %v2619 = vadd.f32 %v2611, %v1058
        %v2620 = vadd.f32 %v2612, %v1058
        %v2621 = vadd.f32 %v2613, %v1058
        %v2622 = vmax.f32 %v2614, 0.0
        %v2623 = vmax.f32 %v2615, 0.0
        %v2624 = vmax.f32 %v2616, 0.0
        %v2625 = vmax.f32 %v2617, 0.0
        %v2626 = vmax.f32 %v2618, 0.0
        %v2627 = vmax.f32 %v2619, 0.0
        %v2628 = vmax.f32 %v2620, 0.0
        %v2629 = vmax.f32 %v2621, 0.0
        %2630 = vst [vmem:[#allocation2] sm:$0xff] 0.0
        %2631 = vst [vmem:[#allocation2 + $0x8] sm:$0xff] 0.0
        %2632 = vst [vmem:[#allocation2 + $0x10] sm:$0xff] 0.0
        %2633 = vst [vmem:[#allocation2 + $0x18] sm:$0xff] 0.0
        %2634 = vst.msk [vmem:[#allocation2 + $0x20] sm:$0xff] %vm630, 0.0
        %2635 = vst [vmem:[#allocation2 + $0x28] sm:$0xff] 0.0
        %2636 = vst [vmem:[#allocation2 + $0x30] sm:$0xff] 0.0
        %2637 = vst [vmem:[#allocation2 + $0x38] sm:$0xff] 0.0
        %2638 = vst [vmem:[#allocation2 + $0x40] sm:$0xff] 0.0
        %2639 = vst.msk [vmem:[#allocation2 + $0x48] sm:$0xff] %vm630, 0.0
        %2640 = vst [vmem:[#allocation2 + $0x50] sm:$0xff] 0.0
        %2641 = vst [vmem:[#allocation2 + $0x58] sm:$0xff] 0.0
        %2642 = vst [vmem:[#allocation2 + $0x60] sm:$0xff] 0.0
        %2643 = vst [vmem:[#allocation2 + $0x68] sm:$0xff] 0.0
        %2644 = vst.msk [vmem:[#allocation2 + $0x70] sm:$0xff] %vm630, 0.0
        %2645 = vst [vmem:[#allocation2 + $0x78] sm:$0xff] 0.0
        %2646 = vst [vmem:[#allocation2 + $0x80] sm:$0xff] 0.0
        %2647 = vst [vmem:[#allocation2 + $0x88] sm:$0xff] 0.0
        %2648 = vst [vmem:[#allocation2 + $0x90] sm:$0xff] 0.0
        %2649 = vst.msk [vmem:[#allocation2 + $0x98] sm:$0xff] %vm630, 0.0
        %2650 = vst [vmem:[#allocation2 + $0xa0] sm:$0xff] 0.0
        %2651 = vst [vmem:[#allocation2 + $0xa8] sm:$0xff] 0.0
        %2652 = vst [vmem:[#allocation2 + $0xb0] sm:$0xff] 0.0
        %2653 = vst [vmem:[#allocation2 + $0xb8] sm:$0xff] 0.0
        %2654 = vst.msk [vmem:[#allocation2 + $0xc0] sm:$0xff] %vm630, 0.0
        %2655 = vst [vmem:[#allocation2 + $0xc8] sm:$0xff] 0.0
        %2656 = vst [vmem:[#allocation2 + $0xd0] sm:$0xff] 0.0
        %2657 = vst [vmem:[#allocation2 + $0xd8] sm:$0xff] 0.0
        %2658 = vst [vmem:[#allocation2 + $0xe0] sm:$0xff] 0.0
        %2659 = vst.msk [vmem:[#allocation2 + $0xe8] sm:$0xff] %vm630, 0.0
        %2660 = vst [vmem:[#allocation2 + $0xf0] sm:$0xff] 0.0
        %2661 = vst [vmem:[#allocation2 + $0xf8] sm:$0xff] 0.0
        %2662 = vst [vmem:[#allocation2 + $0x100] sm:$0xff] 0.0
        %2663 = vst [vmem:[#allocation2 + $0x108] sm:$0xff] 0.0
        %2664 = vst.msk [vmem:[#allocation2 + $0x110] sm:$0xff] %vm630, 0.0
        %2665 = vst [vmem:[#allocation2 + $0x118] sm:$0xff] 0.0
        %2666 = vst [vmem:[#allocation2 + $0x120] sm:$0xff] 0.0
        %2667 = vst [vmem:[#allocation2 + $0x128] sm:$0xff] 0.0
        %2668 = vst [vmem:[#allocation2 + $0x130] sm:$0xff] 0.0
        %2669 = vst.msk [vmem:[#allocation2 + $0x138] sm:$0xff] %vm630, 0.0
        %2670 = vst [vmem:[#allocation2 + $0x140] sm:$0x3] 0.0
        %2671 = vst [vmem:[#allocation2 + $0x148] sm:$0x3] 0.0
        %2672 = vst [vmem:[#allocation2 + $0x150] sm:$0x3] 0.0
        %2673 = vst [vmem:[#allocation2 + $0x158] sm:$0x3] 0.0
        %vm2674 = vcmask 123904
        %2675 = vst.msk [vmem:[#allocation2 + $0x160] sm:$0x3] %vm2674, 0.0
        %vm2708 = vcmask 1040384
        %v2709 = vrot.slane %v1068, 7
        %v2710 = vrot.slane %v1586, 7
        %v2711 = vrot.slane %v2104, 7
        %v2712 = vrot.slane %v2622, 7
        %v2713 = vrot.slane %v1069, 7
        %v2714 = vsel %vm2708, %v2709, %v2713
        %v2715 = vrot.slane %v1587, 7
        %v2716 = vsel %vm2708, %v2710, %v2715
        %v2717 = vrot.slane %v2105, 7
        %v2718 = vsel %vm2708, %v2711, %v2717
        %v2719 = vrot.slane %v2623, 7
        %v2720 = vsel %vm2708, %v2712, %v2719
        %v2721 = vrot.slane %v1070, 7
        %v2722 = vsel %vm2708, %v2713, %v2721
        %v2723 = vrot.slane %v1588, 7
        %v2724 = vsel %vm2708, %v2715, %v2723
        %v2725 = vrot.slane %v2106, 7
        %v2726 = vsel %vm2708, %v2717, %v2725
        %v2727 = vrot.slane %v2624, 7
        %v2728 = vsel %vm2708, %v2719, %v2727
        %v2729 = vrot.slane %v1071, 7
        %v2730 = vsel %vm2708, %v2721, %v2729
        %v2731 = vrot.slane %v1589, 7
        %v2732 = vsel %vm2708, %v2723, %v2731
        %v2733 = vrot.slane %v2107, 7
        %v2734 = vsel %vm2708, %v2725, %v2733
        %v2735 = vrot.slane %v2625, 7
        %v2736 = vsel %vm2708, %v2727, %v2735
        %v2737 = vrot.slane %v1072, 7
        %v2738 = vsel %vm2708, %v2729, %v2737
        %v2739 = vrot.slane %v1590, 7
        %v2740 = vsel %vm2708, %v2731, %v2739
        %v2741 = vrot.slane %v2108, 7
        %v2742 = vsel %vm2708, %v2733, %v2741
        %v2743 = vrot.slane %v2626, 7
        %v2744 = vsel %vm2708, %v2735, %v2743
        %v2745 = vrot.slane %v1073, 7
        %v2746 = vsel %vm2708, %v2737, %v2745
        %v2747 = vrot.slane %v1591, 7
        %v2748 = vsel %vm2708, %v2739, %v2747
        %v2749 = vrot.slane %v2109, 7
        %v2750 = vsel %vm2708, %v2741, %v2749
        %v2751 = vrot.slane %v2627, 7
        %v2752 = vsel %vm2708, %v2743, %v2751
        %v2753 = vrot.slane %v1074, 7
        %v2754 = vsel %vm2708, %v2745, %v2753
        %v2755 = vrot.slane %v1592, 7
        %v2756 = vsel %vm2708, %v2747, %v2755
        %v2757 = vrot.slane %v2110, 7
        %v2758 = vsel %vm2708, %v2749, %v2757
        %v2759 = vrot.slane %v2628, 7
        %v2760 = vsel %vm2708, %v2751, %v2759
        %v2761 = vrot.slane %v1075, 7
        %v2762 = vsel %vm2708, %v2753, %v2761
        %v2763 = vrot.slane %v1593, 7
        %v2764 = vsel %vm2708, %v2755, %v2763
        %v2765 = vrot.slane %v2111, 7
        %v2766 = vsel %vm2708, %v2757, %v2765
        %v2767 = vrot.slane %v2629, 7
        %v2768 = vsel %vm2708, %v2759, %v2767
        %2769 = vrot.lane.b32.xlu0 %v2709, 8
        %v2770 = vpop.permute.xlu0 %2769
        %2771 = vrot.lane.b32.xlu0 %v2710, 8
        %v2772 = vpop.permute.xlu0 %2771
        %2773 = vrot.lane.b32.xlu0 %v2711, 8
        %v2774 = vpop.permute.xlu0 %2773
        %2775 = vrot.lane.b32.xlu0 %v2712, 8
        %v2776 = vpop.permute.xlu0 %2775
        %2777 = vrot.lane.b32.xlu0 %v2714, 8
        %v2778 = vpop.permute.xlu0 %2777
        %2779 = vrot.lane.b32.xlu0 %v2716, 8
        %v2780 = vpop.permute.xlu0 %2779
        %2781 = vrot.lane.b32.xlu0 %v2718, 8
        %v2782 = vpop.permute.xlu0 %2781
        %2783 = vrot.lane.b32.xlu0 %v2720, 8
        %v2784 = vpop.permute.xlu0 %2783
        %2785 = vrot.lane.b32.xlu0 %v2722, 8
        %v2786 = vpop.permute.xlu0 %2785
        %2787 = vrot.lane.b32.xlu0 %v2724, 8
        %v2788 = vpop.permute.xlu0 %2787
        %2789 = vrot.lane.b32.xlu0 %v2726, 8
        %v2790 = vpop.permute.xlu0 %2789
        %2791 = vrot.lane.b32.xlu0 %v2728, 8
        %v2792 = vpop.permute.xlu0 %2791
        %2793 = vrot.lane.b32.xlu0 %v2730, 8
        %v2794 = vpop.permute.xlu0 %2793
        %2795 = vrot.lane.b32.xlu0 %v2732, 8
        %v2796 = vpop.permute.xlu0 %2795
        %2797 = vrot.lane.b32.xlu0 %v2734, 8
        %v2798 = vpop.permute.xlu0 %2797
        %2799 = vrot.lane.b32.xlu0 %v2736, 8
        %v2800 = vpop.permute.xlu0 %2799
        %2801 = vrot.lane.b32.xlu0 %v2738, 8
        %v2802 = vpop.permute.xlu0 %2801
        %2803 = vrot.lane.b32.xlu0 %v2740, 8
        %v2804 = vpop.permute.xlu0 %2803
        %2805 = vrot.lane.b32.xlu0 %v2742, 8
        %v2806 = vpop.permute.xlu0 %2805
        %2807 = vrot.lane.b32.xlu0 %v2744, 8
        %v2808 = vpop.permute.xlu0 %2807
        %2809 = vrot.lane.b32.xlu0 %v2746, 8
        %v2810 = vpop.permute.xlu0 %2809
        %2811 = vrot.lane.b32.xlu0 %v2748, 8
        %v2812 = vpop.permute.xlu0 %2811
        %2813 = vrot.lane.b32.xlu0 %v2750, 8
        %v2814 = vpop.permute.xlu0 %2813
        %2815 = vrot.lane.b32.xlu0 %v2752, 8
        %v2816 = vpop.permute.xlu0 %2815
        %2817 = vrot.lane.b32.xlu0 %v2754, 8
        %v2818 = vpop.permute.xlu0 %2817
        %2819 = vrot.lane.b32.xlu0 %v2756, 8
        %v2820 = vpop.permute.xlu0 %2819
        %2821 = vrot.lane.b32.xlu0 %v2758, 8
        %v2822 = vpop.permute.xlu0 %2821
        %2823 = vrot.lane.b32.xlu0 %v2760, 8
        %v2824 = vpop.permute.xlu0 %2823
        %2825 = vrot.lane.b32.xlu0 %v2762, 8
        %v2826 = vpop.permute.xlu0 %2825
        %2827 = vrot.lane.b32.xlu0 %v2764, 8
        %v2828 = vpop.permute.xlu0 %2827
        %2829 = vrot.lane.b32.xlu0 %v2766, 8
        %v2830 = vpop.permute.xlu0 %2829
        %2831 = vrot.lane.b32.xlu0 %v2768, 8
        %v2832 = vpop.permute.xlu0 %2831
        %2833 = vrot.lane.b32.xlu0 %v2761, 8
        %v2834 = vpop.permute.xlu0 %2833
        %2835 = vrot.lane.b32.xlu0 %v2763, 8
        %v2836 = vpop.permute.xlu0 %2835
        %2837 = vrot.lane.b32.xlu0 %v2765, 8
        %v2838 = vpop.permute.xlu0 %2837
        %2839 = vrot.lane.b32.xlu0 %v2767, 8
        %v2840 = vpop.permute.xlu0 %2839
        %vm2841 = vcmask 64512
        %v2842 = vsel %vm2841, %v2770, %v2772
        %v2843 = vsel %vm2841, %v2772, %v2774
        %v2844 = vsel %vm2841, %v2774, %v2776
        %v2845 = vsel %vm2841, %v2778, %v2780
        %v2846 = vsel %vm2841, %v2780, %v2782
        %v2847 = vsel %vm2841, %v2782, %v2784
        %v2848 = vsel %vm2841, %v2786, %v2788
        %v2849 = vsel %vm2841, %v2788, %v2790
        %v2850 = vsel %vm2841, %v2790, %v2792
        %v2851 = vsel %vm2841, %v2794, %v2796
        %v2852 = vsel %vm2841, %v2796, %v2798
        %v2853 = vsel %vm2841, %v2798, %v2800
        %v2854 = vsel %vm2841, %v2802, %v2804
        %v2855 = vsel %vm2841, %v2804, %v2806
        %v2856 = vsel %vm2841, %v2806, %v2808
        %v2857 = vsel %vm2841, %v2810, %v2812
        %v2858 = vsel %vm2841, %v2812, %v2814
        %v2859 = vsel %vm2841, %v2814, %v2816
        %v2860 = vsel %vm2841, %v2818, %v2820
        %v2861 = vsel %vm2841, %v2820, %v2822
        %v2862 = vsel %vm2841, %v2822, %v2824
        %v2863 = vsel %vm2841, %v2826, %v2828
        %v2864 = vsel %vm2841, %v2828, %v2830
        %v2865 = vsel %vm2841, %v2830, %v2832
        %v2866 = vsel %vm2841, %v2834, %v2836
        %v2867 = vsel %vm2841, %v2836, %v2838
        %v2868 = vsel %vm2841, %v2838, %v2840
        %vm2914 = vcmask 1047617
        %2915 = vst.msk [vmem:[#allocation2] sm:$0xfe] %vm2914, %v2770
        %2916 = vst [vmem:[#allocation2 + $0x8] sm:$0xfe] %v2842
        %2917 = vst [vmem:[#allocation2 + $0x10] sm:$0xfe] %v2843
        %2918 = vst [vmem:[#allocation2 + $0x18] sm:$0xfe] %v2844
        %vm2919 = vcmask 64513
        %2920 = vst.msk [vmem:[#allocation2 + $0x20] sm:$0xfe] %vm2919, %v2776
        %vm2921 = vcmask 1047616
        %2922 = vst.msk [vmem:[#allocation2 + $0x28] sm:$0xff] %vm2921, %v2778
        %2923 = vst [vmem:[#allocation2 + $0x30] sm:$0xff] %v2845
        %2924 = vst [vmem:[#allocation2 + $0x38] sm:$0xff] %v2846
        %2925 = vst [vmem:[#allocation2 + $0x40] sm:$0xff] %v2847
        %2926 = vst.msk [vmem:[#allocation2 + $0x48] sm:$0xff] %vm2841, %v2784
        %2927 = vst.msk [vmem:[#allocation2 + $0x50] sm:$0xff] %vm2921, %v2786
        %2928 = vst [vmem:[#allocation2 + $0x58] sm:$0xff] %v2848
        %2929 = vst [vmem:[#allocation2 + $0x60] sm:$0xff] %v2849
        %2930 = vst [vmem:[#allocation2 + $0x68] sm:$0xff] %v2850
        %2931 = vst.msk [vmem:[#allocation2 + $0x70] sm:$0xff] %vm2841, %v2792
        %2932 = vst.msk [vmem:[#allocation2 + $0x78] sm:$0xff] %vm2921, %v2794
        %2933 = vst [vmem:[#allocation2 + $0x80] sm:$0xff] %v2851
        %2934 = vst [vmem:[#allocation2 + $0x88] sm:$0xff] %v2852
        %2935 = vst [vmem:[#allocation2 + $0x90] sm:$0xff] %v2853
        %2936 = vst.msk [vmem:[#allocation2 + $0x98] sm:$0xff] %vm2841, %v2800
        %2937 = vst.msk [vmem:[#allocation2 + $0xa0] sm:$0xff] %vm2921, %v2802
        %2938 = vst [vmem:[#allocation2 + $0xa8] sm:$0xff] %v2854
        %2939 = vst [vmem:[#allocation2 + $0xb0] sm:$0xff] %v2855
        %2940 = vst [vmem:[#allocation2 + $0xb8] sm:$0xff] %v2856
        %2941 = vst.msk [vmem:[#allocation2 + $0xc0] sm:$0xff] %vm2841, %v2808
        %2942 = vst.msk [vmem:[#allocation2 + $0xc8] sm:$0xff] %vm2921, %v2810
        %2943 = vst [vmem:[#allocation2 + $0xd0] sm:$0xff] %v2857
        %2944 = vst [vmem:[#allocation2 + $0xd8] sm:$0xff] %v2858
        %2945 = vst [vmem:[#allocation2 + $0xe0] sm:$0xff] %v2859
        %2946 = vst.msk [vmem:[#allocation2 + $0xe8] sm:$0xff] %vm2841, %v2816
        %2947 = vst.msk [vmem:[#allocation2 + $0xf0] sm:$0xff] %vm2921, %v2818
        %2948 = vst [vmem:[#allocation2 + $0xf8] sm:$0xff] %v2860
        %2949 = vst [vmem:[#allocation2 + $0x100] sm:$0xff] %v2861
        %2950 = vst [vmem:[#allocation2 + $0x108] sm:$0xff] %v2862
        %2951 = vst.msk [vmem:[#allocation2 + $0x110] sm:$0xff] %vm2841, %v2824
        %2952 = vst.msk [vmem:[#allocation2 + $0x118] sm:$0xff] %vm2921, %v2826
        %2953 = vst [vmem:[#allocation2 + $0x120] sm:$0xff] %v2863
        %2954 = vst [vmem:[#allocation2 + $0x128] sm:$0xff] %v2864
        %2955 = vst [vmem:[#allocation2 + $0x130] sm:$0xff] %v2865
        %2956 = vst.msk [vmem:[#allocation2 + $0x138] sm:$0xff] %vm2841, %v2832
        %vm2957 = vcmask 1040448
        %2958 = vst.msk [vmem:[#allocation2 + $0x140] sm:$0x1] %vm2957, %v2834
        %2959 = vst [vmem:[#allocation2 + $0x148] sm:$0x1] %v2866
        %2960 = vst [vmem:[#allocation2 + $0x150] sm:$0x1] %v2867
        %2961 = vst [vmem:[#allocation2 + $0x158] sm:$0x1] %v2868
        %vm2962 = vcmask 57344
        %2963 = vst.msk [vmem:[#allocation2 + $0x160] sm:$0x1] %vm2962, %v2840
        %v2964 = vld [vmem:[%s4] sm:$0x1]
        %v2965 = vld [vmem:[%s3] sm:$0xff]
        %v2966 = vld [vmem:[%s3 + $0x8] sm:$0xff]
        %v2967 = vld [vmem:[%s3 + $0x10] sm:$0xff]
        %v2968 = vld [vmem:[%s3 + $0x18] sm:$0xff]
        %v2969 = vld [vmem:[%s3 + $0x20] sm:$0xff]
        %v2970 = vld [vmem:[%s3 + $0x28] sm:$0xff]
        %v2971 = vld [vmem:[%s3 + $0x30] sm:$0xff]
        %v2972 = vld [vmem:[%s3 + $0x38] sm:$0xff]
        %v2973 = vld [vmem:[%s3 + $0x40] sm:$0xff]
        %v2974 = vld [vmem:[%s3 + $0x48] sm:$0xff]
        %v2975 = vld [vmem:[%s3 + $0x50] sm:$0xff]
        %v2976 = vld [vmem:[%s3 + $0x58] sm:$0xff]
        %v2977 = vld [vmem:[%s3 + $0x60] sm:$0xff]
        %v2978 = vld [vmem:[%s3 + $0x68] sm:$0xff]
        %v2979 = vld [vmem:[%s3 + $0x70] sm:$0xff]
        %v2980 = vld [vmem:[%s3 + $0x78] sm:$0xff]
        %v2981 = vld [vmem:[%s3 + $0x80] sm:$0xff]
        %v2982 = vld [vmem:[%s3 + $0x88] sm:$0xff]
        %s2983 = scalar_lea.vmem %s3, 144
        %v2984 = vld [vmem:[%s2983] sm:$0xff]
        %v2985 = vld [vmem:[%s2983 + $0x8] sm:$0xff]
        %v2986 = vld [vmem:[%s2983 + $0x10] sm:$0xff]
        %v2987 = vld [vmem:[%s2983 + $0x18] sm:$0xff]
        %v2988 = vld [vmem:[%s2983 + $0x20] sm:$0xff]
        %v2989 = vld [vmem:[%s2983 + $0x28] sm:$0xff]
        %v2990 = vld [vmem:[%s2983 + $0x30] sm:$0xff]
        %v2991 = vld [vmem:[%s2983 + $0x38] sm:$0xff]
        %v2992 = vld [vmem:[%s2983 + $0x40] sm:$0xff]
        %v2993 = vld [vmem:[%s2983 + $0x48] sm:$0xff]
        %v2994 = vld [vmem:[%s2983 + $0x50] sm:$0xff]
        %v2995 = vld [vmem:[%s2983 + $0x58] sm:$0xff]
        %v2996 = vld [vmem:[%s2983 + $0x60] sm:$0xff]
        %v2997 = vld [vmem:[%s2983 + $0x68] sm:$0xff]
        %v2998 = vld [vmem:[%s2983 + $0x70] sm:$0xff]
        %v2999 = vld [vmem:[%s2983 + $0x78] sm:$0xff]
        %v3000 = vld [vmem:[%s2983 + $0x80] sm:$0xff]
        %v3001 = vld [vmem:[%s2983 + $0x88] sm:$0xff]
        %s3002 = scalar_lea.vmem %s3, 288
        %v3003 = vld [vmem:[%s3002] sm:$0xff]
        %v3004 = vld [vmem:[%s3002 + $0x8] sm:$0xff]
        %v3005 = vld [vmem:[%s3002 + $0x10] sm:$0xff]
        %v3006 = vld [vmem:[%s3002 + $0x18] sm:$0xff]
        %v3007 = vld [vmem:[%s3002 + $0x20] sm:$0xff]
        %v3008 = vld [vmem:[%s3002 + $0x28] sm:$0xff]
        %v3009 = vld [vmem:[%s3002 + $0x30] sm:$0xff]
        %v3010 = vld [vmem:[%s3002 + $0x38] sm:$0xff]
        %v3011 = vld [vmem:[%s3002 + $0x40] sm:$0xff]
        %v3012 = vld [vmem:[%s3002 + $0x48] sm:$0xff]
        %v3013 = vld [vmem:[%s3002 + $0x50] sm:$0xff]
        %v3014 = vld [vmem:[%s3002 + $0x58] sm:$0xff]
        %v3015 = vld [vmem:[%s3002 + $0x60] sm:$0xff]
        %v3016 = vld [vmem:[%s3002 + $0x68] sm:$0xff]
        %v3017 = vld [vmem:[%s3002 + $0x70] sm:$0xff]
        %v3018 = vld [vmem:[%s3002 + $0x78] sm:$0xff]
        %v3019 = vld [vmem:[%s3002 + $0x80] sm:$0xff]
        %v3020 = vld [vmem:[%s3002 + $0x88] sm:$0xff]
        %v3021 = vld [vmem:[#allocation2] sm:$0xff]
        %v3022 = vld [vmem:[#allocation2 + $0x8] sm:$0xff]
        %v3023 = vld [vmem:[#allocation2 + $0x28] sm:$0xff]
        %v3024 = vld [vmem:[#allocation2 + $0x30] sm:$0xff]
        %v3025 = vld [vmem:[#allocation2 + $0x50] sm:$0xff]
        %v3026 = vld [vmem:[#allocation2 + $0x58] sm:$0xff]
        %v3027 = vld [vmem:[#allocation2 + $0x78] sm:$0xff]
        %v3028 = vld [vmem:[#allocation2 + $0x80] sm:$0xff]
        %v3029 = vld [vmem:[#allocation2 + $0xa0] sm:$0xff]
        %v3030 = vld [vmem:[#allocation2 + $0xa8] sm:$0xff]
        %v3031 = vld [vmem:[#allocation2 + $0xc8] sm:$0xff]
        %v3032 = vld [vmem:[#allocation2 + $0xd0] sm:$0xff]
        %v3033 = vld [vmem:[#allocation2 + $0xf0] sm:$0xff]
        %v3034 = vld [vmem:[#allocation2 + $0xf8] sm:$0xff]
        %v3035 = vld [vmem:[#allocation2 + $0x118] sm:$0xff]
        %v3036 = vld [vmem:[#allocation2 + $0x120] sm:$0xff]
        %v3037 = vld [vmem:[#allocation2] sm:$0xfe]
        %v3038 = vld [vmem:[#allocation2 + $0x8] sm:$0xfe]
        %v3039 = vld [vmem:[#allocation2 + $0x140] sm:$0x1]
        %v3040 = vld [vmem:[#allocation2 + $0x148] sm:$0x1]
        %v3059 = vrot.slane %v3037, 1
        %v3060 = vrot.slane %v3023, 1
        %v3061 = vsel %vm587, %v3059, %v3060
        %v3062 = vrot.slane %v3038, 1
        %v3063 = vrot.slane %v3024, 1
        %v3064 = vsel %vm587, %v3062, %v3063
        %v3065 = vrot.slane %v3025, 1
        %v3066 = vsel %vm587, %v3060, %v3065
        %v3067 = vrot.slane %v3026, 1
        %v3068 = vsel %vm587, %v3063, %v3067
        %v3069 = vrot.slane %v3027, 1
        %v3070 = vsel %vm587, %v3065, %v3069
        %v3071 = vrot.slane %v3028, 1
        %v3072 = vsel %vm587, %v3067, %v3071
        %v3073 = vrot.slane %v3029, 1
        %v3074 = vsel %vm587, %v3069, %v3073
        %v3075 = vrot.slane %v3030, 1
        %v3076 = vsel %vm587, %v3071, %v3075
        %v3077 = vrot.slane %v3031, 1
        %v3078 = vsel %vm587, %v3073, %v3077
        %v3079 = vrot.slane %v3032, 1
        %v3080 = vsel %vm587, %v3075, %v3079
        %v3081 = vrot.slane %v3033, 1
        %v3082 = vsel %vm587, %v3077, %v3081
        %v3083 = vrot.slane %v3034, 1
        %v3084 = vsel %vm587, %v3079, %v3083
        %v3085 = vrot.slane %v3035, 1
        %v3086 = vsel %vm587, %v3081, %v3085
        %v3087 = vrot.slane %v3036, 1
        %v3088 = vsel %vm587, %v3083, %v3087
        %v3089 = vrot.slane %v3039, 1
        %v3090 = vsel %vm587, %v3085, %v3089
        %v3091 = vrot.slane %v3040, 1
        %v3092 = vsel %vm587, %v3087, %v3091
        %v3101 = vsel %vm630, %v3064, 0
        %v3103 = vsel %vm630, %v3068, 0
        %v3105 = vsel %vm630, %v3072, 0
        %v3107 = vsel %vm630, %v3076, 0
        %v3109 = vsel %vm630, %v3080, 0
        %v3111 = vsel %vm630, %v3084, 0
        %v3113 = vsel %vm630, %v3088, 0
        %v3115 = vsel %vm630, %v3092, 0
        %3117 = vmatprep.subr.mxu0 0.0
        %3118 = vmatpush1.msra.mxu0 %v2984
        %3119 = vmatprep.subr.mxu0 0.0
        %3120 = vmatpush1.msra.mxu0 %v2985
        %3121 = vmatprep.subr.mxu0 0.0
        %3122 = vmatpush1.msra.mxu0 %v2986
        %3123 = vmatprep.subr.mxu0 0.0
        %3124 = vmatpush1.msra.mxu0 %v2987
        %3125 = vmatprep.subr.mxu0 0.0
        %3126 = vmatpush1.msra.mxu0 %v2988
        %3127 = vmatprep.subr.mxu0 0.0
        %3128 = vmatpush1.msra.mxu0 %v2989
        %3129 = vmatprep.subr.mxu0 0.0
        %3130 = vmatpush1.msra.mxu0 %v2990
        %3131 = vmatprep.subr.mxu0 0.0
        %3132 = vmatpush1.msra.mxu0 %v2991
        %3133 = vmatprep.subr.mxu0 0.0
        %3134 = vmatpush1.msra.mxu0 %v2992
        %3135 = vmatprep.subr.mxu0 0.0
        %3136 = vmatpush1.msra.mxu0 %v2993
        %3137 = vmatprep.subr.mxu0 0.0
        %3138 = vmatpush1.msra.mxu0 %v2994
        %3139 = vmatprep.subr.mxu0 0.0
        %3140 = vmatpush1.msra.mxu0 %v2995
        %3141 = vmatprep.subr.mxu0 0.0
        %3142 = vmatpush1.msra.mxu0 %v2996
        %3143 = vmatprep.subr.mxu0 0.0
        %3144 = vmatpush1.msra.mxu0 %v2997
        %3145 = vmatprep.subr.mxu0 0.0
        %3146 = vmatpush1.msra.mxu0 %v2998
        %3147 = vmatprep.subr.mxu0 0.0
        %3148 = vmatpush1.msra.mxu0 %v2999
        %3149 = vmatprep.subr.mxu0 0.0
        %3150 = vmatpush1.msra.mxu0 %v3000
        %3151 = vmatprep.subr.mxu0 0.0
        %3152 = vmatpush1.msra.mxu0 %v3001
        %3153 = vmatprep.subr.mxu0 0.0
        %3154 = vmatpush1.msra.mxu0 0.0
        %3155 = vmatprep.subr.mxu0 0.0
        %3156 = vmatpush1.msra.mxu0 0.0
        %3157 = vmatprep.subr.mxu0 0.0
        %3158 = vmatpush1.msra.mxu0 0.0
        %3159 = vmatprep.subr.mxu0 0.0
        %3160 = vmatpush1.msra.mxu0 0.0
        %3161 = vmatprep.subr.mxu0 0.0
        %3162 = vmatpush1.msra.mxu0 0.0
        %3163 = vmatprep.subr.mxu0 0.0
        %3164 = vmatpush1.msra.mxu0 0.0
        %3165 = vmatprep.subr.mxu0 0.0
        %3166 = vmatpush1.msra.mxu0 0.0
        %3167 = vmatprep.subr.mxu0 0.0
        %3168 = vmatpush1.msra.mxu0 0.0
        %3169 = vmatprep.subr.mxu0 0.0
        %3170 = vmatpush1.msra.mxu0 0.0
        %3171 = vmatprep.subr.mxu0 0.0
        %3172 = vmatpush1.msra.mxu0 0.0
        %3173 = vmatprep.subr.mxu0 0.0
        %3174 = vmatpush1.msra.mxu0 0.0
        %3175 = vmatprep.subr.mxu0 0.0
        %3176 = vmatpush1.msra.mxu0 0.0
        %3177 = vmatprep.subr.mxu0 0.0
        %3178 = vmatpush1.msra.mxu0 0.0
        %3179 = vmatprep.subr.mxu0 0.0
        %3180 = vmatpush1.msra.mxu0 0.0
        %3181 = vmatprep.mubr.f32.mxu0 %v3101
        %3182 = vmatmul.mubr.f32.gmra.mrb[0].mxu0 %v3061
        %v3183 = vpop.f32.mrb[0].mxu0
        %v3184 = vadd.f32 0.0, %v3183
        %v3185 = vpop.f32.mrb[0].mxu0
        %3186 = vmatprep.mubr.f32.mxu0 %v3103
        %3187 = vmatmul.mubr.f32.gmra.mrb[0].mxu0 %v3066
        %v3188 = vpop.f32.mrb[0].mxu0
        %v3189 = vadd.f32 0.0, %v3188
        %v3190 = vpop.f32.mrb[0].mxu0
        %3191 = vmatprep.mubr.f32.mxu0 %v3105
        %3192 = vmatmul.mubr.f32.gmra.mrb[0].mxu0 %v3070
        %v3193 = vpop.f32.mrb[0].mxu0
        %v3194 = vadd.f32 0.0, %v3193
        %v3195 = vpop.f32.mrb[0].mxu0
        %3196 = vmatprep.mubr.f32.mxu0 %v3107
        %3197 = vmatmul.mubr.f32.gmra.mrb[0].mxu0 %v3074
        %v3198 = vpop.f32.mrb[0].mxu0
        %v3199 = vadd.f32 0.0, %v3198
        %v3200 = vpop.f32.mrb[0].mxu0
        %3201 = vmatprep.mubr.f32.mxu0 %v3109
        %3202 = vmatmul.mubr.f32.gmra.mrb[0].mxu0 %v3078
        %v3203 = vpop.f32.mrb[0].mxu0
        %v3204 = vadd.f32 0.0, %v3203
        %v3205 = vpop.f32.mrb[0].mxu0
        %3206 = vmatprep.mubr.f32.mxu0 %v3111
        %3207 = vmatmul.mubr.f32.gmra.mrb[0].mxu0 %v3082
        %v3208 = vpop.f32.mrb[0].mxu0
        %v3209 = vadd.f32 0.0, %v3208
        %v3210 = vpop.f32.mrb[0].mxu0
        %3211 = vmatprep.mubr.f32.mxu0 %v3113
        %3212 = vmatmul.mubr.f32.gmra.mrb[0].mxu0 %v3086
        %v3213 = vpop.f32.mrb[0].mxu0
        %v3214 = vadd.f32 0.0, %v3213
        %v3215 = vpop.f32.mrb[0].mxu0
        %3216 = vmatprep.mubr.f32.mxu0 %v3115
        %3217 = vmatmul.mubr.f32.gmra.mrb[0].mxu0 %v3090
        %v3218 = vpop.f32.mrb[0].mxu0
        %v3219 = vadd.f32 0.0, %v3218
        %v3220 = vpop.f32.mrb[0].mxu0
        %3221 = vdwg.mxu0
        %v3223 = vsel %vm630, %v3022, 0
        %v3225 = vsel %vm630, %v3024, 0
        %v3227 = vsel %vm630, %v3026, 0
        %v3229 = vsel %vm630, %v3028, 0
        %v3231 = vsel %vm630, %v3030, 0
        %v3233 = vsel %vm630, %v3032, 0
        %v3235 = vsel %vm630, %v3034, 0
        %v3237 = vsel %vm630, %v3036, 0
        %3239 = vmatprep.subr.mxu0 0.0
        %3240 = vmatpush1.msra.mxu0 %v2965
        %3241 = vmatprep.subr.mxu0 0.0
        %3242 = vmatpush1.msra.mxu0 %v2966
        %3243 = vmatprep.subr.mxu0 0.0
        %3244 = vmatpush1.msra.mxu0 %v2967
        %3245 = vmatprep.subr.mxu0 0.0
        %3246 = vmatpush1.msra.mxu0 %v2968
        %3247 = vmatprep.subr.mxu0 0.0
        %3248 = vmatpush1.msra.mxu0 %v2969
        %3249 = vmatprep.subr.mxu0 0.0
        %3250 = vmatpush1.msra.mxu0 %v2970
        %3251 = vmatprep.subr.mxu0 0.0
        %3252 = vmatpush1.msra.mxu0 %v2971
        %3253 = vmatprep.subr.mxu0 0.0
        %3254 = vmatpush1.msra.mxu0 %v2972
        %3255 = vmatprep.subr.mxu0 0.0
        %3256 = vmatpush1.msra.mxu0 %v2973
        %3257 = vmatprep.subr.mxu0 0.0
        %3258 = vmatpush1.msra.mxu0 %v2974
        %3259 = vmatprep.subr.mxu0 0.0
        %3260 = vmatpush1.msra.mxu0 %v2975
        %3261 = vmatprep.subr.mxu0 0.0
        %3262 = vmatpush1.msra.mxu0 %v2976
        %3263 = vmatprep.subr.mxu0 0.0
        %3264 = vmatpush1.msra.mxu0 %v2977
        %3265 = vmatprep.subr.mxu0 0.0
        %3266 = vmatpush1.msra.mxu0 %v2978
        %3267 = vmatprep.subr.mxu0 0.0
        %3268 = vmatpush1.msra.mxu0 %v2979
        %3269 = vmatprep.subr.mxu0 0.0
        %3270 = vmatpush1.msra.mxu0 %v2980
        %3271 = vmatprep.subr.mxu0 0.0
        %3272 = vmatpush1.msra.mxu0 %v2981
        %3273 = vmatprep.subr.mxu0 0.0
        %3274 = vmatpush1.msra.mxu0 %v2982
        %3275 = vmatprep.subr.mxu0 0.0
        %3276 = vmatpush1.msra.mxu0 0.0
        %3277 = vmatprep.subr.mxu0 0.0
        %3278 = vmatpush1.msra.mxu0 0.0
        %3279 = vmatprep.subr.mxu0 0.0
        %3280 = vmatpush1.msra.mxu0 0.0
        %3281 = vmatprep.subr.mxu0 0.0
        %3282 = vmatpush1.msra.mxu0 0.0
        %3283 = vmatprep.subr.mxu0 0.0
        %3284 = vmatpush1.msra.mxu0 0.0
        %3285 = vmatprep.subr.mxu0 0.0
        %3286 = vmatpush1.msra.mxu0 0.0
        %3287 = vmatprep.subr.mxu0 0.0
        %3288 = vmatpush1.msra.mxu0 0.0
        %3289 = vmatprep.subr.mxu0 0.0
        %3290 = vmatpush1.msra.mxu0 0.0
        %3291 = vmatprep.subr.mxu0 0.0
        %3292 = vmatpush1.msra.mxu0 0.0
        %3293 = vmatprep.subr.mxu0 0.0
        %3294 = vmatpush1.msra.mxu0 0.0
        %3295 = vmatprep.subr.mxu0 0.0
        %3296 = vmatpush1.msra.mxu0 0.0
        %3297 = vmatprep.subr.mxu0 0.0
        %3298 = vmatpush1.msra.mxu0 0.0
        %3299 = vmatprep.subr.mxu0 0.0
        %3300 = vmatpush1.msra.mxu0 0.0
        %3301 = vmatprep.subr.mxu0 0.0
        %3302 = vmatpush1.msra.mxu0 0.0
        %3303 = vmatprep.mubr.f32.mxu0 %v3223
        %3304 = vmatmul.mubr.f32.gmra.mrb[0].mxu0 %v3021
        %v3305 = vpop.f32.mrb[0].mxu0
        %v3306 = vadd.f32 %v3184, %v3305
        %v3307 = vpop.f32.mrb[0].mxu0
        %3308 = vmatprep.mubr.f32.mxu0 %v3225
        %3309 = vmatmul.mubr.f32.gmra.mrb[0].mxu0 %v3023
        %v3310 = vpop.f32.mrb[0].mxu0
        %v3311 = vadd.f32 %v3189, %v3310
        %v3312 = vpop.f32.mrb[0].mxu0
        %3313 = vmatprep.mubr.f32.mxu0 %v3227
        %3314 = vmatmul.mubr.f32.gmra.mrb[0].mxu0 %v3025
        %v3315 = vpop.f32.mrb[0].mxu0
        %v3316 = vadd.f32 %v3194, %v3315
        %v3317 = vpop.f32.mrb[0].mxu0
        %3318 = vmatprep.mubr.f32.mxu0 %v3229
        %3319 = vmatmul.mubr.f32.gmra.mrb[0].mxu0 %v3027
        %v3320 = vpop.f32.mrb[0].mxu0
        %v3321 = vadd.f32 %v3199, %v3320
        %v3322 = vpop.f32.mrb[0].mxu0
        %3323 = vmatprep.mubr.f32.mxu0 %v3231
        %3324 = vmatmul.mubr.f32.gmra.mrb[0].mxu0 %v3029
        %v3325 = vpop.f32.mrb[0].mxu0
        %v3326 = vadd.f32 %v3204, %v3325
        %v3327 = vpop.f32.mrb[0].mxu0
        %3328 = vmatprep.mubr.f32.mxu0 %v3233
        %3329 = vmatmul.mubr.f32.gmra.mrb[0].mxu0 %v3031
        %v3330 = vpop.f32.mrb[0].mxu0
        %v3331 = vadd.f32 %v3209, %v3330
        %v3332 = vpop.f32.mrb[0].mxu0
        %3333 = vmatprep.mubr.f32.mxu0 %v3235
        %3334 = vmatmul.mubr.f32.gmra.mrb[0].mxu0 %v3033
        %v3335 = vpop.f32.mrb[0].mxu0
        %v3336 = vadd.f32 %v3214, %v3335
        %v3337 = vpop.f32.mrb[0].mxu0
        %3338 = vmatprep.mubr.f32.mxu0 %v3237
        %3339 = vmatmul.mubr.f32.gmra.mrb[0].mxu0 %v3035
        %v3340 = vpop.f32.mrb[0].mxu0
        %v3341 = vadd.f32 %v3219, %v3340
        %v3342 = vpop.f32.mrb[0].mxu0
        %3343 = vdwg.mxu0
        %v3344 = vld [vmem:[#allocation2] sm:$0xfc]
        %v3345 = vld [vmem:[#allocation2 + $0x8] sm:$0xfc]
        %v3346 = vld [vmem:[#allocation2 + $0x140] sm:$0x3]
        %v3347 = vld [vmem:[#allocation2 + $0x148] sm:$0x3]
        %v3352 = vrot.slane %v3344, 2
        %v3353 = vrot.slane %v3023, 2
        %v3354 = vsel %vm882, %v3352, %v3353
        %v3355 = vrot.slane %v3345, 2
        %v3356 = vrot.slane %v3024, 2
        %v3357 = vsel %vm882, %v3355, %v3356
        %v3358 = vrot.slane %v3025, 2
        %v3359 = vsel %vm882, %v3353, %v3358
        %v3360 = vrot.slane %v3026, 2
        %v3361 = vsel %vm882, %v3356, %v3360
        %v3362 = vrot.slane %v3027, 2
        %v3363 = vsel %vm882, %v3358, %v3362
        %v3364 = vrot.slane %v3028, 2
        %v3365 = vsel %vm882, %v3360, %v3364
        %v3366 = vrot.slane %v3029, 2
        %v3367 = vsel %vm882, %v3362, %v3366
        %v3368 = vrot.slane %v3030, 2
        %v3369 = vsel %vm882, %v3364, %v3368
        %v3370 = vrot.slane %v3031, 2
        %v3371 = vsel %vm882, %v3366, %v3370
        %v3372 = vrot.slane %v3032, 2
        %v3373 = vsel %vm882, %v3368, %v3372
        %v3374 = vrot.slane %v3033, 2
        %v3375 = vsel %vm882, %v3370, %v3374
        %v3376 = vrot.slane %v3034, 2
        %v3377 = vsel %vm882, %v3372, %v3376
        %v3378 = vrot.slane %v3035, 2
        %v3379 = vsel %vm882, %v3374, %v3378
        %v3380 = vrot.slane %v3036, 2
        %v3381 = vsel %vm882, %v3376, %v3380
        %v3382 = vrot.slane %v3346, 2
        %v3383 = vsel %vm882, %v3378, %v3382
        %v3384 = vrot.slane %v3347, 2
        %v3385 = vsel %vm882, %v3380, %v3384
        %v3394 = vsel %vm630, %v3357, 0
        %v3396 = vsel %vm630, %v3361, 0
        %v3398 = vsel %vm630, %v3365, 0
        %v3400 = vsel %vm630, %v3369, 0
        %v3402 = vsel %vm630, %v3373, 0
        %v3404 = vsel %vm630, %v3377, 0
        %v3406 = vsel %vm630, %v3381, 0
        %v3408 = vsel %vm630, %v3385, 0
        %3410 = vmatprep.subr.mxu0 0.0
        %3411 = vmatpush1.msra.mxu0 %v3003
        %3412 = vmatprep.subr.mxu0 0.0
        %3413 = vmatpush1.msra.mxu0 %v3004
        %3414 = vmatprep.subr.mxu0 0.0
        %3415 = vmatpush1.msra.mxu0 %v3005
        %3416 = vmatprep.subr.mxu0 0.0
        %3417 = vmatpush1.msra.mxu0 %v3006
        %3418 = vmatprep.subr.mxu0 0.0
        %3419 = vmatpush1.msra.mxu0 %v3007
        %3420 = vmatprep.subr.mxu0 0.0
        %3421 = vmatpush1.msra.mxu0 %v3008
        %3422 = vmatprep.subr.mxu0 0.0
        %3423 = vmatpush1.msra.mxu0 %v3009
        %3424 = vmatprep.subr.mxu0 0.0
        %3425 = vmatpush1.msra.mxu0 %v3010
        %3426 = vmatprep.subr.mxu0 0.0
        %3427 = vmatpush1.msra.mxu0 %v3011
        %3428 = vmatprep.subr.mxu0 0.0
        %3429 = vmatpush1.msra.mxu0 %v3012
        %3430 = vmatprep.subr.mxu0 0.0
        %3431 = vmatpush1.msra.mxu0 %v3013
        %3432 = vmatprep.subr.mxu0 0.0
        %3433 = vmatpush1.msra.mxu0 %v3014
        %3434 = vmatprep.subr.mxu0 0.0
        %3435 = vmatpush1.msra.mxu0 %v3015
        %3436 = vmatprep.subr.mxu0 0.0
        %3437 = vmatpush1.msra.mxu0 %v3016
        %3438 = vmatprep.subr.mxu0 0.0
        %3439 = vmatpush1.msra.mxu0 %v3017
        %3440 = vmatprep.subr.mxu0 0.0
        %3441 = vmatpush1.msra.mxu0 %v3018
        %3442 = vmatprep.subr.mxu0 0.0
        %3443 = vmatpush1.msra.mxu0 %v3019
        %3444 = vmatprep.subr.mxu0 0.0
        %3445 = vmatpush1.msra.mxu0 %v3020
        %3446 = vmatprep.subr.mxu0 0.0
        %3447 = vmatpush1.msra.mxu0 0.0
        %3448 = vmatprep.subr.mxu0 0.0
        %3449 = vmatpush1.msra.mxu0 0.0
        %3450 = vmatprep.subr.mxu0 0.0
        %3451 = vmatpush1.msra.mxu0 0.0
        %3452 = vmatprep.subr.mxu0 0.0
        %3453 = vmatpush1.msra.mxu0 0.0
        %3454 = vmatprep.subr.mxu0 0.0
        %3455 = vmatpush1.msra.mxu0 0.0
        %3456 = vmatprep.subr.mxu0 0.0
        %3457 = vmatpush1.msra.mxu0 0.0
        %3458 = vmatprep.subr.mxu0 0.0
        %3459 = vmatpush1.msra.mxu0 0.0
        %3460 = vmatprep.subr.mxu0 0.0
        %3461 = vmatpush1.msra.mxu0 0.0
        %3462 = vmatprep.subr.mxu0 0.0
        %3463 = vmatpush1.msra.mxu0 0.0
        %3464 = vmatprep.subr.mxu0 0.0
        %3465 = vmatpush1.msra.mxu0 0.0
        %3466 = vmatprep.subr.mxu0 0.0
        %3467 = vmatpush1.msra.mxu0 0.0
        %3468 = vmatprep.subr.mxu0 0.0
        %3469 = vmatpush1.msra.mxu0 0.0
        %3470 = vmatprep.subr.mxu0 0.0
        %3471 = vmatpush1.msra.mxu0 0.0
        %3472 = vmatprep.subr.mxu0 0.0
        %3473 = vmatpush1.msra.mxu0 0.0
        %3474 = vmatprep.mubr.f32.mxu0 %v3394
        %3475 = vmatmul.mubr.f32.gmra.mrb[0].mxu0 %v3354
        %v3476 = vpop.f32.mrb[0].mxu0
        %v3477 = vadd.f32 0.0, %v3476
        %v3478 = vpop.f32.mrb[0].mxu0
        %3479 = vmatprep.mubr.f32.mxu0 %v3396
        %3480 = vmatmul.mubr.f32.gmra.mrb[0].mxu0 %v3359
        %v3481 = vpop.f32.mrb[0].mxu0
        %v3482 = vadd.f32 0.0, %v3481
        %v3483 = vpop.f32.mrb[0].mxu0
        %3484 = vmatprep.mubr.f32.mxu0 %v3398
        %3485 = vmatmul.mubr.f32.gmra.mrb[0].mxu0 %v3363
        %v3486 = vpop.f32.mrb[0].mxu0
        %v3487 = vadd.f32 0.0, %v3486
        %v3488 = vpop.f32.mrb[0].mxu0
        %3489 = vmatprep.mubr.f32.mxu0 %v3400
        %3490 = vmatmul.mubr.f32.gmra.mrb[0].mxu0 %v3367
        %v3491 = vpop.f32.mrb[0].mxu0
        %v3492 = vadd.f32 0.0, %v3491
        %v3493 = vpop.f32.mrb[0].mxu0
        %3494 = vmatprep.mubr.f32.mxu0 %v3402
        %3495 = vmatmul.mubr.f32.gmra.mrb[0].mxu0 %v3371
        %v3496 = vpop.f32.mrb[0].mxu0
        %v3497 = vadd.f32 0.0, %v3496
        %v3498 = vpop.f32.mrb[0].mxu0
        %3499 = vmatprep.mubr.f32.mxu0 %v3404
        %3500 = vmatmul.mubr.f32.gmra.mrb[0].mxu0 %v3375
        %v3501 = vpop.f32.mrb[0].mxu0
        %v3502 = vadd.f32 0.0, %v3501
        %v3503 = vpop.f32.mrb[0].mxu0
        %3504 = vmatprep.mubr.f32.mxu0 %v3406
        %3505 = vmatmul.mubr.f32.gmra.mrb[0].mxu0 %v3379
        %v3506 = vpop.f32.mrb[0].mxu0
        %v3507 = vadd.f32 0.0, %v3506
        %v3508 = vpop.f32.mrb[0].mxu0
        %3509 = vmatprep.mubr.f32.mxu0 %v3408
        %3510 = vmatmul.mubr.f32.gmra.mrb[0].mxu0 %v3383
        %v3511 = vpop.f32.mrb[0].mxu0
        %v3512 = vadd.f32 0.0, %v3511
        %v3513 = vpop.f32.mrb[0].mxu0
        %3514 = vdwg.mxu0
        %v3515 = vadd.f32 %v3306, %v3477
        %v3516 = vadd.f32 %v3311, %v3482
        %v3517 = vadd.f32 %v3316, %v3487
        %v3518 = vadd.f32 %v3321, %v3492
        %v3519 = vadd.f32 %v3326, %v3497
        %v3520 = vadd.f32 %v3331, %v3502
        %v3521 = vadd.f32 %v3336, %v3507
        %v3522 = vadd.f32 %v3341, %v3512
        %v3524 = vlaneseq
        %v3525 = vshrl.u32 %v3524, 7
        %v3526 = vsub.s32 0, %v3525
        %v3527 = vrot.slane %v2964, %v3526
        %v3529 = vadd.f32 %v3515, %v3527
        %v3530 = vadd.f32 %v3516, %v3527
        %v3531 = vadd.f32 %v3517, %v3527
        %v3532 = vadd.f32 %v3518, %v3527
        %v3533 = vadd.f32 %v3519, %v3527
        %v3534 = vadd.f32 %v3520, %v3527
        %v3535 = vadd.f32 %v3521, %v3527
        %v3536 = vadd.f32 %v3522, %v3527
        %v3537 = vmax.f32 %v3529, 0.0
        %v3538 = vmax.f32 %v3530, 0.0
        %v3539 = vmax.f32 %v3531, 0.0
        %v3540 = vmax.f32 %v3532, 0.0
        %v3541 = vmax.f32 %v3533, 0.0
        %v3542 = vmax.f32 %v3534, 0.0
        %v3543 = vmax.f32 %v3535, 0.0
        %v3544 = vmax.f32 %v3536, 0.0
        %v3545 = vld [vmem:[#allocation2 + $0x8] sm:$0xff]
        %v3546 = vld [vmem:[#allocation2 + $0x10] sm:$0xff]
        %v3547 = vld [vmem:[#allocation2 + $0x30] sm:$0xff]
        %v3548 = vld [vmem:[#allocation2 + $0x38] sm:$0xff]
        %v3549 = vld [vmem:[#allocation2 + $0x58] sm:$0xff]
        %v3550 = vld [vmem:[#allocation2 + $0x60] sm:$0xff]
        %v3551 = vld [vmem:[#allocation2 + $0x80] sm:$0xff]
        %v3552 = vld [vmem:[#allocation2 + $0x88] sm:$0xff]
        %v3553 = vld [vmem:[#allocation2 + $0xa8] sm:$0xff]
        %v3554 = vld [vmem:[#allocation2 + $0xb0] sm:$0xff]
        %v3555 = vld [vmem:[#allocation2 + $0xd0] sm:$0xff]
        %v3556 = vld [vmem:[#allocation2 + $0xd8] sm:$0xff]
        %v3557 = vld [vmem:[#allocation2 + $0xf8] sm:$0xff]
        %v3558 = vld [vmem:[#allocation2 + $0x100] sm:$0xff]
        %v3559 = vld [vmem:[#allocation2 + $0x120] sm:$0xff]
        %v3560 = vld [vmem:[#allocation2 + $0x128] sm:$0xff]
        %v3561 = vld [vmem:[#allocation2 + $0x8] sm:$0xfe]
        %v3562 = vld [vmem:[#allocation2 + $0x10] sm:$0xfe]
        %v3563 = vld [vmem:[#allocation2 + $0x148] sm:$0x1]
        %v3564 = vld [vmem:[#allocation2 + $0x150] sm:$0x1]
        %v3583 = vrot.slane %v3561, 1
        %v3584 = vrot.slane %v3547, 1
        %v3585 = vsel %vm587, %v3583, %v3584
        %v3586 = vrot.slane %v3562, 1
        %v3587 = vrot.slane %v3548, 1
        %v3588 = vsel %vm587, %v3586, %v3587
        %v3589 = vrot.slane %v3549, 1
        %v3590 = vsel %vm587, %v3584, %v3589
        %v3591 = vrot.slane %v3550, 1
        %v3592 = vsel %vm587, %v3587, %v3591
        %v3593 = vrot.slane %v3551, 1
        %v3594 = vsel %vm587, %v3589, %v3593
        %v3595 = vrot.slane %v3552, 1
        %v3596 = vsel %vm587, %v3591, %v3595
        %v3597 = vrot.slane %v3553, 1
        %v3598 = vsel %vm587, %v3593, %v3597
        %v3599 = vrot.slane %v3554, 1
        %v3600 = vsel %vm587, %v3595, %v3599
        %v3601 = vrot.slane %v3555, 1
        %v3602 = vsel %vm587, %v3597, %v3601
        %v3603 = vrot.slane %v3556, 1
        %v3604 = vsel %vm587, %v3599, %v3603
        %v3605 = vrot.slane %v3557, 1
        %v3606 = vsel %vm587, %v3601, %v3605
        %v3607 = vrot.slane %v3558, 1
        %v3608 = vsel %vm587, %v3603, %v3607
        %v3609 = vrot.slane %v3559, 1
        %v3610 = vsel %vm587, %v3605, %v3609
        %v3611 = vrot.slane %v3560, 1
        %v3612 = vsel %vm587, %v3607, %v3611
        %v3613 = vrot.slane %v3563, 1
        %v3614 = vsel %vm587, %v3609, %v3613
        %v3615 = vrot.slane %v3564, 1
        %v3616 = vsel %vm587, %v3611, %v3615
        %v3625 = vsel %vm630, %v3588, 0
        %v3627 = vsel %vm630, %v3592, 0
        %v3629 = vsel %vm630, %v3596, 0
        %v3631 = vsel %vm630, %v3600, 0
        %v3633 = vsel %vm630, %v3604, 0
        %v3635 = vsel %vm630, %v3608, 0
        %v3637 = vsel %vm630, %v3612, 0
        %v3639 = vsel %vm630, %v3616, 0
        %3641 = vmatprep.subr.mxu0 0.0
        %3642 = vmatpush1.msra.mxu0 %v2984
        %3643 = vmatprep.subr.mxu0 0.0
        %3644 = vmatpush1.msra.mxu0 %v2985
        %3645 = vmatprep.subr.mxu0 0.0
        %3646 = vmatpush1.msra.mxu0 %v2986
        %3647 = vmatprep.subr.mxu0 0.0
        %3648 = vmatpush1.msra.mxu0 %v2987
        %3649 = vmatprep.subr.mxu0 0.0
        %3650 = vmatpush1.msra.mxu0 %v2988
        %3651 = vmatprep.subr.mxu0 0.0
        %3652 = vmatpush1.msra.mxu0 %v2989
        %3653 = vmatprep.subr.mxu0 0.0
        %3654 = vmatpush1.msra.mxu0 %v2990
        %3655 = vmatprep.subr.mxu0 0.0
        %3656 = vmatpush1.msra.mxu0 %v2991
        %3657 = vmatprep.subr.mxu0 0.0
        %3658 = vmatpush1.msra.mxu0 %v2992
        %3659 = vmatprep.subr.mxu0 0.0
        %3660 = vmatpush1.msra.mxu0 %v2993
        %3661 = vmatprep.subr.mxu0 0.0
        %3662 = vmatpush1.msra.mxu0 %v2994
        %3663 = vmatprep.subr.mxu0 0.0
        %3664 = vmatpush1.msra.mxu0 %v2995
        %3665 = vmatprep.subr.mxu0 0.0
        %3666 = vmatpush1.msra.mxu0 %v2996
        %3667 = vmatprep.subr.mxu0 0.0
        %3668 = vmatpush1.msra.mxu0 %v2997
        %3669 = vmatprep.subr.mxu0 0.0
        %3670 = vmatpush1.msra.mxu0 %v2998
        %3671 = vmatprep.subr.mxu0 0.0
        %3672 = vmatpush1.msra.mxu0 %v2999
        %3673 = vmatprep.subr.mxu0 0.0
        %3674 = vmatpush1.msra.mxu0 %v3000
        %3675 = vmatprep.subr.mxu0 0.0
        %3676 = vmatpush1.msra.mxu0 %v3001
        %3677 = vmatprep.subr.mxu0 0.0
        %3678 = vmatpush1.msra.mxu0 0.0
        %3679 = vmatprep.subr.mxu0 0.0
        %3680 = vmatpush1.msra.mxu0 0.0
        %3681 = vmatprep.subr.mxu0 0.0
        %3682 = vmatpush1.msra.mxu0 0.0
        %3683 = vmatprep.subr.mxu0 0.0
        %3684 = vmatpush1.msra.mxu0 0.0
        %3685 = vmatprep.subr.mxu0 0.0
        %3686 = vmatpush1.msra.mxu0 0.0
        %3687 = vmatprep.subr.mxu0 0.0
        %3688 = vmatpush1.msra.mxu0 0.0
        %3689 = vmatprep.subr.mxu0 0.0
        %3690 = vmatpush1.msra.mxu0 0.0
        %3691 = vmatprep.subr.mxu0 0.0
        %3692 = vmatpush1.msra.mxu0 0.0
        %3693 = vmatprep.subr.mxu0 0.0
        %3694 = vmatpush1.msra.mxu0 0.0
        %3695 = vmatprep.subr.mxu0 0.0
        %3696 = vmatpush1.msra.mxu0 0.0
        %3697 = vmatprep.subr.mxu0 0.0
        %3698 = vmatpush1.msra.mxu0 0.0
        %3699 = vmatprep.subr.mxu0 0.0
        %3700 = vmatpush1.msra.mxu0 0.0
        %3701 = vmatprep.subr.mxu0 0.0
        %3702 = vmatpush1.msra.mxu0 0.0
        %3703 = vmatprep.subr.mxu0 0.0
        %3704 = vmatpush1.msra.mxu0 0.0
        %3705 = vmatprep.mubr.f32.mxu0 %v3625
        %3706 = vmatmul.mubr.f32.gmra.mrb[0].mxu0 %v3585
        %v3707 = vpop.f32.mrb[0].mxu0
        %v3708 = vadd.f32 0.0, %v3707
        %v3709 = vpop.f32.mrb[0].mxu0
        %3710 = vmatprep.mubr.f32.mxu0 %v3627
        %3711 = vmatmul.mubr.f32.gmra.mrb[0].mxu0 %v3590
        %v3712 = vpop.f32.mrb[0].mxu0
        %v3713 = vadd.f32 0.0, %v3712
        %v3714 = vpop.f32.mrb[0].mxu0
        %3715 = vmatprep.mubr.f32.mxu0 %v3629
        %3716 = vmatmul.mubr.f32.gmra.mrb[0].mxu0 %v3594
        %v3717 = vpop.f32.mrb[0].mxu0
        %v3718 = vadd.f32 0.0, %v3717
        %v3719 = vpop.f32.mrb[0].mxu0
        %3720 = vmatprep.mubr.f32.mxu0 %v3631
        %3721 = vmatmul.mubr.f32.gmra.mrb[0].mxu0 %v3598
        %v3722 = vpop.f32.mrb[0].mxu0
        %v3723 = vadd.f32 0.0, %v3722
        %v3724 = vpop.f32.mrb[0].mxu0
        %3725 = vmatprep.mubr.f32.mxu0 %v3633
        %3726 = vmatmul.mubr.f32.gmra.mrb[0].mxu0 %v3602
        %v3727 = vpop.f32.mrb[0].mxu0
        %v3728 = vadd.f32 0.0, %v3727
        %v3729 = vpop.f32.mrb[0].mxu0
        %3730 = vmatprep.mubr.f32.mxu0 %v3635
        %3731 = vmatmul.mubr.f32.gmra.mrb[0].mxu0 %v3606
        %v3732 = vpop.f32.mrb[0].mxu0
        %v3733 = vadd.f32 0.0, %v3732
        %v3734 = vpop.f32.mrb[0].mxu0
        %3735 = vmatprep.mubr.f32.mxu0 %v3637
        %3736 = vmatmul.mubr.f32.gmra.mrb[0].mxu0 %v3610
        %v3737 = vpop.f32.mrb[0].mxu0
        %v3738 = vadd.f32 0.0, %v3737
        %v3739 = vpop.f32.mrb[0].mxu0
        %3740 = vmatprep.mubr.f32.mxu0 %v3639
        %3741 = vmatmul.mubr.f32.gmra.mrb[0].mxu0 %v3614
        %v3742 = vpop.f32.mrb[0].mxu0
        %v3743 = vadd.f32 0.0, %v3742
        %v3744 = vpop.f32.mrb[0].mxu0
        %3745 = vdwg.mxu0
        %v3747 = vsel %vm630, %v3546, 0
        %v3749 = vsel %vm630, %v3548, 0
        %v3751 = vsel %vm630, %v3550, 0
        %v3753 = vsel %vm630, %v3552, 0
        %v3755 = vsel %vm630, %v3554, 0
        %v3757 = vsel %vm630, %v3556, 0
        %v3759 = vsel %vm630, %v3558, 0
        %v3761 = vsel %vm630, %v3560, 0
        %3763 = vmatprep.subr.mxu0 0.0
        %3764 = vmatpush1.msra.mxu0 %v2965
        %3765 = vmatprep.subr.mxu0 0.0
        %3766 = vmatpush1.msra.mxu0 %v2966
        %3767 = vmatprep.subr.mxu0 0.0
        %3768 = vmatpush1.msra.mxu0 %v2967
        %3769 = vmatprep.subr.mxu0 0.0
        %3770 = vmatpush1.msra.mxu0 %v2968
        %3771 = vmatprep.subr.mxu0 0.0
        %3772 = vmatpush1.msra.mxu0 %v2969
        %3773 = vmatprep.subr.mxu0 0.0
        %3774 = vmatpush1.msra.mxu0 %v2970
        %3775 = vmatprep.subr.mxu0 0.0
        %3776 = vmatpush1.msra.mxu0 %v2971
        %3777 = vmatprep.subr.mxu0 0.0
        %3778 = vmatpush1.msra.mxu0 %v2972
        %3779 = vmatprep.subr.mxu0 0.0
        %3780 = vmatpush1.msra.mxu0 %v2973
        %3781 = vmatprep.subr.mxu0 0.0
        %3782 = vmatpush1.msra.mxu0 %v2974
        %3783 = vmatprep.subr.mxu0 0.0
        %3784 = vmatpush1.msra.mxu0 %v2975
        %3785 = vmatprep.subr.mxu0 0.0
        %3786 = vmatpush1.msra.mxu0 %v2976
        %3787 = vmatprep.subr.mxu0 0.0
        %3788 = vmatpush1.msra.mxu0 %v2977
        %3789 = vmatprep.subr.mxu0 0.0
        %3790 = vmatpush1.msra.mxu0 %v2978
        %3791 = vmatprep.subr.mxu0 0.0
        %3792 = vmatpush1.msra.mxu0 %v2979
        %3793 = vmatprep.subr.mxu0 0.0
        %3794 = vmatpush1.msra.mxu0 %v2980
        %3795 = vmatprep.subr.mxu0 0.0
        %3796 = vmatpush1.msra.mxu0 %v2981
        %3797 = vmatprep.subr.mxu0 0.0
        %3798 = vmatpush1.msra.mxu0 %v2982
        %3799 = vmatprep.subr.mxu0 0.0
        %3800 = vmatpush1.msra.mxu0 0.0
        %3801 = vmatprep.subr.mxu0 0.0
        %3802 = vmatpush1.msra.mxu0 0.0
        %3803 = vmatprep.subr.mxu0 0.0
        %3804 = vmatpush1.msra.mxu0 0.0
        %3805 = vmatprep.subr.mxu0 0.0
        %3806 = vmatpush1.msra.mxu0 0.0
        %3807 = vmatprep.subr.mxu0 0.0
        %3808 = vmatpush1.msra.mxu0 0.0
        %3809 = vmatprep.subr.mxu0 0.0
        %3810 = vmatpush1.msra.mxu0 0.0
        %3811 = vmatprep.subr.mxu0 0.0
        %3812 = vmatpush1.msra.mxu0 0.0
        %3813 = vmatprep.subr.mxu0 0.0
        %3814 = vmatpush1.msra.mxu0 0.0
        %3815 = vmatprep.subr.mxu0 0.0
        %3816 = vmatpush1.msra.mxu0 0.0
        %3817 = vmatprep.subr.mxu0 0.0
        %3818 = vmatpush1.msra.mxu0 0.0
        %3819 = vmatprep.subr.mxu0 0.0
        %3820 = vmatpush1.msra.mxu0 0.0
        %3821 = vmatprep.subr.mxu0 0.0
        %3822 = vmatpush1.msra.mxu0 0.0
        %3823 = vmatprep.subr.mxu0 0.0
        %3824 = vmatpush1.msra.mxu0 0.0
        %3825 = vmatprep.subr.mxu0 0.0
        %3826 = vmatpush1.msra.mxu0 0.0
        %3827 = vmatprep.mubr.f32.mxu0 %v3747
        %3828 = vmatmul.mubr.f32.gmra.mrb[0].mxu0 %v3545
        %v3829 = vpop.f32.mrb[0].mxu0
        %v3830 = vadd.f32 %v3708, %v3829
        %v3831 = vpop.f32.mrb[0].mxu0
        %3832 = vmatprep.mubr.f32.mxu0 %v3749
        %3833 = vmatmul.mubr.f32.gmra.mrb[0].mxu0 %v3547
        %v3834 = vpop.f32.mrb[0].mxu0
        %v3835 = vadd.f32 %v3713, %v3834
        %v3836 = vpop.f32.mrb[0].mxu0
        %3837 = vmatprep.mubr.f32.mxu0 %v3751
        %3838 = vmatmul.mubr.f32.gmra.mrb[0].mxu0 %v3549
        %v3839 = vpop.f32.mrb[0].mxu0
        %v3840 = vadd.f32 %v3718, %v3839
        %v3841 = vpop.f32.mrb[0].mxu0
        %3842 = vmatprep.mubr.f32.mxu0 %v3753
        %3843 = vmatmul.mubr.f32.gmra.mrb[0].mxu0 %v3551
        %v3844 = vpop.f32.mrb[0].mxu0
        %v3845 = vadd.f32 %v3723, %v3844
        %v3846 = vpop.f32.mrb[0].mxu0
        %3847 = vmatprep.mubr.f32.mxu0 %v3755
        %3848 = vmatmul.mubr.f32.gmra.mrb[0].mxu0 %v3553
        %v3849 = vpop.f32.mrb[0].mxu0
        %v3850 = vadd.f32 %v3728, %v3849
        %v3851 = vpop.f32.mrb[0].mxu0
        %3852 = vmatprep.mubr.f32.mxu0 %v3757
        %3853 = vmatmul.mubr.f32.gmra.mrb[0].mxu0 %v3555
        %v3854 = vpop.f32.mrb[0].mxu0
        %v3855 = vadd.f32 %v3733, %v3854
        %v3856 = vpop.f32.mrb[0].mxu0
        %3857 = vmatprep.mubr.f32.mxu0 %v3759
        %3858 = vmatmul.mubr.f32.gmra.mrb[0].mxu0 %v3557
        %v3859 = vpop.f32.mrb[0].mxu0
        %v3860 = vadd.f32 %v3738, %v3859
        %v3861 = vpop.f32.mrb[0].mxu0
        %3862 = vmatprep.mubr.f32.mxu0 %v3761
        %3863 = vmatmul.mubr.f32.gmra.mrb[0].mxu0 %v3559
        %v3864 = vpop.f32.mrb[0].mxu0
        %v3865 = vadd.f32 %v3743, %v3864
        %v3866 = vpop.f32.mrb[0].mxu0
        %3867 = vdwg.mxu0
        %v3868 = vld [vmem:[#allocation2 + $0x8] sm:$0xfc]
        %v3869 = vld [vmem:[#allocation2 + $0x10] sm:$0xfc]
        %v3870 = vld [vmem:[#allocation2 + $0x148] sm:$0x3]
        %v3871 = vld [vmem:[#allocation2 + $0x150] sm:$0x3]
        %v3876 = vrot.slane %v3868, 2
        %v3877 = vrot.slane %v3547, 2
        %v3878 = vsel %vm882, %v3876, %v3877
        %v3879 = vrot.slane %v3869, 2
        %v3880 = vrot.slane %v3548, 2
        %v3881 = vsel %vm882, %v3879, %v3880
        %v3882 = vrot.slane %v3549, 2
        %v3883 = vsel %vm882, %v3877, %v3882
        %v3884 = vrot.slane %v3550, 2
        %v3885 = vsel %vm882, %v3880, %v3884
        %v3886 = vrot.slane %v3551, 2
        %v3887 = vsel %vm882, %v3882, %v3886
        %v3888 = vrot.slane %v3552, 2
        %v3889 = vsel %vm882, %v3884, %v3888
        %v3890 = vrot.slane %v3553, 2
        %v3891 = vsel %vm882, %v3886, %v3890
        %v3892 = vrot.slane %v3554, 2
        %v3893 = vsel %vm882, %v3888, %v3892
        %v3894 = vrot.slane %v3555, 2
        %v3895 = vsel %vm882, %v3890, %v3894
        %v3896 = vrot.slane %v3556, 2
        %v3897 = vsel %vm882, %v3892, %v3896
        %v3898 = vrot.slane %v3557, 2
        %v3899 = vsel %vm882, %v3894, %v3898
        %v3900 = vrot.slane %v3558, 2
        %v3901 = vsel %vm882, %v3896, %v3900
        %v3902 = vrot.slane %v3559, 2
        %v3903 = vsel %vm882, %v3898, %v3902
        %v3904 = vrot.slane %v3560, 2
        %v3905 = vsel %vm882, %v3900, %v3904
        %v3906 = vrot.slane %v3870, 2
        %v3907 = vsel %vm882, %v3902, %v3906
        %v3908 = vrot.slane %v3871, 2
        %v3909 = vsel %vm882, %v3904, %v3908
        %v3918 = vsel %vm630, %v3881, 0
        %v3920 = vsel %vm630, %v3885, 0
        %v3922 = vsel %vm630, %v3889, 0
        %v3924 = vsel %vm630, %v3893, 0
        %v3926 = vsel %vm630, %v3897, 0
        %v3928 = vsel %vm630, %v3901, 0
        %v3930 = vsel %vm630, %v3905, 0
        %v3932 = vsel %vm630, %v3909, 0
        %3934 = vmatprep.subr.mxu0 0.0
        %3935 = vmatpush1.msra.mxu0 %v3003
        %3936 = vmatprep.subr.mxu0 0.0
        %3937 = vmatpush1.msra.mxu0 %v3004
        %3938 = vmatprep.subr.mxu0 0.0
        %3939 = vmatpush1.msra.mxu0 %v3005
        %3940 = vmatprep.subr.mxu0 0.0
        %3941 = vmatpush1.msra.mxu0 %v3006
        %3942 = vmatprep.subr.mxu0 0.0
        %3943 = vmatpush1.msra.mxu0 %v3007
        %3944 = vmatprep.subr.mxu0 0.0
        %3945 = vmatpush1.msra.mxu0 %v3008
        %3946 = vmatprep.subr.mxu0 0.0
        %3947 = vmatpush1.msra.mxu0 %v3009
        %3948 = vmatprep.subr.mxu0 0.0
        %3949 = vmatpush1.msra.mxu0 %v3010
        %3950 = vmatprep.subr.mxu0 0.0
        %3951 = vmatpush1.msra.mxu0 %v3011
        %3952 = vmatprep.subr.mxu0 0.0
        %3953 = vmatpush1.msra.mxu0 %v3012
        %3954 = vmatprep.subr.mxu0 0.0
        %3955 = vmatpush1.msra.mxu0 %v3013
        %3956 = vmatprep.subr.mxu0 0.0
        %3957 = vmatpush1.msra.mxu0 %v3014
        %3958 = vmatprep.subr.mxu0 0.0
        %3959 = vmatpush1.msra.mxu0 %v3015
        %3960 = vmatprep.subr.mxu0 0.0
        %3961 = vmatpush1.msra.mxu0 %v3016
        %3962 = vmatprep.subr.mxu0 0.0
        %3963 = vmatpush1.msra.mxu0 %v3017
        %3964 = vmatprep.subr.mxu0 0.0
        %3965 = vmatpush1.msra.mxu0 %v3018
        %3966 = vmatprep.subr.mxu0 0.0
        %3967 = vmatpush1.msra.mxu0 %v3019
        %3968 = vmatprep.subr.mxu0 0.0
        %3969 = vmatpush1.msra.mxu0 %v3020
        %3970 = vmatprep.subr.mxu0 0.0
        %3971 = vmatpush1.msra.mxu0 0.0
        %3972 = vmatprep.subr.mxu0 0.0
        %3973 = vmatpush1.msra.mxu0 0.0
        %3974 = vmatprep.subr.mxu0 0.0
        %3975 = vmatpush1.msra.mxu0 0.0
        %3976 = vmatprep.subr.mxu0 0.0
        %3977 = vmatpush1.msra.mxu0 0.0
        %3978 = vmatprep.subr.mxu0 0.0
        %3979 = vmatpush1.msra.mxu0 0.0
        %3980 = vmatprep.subr.mxu0 0.0
        %3981 = vmatpush1.msra.mxu0 0.0
        %3982 = vmatprep.subr.mxu0 0.0
        %3983 = vmatpush1.msra.mxu0 0.0
        %3984 = vmatprep.subr.mxu0 0.0
        %3985 = vmatpush1.msra.mxu0 0.0
        %3986 = vmatprep.subr.mxu0 0.0
        %3987 = vmatpush1.msra.mxu0 0.0
        %3988 = vmatprep.subr.mxu0 0.0
        %3989 = vmatpush1.msra.mxu0 0.0
        %3990 = vmatprep.subr.mxu0 0.0
        %3991 = vmatpush1.msra.mxu0 0.0
        %3992 = vmatprep.subr.mxu0 0.0
        %3993 = vmatpush1.msra.mxu0 0.0
        %3994 = vmatprep.subr.mxu0 0.0
        %3995 = vmatpush1.msra.mxu0 0.0
        %3996 = vmatprep.subr.mxu0 0.0
        %3997 = vmatpush1.msra.mxu0 0.0
        %3998 = vmatprep.mubr.f32.mxu0 %v3918
        %3999 = vmatmul.mubr.f32.gmra.mrb[0].mxu0 %v3878
        %v4000 = vpop.f32.mrb[0].mxu0
        %v4001 = vadd.f32 0.0, %v4000
        %v4002 = vpop.f32.mrb[0].mxu0
        %4003 = vmatprep.mubr.f32.mxu0 %v3920
        %4004 = vmatmul.mubr.f32.gmra.mrb[0].mxu0 %v3883
        %v4005 = vpop.f32.mrb[0].mxu0
        %v4006 = vadd.f32 0.0, %v4005
        %v4007 = vpop.f32.mrb[0].mxu0
        %4008 = vmatprep.mubr.f32.mxu0 %v3922
        %4009 = vmatmul.mubr.f32.gmra.mrb[0].mxu0 %v3887
        %v4010 = vpop.f32.mrb[0].mxu0
        %v4011 = vadd.f32 0.0, %v4010
        %v4012 = vpop.f32.mrb[0].mxu0
        %4013 = vmatprep.mubr.f32.mxu0 %v3924
        %4014 = vmatmul.mubr.f32.gmra.mrb[0].mxu0 %v3891
        %v4015 = vpop.f32.mrb[0].mxu0
        %v4016 = vadd.f32 0.0, %v4015
        %v4017 = vpop.f32.mrb[0].mxu0
        %4018 = vmatprep.mubr.f32.mxu0 %v3926
        %4019 = vmatmul.mubr.f32.gmra.mrb[0].mxu0 %v3895
        %v4020 = vpop.f32.mrb[0].mxu0
        %v4021 = vadd.f32 0.0, %v4020
        %v4022 = vpop.f32.mrb[0].mxu0
        %4023 = vmatprep.mubr.f32.mxu0 %v3928
        %4024 = vmatmul.mubr.f32.gmra.mrb[0].mxu0 %v3899
        %v4025 = vpop.f32.mrb[0].mxu0
        %v4026 = vadd.f32 0.0, %v4025
        %v4027 = vpop.f32.mrb[0].mxu0
        %4028 = vmatprep.mubr.f32.mxu0 %v3930
        %4029 = vmatmul.mubr.f32.gmra.mrb[0].mxu0 %v3903
        %v4030 = vpop.f32.mrb[0].mxu0
        %v4031 = vadd.f32 0.0, %v4030
        %v4032 = vpop.f32.mrb[0].mxu0
        %4033 = vmatprep.mubr.f32.mxu0 %v3932
        %4034 = vmatmul.mubr.f32.gmra.mrb[0].mxu0 %v3907
        %v4035 = vpop.f32.mrb[0].mxu0
        %v4036 = vadd.f32 0.0, %v4035
        %v4037 = vpop.f32.mrb[0].mxu0
        %4038 = vdwg.mxu0
        %v4039 = vadd.f32 %v3830, %v4001
        %v4040 = vadd.f32 %v3835, %v4006
        %v4041 = vadd.f32 %v3840, %v4011
        %v4042 = vadd.f32 %v3845, %v4016
        %v4043 = vadd.f32 %v3850, %v4021
        %v4044 = vadd.f32 %v3855, %v4026
        %v4045 = vadd.f32 %v3860, %v4031
        %v4046 = vadd.f32 %v3865, %v4036
        %v4047 = vadd.f32 %v4039, %v3527
        %v4048 = vadd.f32 %v4040, %v3527
        %v4049 = vadd.f32 %v4041, %v3527
        %v4050 = vadd.f32 %v4042, %v3527
        %v4051 = vadd.f32 %v4043, %v3527
        %v4052 = vadd.f32 %v4044, %v3527
        %v4053 = vadd.f32 %v4045, %v3527
        %v4054 = vadd.f32 %v4046, %v3527
        %v4055 = vmax.f32 %v4047, 0.0
        %v4056 = vmax.f32 %v4048, 0.0
        %v4057 = vmax.f32 %v4049, 0.0
        %v4058 = vmax.f32 %v4050, 0.0
        %v4059 = vmax.f32 %v4051, 0.0
        %v4060 = vmax.f32 %v4052, 0.0
        %v4061 = vmax.f32 %v4053, 0.0
        %v4062 = vmax.f32 %v4054, 0.0
        %v4063 = vld [vmem:[#allocation2 + $0x10] sm:$0xff]
        %v4064 = vld [vmem:[#allocation2 + $0x18] sm:$0xff]
        %v4065 = vld [vmem:[#allocation2 + $0x38] sm:$0xff]
        %v4066 = vld [vmem:[#allocation2 + $0x40] sm:$0xff]
        %v4067 = vld [vmem:[#allocation2 + $0x60] sm:$0xff]
        %v4068 = vld [vmem:[#allocation2 + $0x68] sm:$0xff]
        %v4069 = vld [vmem:[#allocation2 + $0x88] sm:$0xff]
        %v4070 = vld [vmem:[#allocation2 + $0x90] sm:$0xff]
        %v4071 = vld [vmem:[#allocation2 + $0xb0] sm:$0xff]
        %v4072 = vld [vmem:[#allocation2 + $0xb8] sm:$0xff]
        %v4073 = vld [vmem:[#allocation2 + $0xd8] sm:$0xff]
        %v4074 = vld [vmem:[#allocation2 + $0xe0] sm:$0xff]
        %v4075 = vld [vmem:[#allocation2 + $0x100] sm:$0xff]
        %v4076 = vld [vmem:[#allocation2 + $0x108] sm:$0xff]
        %v4077 = vld [vmem:[#allocation2 + $0x128] sm:$0xff]
        %v4078 = vld [vmem:[#allocation2 + $0x130] sm:$0xff]
        %v4079 = vld [vmem:[#allocation2 + $0x10] sm:$0xfe]
        %v4080 = vld [vmem:[#allocation2 + $0x18] sm:$0xfe]
        %v4081 = vld [vmem:[#allocation2 + $0x150] sm:$0x1]
        %v4082 = vld [vmem:[#allocation2 + $0x158] sm:$0x1]
        %v4101 = vrot.slane %v4079, 1
        %v4102 = vrot.slane %v4065, 1
        %v4103 = vsel %vm587, %v4101, %v4102
        %v4104 = vrot.slane %v4080, 1
        %v4105 = vrot.slane %v4066, 1
        %v4106 = vsel %vm587, %v4104, %v4105
        %v4107 = vrot.slane %v4067, 1
        %v4108 = vsel %vm587, %v4102, %v4107
        %v4109 = vrot.slane %v4068, 1
        %v4110 = vsel %vm587, %v4105, %v4109
        %v4111 = vrot.slane %v4069, 1
        %v4112 = vsel %vm587, %v4107, %v4111
        %v4113 = vrot.slane %v4070, 1
        %v4114 = vsel %vm587, %v4109, %v4113
        %v4115 = vrot.slane %v4071, 1
        %v4116 = vsel %vm587, %v4111, %v4115
        %v4117 = vrot.slane %v4072, 1
        %v4118 = vsel %vm587, %v4113, %v4117
        %v4119 = vrot.slane %v4073, 1
        %v4120 = vsel %vm587, %v4115, %v4119
        %v4121 = vrot.slane %v4074, 1
        %v4122 = vsel %vm587, %v4117, %v4121
        %v4123 = vrot.slane %v4075, 1
        %v4124 = vsel %vm587, %v4119, %v4123
        %v4125 = vrot.slane %v4076, 1
        %v4126 = vsel %vm587, %v4121, %v4125
        %v4127 = vrot.slane %v4077, 1
        %v4128 = vsel %vm587, %v4123, %v4127
        %v4129 = vrot.slane %v4078, 1
        %v4130 = vsel %vm587, %v4125, %v4129
        %v4131 = vrot.slane %v4081, 1
        %v4132 = vsel %vm587, %v4127, %v4131
        %v4133 = vrot.slane %v4082, 1
        %v4134 = vsel %vm587, %v4129, %v4133
        %v4143 = vsel %vm630, %v4106, 0
        %v4145 = vsel %vm630, %v4110, 0
        %v4147 = vsel %vm630, %v4114, 0
        %v4149 = vsel %vm630, %v4118, 0
        %v4151 = vsel %vm630, %v4122, 0
        %v4153 = vsel %vm630, %v4126, 0
        %v4155 = vsel %vm630, %v4130, 0
        %v4157 = vsel %vm630, %v4134, 0
        %4159 = vmatprep.subr.mxu0 0.0
        %4160 = vmatpush1.msra.mxu0 %v2984
        %4161 = vmatprep.subr.mxu0 0.0
        %4162 = vmatpush1.msra.mxu0 %v2985
        %4163 = vmatprep.subr.mxu0 0.0
        %4164 = vmatpush1.msra.mxu0 %v2986
        %4165 = vmatprep.subr.mxu0 0.0
        %4166 = vmatpush1.msra.mxu0 %v2987
        %4167 = vmatprep.subr.mxu0 0.0
        %4168 = vmatpush1.msra.mxu0 %v2988
        %4169 = vmatprep.subr.mxu0 0.0
        %4170 = vmatpush1.msra.mxu0 %v2989
        %4171 = vmatprep.subr.mxu0 0.0
        %4172 = vmatpush1.msra.mxu0 %v2990
        %4173 = vmatprep.subr.mxu0 0.0
        %4174 = vmatpush1.msra.mxu0 %v2991
        %4175 = vmatprep.subr.mxu0 0.0
        %4176 = vmatpush1.msra.mxu0 %v2992
        %4177 = vmatprep.subr.mxu0 0.0
        %4178 = vmatpush1.msra.mxu0 %v2993
        %4179 = vmatprep.subr.mxu0 0.0
        %4180 = vmatpush1.msra.mxu0 %v2994
        %4181 = vmatprep.subr.mxu0 0.0
        %4182 = vmatpush1.msra.mxu0 %v2995
        %4183 = vmatprep.subr.mxu0 0.0
        %4184 = vmatpush1.msra.mxu0 %v2996
        %4185 = vmatprep.subr.mxu0 0.0
        %4186 = vmatpush1.msra.mxu0 %v2997
        %4187 = vmatprep.subr.mxu0 0.0
        %4188 = vmatpush1.msra.mxu0 %v2998
        %4189 = vmatprep.subr.mxu0 0.0
        %4190 = vmatpush1.msra.mxu0 %v2999
        %4191 = vmatprep.subr.mxu0 0.0
        %4192 = vmatpush1.msra.mxu0 %v3000
        %4193 = vmatprep.subr.mxu0 0.0
        %4194 = vmatpush1.msra.mxu0 %v3001
        %4195 = vmatprep.subr.mxu0 0.0
        %4196 = vmatpush1.msra.mxu0 0.0
        %4197 = vmatprep.subr.mxu0 0.0
        %4198 = vmatpush1.msra.mxu0 0.0
        %4199 = vmatprep.subr.mxu0 0.0
        %4200 = vmatpush1.msra.mxu0 0.0
        %4201 = vmatprep.subr.mxu0 0.0
        %4202 = vmatpush1.msra.mxu0 0.0
        %4203 = vmatprep.subr.mxu0 0.0
        %4204 = vmatpush1.msra.mxu0 0.0
        %4205 = vmatprep.subr.mxu0 0.0
        %4206 = vmatpush1.msra.mxu0 0.0
        %4207 = vmatprep.subr.mxu0 0.0
        %4208 = vmatpush1.msra.mxu0 0.0
        %4209 = vmatprep.subr.mxu0 0.0
        %4210 = vmatpush1.msra.mxu0 0.0
        %4211 = vmatprep.subr.mxu0 0.0
        %4212 = vmatpush1.msra.mxu0 0.0
        %4213 = vmatprep.subr.mxu0 0.0
        %4214 = vmatpush1.msra.mxu0 0.0
        %4215 = vmatprep.subr.mxu0 0.0
        %4216 = vmatpush1.msra.mxu0 0.0
        %4217 = vmatprep.subr.mxu0 0.0
        %4218 = vmatpush1.msra.mxu0 0.0
        %4219 = vmatprep.subr.mxu0 0.0
        %4220 = vmatpush1.msra.mxu0 0.0
        %4221 = vmatprep.subr.mxu0 0.0
        %4222 = vmatpush1.msra.mxu0 0.0
        %4223 = vmatprep.mubr.f32.mxu0 %v4143
        %4224 = vmatmul.mubr.f32.gmra.mrb[0].mxu0 %v4103
        %v4225 = vpop.f32.mrb[0].mxu0
        %v4226 = vadd.f32 0.0, %v4225
        %v4227 = vpop.f32.mrb[0].mxu0
        %4228 = vmatprep.mubr.f32.mxu0 %v4145
        %4229 = vmatmul.mubr.f32.gmra.mrb[0].mxu0 %v4108
        %v4230 = vpop.f32.mrb[0].mxu0
        %v4231 = vadd.f32 0.0, %v4230
        %v4232 = vpop.f32.mrb[0].mxu0
        %4233 = vmatprep.mubr.f32.mxu0 %v4147
        %4234 = vmatmul.mubr.f32.gmra.mrb[0].mxu0 %v4112
        %v4235 = vpop.f32.mrb[0].mxu0
        %v4236 = vadd.f32 0.0, %v4235
        %v4237 = vpop.f32.mrb[0].mxu0
        %4238 = vmatprep.mubr.f32.mxu0 %v4149
        %4239 = vmatmul.mubr.f32.gmra.mrb[0].mxu0 %v4116
        %v4240 = vpop.f32.mrb[0].mxu0
        %v4241 = vadd.f32 0.0, %v4240
        %v4242 = vpop.f32.mrb[0].mxu0
        %4243 = vmatprep.mubr.f32.mxu0 %v4151
        %4244 = vmatmul.mubr.f32.gmra.mrb[0].mxu0 %v4120
        %v4245 = vpop.f32.mrb[0].mxu0
        %v4246 = vadd.f32 0.0, %v4245
        %v4247 = vpop.f32.mrb[0].mxu0
        %4248 = vmatprep.mubr.f32.mxu0 %v4153
        %4249 = vmatmul.mubr.f32.gmra.mrb[0].mxu0 %v4124
        %v4250 = vpop.f32.mrb[0].mxu0
        %v4251 = vadd.f32 0.0, %v4250
        %v4252 = vpop.f32.mrb[0].mxu0
        %4253 = vmatprep.mubr.f32.mxu0 %v4155
        %4254 = vmatmul.mubr.f32.gmra.mrb[0].mxu0 %v4128
        %v4255 = vpop.f32.mrb[0].mxu0
        %v4256 = vadd.f32 0.0, %v4255
        %v4257 = vpop.f32.mrb[0].mxu0
        %4258 = vmatprep.mubr.f32.mxu0 %v4157
        %4259 = vmatmul.mubr.f32.gmra.mrb[0].mxu0 %v4132
        %v4260 = vpop.f32.mrb[0].mxu0
        %v4261 = vadd.f32 0.0, %v4260
        %v4262 = vpop.f32.mrb[0].mxu0
        %4263 = vdwg.mxu0
        %v4265 = vsel %vm630, %v4064, 0
        %v4267 = vsel %vm630, %v4066, 0
        %v4269 = vsel %vm630, %v4068, 0
        %v4271 = vsel %vm630, %v4070, 0
        %v4273 = vsel %vm630, %v4072, 0
        %v4275 = vsel %vm630, %v4074, 0
        %v4277 = vsel %vm630, %v4076, 0
        %v4279 = vsel %vm630, %v4078, 0
        %4281 = vmatprep.subr.mxu0 0.0
        %4282 = vmatpush1.msra.mxu0 %v2965
        %4283 = vmatprep.subr.mxu0 0.0
        %4284 = vmatpush1.msra.mxu0 %v2966
        %4285 = vmatprep.subr.mxu0 0.0
        %4286 = vmatpush1.msra.mxu0 %v2967
        %4287 = vmatprep.subr.mxu0 0.0
        %4288 = vmatpush1.msra.mxu0 %v2968
        %4289 = vmatprep.subr.mxu0 0.0
        %4290 = vmatpush1.msra.mxu0 %v2969
        %4291 = vmatprep.subr.mxu0 0.0
        %4292 = vmatpush1.msra.mxu0 %v2970
        %4293 = vmatprep.subr.mxu0 0.0
        %4294 = vmatpush1.msra.mxu0 %v2971
        %4295 = vmatprep.subr.mxu0 0.0
        %4296 = vmatpush1.msra.mxu0 %v2972
        %4297 = vmatprep.subr.mxu0 0.0
        %4298 = vmatpush1.msra.mxu0 %v2973
        %4299 = vmatprep.subr.mxu0 0.0
        %4300 = vmatpush1.msra.mxu0 %v2974
        %4301 = vmatprep.subr.mxu0 0.0
        %4302 = vmatpush1.msra.mxu0 %v2975
        %4303 = vmatprep.subr.mxu0 0.0
        %4304 = vmatpush1.msra.mxu0 %v2976
        %4305 = vmatprep.subr.mxu0 0.0
        %4306 = vmatpush1.msra.mxu0 %v2977
        %4307 = vmatprep.subr.mxu0 0.0
        %4308 = vmatpush1.msra.mxu0 %v2978
        %4309 = vmatprep.subr.mxu0 0.0
        %4310 = vmatpush1.msra.mxu0 %v2979
        %4311 = vmatprep.subr.mxu0 0.0
        %4312 = vmatpush1.msra.mxu0 %v2980
        %4313 = vmatprep.subr.mxu0 0.0
        %4314 = vmatpush1.msra.mxu0 %v2981
        %4315 = vmatprep.subr.mxu0 0.0
        %4316 = vmatpush1.msra.mxu0 %v2982
        %4317 = vmatprep.subr.mxu0 0.0
        %4318 = vmatpush1.msra.mxu0 0.0
        %4319 = vmatprep.subr.mxu0 0.0
        %4320 = vmatpush1.msra.mxu0 0.0
        %4321 = vmatprep.subr.mxu0 0.0
        %4322 = vmatpush1.msra.mxu0 0.0
        %4323 = vmatprep.subr.mxu0 0.0
        %4324 = vmatpush1.msra.mxu0 0.0
        %4325 = vmatprep.subr.mxu0 0.0
        %4326 = vmatpush1.msra.mxu0 0.0
        %4327 = vmatprep.subr.mxu0 0.0
        %4328 = vmatpush1.msra.mxu0 0.0
        %4329 = vmatprep.subr.mxu0 0.0
        %4330 = vmatpush1.msra.mxu0 0.0
        %4331 = vmatprep.subr.mxu0 0.0
        %4332 = vmatpush1.msra.mxu0 0.0
        %4333 = vmatprep.subr.mxu0 0.0
        %4334 = vmatpush1.msra.mxu0 0.0
        %4335 = vmatprep.subr.mxu0 0.0
        %4336 = vmatpush1.msra.mxu0 0.0
        %4337 = vmatprep.subr.mxu0 0.0
        %4338 = vmatpush1.msra.mxu0 0.0
        %4339 = vmatprep.subr.mxu0 0.0
        %4340 = vmatpush1.msra.mxu0 0.0
        %4341 = vmatprep.subr.mxu0 0.0
        %4342 = vmatpush1.msra.mxu0 0.0
        %4343 = vmatprep.subr.mxu0 0.0
        %4344 = vmatpush1.msra.mxu0 0.0
        %4345 = vmatprep.mubr.f32.mxu0 %v4265
        %4346 = vmatmul.mubr.f32.gmra.mrb[0].mxu0 %v4063
        %v4347 = vpop.f32.mrb[0].mxu0
        %v4348 = vadd.f32 %v4226, %v4347
        %v4349 = vpop.f32.mrb[0].mxu0
        %4350 = vmatprep.mubr.f32.mxu0 %v4267
        %4351 = vmatmul.mubr.f32.gmra.mrb[0].mxu0 %v4065
        %v4352 = vpop.f32.mrb[0].mxu0
        %v4353 = vadd.f32 %v4231, %v4352
        %v4354 = vpop.f32.mrb[0].mxu0
        %4355 = vmatprep.mubr.f32.mxu0 %v4269
        %4356 = vmatmul.mubr.f32.gmra.mrb[0].mxu0 %v4067
        %v4357 = vpop.f32.mrb[0].mxu0
        %v4358 = vadd.f32 %v4236, %v4357
        %v4359 = vpop.f32.mrb[0].mxu0
        %4360 = vmatprep.mubr.f32.mxu0 %v4271
        %4361 = vmatmul.mubr.f32.gmra.mrb[0].mxu0 %v4069
        %v4362 = vpop.f32.mrb[0].mxu0
        %v4363 = vadd.f32 %v4241, %v4362
        %v4364 = vpop.f32.mrb[0].mxu0
        %4365 = vmatprep.mubr.f32.mxu0 %v4273
        %4366 = vmatmul.mubr.f32.gmra.mrb[0].mxu0 %v4071
        %v4367 = vpop.f32.mrb[0].mxu0
        %v4368 = vadd.f32 %v4246, %v4367
        %v4369 = vpop.f32.mrb[0].mxu0
        %4370 = vmatprep.mubr.f32.mxu0 %v4275
        %4371 = vmatmul.mubr.f32.gmra.mrb[0].mxu0 %v4073
        %v4372 = vpop.f32.mrb[0].mxu0
        %v4373 = vadd.f32 %v4251, %v4372
        %v4374 = vpop.f32.mrb[0].mxu0
        %4375 = vmatprep.mubr.f32.mxu0 %v4277
        %4376 = vmatmul.mubr.f32.gmra.mrb[0].mxu0 %v4075
        %v4377 = vpop.f32.mrb[0].mxu0
        %v4378 = vadd.f32 %v4256, %v4377
        %v4379 = vpop.f32.mrb[0].mxu0
        %4380 = vmatprep.mubr.f32.mxu0 %v4279
        %4381 = vmatmul.mubr.f32.gmra.mrb[0].mxu0 %v4077
        %v4382 = vpop.f32.mrb[0].mxu0
        %v4383 = vadd.f32 %v4261, %v4382
        %v4384 = vpop.f32.mrb[0].mxu0
        %4385 = vdwg.mxu0
        %v4386 = vld [vmem:[#allocation2 + $0x10] sm:$0xfc]
        %v4387 = vld [vmem:[#allocation2 + $0x18] sm:$0xfc]
        %v4388 = vld [vmem:[#allocation2 + $0x150] sm:$0x3]
        %v4389 = vld [vmem:[#allocation2 + $0x158] sm:$0x3]
        %v4394 = vrot.slane %v4386, 2
        %v4395 = vrot.slane %v4065, 2
        %v4396 = vsel %vm882, %v4394, %v4395
        %v4397 = vrot.slane %v4387, 2
        %v4398 = vrot.slane %v4066, 2
        %v4399 = vsel %vm882, %v4397, %v4398
        %v4400 = vrot.slane %v4067, 2
        %v4401 = vsel %vm882, %v4395, %v4400
        %v4402 = vrot.slane %v4068, 2
        %v4403 = vsel %vm882, %v4398, %v4402
        %v4404 = vrot.slane %v4069, 2
        %v4405 = vsel %vm882, %v4400, %v4404
        %v4406 = vrot.slane %v4070, 2
        %v4407 = vsel %vm882, %v4402, %v4406
        %v4408 = vrot.slane %v4071, 2
        %v4409 = vsel %vm882, %v4404, %v4408
        %v4410 = vrot.slane %v4072, 2
        %v4411 = vsel %vm882, %v4406, %v4410
        %v4412 = vrot.slane %v4073, 2
        %v4413 = vsel %vm882, %v4408, %v4412
        %v4414 = vrot.slane %v4074, 2
        %v4415 = vsel %vm882, %v4410, %v4414
        %v4416 = vrot.slane %v4075, 2
        %v4417 = vsel %vm882, %v4412, %v4416
        %v4418 = vrot.slane %v4076, 2
        %v4419 = vsel %vm882, %v4414, %v4418
        %v4420 = vrot.slane %v4077, 2
        %v4421 = vsel %vm882, %v4416, %v4420
        %v4422 = vrot.slane %v4078, 2
        %v4423 = vsel %vm882, %v4418, %v4422
        %v4424 = vrot.slane %v4388, 2
        %v4425 = vsel %vm882, %v4420, %v4424
        %v4426 = vrot.slane %v4389, 2
        %v4427 = vsel %vm882, %v4422, %v4426
        %v4436 = vsel %vm630, %v4399, 0
        %v4438 = vsel %vm630, %v4403, 0
        %v4440 = vsel %vm630, %v4407, 0
        %v4442 = vsel %vm630, %v4411, 0
        %v4444 = vsel %vm630, %v4415, 0
        %v4446 = vsel %vm630, %v4419, 0
        %v4448 = vsel %vm630, %v4423, 0
        %v4450 = vsel %vm630, %v4427, 0
        %4452 = vmatprep.subr.mxu0 0.0
        %4453 = vmatpush1.msra.mxu0 %v3003
        %4454 = vmatprep.subr.mxu0 0.0
        %4455 = vmatpush1.msra.mxu0 %v3004
        %4456 = vmatprep.subr.mxu0 0.0
        %4457 = vmatpush1.msra.mxu0 %v3005
        %4458 = vmatprep.subr.mxu0 0.0
        %4459 = vmatpush1.msra.mxu0 %v3006
        %4460 = vmatprep.subr.mxu0 0.0
        %4461 = vmatpush1.msra.mxu0 %v3007
        %4462 = vmatprep.subr.mxu0 0.0
        %4463 = vmatpush1.msra.mxu0 %v3008
        %4464 = vmatprep.subr.mxu0 0.0
        %4465 = vmatpush1.msra.mxu0 %v3009
        %4466 = vmatprep.subr.mxu0 0.0
        %4467 = vmatpush1.msra.mxu0 %v3010
        %4468 = vmatprep.subr.mxu0 0.0
        %4469 = vmatpush1.msra.mxu0 %v3011
        %4470 = vmatprep.subr.mxu0 0.0
        %4471 = vmatpush1.msra.mxu0 %v3012
        %4472 = vmatprep.subr.mxu0 0.0
        %4473 = vmatpush1.msra.mxu0 %v3013
        %4474 = vmatprep.subr.mxu0 0.0
        %4475 = vmatpush1.msra.mxu0 %v3014
        %4476 = vmatprep.subr.mxu0 0.0
        %4477 = vmatpush1.msra.mxu0 %v3015
        %4478 = vmatprep.subr.mxu0 0.0
        %4479 = vmatpush1.msra.mxu0 %v3016
        %4480 = vmatprep.subr.mxu0 0.0
        %4481 = vmatpush1.msra.mxu0 %v3017
        %4482 = vmatprep.subr.mxu0 0.0
        %4483 = vmatpush1.msra.mxu0 %v3018
        %4484 = vmatprep.subr.mxu0 0.0
        %4485 = vmatpush1.msra.mxu0 %v3019
        %4486 = vmatprep.subr.mxu0 0.0
        %4487 = vmatpush1.msra.mxu0 %v3020
        %4488 = vmatprep.subr.mxu0 0.0
        %4489 = vmatpush1.msra.mxu0 0.0
        %4490 = vmatprep.subr.mxu0 0.0
        %4491 = vmatpush1.msra.mxu0 0.0
        %4492 = vmatprep.subr.mxu0 0.0
        %4493 = vmatpush1.msra.mxu0 0.0
        %4494 = vmatprep.subr.mxu0 0.0
        %4495 = vmatpush1.msra.mxu0 0.0
        %4496 = vmatprep.subr.mxu0 0.0
        %4497 = vmatpush1.msra.mxu0 0.0
        %4498 = vmatprep.subr.mxu0 0.0
        %4499 = vmatpush1.msra.mxu0 0.0
        %4500 = vmatprep.subr.mxu0 0.0
        %4501 = vmatpush1.msra.mxu0 0.0
        %4502 = vmatprep.subr.mxu0 0.0
        %4503 = vmatpush1.msra.mxu0 0.0
        %4504 = vmatprep.subr.mxu0 0.0
        %4505 = vmatpush1.msra.mxu0 0.0
        %4506 = vmatprep.subr.mxu0 0.0
        %4507 = vmatpush1.msra.mxu0 0.0
        %4508 = vmatprep.subr.mxu0 0.0
        %4509 = vmatpush1.msra.mxu0 0.0
        %4510 = vmatprep.subr.mxu0 0.0
        %4511 = vmatpush1.msra.mxu0 0.0
        %4512 = vmatprep.subr.mxu0 0.0
        %4513 = vmatpush1.msra.mxu0 0.0
        %4514 = vmatprep.subr.mxu0 0.0
        %4515 = vmatpush1.msra.mxu0 0.0
        %4516 = vmatprep.mubr.f32.mxu0 %v4436
        %4517 = vmatmul.mubr.f32.gmra.mrb[0].mxu0 %v4396
        %v4518 = vpop.f32.mrb[0].mxu0
        %v4519 = vadd.f32 0.0, %v4518
        %v4520 = vpop.f32.mrb[0].mxu0
        %4521 = vmatprep.mubr.f32.mxu0 %v4438
        %4522 = vmatmul.mubr.f32.gmra.mrb[0].mxu0 %v4401
        %v4523 = vpop.f32.mrb[0].mxu0
        %v4524 = vadd.f32 0.0, %v4523
        %v4525 = vpop.f32.mrb[0].mxu0
        %4526 = vmatprep.mubr.f32.mxu0 %v4440
        %4527 = vmatmul.mubr.f32.gmra.mrb[0].mxu0 %v4405
        %v4528 = vpop.f32.mrb[0].mxu0
        %v4529 = vadd.f32 0.0, %v4528
        %v4530 = vpop.f32.mrb[0].mxu0
        %4531 = vmatprep.mubr.f32.mxu0 %v4442
        %4532 = vmatmul.mubr.f32.gmra.mrb[0].mxu0 %v4409
        %v4533 = vpop.f32.mrb[0].mxu0
        %v4534 = vadd.f32 0.0, %v4533
        %v4535 = vpop.f32.mrb[0].mxu0
        %4536 = vmatprep.mubr.f32.mxu0 %v4444
        %4537 = vmatmul.mubr.f32.gmra.mrb[0].mxu0 %v4413
        %v4538 = vpop.f32.mrb[0].mxu0
        %v4539 = vadd.f32 0.0, %v4538
        %v4540 = vpop.f32.mrb[0].mxu0
        %4541 = vmatprep.mubr.f32.mxu0 %v4446
        %4542 = vmatmul.mubr.f32.gmra.mrb[0].mxu0 %v4417
        %v4543 = vpop.f32.mrb[0].mxu0
        %v4544 = vadd.f32 0.0, %v4543
        %v4545 = vpop.f32.mrb[0].mxu0
        %4546 = vmatprep.mubr.f32.mxu0 %v4448
        %4547 = vmatmul.mubr.f32.gmra.mrb[0].mxu0 %v4421
        %v4548 = vpop.f32.mrb[0].mxu0
        %v4549 = vadd.f32 0.0, %v4548
        %v4550 = vpop.f32.mrb[0].mxu0
        %4551 = vmatprep.mubr.f32.mxu0 %v4450
        %4552 = vmatmul.mubr.f32.gmra.mrb[0].mxu0 %v4425
        %v4553 = vpop.f32.mrb[0].mxu0
        %v4554 = vadd.f32 0.0, %v4553
        %v4555 = vpop.f32.mrb[0].mxu0
        %4556 = vdwg.mxu0
        %v4557 = vadd.f32 %v4348, %v4519
        %v4558 = vadd.f32 %v4353, %v4524
        %v4559 = vadd.f32 %v4358, %v4529
        %v4560 = vadd.f32 %v4363, %v4534
        %v4561 = vadd.f32 %v4368, %v4539
        %v4562 = vadd.f32 %v4373, %v4544
        %v4563 = vadd.f32 %v4378, %v4549
        %v4564 = vadd.f32 %v4383, %v4554
        %v4565 = vadd.f32 %v4557, %v3527
        %v4566 = vadd.f32 %v4558, %v3527
        %v4567 = vadd.f32 %v4559, %v3527
        %v4568 = vadd.f32 %v4560, %v3527
        %v4569 = vadd.f32 %v4561, %v3527
        %v4570 = vadd.f32 %v4562, %v3527
        %v4571 = vadd.f32 %v4563, %v3527
        %v4572 = vadd.f32 %v4564, %v3527
        %v4573 = vmax.f32 %v4565, 0.0
        %v4574 = vmax.f32 %v4566, 0.0
        %v4575 = vmax.f32 %v4567, 0.0
        %v4576 = vmax.f32 %v4568, 0.0
        %v4577 = vmax.f32 %v4569, 0.0
        %v4578 = vmax.f32 %v4570, 0.0
        %v4579 = vmax.f32 %v4571, 0.0
        %v4580 = vmax.f32 %v4572, 0.0
        %v4581 = vld [vmem:[#allocation2 + $0x18] sm:$0xff]
        %v4582 = vld [vmem:[#allocation2 + $0x20] sm:$0xff]
        %v4583 = vld [vmem:[#allocation2 + $0x40] sm:$0xff]
        %v4584 = vld [vmem:[#allocation2 + $0x48] sm:$0xff]
        %v4585 = vld [vmem:[#allocation2 + $0x68] sm:$0xff]
        %v4586 = vld [vmem:[#allocation2 + $0x70] sm:$0xff]
        %v4587 = vld [vmem:[#allocation2 + $0x90] sm:$0xff]
        %v4588 = vld [vmem:[#allocation2 + $0x98] sm:$0xff]
        %v4589 = vld [vmem:[#allocation2 + $0xb8] sm:$0xff]
        %v4590 = vld [vmem:[#allocation2 + $0xc0] sm:$0xff]
        %v4591 = vld [vmem:[#allocation2 + $0xe0] sm:$0xff]
        %v4592 = vld [vmem:[#allocation2 + $0xe8] sm:$0xff]
        %v4593 = vld [vmem:[#allocation2 + $0x108] sm:$0xff]
        %v4594 = vld [vmem:[#allocation2 + $0x110] sm:$0xff]
        %v4595 = vld [vmem:[#allocation2 + $0x130] sm:$0xff]
        %v4596 = vld [vmem:[#allocation2 + $0x138] sm:$0xff]
        %v4597 = vld [vmem:[#allocation2 + $0x18] sm:$0xfe]
        %v4598 = vld [vmem:[#allocation2 + $0x20] sm:$0xfe]
        %v4599 = vld [vmem:[#allocation2 + $0x158] sm:$0x1]
        %v4600 = vld [vmem:[#allocation2 + $0x160] sm:$0x1]
        %v4619 = vrot.slane %v4597, 1
        %v4620 = vrot.slane %v4583, 1
        %v4621 = vsel %vm587, %v4619, %v4620
        %v4622 = vrot.slane %v4598, 1
        %v4623 = vrot.slane %v4584, 1
        %v4624 = vsel %vm587, %v4622, %v4623
        %v4625 = vrot.slane %v4585, 1
        %v4626 = vsel %vm587, %v4620, %v4625
        %v4627 = vrot.slane %v4586, 1
        %v4628 = vsel %vm587, %v4623, %v4627
        %v4629 = vrot.slane %v4587, 1
        %v4630 = vsel %vm587, %v4625, %v4629
        %v4631 = vrot.slane %v4588, 1
        %v4632 = vsel %vm587, %v4627, %v4631
        %v4633 = vrot.slane %v4589, 1
        %v4634 = vsel %vm587, %v4629, %v4633
        %v4635 = vrot.slane %v4590, 1
        %v4636 = vsel %vm587, %v4631, %v4635
        %v4637 = vrot.slane %v4591, 1
        %v4638 = vsel %vm587, %v4633, %v4637
        %v4639 = vrot.slane %v4592, 1
        %v4640 = vsel %vm587, %v4635, %v4639
        %v4641 = vrot.slane %v4593, 1
        %v4642 = vsel %vm587, %v4637, %v4641
        %v4643 = vrot.slane %v4594, 1
        %v4644 = vsel %vm587, %v4639, %v4643
        %v4645 = vrot.slane %v4595, 1
        %v4646 = vsel %vm587, %v4641, %v4645
        %v4647 = vrot.slane %v4596, 1
        %v4648 = vsel %vm587, %v4643, %v4647
        %v4649 = vrot.slane %v4599, 1
        %v4650 = vsel %vm587, %v4645, %v4649
        %v4651 = vrot.slane %v4600, 1
        %v4652 = vsel %vm587, %v4647, %v4651
        %v4661 = vsel %vm630, %v4624, 0
        %v4663 = vsel %vm630, %v4628, 0
        %v4665 = vsel %vm630, %v4632, 0
        %v4667 = vsel %vm630, %v4636, 0
        %v4669 = vsel %vm630, %v4640, 0
        %v4671 = vsel %vm630, %v4644, 0
        %v4673 = vsel %vm630, %v4648, 0
        %v4675 = vsel %vm630, %v4652, 0
        %4677 = vmatprep.subr.mxu0 0.0
        %4678 = vmatpush1.msra.mxu0 %v2984
        %4679 = vmatprep.subr.mxu0 0.0
        %4680 = vmatpush1.msra.mxu0 %v2985
        %4681 = vmatprep.subr.mxu0 0.0
        %4682 = vmatpush1.msra.mxu0 %v2986
        %4683 = vmatprep.subr.mxu0 0.0
        %4684 = vmatpush1.msra.mxu0 %v2987
        %4685 = vmatprep.subr.mxu0 0.0
        %4686 = vmatpush1.msra.mxu0 %v2988
        %4687 = vmatprep.subr.mxu0 0.0
        %4688 = vmatpush1.msra.mxu0 %v2989
        %4689 = vmatprep.subr.mxu0 0.0
        %4690 = vmatpush1.msra.mxu0 %v2990
        %4691 = vmatprep.subr.mxu0 0.0
        %4692 = vmatpush1.msra.mxu0 %v2991
        %4693 = vmatprep.subr.mxu0 0.0
        %4694 = vmatpush1.msra.mxu0 %v2992
        %4695 = vmatprep.subr.mxu0 0.0
        %4696 = vmatpush1.msra.mxu0 %v2993
        %4697 = vmatprep.subr.mxu0 0.0
        %4698 = vmatpush1.msra.mxu0 %v2994
        %4699 = vmatprep.subr.mxu0 0.0
        %4700 = vmatpush1.msra.mxu0 %v2995
        %4701 = vmatprep.subr.mxu0 0.0
        %4702 = vmatpush1.msra.mxu0 %v2996
        %4703 = vmatprep.subr.mxu0 0.0
        %4704 = vmatpush1.msra.mxu0 %v2997
        %4705 = vmatprep.subr.mxu0 0.0
        %4706 = vmatpush1.msra.mxu0 %v2998
        %4707 = vmatprep.subr.mxu0 0.0
        %4708 = vmatpush1.msra.mxu0 %v2999
        %4709 = vmatprep.subr.mxu0 0.0
        %4710 = vmatpush1.msra.mxu0 %v3000
        %4711 = vmatprep.subr.mxu0 0.0
        %4712 = vmatpush1.msra.mxu0 %v3001
        %4713 = vmatprep.subr.mxu0 0.0
        %4714 = vmatpush1.msra.mxu0 0.0
        %4715 = vmatprep.subr.mxu0 0.0
        %4716 = vmatpush1.msra.mxu0 0.0
        %4717 = vmatprep.subr.mxu0 0.0
        %4718 = vmatpush1.msra.mxu0 0.0
        %4719 = vmatprep.subr.mxu0 0.0
        %4720 = vmatpush1.msra.mxu0 0.0
        %4721 = vmatprep.subr.mxu0 0.0
        %4722 = vmatpush1.msra.mxu0 0.0
        %4723 = vmatprep.subr.mxu0 0.0
        %4724 = vmatpush1.msra.mxu0 0.0
        %4725 = vmatprep.subr.mxu0 0.0
        %4726 = vmatpush1.msra.mxu0 0.0
        %4727 = vmatprep.subr.mxu0 0.0
        %4728 = vmatpush1.msra.mxu0 0.0
        %4729 = vmatprep.subr.mxu0 0.0
        %4730 = vmatpush1.msra.mxu0 0.0
        %4731 = vmatprep.subr.mxu0 0.0
        %4732 = vmatpush1.msra.mxu0 0.0
        %4733 = vmatprep.subr.mxu0 0.0
        %4734 = vmatpush1.msra.mxu0 0.0
        %4735 = vmatprep.subr.mxu0 0.0
        %4736 = vmatpush1.msra.mxu0 0.0
        %4737 = vmatprep.subr.mxu0 0.0
        %4738 = vmatpush1.msra.mxu0 0.0
        %4739 = vmatprep.subr.mxu0 0.0
        %4740 = vmatpush1.msra.mxu0 0.0
        %4741 = vmatprep.mubr.f32.mxu0 %v4661
        %4742 = vmatmul.mubr.f32.gmra.mrb[0].mxu0 %v4621
        %v4743 = vpop.f32.mrb[0].mxu0
        %v4744 = vadd.f32 0.0, %v4743
        %v4745 = vpop.f32.mrb[0].mxu0
        %4746 = vmatprep.mubr.f32.mxu0 %v4663
        %4747 = vmatmul.mubr.f32.gmra.mrb[0].mxu0 %v4626
        %v4748 = vpop.f32.mrb[0].mxu0
        %v4749 = vadd.f32 0.0, %v4748
        %v4750 = vpop.f32.mrb[0].mxu0
        %4751 = vmatprep.mubr.f32.mxu0 %v4665
        %4752 = vmatmul.mubr.f32.gmra.mrb[0].mxu0 %v4630
        %v4753 = vpop.f32.mrb[0].mxu0
        %v4754 = vadd.f32 0.0, %v4753
        %v4755 = vpop.f32.mrb[0].mxu0
        %4756 = vmatprep.mubr.f32.mxu0 %v4667
        %4757 = vmatmul.mubr.f32.gmra.mrb[0].mxu0 %v4634
        %v4758 = vpop.f32.mrb[0].mxu0
        %v4759 = vadd.f32 0.0, %v4758
        %v4760 = vpop.f32.mrb[0].mxu0
        %4761 = vmatprep.mubr.f32.mxu0 %v4669
        %4762 = vmatmul.mubr.f32.gmra.mrb[0].mxu0 %v4638
        %v4763 = vpop.f32.mrb[0].mxu0
        %v4764 = vadd.f32 0.0, %v4763
        %v4765 = vpop.f32.mrb[0].mxu0
        %4766 = vmatprep.mubr.f32.mxu0 %v4671
        %4767 = vmatmul.mubr.f32.gmra.mrb[0].mxu0 %v4642
        %v4768 = vpop.f32.mrb[0].mxu0
        %v4769 = vadd.f32 0.0, %v4768
        %v4770 = vpop.f32.mrb[0].mxu0
        %4771 = vmatprep.mubr.f32.mxu0 %v4673
        %4772 = vmatmul.mubr.f32.gmra.mrb[0].mxu0 %v4646
        %v4773 = vpop.f32.mrb[0].mxu0
        %v4774 = vadd.f32 0.0, %v4773
        %v4775 = vpop.f32.mrb[0].mxu0
        %4776 = vmatprep.mubr.f32.mxu0 %v4675
        %4777 = vmatmul.mubr.f32.gmra.mrb[0].mxu0 %v4650
        %v4778 = vpop.f32.mrb[0].mxu0
        %v4779 = vadd.f32 0.0, %v4778
        %v4780 = vpop.f32.mrb[0].mxu0
        %4781 = vdwg.mxu0
        %v4783 = vsel %vm630, %v4582, 0
        %v4785 = vsel %vm630, %v4584, 0
        %v4787 = vsel %vm630, %v4586, 0
        %v4789 = vsel %vm630, %v4588, 0
        %v4791 = vsel %vm630, %v4590, 0
        %v4793 = vsel %vm630, %v4592, 0
        %v4795 = vsel %vm630, %v4594, 0
        %v4797 = vsel %vm630, %v4596, 0
        %4799 = vmatprep.subr.mxu0 0.0
        %4800 = vmatpush1.msra.mxu0 %v2965
        %4801 = vmatprep.subr.mxu0 0.0
        %4802 = vmatpush1.msra.mxu0 %v2966
        %4803 = vmatprep.subr.mxu0 0.0
        %4804 = vmatpush1.msra.mxu0 %v2967
        %4805 = vmatprep.subr.mxu0 0.0
        %4806 = vmatpush1.msra.mxu0 %v2968
        %4807 = vmatprep.subr.mxu0 0.0
        %4808 = vmatpush1.msra.mxu0 %v2969
        %4809 = vmatprep.subr.mxu0 0.0
        %4810 = vmatpush1.msra.mxu0 %v2970
        %4811 = vmatprep.subr.mxu0 0.0
        %4812 = vmatpush1.msra.mxu0 %v2971
        %4813 = vmatprep.subr.mxu0 0.0
        %4814 = vmatpush1.msra.mxu0 %v2972
        %4815 = vmatprep.subr.mxu0 0.0
        %4816 = vmatpush1.msra.mxu0 %v2973
        %4817 = vmatprep.subr.mxu0 0.0
        %4818 = vmatpush1.msra.mxu0 %v2974
        %4819 = vmatprep.subr.mxu0 0.0
        %4820 = vmatpush1.msra.mxu0 %v2975
        %4821 = vmatprep.subr.mxu0 0.0
        %4822 = vmatpush1.msra.mxu0 %v2976
        %4823 = vmatprep.subr.mxu0 0.0
        %4824 = vmatpush1.msra.mxu0 %v2977
        %4825 = vmatprep.subr.mxu0 0.0
        %4826 = vmatpush1.msra.mxu0 %v2978
        %4827 = vmatprep.subr.mxu0 0.0
        %4828 = vmatpush1.msra.mxu0 %v2979
        %4829 = vmatprep.subr.mxu0 0.0
        %4830 = vmatpush1.msra.mxu0 %v2980
        %4831 = vmatprep.subr.mxu0 0.0
        %4832 = vmatpush1.msra.mxu0 %v2981
        %4833 = vmatprep.subr.mxu0 0.0
        %4834 = vmatpush1.msra.mxu0 %v2982
        %4835 = vmatprep.subr.mxu0 0.0
        %4836 = vmatpush1.msra.mxu0 0.0
        %4837 = vmatprep.subr.mxu0 0.0
        %4838 = vmatpush1.msra.mxu0 0.0
        %4839 = vmatprep.subr.mxu0 0.0
        %4840 = vmatpush1.msra.mxu0 0.0
        %4841 = vmatprep.subr.mxu0 0.0
        %4842 = vmatpush1.msra.mxu0 0.0
        %4843 = vmatprep.subr.mxu0 0.0
        %4844 = vmatpush1.msra.mxu0 0.0
        %4845 = vmatprep.subr.mxu0 0.0
        %4846 = vmatpush1.msra.mxu0 0.0
        %4847 = vmatprep.subr.mxu0 0.0
        %4848 = vmatpush1.msra.mxu0 0.0
        %4849 = vmatprep.subr.mxu0 0.0
        %4850 = vmatpush1.msra.mxu0 0.0
        %4851 = vmatprep.subr.mxu0 0.0
        %4852 = vmatpush1.msra.mxu0 0.0
        %4853 = vmatprep.subr.mxu0 0.0
        %4854 = vmatpush1.msra.mxu0 0.0
        %4855 = vmatprep.subr.mxu0 0.0
        %4856 = vmatpush1.msra.mxu0 0.0
        %4857 = vmatprep.subr.mxu0 0.0
        %4858 = vmatpush1.msra.mxu0 0.0
        %4859 = vmatprep.subr.mxu0 0.0
        %4860 = vmatpush1.msra.mxu0 0.0
        %4861 = vmatprep.subr.mxu0 0.0
        %4862 = vmatpush1.msra.mxu0 0.0
        %4863 = vmatprep.mubr.f32.mxu0 %v4783
        %4864 = vmatmul.mubr.f32.gmra.mrb[0].mxu0 %v4581
        %v4865 = vpop.f32.mrb[0].mxu0
        %v4866 = vadd.f32 %v4744, %v4865
        %v4867 = vpop.f32.mrb[0].mxu0
        %4868 = vmatprep.mubr.f32.mxu0 %v4785
        %4869 = vmatmul.mubr.f32.gmra.mrb[0].mxu0 %v4583
        %v4870 = vpop.f32.mrb[0].mxu0
        %v4871 = vadd.f32 %v4749, %v4870
        %v4872 = vpop.f32.mrb[0].mxu0
        %4873 = vmatprep.mubr.f32.mxu0 %v4787
        %4874 = vmatmul.mubr.f32.gmra.mrb[0].mxu0 %v4585
        %v4875 = vpop.f32.mrb[0].mxu0
        %v4876 = vadd.f32 %v4754, %v4875
        %v4877 = vpop.f32.mrb[0].mxu0
        %4878 = vmatprep.mubr.f32.mxu0 %v4789
        %4879 = vmatmul.mubr.f32.gmra.mrb[0].mxu0 %v4587
        %v4880 = vpop.f32.mrb[0].mxu0
        %v4881 = vadd.f32 %v4759, %v4880
        %v4882 = vpop.f32.mrb[0].mxu0
        %4883 = vmatprep.mubr.f32.mxu0 %v4791
        %4884 = vmatmul.mubr.f32.gmra.mrb[0].mxu0 %v4589
        %v4885 = vpop.f32.mrb[0].mxu0
        %v4886 = vadd.f32 %v4764, %v4885
        %v4887 = vpop.f32.mrb[0].mxu0
        %4888 = vmatprep.mubr.f32.mxu0 %v4793
        %4889 = vmatmul.mubr.f32.gmra.mrb[0].mxu0 %v4591
        %v4890 = vpop.f32.mrb[0].mxu0
        %v4891 = vadd.f32 %v4769, %v4890
        %v4892 = vpop.f32.mrb[0].mxu0
        %4893 = vmatprep.mubr.f32.mxu0 %v4795
        %4894 = vmatmul.mubr.f32.gmra.mrb[0].mxu0 %v4593
        %v4895 = vpop.f32.mrb[0].mxu0
        %v4896 = vadd.f32 %v4774, %v4895
        %v4897 = vpop.f32.mrb[0].mxu0
        %4898 = vmatprep.mubr.f32.mxu0 %v4797
        %4899 = vmatmul.mubr.f32.gmra.mrb[0].mxu0 %v4595
        %v4900 = vpop.f32.mrb[0].mxu0
        %v4901 = vadd.f32 %v4779, %v4900
        %v4902 = vpop.f32.mrb[0].mxu0
        %4903 = vdwg.mxu0
        %v4904 = vld [vmem:[#allocation2 + $0x18] sm:$0xfc]
        %v4905 = vld [vmem:[#allocation2 + $0x20] sm:$0xfc]
        %v4906 = vld [vmem:[#allocation2 + $0x158] sm:$0x3]
        %v4907 = vld [vmem:[#allocation2 + $0x160] sm:$0x3]
        %v4912 = vrot.slane %v4904, 2
        %v4913 = vrot.slane %v4583, 2
        %v4914 = vsel %vm882, %v4912, %v4913
        %v4915 = vrot.slane %v4905, 2
        %v4916 = vrot.slane %v4584, 2
        %v4917 = vsel %vm882, %v4915, %v4916
        %v4918 = vrot.slane %v4585, 2
        %v4919 = vsel %vm882, %v4913, %v4918
        %v4920 = vrot.slane %v4586, 2
        %v4921 = vsel %vm882, %v4916, %v4920
        %v4922 = vrot.slane %v4587, 2
        %v4923 = vsel %vm882, %v4918, %v4922
        %v4924 = vrot.slane %v4588, 2
        %v4925 = vsel %vm882, %v4920, %v4924
        %v4926 = vrot.slane %v4589, 2
        %v4927 = vsel %vm882, %v4922, %v4926
        %v4928 = vrot.slane %v4590, 2
        %v4929 = vsel %vm882, %v4924, %v4928
        %v4930 = vrot.slane %v4591, 2
        %v4931 = vsel %vm882, %v4926, %v4930
        %v4932 = vrot.slane %v4592, 2
        %v4933 = vsel %vm882, %v4928, %v4932
        %v4934 = vrot.slane %v4593, 2
        %v4935 = vsel %vm882, %v4930, %v4934
        %v4936 = vrot.slane %v4594, 2
        %v4937 = vsel %vm882, %v4932, %v4936
        %v4938 = vrot.slane %v4595, 2
        %v4939 = vsel %vm882, %v4934, %v4938
        %v4940 = vrot.slane %v4596, 2
        %v4941 = vsel %vm882, %v4936, %v4940
        %v4942 = vrot.slane %v4906, 2
        %v4943 = vsel %vm882, %v4938, %v4942
        %v4944 = vrot.slane %v4907, 2
        %v4945 = vsel %vm882, %v4940, %v4944
        %v4954 = vsel %vm630, %v4917, 0
        %v4956 = vsel %vm630, %v4921, 0
        %v4958 = vsel %vm630, %v4925, 0
        %v4960 = vsel %vm630, %v4929, 0
        %v4962 = vsel %vm630, %v4933, 0
        %v4964 = vsel %vm630, %v4937, 0
        %v4966 = vsel %vm630, %v4941, 0
        %v4968 = vsel %vm630, %v4945, 0
        %4970 = vmatprep.subr.mxu0 0.0
        %4971 = vmatpush1.msra.mxu0 %v3003
        %4972 = vmatprep.subr.mxu0 0.0
        %4973 = vmatpush1.msra.mxu0 %v3004
        %4974 = vmatprep.subr.mxu0 0.0
        %4975 = vmatpush1.msra.mxu0 %v3005
        %4976 = vmatprep.subr.mxu0 0.0
        %4977 = vmatpush1.msra.mxu0 %v3006
        %4978 = vmatprep.subr.mxu0 0.0
        %4979 = vmatpush1.msra.mxu0 %v3007
        %4980 = vmatprep.subr.mxu0 0.0
        %4981 = vmatpush1.msra.mxu0 %v3008
        %4982 = vmatprep.subr.mxu0 0.0
        %4983 = vmatpush1.msra.mxu0 %v3009
        %4984 = vmatprep.subr.mxu0 0.0
        %4985 = vmatpush1.msra.mxu0 %v3010
        %4986 = vmatprep.subr.mxu0 0.0
        %4987 = vmatpush1.msra.mxu0 %v3011
        %4988 = vmatprep.subr.mxu0 0.0
        %4989 = vmatpush1.msra.mxu0 %v3012
        %4990 = vmatprep.subr.mxu0 0.0
        %4991 = vmatpush1.msra.mxu0 %v3013
        %4992 = vmatprep.subr.mxu0 0.0
        %4993 = vmatpush1.msra.mxu0 %v3014
        %4994 = vmatprep.subr.mxu0 0.0
        %4995 = vmatpush1.msra.mxu0 %v3015
        %4996 = vmatprep.subr.mxu0 0.0
        %4997 = vmatpush1.msra.mxu0 %v3016
        %4998 = vmatprep.subr.mxu0 0.0
        %4999 = vmatpush1.msra.mxu0 %v3017
        %5000 = vmatprep.subr.mxu0 0.0
        %5001 = vmatpush1.msra.mxu0 %v3018
        %5002 = vmatprep.subr.mxu0 0.0
        %5003 = vmatpush1.msra.mxu0 %v3019
        %5004 = vmatprep.subr.mxu0 0.0
        %5005 = vmatpush1.msra.mxu0 %v3020
        %5006 = vmatprep.subr.mxu0 0.0
        %5007 = vmatpush1.msra.mxu0 0.0
        %5008 = vmatprep.subr.mxu0 0.0
        %5009 = vmatpush1.msra.mxu0 0.0
        %5010 = vmatprep.subr.mxu0 0.0
        %5011 = vmatpush1.msra.mxu0 0.0
        %5012 = vmatprep.subr.mxu0 0.0
        %5013 = vmatpush1.msra.mxu0 0.0
        %5014 = vmatprep.subr.mxu0 0.0
        %5015 = vmatpush1.msra.mxu0 0.0
        %5016 = vmatprep.subr.mxu0 0.0
        %5017 = vmatpush1.msra.mxu0 0.0
        %5018 = vmatprep.subr.mxu0 0.0
        %5019 = vmatpush1.msra.mxu0 0.0
        %5020 = vmatprep.subr.mxu0 0.0
        %5021 = vmatpush1.msra.mxu0 0.0
        %5022 = vmatprep.subr.mxu0 0.0
        %5023 = vmatpush1.msra.mxu0 0.0
        %5024 = vmatprep.subr.mxu0 0.0
        %5025 = vmatpush1.msra.mxu0 0.0
        %5026 = vmatprep.subr.mxu0 0.0
        %5027 = vmatpush1.msra.mxu0 0.0
        %5028 = vmatprep.subr.mxu0 0.0
        %5029 = vmatpush1.msra.mxu0 0.0
        %5030 = vmatprep.subr.mxu0 0.0
        %5031 = vmatpush1.msra.mxu0 0.0
        %5032 = vmatprep.subr.mxu0 0.0
        %5033 = vmatpush1.msra.mxu0 0.0
        %5034 = vmatprep.mubr.f32.mxu0 %v4954
        %5035 = vmatmul.mubr.f32.gmra.mrb[0].mxu0 %v4914
        %v5036 = vpop.f32.mrb[0].mxu0
        %v5037 = vadd.f32 0.0, %v5036
        %v5038 = vpop.f32.mrb[0].mxu0
        %5039 = vmatprep.mubr.f32.mxu0 %v4956
        %5040 = vmatmul.mubr.f32.gmra.mrb[0].mxu0 %v4919
        %v5041 = vpop.f32.mrb[0].mxu0
        %v5042 = vadd.f32 0.0, %v5041
        %v5043 = vpop.f32.mrb[0].mxu0
        %5044 = vmatprep.mubr.f32.mxu0 %v4958
        %5045 = vmatmul.mubr.f32.gmra.mrb[0].mxu0 %v4923
        %v5046 = vpop.f32.mrb[0].mxu0
        %v5047 = vadd.f32 0.0, %v5046
        %v5048 = vpop.f32.mrb[0].mxu0
        %5049 = vmatprep.mubr.f32.mxu0 %v4960
        %5050 = vmatmul.mubr.f32.gmra.mrb[0].mxu0 %v4927
        %v5051 = vpop.f32.mrb[0].mxu0
        %v5052 = vadd.f32 0.0, %v5051
        %v5053 = vpop.f32.mrb[0].mxu0
        %5054 = vmatprep.mubr.f32.mxu0 %v4962
        %5055 = vmatmul.mubr.f32.gmra.mrb[0].mxu0 %v4931
        %v5056 = vpop.f32.mrb[0].mxu0
        %v5057 = vadd.f32 0.0, %v5056
        %v5058 = vpop.f32.mrb[0].mxu0
        %5059 = vmatprep.mubr.f32.mxu0 %v4964
        %5060 = vmatmul.mubr.f32.gmra.mrb[0].mxu0 %v4935
        %v5061 = vpop.f32.mrb[0].mxu0
        %v5062 = vadd.f32 0.0, %v5061
        %v5063 = vpop.f32.mrb[0].mxu0
        %5064 = vmatprep.mubr.f32.mxu0 %v4966
        %5065 = vmatmul.mubr.f32.gmra.mrb[0].mxu0 %v4939
        %v5066 = vpop.f32.mrb[0].mxu0
        %v5067 = vadd.f32 0.0, %v5066
        %v5068 = vpop.f32.mrb[0].mxu0
        %5069 = vmatprep.mubr.f32.mxu0 %v4968
        %5070 = vmatmul.mubr.f32.gmra.mrb[0].mxu0 %v4943
        %v5071 = vpop.f32.mrb[0].mxu0
        %v5072 = vadd.f32 0.0, %v5071
        %v5073 = vpop.f32.mrb[0].mxu0
        %5074 = vdwg.mxu0
        %v5075 = vadd.f32 %v4866, %v5037
        %v5076 = vadd.f32 %v4871, %v5042
        %v5077 = vadd.f32 %v4876, %v5047
        %v5078 = vadd.f32 %v4881, %v5052
        %v5079 = vadd.f32 %v4886, %v5057
        %v5080 = vadd.f32 %v4891, %v5062
        %v5081 = vadd.f32 %v4896, %v5067
        %v5082 = vadd.f32 %v4901, %v5072
        %v5083 = vadd.f32 %v5075, %v3527
        %v5084 = vadd.f32 %v5076, %v3527
        %v5085 = vadd.f32 %v5077, %v3527
        %v5086 = vadd.f32 %v5078, %v3527
        %v5087 = vadd.f32 %v5079, %v3527
        %v5088 = vadd.f32 %v5080, %v3527
        %v5089 = vadd.f32 %v5081, %v3527
        %v5090 = vadd.f32 %v5082, %v3527
        %v5091 = vmax.f32 %v5083, 0.0
        %v5092 = vmax.f32 %v5084, 0.0
        %v5093 = vmax.f32 %v5085, 0.0
        %v5094 = vmax.f32 %v5086, 0.0
        %v5095 = vmax.f32 %v5087, 0.0
        %v5096 = vmax.f32 %v5088, 0.0
        %v5097 = vmax.f32 %v5089, 0.0
        %v5098 = vmax.f32 %v5090, 0.0
        %v5131 = vcombine.low %v3537, %v4055
        %v5132 = vcombine.high %v3537, %v4055
        %v5133 = vcombine.low %v4573, %v5091
        %v5134 = vcombine.high %v4573, %v5091
        %v5136 = vunpack.c.l.s4 1983009808
        %v5137 = vunpack.c.0.s8 %v5136
        %v5138 = vlaneseq
        %v5139 = vshrl.u32 %v5138, 7
        %v5140 = vsub.s32 %v5137, %v5139
        %v5141 = vrot.slane %v5131, %v5140
        %v5143 = vunpack.c.l.s4 1983009808
        %v5144 = vunpack.c.0.s8 %v5143
        %v5145 = vlaneseq
        %v5146 = vshrl.u32 %v5145, 7
        %v5147 = vsub.s32 %v5144, %v5146
        %v5148 = vrot.slane %v5132, %v5147
        %v5150 = vunpack.c.l.s4 1983009808
        %v5151 = vunpack.c.0.s8 %v5150
        %v5152 = vlaneseq
        %v5153 = vshrl.u32 %v5152, 7
        %v5154 = vsub.s32 %v5151, %v5153
        %v5155 = vrot.slane %v5133, %v5154
        %v5157 = vunpack.c.l.s4 1983009808
        %v5158 = vunpack.c.0.s8 %v5157
        %v5159 = vlaneseq
        %v5160 = vshrl.u32 %v5159, 7
        %v5161 = vsub.s32 %v5158, %v5160
        %v5162 = vrot.slane %v5134, %v5161
        %v5163 = vcombine.low %v5141, %v5155
        %v5164 = vcombine.high %v5141, %v5155
        %v5165 = vcombine.low %v5148, %v5162
        %v5166 = vcombine.high %v5148, %v5162
        %v5167 = vcombine.low %v3538, %v4056
        %v5168 = vcombine.high %v3538, %v4056
        %v5169 = vcombine.low %v4574, %v5092
        %v5170 = vcombine.high %v4574, %v5092
        %v5172 = vunpack.c.l.s4 1983009808
        %v5173 = vunpack.c.0.s8 %v5172
        %v5174 = vlaneseq
        %v5175 = vshrl.u32 %v5174, 7
        %v5176 = vsub.s32 %v5173, %v5175
        %v5177 = vrot.slane %v5167, %v5176
        %v5179 = vunpack.c.l.s4 1983009808
        %v5180 = vunpack.c.0.s8 %v5179
        %v5181 = vlaneseq
        %v5182 = vshrl.u32 %v5181, 7
        %v5183 = vsub.s32 %v5180, %v5182
        %v5184 = vrot.slane %v5168, %v5183
        %v5186 = vunpack.c.l.s4 1983009808
        %v5187 = vunpack.c.0.s8 %v5186
        %v5188 = vlaneseq
        %v5189 = vshrl.u32 %v5188, 7
        %v5190 = vsub.s32 %v5187, %v5189
        %v5191 = vrot.slane %v5169, %v5190
        %v5193 = vunpack.c.l.s4 1983009808
        %v5194 = vunpack.c.0.s8 %v5193
        %v5195 = vlaneseq
        %v5196 = vshrl.u32 %v5195, 7
        %v5197 = vsub.s32 %v5194, %v5196
        %v5198 = vrot.slane %v5170, %v5197
        %v5199 = vcombine.low %v5177, %v5191
        %v5200 = vcombine.high %v5177, %v5191
        %v5201 = vcombine.low %v5184, %v5198
        %v5202 = vcombine.high %v5184, %v5198
        %v5203 = vcombine.low %v3539, %v4057
        %v5204 = vcombine.high %v3539, %v4057
        %v5205 = vcombine.low %v4575, %v5093
        %v5206 = vcombine.high %v4575, %v5093
        %v5208 = vunpack.c.l.s4 1983009808
        %v5209 = vunpack.c.0.s8 %v5208
        %v5210 = vlaneseq
        %v5211 = vshrl.u32 %v5210, 7
        %v5212 = vsub.s32 %v5209, %v5211
        %v5213 = vrot.slane %v5203, %v5212
        %v5215 = vunpack.c.l.s4 1983009808
        %v5216 = vunpack.c.0.s8 %v5215
        %v5217 = vlaneseq
        %v5218 = vshrl.u32 %v5217, 7
        %v5219 = vsub.s32 %v5216, %v5218
        %v5220 = vrot.slane %v5204, %v5219
        %v5222 = vunpack.c.l.s4 1983009808
        %v5223 = vunpack.c.0.s8 %v5222
        %v5224 = vlaneseq
        %v5225 = vshrl.u32 %v5224, 7
        %v5226 = vsub.s32 %v5223, %v5225
        %v5227 = vrot.slane %v5205, %v5226
        %v5229 = vunpack.c.l.s4 1983009808
        %v5230 = vunpack.c.0.s8 %v5229
        %v5231 = vlaneseq
        %v5232 = vshrl.u32 %v5231, 7
        %v5233 = vsub.s32 %v5230, %v5232
        %v5234 = vrot.slane %v5206, %v5233
        %v5235 = vcombine.low %v5213, %v5227
        %v5236 = vcombine.high %v5213, %v5227
        %v5237 = vcombine.low %v5220, %v5234
        %v5238 = vcombine.high %v5220, %v5234
        %v5239 = vcombine.low %v3540, %v4058
        %v5240 = vcombine.high %v3540, %v4058
        %v5241 = vcombine.low %v4576, %v5094
        %v5242 = vcombine.high %v4576, %v5094
        %v5244 = vunpack.c.l.s4 1983009808
        %v5245 = vunpack.c.0.s8 %v5244
        %v5246 = vlaneseq
        %v5247 = vshrl.u32 %v5246, 7
        %v5248 = vsub.s32 %v5245, %v5247
        %v5249 = vrot.slane %v5239, %v5248
        %v5251 = vunpack.c.l.s4 1983009808
        %v5252 = vunpack.c.0.s8 %v5251
        %v5253 = vlaneseq
        %v5254 = vshrl.u32 %v5253, 7
        %v5255 = vsub.s32 %v5252, %v5254
        %v5256 = vrot.slane %v5240, %v5255
        %v5258 = vunpack.c.l.s4 1983009808
        %v5259 = vunpack.c.0.s8 %v5258
        %v5260 = vlaneseq
        %v5261 = vshrl.u32 %v5260, 7
        %v5262 = vsub.s32 %v5259, %v5261
        %v5263 = vrot.slane %v5241, %v5262
        %v5265 = vunpack.c.l.s4 1983009808
        %v5266 = vunpack.c.0.s8 %v5265
        %v5267 = vlaneseq
        %v5268 = vshrl.u32 %v5267, 7
        %v5269 = vsub.s32 %v5266, %v5268
        %v5270 = vrot.slane %v5242, %v5269
        %v5271 = vcombine.low %v5249, %v5263
        %v5272 = vcombine.high %v5249, %v5263
        %v5273 = vcombine.low %v5256, %v5270
        %v5274 = vcombine.high %v5256, %v5270
        %v5275 = vcombine.low %v3541, %v4059
        %v5276 = vcombine.high %v3541, %v4059
        %v5277 = vcombine.low %v4577, %v5095
        %v5278 = vcombine.high %v4577, %v5095
        %v5280 = vunpack.c.l.s4 1983009808
        %v5281 = vunpack.c.0.s8 %v5280
        %v5282 = vlaneseq
        %v5283 = vshrl.u32 %v5282, 7
        %v5284 = vsub.s32 %v5281, %v5283
        %v5285 = vrot.slane %v5275, %v5284
        %v5287 = vunpack.c.l.s4 1983009808
        %v5288 = vunpack.c.0.s8 %v5287
        %v5289 = vlaneseq
        %v5290 = vshrl.u32 %v5289, 7
        %v5291 = vsub.s32 %v5288, %v5290
        %v5292 = vrot.slane %v5276, %v5291
        %v5294 = vunpack.c.l.s4 1983009808
        %v5295 = vunpack.c.0.s8 %v5294
        %v5296 = vlaneseq
        %v5297 = vshrl.u32 %v5296, 7
        %v5298 = vsub.s32 %v5295, %v5297
        %v5299 = vrot.slane %v5277, %v5298
        %v5301 = vunpack.c.l.s4 1983009808
        %v5302 = vunpack.c.0.s8 %v5301
        %v5303 = vlaneseq
        %v5304 = vshrl.u32 %v5303, 7
        %v5305 = vsub.s32 %v5302, %v5304
        %v5306 = vrot.slane %v5278, %v5305
        %v5307 = vcombine.low %v5285, %v5299
        %v5308 = vcombine.high %v5285, %v5299
        %v5309 = vcombine.low %v5292, %v5306
        %v5310 = vcombine.high %v5292, %v5306
        %v5311 = vcombine.low %v3542, %v4060
        %v5312 = vcombine.high %v3542, %v4060
        %v5313 = vcombine.low %v4578, %v5096
        %v5314 = vcombine.high %v4578, %v5096
        %v5316 = vunpack.c.l.s4 1983009808
        %v5317 = vunpack.c.0.s8 %v5316
        %v5318 = vlaneseq
        %v5319 = vshrl.u32 %v5318, 7
        %v5320 = vsub.s32 %v5317, %v5319
        %v5321 = vrot.slane %v5311, %v5320
        %v5323 = vunpack.c.l.s4 1983009808
        %v5324 = vunpack.c.0.s8 %v5323
        %v5325 = vlaneseq
        %v5326 = vshrl.u32 %v5325, 7
        %v5327 = vsub.s32 %v5324, %v5326
        %v5328 = vrot.slane %v5312, %v5327
        %v5330 = vunpack.c.l.s4 1983009808
        %v5331 = vunpack.c.0.s8 %v5330
        %v5332 = vlaneseq
        %v5333 = vshrl.u32 %v5332, 7
        %v5334 = vsub.s32 %v5331, %v5333
        %v5335 = vrot.slane %v5313, %v5334
        %v5337 = vunpack.c.l.s4 1983009808
        %v5338 = vunpack.c.0.s8 %v5337
        %v5339 = vlaneseq
        %v5340 = vshrl.u32 %v5339, 7
        %v5341 = vsub.s32 %v5338, %v5340
        %v5342 = vrot.slane %v5314, %v5341
        %v5343 = vcombine.low %v5321, %v5335
        %v5344 = vcombine.high %v5321, %v5335
        %v5345 = vcombine.low %v5328, %v5342
        %v5346 = vcombine.high %v5328, %v5342
        %v5347 = vcombine.low %v3543, %v4061
        %v5348 = vcombine.high %v3543, %v4061
        %v5349 = vcombine.low %v4579, %v5097
        %v5350 = vcombine.high %v4579, %v5097
        %v5352 = vunpack.c.l.s4 1983009808
        %v5353 = vunpack.c.0.s8 %v5352
        %v5354 = vlaneseq
        %v5355 = vshrl.u32 %v5354, 7
        %v5356 = vsub.s32 %v5353, %v5355
        %v5357 = vrot.slane %v5347, %v5356
        %v5359 = vunpack.c.l.s4 1983009808
        %v5360 = vunpack.c.0.s8 %v5359
        %v5361 = vlaneseq
        %v5362 = vshrl.u32 %v5361, 7
        %v5363 = vsub.s32 %v5360, %v5362
        %v5364 = vrot.slane %v5348, %v5363
        %v5366 = vunpack.c.l.s4 1983009808
        %v5367 = vunpack.c.0.s8 %v5366
        %v5368 = vlaneseq
        %v5369 = vshrl.u32 %v5368, 7
        %v5370 = vsub.s32 %v5367, %v5369
        %v5371 = vrot.slane %v5349, %v5370
        %v5373 = vunpack.c.l.s4 1983009808
        %v5374 = vunpack.c.0.s8 %v5373
        %v5375 = vlaneseq
        %v5376 = vshrl.u32 %v5375, 7
        %v5377 = vsub.s32 %v5374, %v5376
        %v5378 = vrot.slane %v5350, %v5377
        %v5379 = vcombine.low %v5357, %v5371
        %v5380 = vcombine.high %v5357, %v5371
        %v5381 = vcombine.low %v5364, %v5378
        %v5382 = vcombine.high %v5364, %v5378
        %v5383 = vcombine.low %v3544, %v4062
        %v5384 = vcombine.high %v3544, %v4062
        %v5385 = vcombine.low %v4580, %v5098
        %v5386 = vcombine.high %v4580, %v5098
        %v5388 = vunpack.c.l.s4 1983009808
        %v5389 = vunpack.c.0.s8 %v5388
        %v5390 = vlaneseq
        %v5391 = vshrl.u32 %v5390, 7
        %v5392 = vsub.s32 %v5389, %v5391
        %v5393 = vrot.slane %v5383, %v5392
        %v5395 = vunpack.c.l.s4 1983009808
        %v5396 = vunpack.c.0.s8 %v5395
        %v5397 = vlaneseq
        %v5398 = vshrl.u32 %v5397, 7
        %v5399 = vsub.s32 %v5396, %v5398
        %v5400 = vrot.slane %v5384, %v5399
        %v5402 = vunpack.c.l.s4 1983009808
        %v5403 = vunpack.c.0.s8 %v5402
        %v5404 = vlaneseq
        %v5405 = vshrl.u32 %v5404, 7
        %v5406 = vsub.s32 %v5403, %v5405
        %v5407 = vrot.slane %v5385, %v5406
        %v5409 = vunpack.c.l.s4 1983009808
        %v5410 = vunpack.c.0.s8 %v5409
        %v5411 = vlaneseq
        %v5412 = vshrl.u32 %v5411, 7
        %v5413 = vsub.s32 %v5410, %v5412
        %v5414 = vrot.slane %v5386, %v5413
        %v5415 = vcombine.low %v5393, %v5407
        %v5416 = vcombine.high %v5393, %v5407
        %v5417 = vcombine.low %v5400, %v5414
        %v5418 = vcombine.high %v5400, %v5414
        %v5419 = vcombine.high %v5163, %v5163
        %v5421 = vunpack.c.l.s4 1983009808
        %v5422 = vunpack.c.0.s8 %v5421
        %v5423 = vlaneseq
        %v5424 = vshrl.u32 %v5423, 7
        %v5425 = vsub.s32 %v5422, %v5424
        %v5426 = vrot.slane %v5163, %v5425
        %v5428 = vunpack.c.l.s4 1983009808
        %v5429 = vunpack.c.0.s8 %v5428
        %v5430 = vlaneseq
        %v5431 = vshrl.u32 %v5430, 7
        %v5432 = vsub.s32 %v5429, %v5431
        %v5433 = vrot.slane %v5419, %v5432
        %v5434 = vcombine.high %v5426, %v5426
        %v5435 = vcombine.high %v5433, %v5433
        %v5436 = vcombine.high %v5164, %v5164
        %v5438 = vunpack.c.l.s4 1983009808
        %v5439 = vunpack.c.0.s8 %v5438
        %v5440 = vlaneseq
        %v5441 = vshrl.u32 %v5440, 7
        %v5442 = vsub.s32 %v5439, %v5441
        %v5443 = vrot.slane %v5164, %v5442
        %v5445 = vunpack.c.l.s4 1983009808
        %v5446 = vunpack.c.0.s8 %v5445
        %v5447 = vlaneseq
        %v5448 = vshrl.u32 %v5447, 7
        %v5449 = vsub.s32 %v5446, %v5448
        %v5450 = vrot.slane %v5436, %v5449
        %v5451 = vcombine.high %v5443, %v5443
        %v5452 = vcombine.high %v5450, %v5450
        %v5453 = vcombine.high %v5165, %v5165
        %v5455 = vunpack.c.l.s4 1983009808
        %v5456 = vunpack.c.0.s8 %v5455
        %v5457 = vlaneseq
        %v5458 = vshrl.u32 %v5457, 7
        %v5459 = vsub.s32 %v5456, %v5458
        %v5460 = vrot.slane %v5165, %v5459
        %v5462 = vunpack.c.l.s4 1983009808
        %v5463 = vunpack.c.0.s8 %v5462
        %v5464 = vlaneseq
        %v5465 = vshrl.u32 %v5464, 7
        %v5466 = vsub.s32 %v5463, %v5465
        %v5467 = vrot.slane %v5453, %v5466
        %v5468 = vcombine.high %v5460, %v5460
        %v5469 = vcombine.high %v5467, %v5467
        %v5470 = vcombine.high %v5166, %v5166
        %v5472 = vunpack.c.l.s4 1983009808
        %v5473 = vunpack.c.0.s8 %v5472
        %v5474 = vlaneseq
        %v5475 = vshrl.u32 %v5474, 7
        %v5476 = vsub.s32 %v5473, %v5475
        %v5477 = vrot.slane %v5166, %v5476
        %v5479 = vunpack.c.l.s4 1983009808
        %v5480 = vunpack.c.0.s8 %v5479
        %v5481 = vlaneseq
        %v5482 = vshrl.u32 %v5481, 7
        %v5483 = vsub.s32 %v5480, %v5482
        %v5484 = vrot.slane %v5470, %v5483
        %v5485 = vcombine.high %v5477, %v5477
        %v5486 = vcombine.high %v5484, %v5484
        %v5487 = vcombine.high %v5199, %v5199
        %v5489 = vunpack.c.l.s4 1983009808
        %v5490 = vunpack.c.0.s8 %v5489
        %v5491 = vlaneseq
        %v5492 = vshrl.u32 %v5491, 7
        %v5493 = vsub.s32 %v5490, %v5492
        %v5494 = vrot.slane %v5199, %v5493
        %v5496 = vunpack.c.l.s4 1983009808
        %v5497 = vunpack.c.0.s8 %v5496
        %v5498 = vlaneseq
        %v5499 = vshrl.u32 %v5498, 7
        %v5500 = vsub.s32 %v5497, %v5499
        %v5501 = vrot.slane %v5487, %v5500
        %v5502 = vcombine.high %v5494, %v5494
        %v5503 = vcombine.high %v5501, %v5501
        %v5504 = vcombine.high %v5200, %v5200
        %v5506 = vunpack.c.l.s4 1983009808
        %v5507 = vunpack.c.0.s8 %v5506
        %v5508 = vlaneseq
        %v5509 = vshrl.u32 %v5508, 7
        %v5510 = vsub.s32 %v5507, %v5509
        %v5511 = vrot.slane %v5200, %v5510
        %v5513 = vunpack.c.l.s4 1983009808
        %v5514 = vunpack.c.0.s8 %v5513
        %v5515 = vlaneseq
        %v5516 = vshrl.u32 %v5515, 7
        %v5517 = vsub.s32 %v5514, %v5516
        %v5518 = vrot.slane %v5504, %v5517
        %v5519 = vcombine.high %v5511, %v5511
        %v5520 = vcombine.high %v5518, %v5518
        %v5521 = vcombine.high %v5201, %v5201
        %v5523 = vunpack.c.l.s4 1983009808
        %v5524 = vunpack.c.0.s8 %v5523
        %v5525 = vlaneseq
        %v5526 = vshrl.u32 %v5525, 7
        %v5527 = vsub.s32 %v5524, %v5526
        %v5528 = vrot.slane %v5201, %v5527
        %v5530 = vunpack.c.l.s4 1983009808
        %v5531 = vunpack.c.0.s8 %v5530
        %v5532 = vlaneseq
        %v5533 = vshrl.u32 %v5532, 7
        %v5534 = vsub.s32 %v5531, %v5533
        %v5535 = vrot.slane %v5521, %v5534
        %v5536 = vcombine.high %v5528, %v5528
        %v5537 = vcombine.high %v5535, %v5535
        %v5538 = vcombine.high %v5202, %v5202
        %v5540 = vunpack.c.l.s4 1983009808
        %v5541 = vunpack.c.0.s8 %v5540
        %v5542 = vlaneseq
        %v5543 = vshrl.u32 %v5542, 7
        %v5544 = vsub.s32 %v5541, %v5543
        %v5545 = vrot.slane %v5202, %v5544
        %v5547 = vunpack.c.l.s4 1983009808
        %v5548 = vunpack.c.0.s8 %v5547
        %v5549 = vlaneseq
        %v5550 = vshrl.u32 %v5549, 7
        %v5551 = vsub.s32 %v5548, %v5550
        %v5552 = vrot.slane %v5538, %v5551
        %v5553 = vcombine.high %v5545, %v5545
        %v5554 = vcombine.high %v5552, %v5552
        %v5555 = vcombine.high %v5235, %v5235
        %v5557 = vunpack.c.l.s4 1983009808
        %v5558 = vunpack.c.0.s8 %v5557
        %v5559 = vlaneseq
        %v5560 = vshrl.u32 %v5559, 7
        %v5561 = vsub.s32 %v5558, %v5560
        %v5562 = vrot.slane %v5235, %v5561
        %v5564 = vunpack.c.l.s4 1983009808
        %v5565 = vunpack.c.0.s8 %v5564
        %v5566 = vlaneseq
        %v5567 = vshrl.u32 %v5566, 7
        %v5568 = vsub.s32 %v5565, %v5567
        %v5569 = vrot.slane %v5555, %v5568
        %v5570 = vcombine.high %v5562, %v5562
        %v5571 = vcombine.high %v5569, %v5569
        %v5572 = vcombine.high %v5236, %v5236
        %v5574 = vunpack.c.l.s4 1983009808
        %v5575 = vunpack.c.0.s8 %v5574
        %v5576 = vlaneseq
        %v5577 = vshrl.u32 %v5576, 7
        %v5578 = vsub.s32 %v5575, %v5577
        %v5579 = vrot.slane %v5236, %v5578
        %v5581 = vunpack.c.l.s4 1983009808
        %v5582 = vunpack.c.0.s8 %v5581
        %v5583 = vlaneseq
        %v5584 = vshrl.u32 %v5583, 7
        %v5585 = vsub.s32 %v5582, %v5584
        %v5586 = vrot.slane %v5572, %v5585
        %v5587 = vcombine.high %v5579, %v5579
        %v5588 = vcombine.high %v5586, %v5586
        %v5589 = vcombine.high %v5237, %v5237
        %v5591 = vunpack.c.l.s4 1983009808
        %v5592 = vunpack.c.0.s8 %v5591
        %v5593 = vlaneseq
        %v5594 = vshrl.u32 %v5593, 7
        %v5595 = vsub.s32 %v5592, %v5594
        %v5596 = vrot.slane %v5237, %v5595
        %v5598 = vunpack.c.l.s4 1983009808
        %v5599 = vunpack.c.0.s8 %v5598
        %v5600 = vlaneseq
        %v5601 = vshrl.u32 %v5600, 7
        %v5602 = vsub.s32 %v5599, %v5601
        %v5603 = vrot.slane %v5589, %v5602
        %v5604 = vcombine.high %v5596, %v5596
        %v5605 = vcombine.high %v5603, %v5603
        %v5606 = vcombine.high %v5238, %v5238
        %v5608 = vunpack.c.l.s4 1983009808
        %v5609 = vunpack.c.0.s8 %v5608
        %v5610 = vlaneseq
        %v5611 = vshrl.u32 %v5610, 7
        %v5612 = vsub.s32 %v5609, %v5611
        %v5613 = vrot.slane %v5238, %v5612
        %v5615 = vunpack.c.l.s4 1983009808
        %v5616 = vunpack.c.0.s8 %v5615
        %v5617 = vlaneseq
        %v5618 = vshrl.u32 %v5617, 7
        %v5619 = vsub.s32 %v5616, %v5618
        %v5620 = vrot.slane %v5606, %v5619
        %v5621 = vcombine.high %v5613, %v5613
        %v5622 = vcombine.high %v5620, %v5620
        %v5623 = vcombine.high %v5271, %v5271
        %v5625 = vunpack.c.l.s4 1983009808
        %v5626 = vunpack.c.0.s8 %v5625
        %v5627 = vlaneseq
        %v5628 = vshrl.u32 %v5627, 7
        %v5629 = vsub.s32 %v5626, %v5628
        %v5630 = vrot.slane %v5271, %v5629
        %v5632 = vunpack.c.l.s4 1983009808
        %v5633 = vunpack.c.0.s8 %v5632
        %v5634 = vlaneseq
        %v5635 = vshrl.u32 %v5634, 7
        %v5636 = vsub.s32 %v5633, %v5635
        %v5637 = vrot.slane %v5623, %v5636
        %v5638 = vcombine.high %v5630, %v5630
        %v5639 = vcombine.high %v5637, %v5637
        %v5640 = vcombine.high %v5272, %v5272
        %v5642 = vunpack.c.l.s4 1983009808
        %v5643 = vunpack.c.0.s8 %v5642
        %v5644 = vlaneseq
        %v5645 = vshrl.u32 %v5644, 7
        %v5646 = vsub.s32 %v5643, %v5645
        %v5647 = vrot.slane %v5272, %v5646
        %v5649 = vunpack.c.l.s4 1983009808
        %v5650 = vunpack.c.0.s8 %v5649
        %v5651 = vlaneseq
        %v5652 = vshrl.u32 %v5651, 7
        %v5653 = vsub.s32 %v5650, %v5652
        %v5654 = vrot.slane %v5640, %v5653
        %v5655 = vcombine.high %v5647, %v5647
        %v5656 = vcombine.high %v5654, %v5654
        %v5657 = vcombine.high %v5273, %v5273
        %v5659 = vunpack.c.l.s4 1983009808
        %v5660 = vunpack.c.0.s8 %v5659
        %v5661 = vlaneseq
        %v5662 = vshrl.u32 %v5661, 7
        %v5663 = vsub.s32 %v5660, %v5662
        %v5664 = vrot.slane %v5273, %v5663
        %v5666 = vunpack.c.l.s4 1983009808
        %v5667 = vunpack.c.0.s8 %v5666
        %v5668 = vlaneseq
        %v5669 = vshrl.u32 %v5668, 7
        %v5670 = vsub.s32 %v5667, %v5669
        %v5671 = vrot.slane %v5657, %v5670
        %v5672 = vcombine.high %v5664, %v5664
        %v5673 = vcombine.high %v5671, %v5671
        %v5674 = vcombine.high %v5274, %v5274
        %v5676 = vunpack.c.l.s4 1983009808
        %v5677 = vunpack.c.0.s8 %v5676
        %v5678 = vlaneseq
        %v5679 = vshrl.u32 %v5678, 7
        %v5680 = vsub.s32 %v5677, %v5679
        %v5681 = vrot.slane %v5274, %v5680
        %v5683 = vunpack.c.l.s4 1983009808
        %v5684 = vunpack.c.0.s8 %v5683
        %v5685 = vlaneseq
        %v5686 = vshrl.u32 %v5685, 7
        %v5687 = vsub.s32 %v5684, %v5686
        %v5688 = vrot.slane %v5674, %v5687
        %v5689 = vcombine.high %v5681, %v5681
        %v5690 = vcombine.high %v5688, %v5688
        %v5691 = vcombine.high %v5307, %v5307
        %v5693 = vunpack.c.l.s4 1983009808
        %v5694 = vunpack.c.0.s8 %v5693
        %v5695 = vlaneseq
        %v5696 = vshrl.u32 %v5695, 7
        %v5697 = vsub.s32 %v5694, %v5696
        %v5698 = vrot.slane %v5307, %v5697
        %v5700 = vunpack.c.l.s4 1983009808
        %v5701 = vunpack.c.0.s8 %v5700
        %v5702 = vlaneseq
        %v5703 = vshrl.u32 %v5702, 7
        %v5704 = vsub.s32 %v5701, %v5703
        %v5705 = vrot.slane %v5691, %v5704
        %v5706 = vcombine.high %v5698, %v5698
        %v5707 = vcombine.high %v5705, %v5705
        %v5708 = vcombine.high %v5308, %v5308
        %v5710 = vunpack.c.l.s4 1983009808
        %v5711 = vunpack.c.0.s8 %v5710
        %v5712 = vlaneseq
        %v5713 = vshrl.u32 %v5712, 7
        %v5714 = vsub.s32 %v5711, %v5713
        %v5715 = vrot.slane %v5308, %v5714
        %v5717 = vunpack.c.l.s4 1983009808
        %v5718 = vunpack.c.0.s8 %v5717
        %v5719 = vlaneseq
        %v5720 = vshrl.u32 %v5719, 7
        %v5721 = vsub.s32 %v5718, %v5720
        %v5722 = vrot.slane %v5708, %v5721
        %v5723 = vcombine.high %v5715, %v5715
        %v5724 = vcombine.high %v5722, %v5722
        %v5725 = vcombine.high %v5309, %v5309
        %v5727 = vunpack.c.l.s4 1983009808
        %v5728 = vunpack.c.0.s8 %v5727
        %v5729 = vlaneseq
        %v5730 = vshrl.u32 %v5729, 7
        %v5731 = vsub.s32 %v5728, %v5730
        %v5732 = vrot.slane %v5309, %v5731
        %v5734 = vunpack.c.l.s4 1983009808
        %v5735 = vunpack.c.0.s8 %v5734
        %v5736 = vlaneseq
        %v5737 = vshrl.u32 %v5736, 7
        %v5738 = vsub.s32 %v5735, %v5737
        %v5739 = vrot.slane %v5725, %v5738
        %v5740 = vcombine.high %v5732, %v5732
        %v5741 = vcombine.high %v5739, %v5739
        %v5742 = vcombine.high %v5310, %v5310
        %v5744 = vunpack.c.l.s4 1983009808
        %v5745 = vunpack.c.0.s8 %v5744
        %v5746 = vlaneseq
        %v5747 = vshrl.u32 %v5746, 7
        %v5748 = vsub.s32 %v5745, %v5747
        %v5749 = vrot.slane %v5310, %v5748
        %v5751 = vunpack.c.l.s4 1983009808
        %v5752 = vunpack.c.0.s8 %v5751
        %v5753 = vlaneseq
        %v5754 = vshrl.u32 %v5753, 7
        %v5755 = vsub.s32 %v5752, %v5754
        %v5756 = vrot.slane %v5742, %v5755
        %v5757 = vcombine.high %v5749, %v5749
        %v5758 = vcombine.high %v5756, %v5756
        %v5759 = vcombine.high %v5343, %v5343
        %v5761 = vunpack.c.l.s4 1983009808
        %v5762 = vunpack.c.0.s8 %v5761
        %v5763 = vlaneseq
        %v5764 = vshrl.u32 %v5763, 7
        %v5765 = vsub.s32 %v5762, %v5764
        %v5766 = vrot.slane %v5343, %v5765
        %v5768 = vunpack.c.l.s4 1983009808
        %v5769 = vunpack.c.0.s8 %v5768
        %v5770 = vlaneseq
        %v5771 = vshrl.u32 %v5770, 7
        %v5772 = vsub.s32 %v5769, %v5771
        %v5773 = vrot.slane %v5759, %v5772
        %v5774 = vcombine.high %v5766, %v5766
        %v5775 = vcombine.high %v5773, %v5773
        %v5776 = vcombine.high %v5344, %v5344
        %v5778 = vunpack.c.l.s4 1983009808
        %v5779 = vunpack.c.0.s8 %v5778
        %v5780 = vlaneseq
        %v5781 = vshrl.u32 %v5780, 7
        %v5782 = vsub.s32 %v5779, %v5781
        %v5783 = vrot.slane %v5344, %v5782
        %v5785 = vunpack.c.l.s4 1983009808
        %v5786 = vunpack.c.0.s8 %v5785
        %v5787 = vlaneseq
        %v5788 = vshrl.u32 %v5787, 7
        %v5789 = vsub.s32 %v5786, %v5788
        %v5790 = vrot.slane %v5776, %v5789
        %v5791 = vcombine.high %v5783, %v5783
        %v5792 = vcombine.high %v5790, %v5790
        %v5793 = vcombine.high %v5345, %v5345
        %v5795 = vunpack.c.l.s4 1983009808
        %v5796 = vunpack.c.0.s8 %v5795
        %v5797 = vlaneseq
        %v5798 = vshrl.u32 %v5797, 7
        %v5799 = vsub.s32 %v5796, %v5798
        %v5800 = vrot.slane %v5345, %v5799
        %v5802 = vunpack.c.l.s4 1983009808
        %v5803 = vunpack.c.0.s8 %v5802
        %v5804 = vlaneseq
        %v5805 = vshrl.u32 %v5804, 7
        %v5806 = vsub.s32 %v5803, %v5805
        %v5807 = vrot.slane %v5793, %v5806
        %v5808 = vcombine.high %v5800, %v5800
        %v5809 = vcombine.high %v5807, %v5807
        %v5810 = vcombine.high %v5346, %v5346
        %v5812 = vunpack.c.l.s4 1983009808
        %v5813 = vunpack.c.0.s8 %v5812
        %v5814 = vlaneseq
        %v5815 = vshrl.u32 %v5814, 7
        %v5816 = vsub.s32 %v5813, %v5815
        %v5817 = vrot.slane %v5346, %v5816
        %v5819 = vunpack.c.l.s4 1983009808
        %v5820 = vunpack.c.0.s8 %v5819
        %v5821 = vlaneseq
        %v5822 = vshrl.u32 %v5821, 7
        %v5823 = vsub.s32 %v5820, %v5822
        %v5824 = vrot.slane %v5810, %v5823
        %v5825 = vcombine.high %v5817, %v5817
        %v5826 = vcombine.high %v5824, %v5824
        %v5827 = vcombine.high %v5379, %v5379
        %v5829 = vunpack.c.l.s4 1983009808
        %v5830 = vunpack.c.0.s8 %v5829
        %v5831 = vlaneseq
        %v5832 = vshrl.u32 %v5831, 7
        %v5833 = vsub.s32 %v5830, %v5832
        %v5834 = vrot.slane %v5379, %v5833
        %v5836 = vunpack.c.l.s4 1983009808
        %v5837 = vunpack.c.0.s8 %v5836
        %v5838 = vlaneseq
        %v5839 = vshrl.u32 %v5838, 7
        %v5840 = vsub.s32 %v5837, %v5839
        %v5841 = vrot.slane %v5827, %v5840
        %v5842 = vcombine.high %v5834, %v5834
        %v5843 = vcombine.high %v5841, %v5841
        %v5844 = vcombine.high %v5380, %v5380
        %v5846 = vunpack.c.l.s4 1983009808
        %v5847 = vunpack.c.0.s8 %v5846
        %v5848 = vlaneseq
        %v5849 = vshrl.u32 %v5848, 7
        %v5850 = vsub.s32 %v5847, %v5849
        %v5851 = vrot.slane %v5380, %v5850
        %v5853 = vunpack.c.l.s4 1983009808
        %v5854 = vunpack.c.0.s8 %v5853
        %v5855 = vlaneseq
        %v5856 = vshrl.u32 %v5855, 7
        %v5857 = vsub.s32 %v5854, %v5856
        %v5858 = vrot.slane %v5844, %v5857
        %v5859 = vcombine.high %v5851, %v5851
        %v5860 = vcombine.high %v5858, %v5858
        %v5861 = vcombine.high %v5381, %v5381
        %v5863 = vunpack.c.l.s4 1983009808
        %v5864 = vunpack.c.0.s8 %v5863
        %v5865 = vlaneseq
        %v5866 = vshrl.u32 %v5865, 7
        %v5867 = vsub.s32 %v5864, %v5866
        %v5868 = vrot.slane %v5381, %v5867
        %v5870 = vunpack.c.l.s4 1983009808
        %v5871 = vunpack.c.0.s8 %v5870
        %v5872 = vlaneseq
        %v5873 = vshrl.u32 %v5872, 7
        %v5874 = vsub.s32 %v5871, %v5873
        %v5875 = vrot.slane %v5861, %v5874
        %v5876 = vcombine.high %v5868, %v5868
        %v5877 = vcombine.high %v5875, %v5875
        %v5878 = vcombine.high %v5382, %v5382
        %v5880 = vunpack.c.l.s4 1983009808
        %v5881 = vunpack.c.0.s8 %v5880
        %v5882 = vlaneseq
        %v5883 = vshrl.u32 %v5882, 7
        %v5884 = vsub.s32 %v5881, %v5883
        %v5885 = vrot.slane %v5382, %v5884
        %v5887 = vunpack.c.l.s4 1983009808
        %v5888 = vunpack.c.0.s8 %v5887
        %v5889 = vlaneseq
        %v5890 = vshrl.u32 %v5889, 7
        %v5891 = vsub.s32 %v5888, %v5890
        %v5892 = vrot.slane %v5878, %v5891
        %v5893 = vcombine.high %v5885, %v5885
        %v5894 = vcombine.high %v5892, %v5892
        %v5895 = vcombine.high %v5415, %v5415
        %v5897 = vunpack.c.l.s4 1983009808
        %v5898 = vunpack.c.0.s8 %v5897
        %v5899 = vlaneseq
        %v5900 = vshrl.u32 %v5899, 7
        %v5901 = vsub.s32 %v5898, %v5900
        %v5902 = vrot.slane %v5415, %v5901
        %v5904 = vunpack.c.l.s4 1983009808
        %v5905 = vunpack.c.0.s8 %v5904
        %v5906 = vlaneseq
        %v5907 = vshrl.u32 %v5906, 7
        %v5908 = vsub.s32 %v5905, %v5907
        %v5909 = vrot.slane %v5895, %v5908
        %v5910 = vcombine.high %v5902, %v5902
        %v5911 = vcombine.high %v5909, %v5909
        %v5912 = vcombine.high %v5416, %v5416
        %v5914 = vunpack.c.l.s4 1983009808
        %v5915 = vunpack.c.0.s8 %v5914
        %v5916 = vlaneseq
        %v5917 = vshrl.u32 %v5916, 7
        %v5918 = vsub.s32 %v5915, %v5917
        %v5919 = vrot.slane %v5416, %v5918
        %v5921 = vunpack.c.l.s4 1983009808
        %v5922 = vunpack.c.0.s8 %v5921
        %v5923 = vlaneseq
        %v5924 = vshrl.u32 %v5923, 7
        %v5925 = vsub.s32 %v5922, %v5924
        %v5926 = vrot.slane %v5912, %v5925
        %v5927 = vcombine.high %v5919, %v5919
        %v5928 = vcombine.high %v5926, %v5926
        %v5929 = vcombine.high %v5417, %v5417
        %v5931 = vunpack.c.l.s4 1983009808
        %v5932 = vunpack.c.0.s8 %v5931
        %v5933 = vlaneseq
        %v5934 = vshrl.u32 %v5933, 7
        %v5935 = vsub.s32 %v5932, %v5934
        %v5936 = vrot.slane %v5417, %v5935
        %v5938 = vunpack.c.l.s4 1983009808
        %v5939 = vunpack.c.0.s8 %v5938
        %v5940 = vlaneseq
        %v5941 = vshrl.u32 %v5940, 7
        %v5942 = vsub.s32 %v5939, %v5941
        %v5943 = vrot.slane %v5929, %v5942
        %v5944 = vcombine.high %v5936, %v5936
        %v5945 = vcombine.high %v5943, %v5943
        %v5946 = vcombine.high %v5418, %v5418
        %v5948 = vunpack.c.l.s4 1983009808
        %v5949 = vunpack.c.0.s8 %v5948
        %v5950 = vlaneseq
        %v5951 = vshrl.u32 %v5950, 7
        %v5952 = vsub.s32 %v5949, %v5951
        %v5953 = vrot.slane %v5418, %v5952
        %v5955 = vunpack.c.l.s4 1983009808
        %v5956 = vunpack.c.0.s8 %v5955
        %v5957 = vlaneseq
        %v5958 = vshrl.u32 %v5957, 7
        %v5959 = vsub.s32 %v5956, %v5958
        %v5960 = vrot.slane %v5946, %v5959
        %v5961 = vcombine.high %v5953, %v5953
        %v5962 = vcombine.high %v5960, %v5960
        %vm6091 = vcmask 1041408
        %v6092 = vsel %vm6091, %v5426, -inf
        %v6093 = vrot.slane %v6092, 4
        %v6094 = vmax.f32 %v6092, %v6093
        %v6095 = vrot.slane %v6094, 2
        %v6096 = vmax.f32 %v6094, %v6095
        %v6097 = vrot.slane %v6096, 1
        %v6098 = vmax.f32 %v6096, %v6097
        %v6099 = vsel %vm6091, %v5434, -inf
        %v6100 = vrot.slane %v6099, 4
        %v6101 = vmax.f32 %v6099, %v6100
        %v6102 = vrot.slane %v6101, 2
        %v6103 = vmax.f32 %v6101, %v6102
        %v6104 = vrot.slane %v6103, 1
        %v6105 = vmax.f32 %v6103, %v6104
        %v6106 = vsel %vm6091, %v5433, -inf
        %v6107 = vrot.slane %v6106, 4
        %v6108 = vmax.f32 %v6106, %v6107
        %v6109 = vrot.slane %v6108, 2
        %v6110 = vmax.f32 %v6108, %v6109
        %v6111 = vrot.slane %v6110, 1
        %v6112 = vmax.f32 %v6110, %v6111
        %v6113 = vsel %vm6091, %v5435, -inf
        %v6114 = vrot.slane %v6113, 4
        %v6115 = vmax.f32 %v6113, %v6114
        %v6116 = vrot.slane %v6115, 2
        %v6117 = vmax.f32 %v6115, %v6116
        %v6118 = vrot.slane %v6117, 1
        %v6119 = vmax.f32 %v6117, %v6118
        %v6120 = vsel %vm6091, %v5443, -inf
        %v6121 = vrot.slane %v6120, 4
        %v6122 = vmax.f32 %v6120, %v6121
        %v6123 = vrot.slane %v6122, 2
        %v6124 = vmax.f32 %v6122, %v6123
        %v6125 = vrot.slane %v6124, 1
        %v6126 = vmax.f32 %v6124, %v6125
        %v6127 = vsel %vm6091, %v5451, -inf
        %v6128 = vrot.slane %v6127, 4
        %v6129 = vmax.f32 %v6127, %v6128
        %v6130 = vrot.slane %v6129, 2
        %v6131 = vmax.f32 %v6129, %v6130
        %v6132 = vrot.slane %v6131, 1
        %v6133 = vmax.f32 %v6131, %v6132
        %v6134 = vsel %vm6091, %v5450, -inf
        %v6135 = vrot.slane %v6134, 4
        %v6136 = vmax.f32 %v6134, %v6135
        %v6137 = vrot.slane %v6136, 2
        %v6138 = vmax.f32 %v6136, %v6137
        %v6139 = vrot.slane %v6138, 1
        %v6140 = vmax.f32 %v6138, %v6139
        %v6141 = vsel %vm6091, %v5452, -inf
        %v6142 = vrot.slane %v6141, 4
        %v6143 = vmax.f32 %v6141, %v6142
        %v6144 = vrot.slane %v6143, 2
        %v6145 = vmax.f32 %v6143, %v6144
        %v6146 = vrot.slane %v6145, 1
        %v6147 = vmax.f32 %v6145, %v6146
        %v6148 = vsel %vm6091, %v5460, -inf
        %v6149 = vrot.slane %v6148, 4
        %v6150 = vmax.f32 %v6148, %v6149
        %v6151 = vrot.slane %v6150, 2
        %v6152 = vmax.f32 %v6150, %v6151
        %v6153 = vrot.slane %v6152, 1
        %v6154 = vmax.f32 %v6152, %v6153
        %v6155 = vsel %vm6091, %v5468, -inf
        %v6156 = vrot.slane %v6155, 4
        %v6157 = vmax.f32 %v6155, %v6156
        %v6158 = vrot.slane %v6157, 2
        %v6159 = vmax.f32 %v6157, %v6158
        %v6160 = vrot.slane %v6159, 1
        %v6161 = vmax.f32 %v6159, %v6160
        %v6162 = vsel %vm6091, %v5467, -inf
        %v6163 = vrot.slane %v6162, 4
        %v6164 = vmax.f32 %v6162, %v6163
        %v6165 = vrot.slane %v6164, 2
        %v6166 = vmax.f32 %v6164, %v6165
        %v6167 = vrot.slane %v6166, 1
        %v6168 = vmax.f32 %v6166, %v6167
        %v6169 = vsel %vm6091, %v5469, -inf
        %v6170 = vrot.slane %v6169, 4
        %v6171 = vmax.f32 %v6169, %v6170
        %v6172 = vrot.slane %v6171, 2
        %v6173 = vmax.f32 %v6171, %v6172
        %v6174 = vrot.slane %v6173, 1
        %v6175 = vmax.f32 %v6173, %v6174
        %v6176 = vsel %vm6091, %v5477, -inf
        %v6177 = vrot.slane %v6176, 4
        %v6178 = vmax.f32 %v6176, %v6177
        %v6179 = vrot.slane %v6178, 2
        %v6180 = vmax.f32 %v6178, %v6179
        %v6181 = vrot.slane %v6180, 1
        %v6182 = vmax.f32 %v6180, %v6181
        %v6183 = vsel %vm6091, %v5485, -inf
        %v6184 = vrot.slane %v6183, 4
        %v6185 = vmax.f32 %v6183, %v6184
        %v6186 = vrot.slane %v6185, 2
        %v6187 = vmax.f32 %v6185, %v6186
        %v6188 = vrot.slane %v6187, 1
        %v6189 = vmax.f32 %v6187, %v6188
        %v6190 = vsel %vm6091, %v5484, -inf
        %v6191 = vrot.slane %v6190, 4
        %v6192 = vmax.f32 %v6190, %v6191
        %v6193 = vrot.slane %v6192, 2
        %v6194 = vmax.f32 %v6192, %v6193
        %v6195 = vrot.slane %v6194, 1
        %v6196 = vmax.f32 %v6194, %v6195
        %v6197 = vsel %vm6091, %v5486, -inf
        %v6198 = vrot.slane %v6197, 4
        %v6199 = vmax.f32 %v6197, %v6198
        %v6200 = vrot.slane %v6199, 2
        %v6201 = vmax.f32 %v6199, %v6200
        %v6202 = vrot.slane %v6201, 1
        %v6203 = vmax.f32 %v6201, %v6202
        %v6204 = vsel %vm6091, %v5494, -inf
        %v6205 = vrot.slane %v6204, 4
        %v6206 = vmax.f32 %v6204, %v6205
        %v6207 = vrot.slane %v6206, 2
        %v6208 = vmax.f32 %v6206, %v6207
        %v6209 = vrot.slane %v6208, 1
        %v6210 = vmax.f32 %v6208, %v6209
        %v6211 = vsel %vm6091, %v5502, -inf
        %v6212 = vrot.slane %v6211, 4
        %v6213 = vmax.f32 %v6211, %v6212
        %v6214 = vrot.slane %v6213, 2
        %v6215 = vmax.f32 %v6213, %v6214
        %v6216 = vrot.slane %v6215, 1
        %v6217 = vmax.f32 %v6215, %v6216
        %v6218 = vsel %vm6091, %v5501, -inf
        %v6219 = vrot.slane %v6218, 4
        %v6220 = vmax.f32 %v6218, %v6219
        %v6221 = vrot.slane %v6220, 2
        %v6222 = vmax.f32 %v6220, %v6221
        %v6223 = vrot.slane %v6222, 1
        %v6224 = vmax.f32 %v6222, %v6223
        %v6225 = vsel %vm6091, %v5503, -inf
        %v6226 = vrot.slane %v6225, 4
        %v6227 = vmax.f32 %v6225, %v6226
        %v6228 = vrot.slane %v6227, 2
        %v6229 = vmax.f32 %v6227, %v6228
        %v6230 = vrot.slane %v6229, 1
        %v6231 = vmax.f32 %v6229, %v6230
        %v6232 = vsel %vm6091, %v5511, -inf
        %v6233 = vrot.slane %v6232, 4
        %v6234 = vmax.f32 %v6232, %v6233
        %v6235 = vrot.slane %v6234, 2
        %v6236 = vmax.f32 %v6234, %v6235
        %v6237 = vrot.slane %v6236, 1
        %v6238 = vmax.f32 %v6236, %v6237
        %v6239 = vsel %vm6091, %v5519, -inf
        %v6240 = vrot.slane %v6239, 4
        %v6241 = vmax.f32 %v6239, %v6240
        %v6242 = vrot.slane %v6241, 2
        %v6243 = vmax.f32 %v6241, %v6242
        %v6244 = vrot.slane %v6243, 1
        %v6245 = vmax.f32 %v6243, %v6244
        %v6246 = vsel %vm6091, %v5518, -inf
        %v6247 = vrot.slane %v6246, 4
        %v6248 = vmax.f32 %v6246, %v6247
        %v6249 = vrot.slane %v6248, 2
        %v6250 = vmax.f32 %v6248, %v6249
        %v6251 = vrot.slane %v6250, 1
        %v6252 = vmax.f32 %v6250, %v6251
        %v6253 = vsel %vm6091, %v5520, -inf
        %v6254 = vrot.slane %v6253, 4
        %v6255 = vmax.f32 %v6253, %v6254
        %v6256 = vrot.slane %v6255, 2
        %v6257 = vmax.f32 %v6255, %v6256
        %v6258 = vrot.slane %v6257, 1
        %v6259 = vmax.f32 %v6257, %v6258
        %v6260 = vsel %vm6091, %v5528, -inf
        %v6261 = vrot.slane %v6260, 4
        %v6262 = vmax.f32 %v6260, %v6261
        %v6263 = vrot.slane %v6262, 2
        %v6264 = vmax.f32 %v6262, %v6263
        %v6265 = vrot.slane %v6264, 1
        %v6266 = vmax.f32 %v6264, %v6265
        %v6267 = vsel %vm6091, %v5536, -inf
        %v6268 = vrot.slane %v6267, 4
        %v6269 = vmax.f32 %v6267, %v6268
        %v6270 = vrot.slane %v6269, 2
        %v6271 = vmax.f32 %v6269, %v6270
        %v6272 = vrot.slane %v6271, 1
        %v6273 = vmax.f32 %v6271, %v6272
        %v6274 = vsel %vm6091, %v5535, -inf
        %v6275 = vrot.slane %v6274, 4
        %v6276 = vmax.f32 %v6274, %v6275
        %v6277 = vrot.slane %v6276, 2
        %v6278 = vmax.f32 %v6276, %v6277
        %v6279 = vrot.slane %v6278, 1
        %v6280 = vmax.f32 %v6278, %v6279
        %v6281 = vsel %vm6091, %v5537, -inf
        %v6282 = vrot.slane %v6281, 4
        %v6283 = vmax.f32 %v6281, %v6282
        %v6284 = vrot.slane %v6283, 2
        %v6285 = vmax.f32 %v6283, %v6284
        %v6286 = vrot.slane %v6285, 1
        %v6287 = vmax.f32 %v6285, %v6286
        %v6288 = vsel %vm6091, %v5545, -inf
        %v6289 = vrot.slane %v6288, 4
        %v6290 = vmax.f32 %v6288, %v6289
        %v6291 = vrot.slane %v6290, 2
        %v6292 = vmax.f32 %v6290, %v6291
        %v6293 = vrot.slane %v6292, 1
        %v6294 = vmax.f32 %v6292, %v6293
        %v6295 = vsel %vm6091, %v5553, -inf
        %v6296 = vrot.slane %v6295, 4
        %v6297 = vmax.f32 %v6295, %v6296
        %v6298 = vrot.slane %v6297, 2
        %v6299 = vmax.f32 %v6297, %v6298
        %v6300 = vrot.slane %v6299, 1
        %v6301 = vmax.f32 %v6299, %v6300
        %v6302 = vsel %vm6091, %v5552, -inf
        %v6303 = vrot.slane %v6302, 4
        %v6304 = vmax.f32 %v6302, %v6303
        %v6305 = vrot.slane %v6304, 2
        %v6306 = vmax.f32 %v6304, %v6305
        %v6307 = vrot.slane %v6306, 1
        %v6308 = vmax.f32 %v6306, %v6307
        %v6309 = vsel %vm6091, %v5554, -inf
        %v6310 = vrot.slane %v6309, 4
        %v6311 = vmax.f32 %v6309, %v6310
        %v6312 = vrot.slane %v6311, 2
        %v6313 = vmax.f32 %v6311, %v6312
        %v6314 = vrot.slane %v6313, 1
        %v6315 = vmax.f32 %v6313, %v6314
        %v6316 = vsel %vm6091, %v5562, -inf
        %v6317 = vrot.slane %v6316, 4
        %v6318 = vmax.f32 %v6316, %v6317
        %v6319 = vrot.slane %v6318, 2
        %v6320 = vmax.f32 %v6318, %v6319
        %v6321 = vrot.slane %v6320, 1
        %v6322 = vmax.f32 %v6320, %v6321
        %v6323 = vsel %vm6091, %v5570, -inf
        %v6324 = vrot.slane %v6323, 4
        %v6325 = vmax.f32 %v6323, %v6324
        %v6326 = vrot.slane %v6325, 2
        %v6327 = vmax.f32 %v6325, %v6326
        %v6328 = vrot.slane %v6327, 1
        %v6329 = vmax.f32 %v6327, %v6328
        %v6330 = vsel %vm6091, %v5569, -inf
        %v6331 = vrot.slane %v6330, 4
        %v6332 = vmax.f32 %v6330, %v6331
        %v6333 = vrot.slane %v6332, 2
        %v6334 = vmax.f32 %v6332, %v6333
        %v6335 = vrot.slane %v6334, 1
        %v6336 = vmax.f32 %v6334, %v6335
        %v6337 = vsel %vm6091, %v5571, -inf
        %v6338 = vrot.slane %v6337, 4
        %v6339 = vmax.f32 %v6337, %v6338
        %v6340 = vrot.slane %v6339, 2
        %v6341 = vmax.f32 %v6339, %v6340
        %v6342 = vrot.slane %v6341, 1
        %v6343 = vmax.f32 %v6341, %v6342
        %v6344 = vsel %vm6091, %v5579, -inf
        %v6345 = vrot.slane %v6344, 4
        %v6346 = vmax.f32 %v6344, %v6345
        %v6347 = vrot.slane %v6346, 2
        %v6348 = vmax.f32 %v6346, %v6347
        %v6349 = vrot.slane %v6348, 1
        %v6350 = vmax.f32 %v6348, %v6349
        %v6351 = vsel %vm6091, %v5587, -inf
        %v6352 = vrot.slane %v6351, 4
        %v6353 = vmax.f32 %v6351, %v6352
        %v6354 = vrot.slane %v6353, 2
        %v6355 = vmax.f32 %v6353, %v6354
        %v6356 = vrot.slane %v6355, 1
        %v6357 = vmax.f32 %v6355, %v6356
        %v6358 = vsel %vm6091, %v5586, -inf
        %v6359 = vrot.slane %v6358, 4
        %v6360 = vmax.f32 %v6358, %v6359
        %v6361 = vrot.slane %v6360, 2
        %v6362 = vmax.f32 %v6360, %v6361
        %v6363 = vrot.slane %v6362, 1
        %v6364 = vmax.f32 %v6362, %v6363
        %v6365 = vsel %vm6091, %v5588, -inf
        %v6366 = vrot.slane %v6365, 4
        %v6367 = vmax.f32 %v6365, %v6366
        %v6368 = vrot.slane %v6367, 2
        %v6369 = vmax.f32 %v6367, %v6368
        %v6370 = vrot.slane %v6369, 1
        %v6371 = vmax.f32 %v6369, %v6370
        %v6372 = vsel %vm6091, %v5596, -inf
        %v6373 = vrot.slane %v6372, 4
        %v6374 = vmax.f32 %v6372, %v6373
        %v6375 = vrot.slane %v6374, 2
        %v6376 = vmax.f32 %v6374, %v6375
        %v6377 = vrot.slane %v6376, 1
        %v6378 = vmax.f32 %v6376, %v6377
        %v6379 = vsel %vm6091, %v5604, -inf
        %v6380 = vrot.slane %v6379, 4
        %v6381 = vmax.f32 %v6379, %v6380
        %v6382 = vrot.slane %v6381, 2
        %v6383 = vmax.f32 %v6381, %v6382
        %v6384 = vrot.slane %v6383, 1
        %v6385 = vmax.f32 %v6383, %v6384
        %v6386 = vsel %vm6091, %v5603, -inf
        %v6387 = vrot.slane %v6386, 4
        %v6388 = vmax.f32 %v6386, %v6387
        %v6389 = vrot.slane %v6388, 2
        %v6390 = vmax.f32 %v6388, %v6389
        %v6391 = vrot.slane %v6390, 1
        %v6392 = vmax.f32 %v6390, %v6391
        %v6393 = vsel %vm6091, %v5605, -inf
        %v6394 = vrot.slane %v6393, 4
        %v6395 = vmax.f32 %v6393, %v6394
        %v6396 = vrot.slane %v6395, 2
        %v6397 = vmax.f32 %v6395, %v6396
        %v6398 = vrot.slane %v6397, 1
        %v6399 = vmax.f32 %v6397, %v6398
        %v6400 = vsel %vm6091, %v5613, -inf
        %v6401 = vrot.slane %v6400, 4
        %v6402 = vmax.f32 %v6400, %v6401
        %v6403 = vrot.slane %v6402, 2
        %v6404 = vmax.f32 %v6402, %v6403
        %v6405 = vrot.slane %v6404, 1
        %v6406 = vmax.f32 %v6404, %v6405
        %v6407 = vsel %vm6091, %v5621, -inf
        %v6408 = vrot.slane %v6407, 4
        %v6409 = vmax.f32 %v6407, %v6408
        %v6410 = vrot.slane %v6409, 2
        %v6411 = vmax.f32 %v6409, %v6410
        %v6412 = vrot.slane %v6411, 1
        %v6413 = vmax.f32 %v6411, %v6412
        %v6414 = vsel %vm6091, %v5620, -inf
        %v6415 = vrot.slane %v6414, 4
        %v6416 = vmax.f32 %v6414, %v6415
        %v6417 = vrot.slane %v6416, 2
        %v6418 = vmax.f32 %v6416, %v6417
        %v6419 = vrot.slane %v6418, 1
        %v6420 = vmax.f32 %v6418, %v6419
        %v6421 = vsel %vm6091, %v5622, -inf
        %v6422 = vrot.slane %v6421, 4
        %v6423 = vmax.f32 %v6421, %v6422
        %v6424 = vrot.slane %v6423, 2
        %v6425 = vmax.f32 %v6423, %v6424
        %v6426 = vrot.slane %v6425, 1
        %v6427 = vmax.f32 %v6425, %v6426
        %v6428 = vsel %vm6091, %v5630, -inf
        %v6429 = vrot.slane %v6428, 4
        %v6430 = vmax.f32 %v6428, %v6429
        %v6431 = vrot.slane %v6430, 2
        %v6432 = vmax.f32 %v6430, %v6431
        %v6433 = vrot.slane %v6432, 1
        %v6434 = vmax.f32 %v6432, %v6433
        %v6435 = vsel %vm6091, %v5638, -inf
        %v6436 = vrot.slane %v6435, 4
        %v6437 = vmax.f32 %v6435, %v6436
        %v6438 = vrot.slane %v6437, 2
        %v6439 = vmax.f32 %v6437, %v6438
        %v6440 = vrot.slane %v6439, 1
        %v6441 = vmax.f32 %v6439, %v6440
        %v6442 = vsel %vm6091, %v5637, -inf
        %v6443 = vrot.slane %v6442, 4
        %v6444 = vmax.f32 %v6442, %v6443
        %v6445 = vrot.slane %v6444, 2
        %v6446 = vmax.f32 %v6444, %v6445
        %v6447 = vrot.slane %v6446, 1
        %v6448 = vmax.f32 %v6446, %v6447
        %v6449 = vsel %vm6091, %v5639, -inf
        %v6450 = vrot.slane %v6449, 4
        %v6451 = vmax.f32 %v6449, %v6450
        %v6452 = vrot.slane %v6451, 2
        %v6453 = vmax.f32 %v6451, %v6452
        %v6454 = vrot.slane %v6453, 1
        %v6455 = vmax.f32 %v6453, %v6454
        %v6456 = vsel %vm6091, %v5647, -inf
        %v6457 = vrot.slane %v6456, 4
        %v6458 = vmax.f32 %v6456, %v6457
        %v6459 = vrot.slane %v6458, 2
        %v6460 = vmax.f32 %v6458, %v6459
        %v6461 = vrot.slane %v6460, 1
        %v6462 = vmax.f32 %v6460, %v6461
        %v6463 = vsel %vm6091, %v5655, -inf
        %v6464 = vrot.slane %v6463, 4
        %v6465 = vmax.f32 %v6463, %v6464
        %v6466 = vrot.slane %v6465, 2
        %v6467 = vmax.f32 %v6465, %v6466
        %v6468 = vrot.slane %v6467, 1
        %v6469 = vmax.f32 %v6467, %v6468
        %v6470 = vsel %vm6091, %v5654, -inf
        %v6471 = vrot.slane %v6470, 4
        %v6472 = vmax.f32 %v6470, %v6471
        %v6473 = vrot.slane %v6472, 2
        %v6474 = vmax.f32 %v6472, %v6473
        %v6475 = vrot.slane %v6474, 1
        %v6476 = vmax.f32 %v6474, %v6475
        %v6477 = vsel %vm6091, %v5656, -inf
        %v6478 = vrot.slane %v6477, 4
        %v6479 = vmax.f32 %v6477, %v6478
        %v6480 = vrot.slane %v6479, 2
        %v6481 = vmax.f32 %v6479, %v6480
        %v6482 = vrot.slane %v6481, 1
        %v6483 = vmax.f32 %v6481, %v6482
        %v6484 = vsel %vm6091, %v5664, -inf
        %v6485 = vrot.slane %v6484, 4
        %v6486 = vmax.f32 %v6484, %v6485
        %v6487 = vrot.slane %v6486, 2
        %v6488 = vmax.f32 %v6486, %v6487
        %v6489 = vrot.slane %v6488, 1
        %v6490 = vmax.f32 %v6488, %v6489
        %v6491 = vsel %vm6091, %v5672, -inf
        %v6492 = vrot.slane %v6491, 4
        %v6493 = vmax.f32 %v6491, %v6492
        %v6494 = vrot.slane %v6493, 2
        %v6495 = vmax.f32 %v6493, %v6494
        %v6496 = vrot.slane %v6495, 1
        %v6497 = vmax.f32 %v6495, %v6496
        %v6498 = vsel %vm6091, %v5671, -inf
        %v6499 = vrot.slane %v6498, 4
        %v6500 = vmax.f32 %v6498, %v6499
        %v6501 = vrot.slane %v6500, 2
        %v6502 = vmax.f32 %v6500, %v6501
        %v6503 = vrot.slane %v6502, 1
        %v6504 = vmax.f32 %v6502, %v6503
        %v6505 = vsel %vm6091, %v5673, -inf
        %v6506 = vrot.slane %v6505, 4
        %v6507 = vmax.f32 %v6505, %v6506
        %v6508 = vrot.slane %v6507, 2
        %v6509 = vmax.f32 %v6507, %v6508
        %v6510 = vrot.slane %v6509, 1
        %v6511 = vmax.f32 %v6509, %v6510
        %v6512 = vsel %vm6091, %v5681, -inf
        %v6513 = vrot.slane %v6512, 4
        %v6514 = vmax.f32 %v6512, %v6513
        %v6515 = vrot.slane %v6514, 2
        %v6516 = vmax.f32 %v6514, %v6515
        %v6517 = vrot.slane %v6516, 1
        %v6518 = vmax.f32 %v6516, %v6517
        %v6519 = vsel %vm6091, %v5689, -inf
        %v6520 = vrot.slane %v6519, 4
        %v6521 = vmax.f32 %v6519, %v6520
        %v6522 = vrot.slane %v6521, 2
        %v6523 = vmax.f32 %v6521, %v6522
        %v6524 = vrot.slane %v6523, 1
        %v6525 = vmax.f32 %v6523, %v6524
        %v6526 = vsel %vm6091, %v5688, -inf
        %v6527 = vrot.slane %v6526, 4
        %v6528 = vmax.f32 %v6526, %v6527
        %v6529 = vrot.slane %v6528, 2
        %v6530 = vmax.f32 %v6528, %v6529
        %v6531 = vrot.slane %v6530, 1
        %v6532 = vmax.f32 %v6530, %v6531
        %v6533 = vsel %vm6091, %v5690, -inf
        %v6534 = vrot.slane %v6533, 4
        %v6535 = vmax.f32 %v6533, %v6534
        %v6536 = vrot.slane %v6535, 2
        %v6537 = vmax.f32 %v6535, %v6536
        %v6538 = vrot.slane %v6537, 1
        %v6539 = vmax.f32 %v6537, %v6538
        %v6540 = vsel %vm6091, %v5698, -inf
        %v6541 = vrot.slane %v6540, 4
        %v6542 = vmax.f32 %v6540, %v6541
        %v6543 = vrot.slane %v6542, 2
        %v6544 = vmax.f32 %v6542, %v6543
        %v6545 = vrot.slane %v6544, 1
        %v6546 = vmax.f32 %v6544, %v6545
        %v6547 = vsel %vm6091, %v5706, -inf
        %v6548 = vrot.slane %v6547, 4
        %v6549 = vmax.f32 %v6547, %v6548
        %v6550 = vrot.slane %v6549, 2
        %v6551 = vmax.f32 %v6549, %v6550
        %v6552 = vrot.slane %v6551, 1
        %v6553 = vmax.f32 %v6551, %v6552
        %v6554 = vsel %vm6091, %v5705, -inf
        %v6555 = vrot.slane %v6554, 4
        %v6556 = vmax.f32 %v6554, %v6555
        %v6557 = vrot.slane %v6556, 2
        %v6558 = vmax.f32 %v6556, %v6557
        %v6559 = vrot.slane %v6558, 1
        %v6560 = vmax.f32 %v6558, %v6559
        %v6561 = vsel %vm6091, %v5707, -inf
        %v6562 = vrot.slane %v6561, 4
        %v6563 = vmax.f32 %v6561, %v6562
        %v6564 = vrot.slane %v6563, 2
        %v6565 = vmax.f32 %v6563, %v6564
        %v6566 = vrot.slane %v6565, 1
        %v6567 = vmax.f32 %v6565, %v6566
        %v6568 = vsel %vm6091, %v5715, -inf
        %v6569 = vrot.slane %v6568, 4
        %v6570 = vmax.f32 %v6568, %v6569
        %v6571 = vrot.slane %v6570, 2
        %v6572 = vmax.f32 %v6570, %v6571
        %v6573 = vrot.slane %v6572, 1
        %v6574 = vmax.f32 %v6572, %v6573
        %v6575 = vsel %vm6091, %v5723, -inf
        %v6576 = vrot.slane %v6575, 4
        %v6577 = vmax.f32 %v6575, %v6576
        %v6578 = vrot.slane %v6577, 2
        %v6579 = vmax.f32 %v6577, %v6578
        %v6580 = vrot.slane %v6579, 1
        %v6581 = vmax.f32 %v6579, %v6580
        %v6582 = vsel %vm6091, %v5722, -inf
        %v6583 = vrot.slane %v6582, 4
        %v6584 = vmax.f32 %v6582, %v6583
        %v6585 = vrot.slane %v6584, 2
        %v6586 = vmax.f32 %v6584, %v6585
        %v6587 = vrot.slane %v6586, 1
        %v6588 = vmax.f32 %v6586, %v6587
        %v6589 = vsel %vm6091, %v5724, -inf
        %v6590 = vrot.slane %v6589, 4
        %v6591 = vmax.f32 %v6589, %v6590
        %v6592 = vrot.slane %v6591, 2
        %v6593 = vmax.f32 %v6591, %v6592
        %v6594 = vrot.slane %v6593, 1
        %v6595 = vmax.f32 %v6593, %v6594
        %v6596 = vsel %vm6091, %v5732, -inf
        %v6597 = vrot.slane %v6596, 4
        %v6598 = vmax.f32 %v6596, %v6597
        %v6599 = vrot.slane %v6598, 2
        %v6600 = vmax.f32 %v6598, %v6599
        %v6601 = vrot.slane %v6600, 1
        %v6602 = vmax.f32 %v6600, %v6601
        %v6603 = vsel %vm6091, %v5740, -inf
        %v6604 = vrot.slane %v6603, 4
        %v6605 = vmax.f32 %v6603, %v6604
        %v6606 = vrot.slane %v6605, 2
        %v6607 = vmax.f32 %v6605, %v6606
        %v6608 = vrot.slane %v6607, 1
        %v6609 = vmax.f32 %v6607, %v6608
        %v6610 = vsel %vm6091, %v5739, -inf
        %v6611 = vrot.slane %v6610, 4
        %v6612 = vmax.f32 %v6610, %v6611
        %v6613 = vrot.slane %v6612, 2
        %v6614 = vmax.f32 %v6612, %v6613
        %v6615 = vrot.slane %v6614, 1
        %v6616 = vmax.f32 %v6614, %v6615
        %v6617 = vsel %vm6091, %v5741, -inf
        %v6618 = vrot.slane %v6617, 4
        %v6619 = vmax.f32 %v6617, %v6618
        %v6620 = vrot.slane %v6619, 2
        %v6621 = vmax.f32 %v6619, %v6620
        %v6622 = vrot.slane %v6621, 1
        %v6623 = vmax.f32 %v6621, %v6622
        %v6624 = vsel %vm6091, %v5749, -inf
        %v6625 = vrot.slane %v6624, 4
        %v6626 = vmax.f32 %v6624, %v6625
        %v6627 = vrot.slane %v6626, 2
        %v6628 = vmax.f32 %v6626, %v6627
        %v6629 = vrot.slane %v6628, 1
        %v6630 = vmax.f32 %v6628, %v6629
        %v6631 = vsel %vm6091, %v5757, -inf
        %v6632 = vrot.slane %v6631, 4
        %v6633 = vmax.f32 %v6631, %v6632
        %v6634 = vrot.slane %v6633, 2
        %v6635 = vmax.f32 %v6633, %v6634
        %v6636 = vrot.slane %v6635, 1
        %v6637 = vmax.f32 %v6635, %v6636
        %v6638 = vsel %vm6091, %v5756, -inf
        %v6639 = vrot.slane %v6638, 4
        %v6640 = vmax.f32 %v6638, %v6639
        %v6641 = vrot.slane %v6640, 2
        %v6642 = vmax.f32 %v6640, %v6641
        %v6643 = vrot.slane %v6642, 1
        %v6644 = vmax.f32 %v6642, %v6643
        %v6645 = vsel %vm6091, %v5758, -inf
        %v6646 = vrot.slane %v6645, 4
        %v6647 = vmax.f32 %v6645, %v6646
        %v6648 = vrot.slane %v6647, 2
        %v6649 = vmax.f32 %v6647, %v6648
        %v6650 = vrot.slane %v6649, 1
        %v6651 = vmax.f32 %v6649, %v6650
        %v6652 = vsel %vm6091, %v5766, -inf
        %v6653 = vrot.slane %v6652, 4
        %v6654 = vmax.f32 %v6652, %v6653
        %v6655 = vrot.slane %v6654, 2
        %v6656 = vmax.f32 %v6654, %v6655
        %v6657 = vrot.slane %v6656, 1
        %v6658 = vmax.f32 %v6656, %v6657
        %v6659 = vsel %vm6091, %v5774, -inf
        %v6660 = vrot.slane %v6659, 4
        %v6661 = vmax.f32 %v6659, %v6660
        %v6662 = vrot.slane %v6661, 2
        %v6663 = vmax.f32 %v6661, %v6662
        %v6664 = vrot.slane %v6663, 1
        %v6665 = vmax.f32 %v6663, %v6664
        %v6666 = vsel %vm6091, %v5773, -inf
        %v6667 = vrot.slane %v6666, 4
        %v6668 = vmax.f32 %v6666, %v6667
        %v6669 = vrot.slane %v6668, 2
        %v6670 = vmax.f32 %v6668, %v6669
        %v6671 = vrot.slane %v6670, 1
        %v6672 = vmax.f32 %v6670, %v6671
        %v6673 = vsel %vm6091, %v5775, -inf
        %v6674 = vrot.slane %v6673, 4
        %v6675 = vmax.f32 %v6673, %v6674
        %v6676 = vrot.slane %v6675, 2
        %v6677 = vmax.f32 %v6675, %v6676
        %v6678 = vrot.slane %v6677, 1
        %v6679 = vmax.f32 %v6677, %v6678
        %v6680 = vsel %vm6091, %v5783, -inf
        %v6681 = vrot.slane %v6680, 4
        %v6682 = vmax.f32 %v6680, %v6681
        %v6683 = vrot.slane %v6682, 2
        %v6684 = vmax.f32 %v6682, %v6683
        %v6685 = vrot.slane %v6684, 1
        %v6686 = vmax.f32 %v6684, %v6685
        %v6687 = vsel %vm6091, %v5791, -inf
        %v6688 = vrot.slane %v6687, 4
        %v6689 = vmax.f32 %v6687, %v6688
        %v6690 = vrot.slane %v6689, 2
        %v6691 = vmax.f32 %v6689, %v6690
        %v6692 = vrot.slane %v6691, 1
        %v6693 = vmax.f32 %v6691, %v6692
        %v6694 = vsel %vm6091, %v5790, -inf
        %v6695 = vrot.slane %v6694, 4
        %v6696 = vmax.f32 %v6694, %v6695
        %v6697 = vrot.slane %v6696, 2
        %v6698 = vmax.f32 %v6696, %v6697
        %v6699 = vrot.slane %v6698, 1
        %v6700 = vmax.f32 %v6698, %v6699
        %v6701 = vsel %vm6091, %v5792, -inf
        %v6702 = vrot.slane %v6701, 4
        %v6703 = vmax.f32 %v6701, %v6702
        %v6704 = vrot.slane %v6703, 2
        %v6705 = vmax.f32 %v6703, %v6704
        %v6706 = vrot.slane %v6705, 1
        %v6707 = vmax.f32 %v6705, %v6706
        %v6708 = vsel %vm6091, %v5800, -inf
        %v6709 = vrot.slane %v6708, 4
        %v6710 = vmax.f32 %v6708, %v6709
        %v6711 = vrot.slane %v6710, 2
        %v6712 = vmax.f32 %v6710, %v6711
        %v6713 = vrot.slane %v6712, 1
        %v6714 = vmax.f32 %v6712, %v6713
        %v6715 = vsel %vm6091, %v5808, -inf
        %v6716 = vrot.slane %v6715, 4
        %v6717 = vmax.f32 %v6715, %v6716
        %v6718 = vrot.slane %v6717, 2
        %v6719 = vmax.f32 %v6717, %v6718
        %v6720 = vrot.slane %v6719, 1
        %v6721 = vmax.f32 %v6719, %v6720
        %v6722 = vsel %vm6091, %v5807, -inf
        %v6723 = vrot.slane %v6722, 4
        %v6724 = vmax.f32 %v6722, %v6723
        %v6725 = vrot.slane %v6724, 2
        %v6726 = vmax.f32 %v6724, %v6725
        %v6727 = vrot.slane %v6726, 1
        %v6728 = vmax.f32 %v6726, %v6727
        %v6729 = vsel %vm6091, %v5809, -inf
        %v6730 = vrot.slane %v6729, 4
        %v6731 = vmax.f32 %v6729, %v6730
        %v6732 = vrot.slane %v6731, 2
        %v6733 = vmax.f32 %v6731, %v6732
        %v6734 = vrot.slane %v6733, 1
        %v6735 = vmax.f32 %v6733, %v6734
        %v6736 = vsel %vm6091, %v5817, -inf
        %v6737 = vrot.slane %v6736, 4
        %v6738 = vmax.f32 %v6736, %v6737
        %v6739 = vrot.slane %v6738, 2
        %v6740 = vmax.f32 %v6738, %v6739
        %v6741 = vrot.slane %v6740, 1
        %v6742 = vmax.f32 %v6740, %v6741
        %v6743 = vsel %vm6091, %v5825, -inf
        %v6744 = vrot.slane %v6743, 4
        %v6745 = vmax.f32 %v6743, %v6744
        %v6746 = vrot.slane %v6745, 2
        %v6747 = vmax.f32 %v6745, %v6746
        %v6748 = vrot.slane %v6747, 1
        %v6749 = vmax.f32 %v6747, %v6748
        %v6750 = vsel %vm6091, %v5824, -inf
        %v6751 = vrot.slane %v6750, 4
        %v6752 = vmax.f32 %v6750, %v6751
        %v6753 = vrot.slane %v6752, 2
        %v6754 = vmax.f32 %v6752, %v6753
        %v6755 = vrot.slane %v6754, 1
        %v6756 = vmax.f32 %v6754, %v6755
        %v6757 = vsel %vm6091, %v5826, -inf
        %v6758 = vrot.slane %v6757, 4
        %v6759 = vmax.f32 %v6757, %v6758
        %v6760 = vrot.slane %v6759, 2
        %v6761 = vmax.f32 %v6759, %v6760
        %v6762 = vrot.slane %v6761, 1
        %v6763 = vmax.f32 %v6761, %v6762
        %v6764 = vsel %vm6091, %v5834, -inf
        %v6765 = vrot.slane %v6764, 4
        %v6766 = vmax.f32 %v6764, %v6765
        %v6767 = vrot.slane %v6766, 2
        %v6768 = vmax.f32 %v6766, %v6767
        %v6769 = vrot.slane %v6768, 1
        %v6770 = vmax.f32 %v6768, %v6769
        %v6771 = vsel %vm6091, %v5842, -inf
        %v6772 = vrot.slane %v6771, 4
        %v6773 = vmax.f32 %v6771, %v6772
        %v6774 = vrot.slane %v6773, 2
        %v6775 = vmax.f32 %v6773, %v6774
        %v6776 = vrot.slane %v6775, 1
        %v6777 = vmax.f32 %v6775, %v6776
        %v6778 = vsel %vm6091, %v5841, -inf
        %v6779 = vrot.slane %v6778, 4
        %v6780 = vmax.f32 %v6778, %v6779
        %v6781 = vrot.slane %v6780, 2
        %v6782 = vmax.f32 %v6780, %v6781
        %v6783 = vrot.slane %v6782, 1
        %v6784 = vmax.f32 %v6782, %v6783
        %v6785 = vsel %vm6091, %v5843, -inf
        %v6786 = vrot.slane %v6785, 4
        %v6787 = vmax.f32 %v6785, %v6786
        %v6788 = vrot.slane %v6787, 2
        %v6789 = vmax.f32 %v6787, %v6788
        %v6790 = vrot.slane %v6789, 1
        %v6791 = vmax.f32 %v6789, %v6790
        %v6792 = vsel %vm6091, %v5851, -inf
        %v6793 = vrot.slane %v6792, 4
        %v6794 = vmax.f32 %v6792, %v6793
        %v6795 = vrot.slane %v6794, 2
        %v6796 = vmax.f32 %v6794, %v6795
        %v6797 = vrot.slane %v6796, 1
        %v6798 = vmax.f32 %v6796, %v6797
        %v6799 = vsel %vm6091, %v5859, -inf
        %v6800 = vrot.slane %v6799, 4
        %v6801 = vmax.f32 %v6799, %v6800
        %v6802 = vrot.slane %v6801, 2
        %v6803 = vmax.f32 %v6801, %v6802
        %v6804 = vrot.slane %v6803, 1
        %v6805 = vmax.f32 %v6803, %v6804
        %v6806 = vsel %vm6091, %v5858, -inf
        %v6807 = vrot.slane %v6806, 4
        %v6808 = vmax.f32 %v6806, %v6807
        %v6809 = vrot.slane %v6808, 2
        %v6810 = vmax.f32 %v6808, %v6809
        %v6811 = vrot.slane %v6810, 1
        %v6812 = vmax.f32 %v6810, %v6811
        %v6813 = vsel %vm6091, %v5860, -inf
        %v6814 = vrot.slane %v6813, 4
        %v6815 = vmax.f32 %v6813, %v6814
        %v6816 = vrot.slane %v6815, 2
        %v6817 = vmax.f32 %v6815, %v6816
        %v6818 = vrot.slane %v6817, 1
        %v6819 = vmax.f32 %v6817, %v6818
        %v6820 = vsel %vm6091, %v5868, -inf
        %v6821 = vrot.slane %v6820, 4
        %v6822 = vmax.f32 %v6820, %v6821
        %v6823 = vrot.slane %v6822, 2
        %v6824 = vmax.f32 %v6822, %v6823
        %v6825 = vrot.slane %v6824, 1
        %v6826 = vmax.f32 %v6824, %v6825
        %v6827 = vsel %vm6091, %v5876, -inf
        %v6828 = vrot.slane %v6827, 4
        %v6829 = vmax.f32 %v6827, %v6828
        %v6830 = vrot.slane %v6829, 2
        %v6831 = vmax.f32 %v6829, %v6830
        %v6832 = vrot.slane %v6831, 1
        %v6833 = vmax.f32 %v6831, %v6832
        %v6834 = vsel %vm6091, %v5875, -inf
        %v6835 = vrot.slane %v6834, 4
        %v6836 = vmax.f32 %v6834, %v6835
        %v6837 = vrot.slane %v6836, 2
        %v6838 = vmax.f32 %v6836, %v6837
        %v6839 = vrot.slane %v6838, 1
        %v6840 = vmax.f32 %v6838, %v6839
        %v6841 = vsel %vm6091, %v5877, -inf
        %v6842 = vrot.slane %v6841, 4
        %v6843 = vmax.f32 %v6841, %v6842
        %v6844 = vrot.slane %v6843, 2
        %v6845 = vmax.f32 %v6843, %v6844
        %v6846 = vrot.slane %v6845, 1
        %v6847 = vmax.f32 %v6845, %v6846
        %v6848 = vsel %vm6091, %v5885, -inf
        %v6849 = vrot.slane %v6848, 4
        %v6850 = vmax.f32 %v6848, %v6849
        %v6851 = vrot.slane %v6850, 2
        %v6852 = vmax.f32 %v6850, %v6851
        %v6853 = vrot.slane %v6852, 1
        %v6854 = vmax.f32 %v6852, %v6853
        %v6855 = vsel %vm6091, %v5893, -inf
        %v6856 = vrot.slane %v6855, 4
        %v6857 = vmax.f32 %v6855, %v6856
        %v6858 = vrot.slane %v6857, 2
        %v6859 = vmax.f32 %v6857, %v6858
        %v6860 = vrot.slane %v6859, 1
        %v6861 = vmax.f32 %v6859, %v6860
        %v6862 = vsel %vm6091, %v5892, -inf
        %v6863 = vrot.slane %v6862, 4
        %v6864 = vmax.f32 %v6862, %v6863
        %v6865 = vrot.slane %v6864, 2
        %v6866 = vmax.f32 %v6864, %v6865
        %v6867 = vrot.slane %v6866, 1
        %v6868 = vmax.f32 %v6866, %v6867
        %v6869 = vsel %vm6091, %v5894, -inf
        %v6870 = vrot.slane %v6869, 4
        %v6871 = vmax.f32 %v6869, %v6870
        %v6872 = vrot.slane %v6871, 2
        %v6873 = vmax.f32 %v6871, %v6872
        %v6874 = vrot.slane %v6873, 1
        %v6875 = vmax.f32 %v6873, %v6874
        %v6876 = vsel %vm6091, %v5902, -inf
        %v6877 = vrot.slane %v6876, 4
        %v6878 = vmax.f32 %v6876, %v6877
        %v6879 = vrot.slane %v6878, 2
        %v6880 = vmax.f32 %v6878, %v6879
        %v6881 = vrot.slane %v6880, 1
        %v6882 = vmax.f32 %v6880, %v6881
        %v6883 = vsel %vm6091, %v5910, -inf
        %v6884 = vrot.slane %v6883, 4
        %v6885 = vmax.f32 %v6883, %v6884
        %v6886 = vrot.slane %v6885, 2
        %v6887 = vmax.f32 %v6885, %v6886
        %v6888 = vrot.slane %v6887, 1
        %v6889 = vmax.f32 %v6887, %v6888
        %v6890 = vsel %vm6091, %v5909, -inf
        %v6891 = vrot.slane %v6890, 4
        %v6892 = vmax.f32 %v6890, %v6891
        %v6893 = vrot.slane %v6892, 2
        %v6894 = vmax.f32 %v6892, %v6893
        %v6895 = vrot.slane %v6894, 1
        %v6896 = vmax.f32 %v6894, %v6895
        %v6897 = vsel %vm6091, %v5911, -inf
        %v6898 = vrot.slane %v6897, 4
        %v6899 = vmax.f32 %v6897, %v6898
        %v6900 = vrot.slane %v6899, 2
        %v6901 = vmax.f32 %v6899, %v6900
        %v6902 = vrot.slane %v6901, 1
        %v6903 = vmax.f32 %v6901, %v6902
        %v6904 = vsel %vm6091, %v5919, -inf
        %v6905 = vrot.slane %v6904, 4
        %v6906 = vmax.f32 %v6904, %v6905
        %v6907 = vrot.slane %v6906, 2
        %v6908 = vmax.f32 %v6906, %v6907
        %v6909 = vrot.slane %v6908, 1
        %v6910 = vmax.f32 %v6908, %v6909
        %v6911 = vsel %vm6091, %v5927, -inf
        %v6912 = vrot.slane %v6911, 4
        %v6913 = vmax.f32 %v6911, %v6912
        %v6914 = vrot.slane %v6913, 2
        %v6915 = vmax.f32 %v6913, %v6914
        %v6916 = vrot.slane %v6915, 1
        %v6917 = vmax.f32 %v6915, %v6916
        %v6918 = vsel %vm6091, %v5926, -inf
        %v6919 = vrot.slane %v6918, 4
        %v6920 = vmax.f32 %v6918, %v6919
        %v6921 = vrot.slane %v6920, 2
        %v6922 = vmax.f32 %v6920, %v6921
        %v6923 = vrot.slane %v6922, 1
        %v6924 = vmax.f32 %v6922, %v6923
        %v6925 = vsel %vm6091, %v5928, -inf
        %v6926 = vrot.slane %v6925, 4
        %v6927 = vmax.f32 %v6925, %v6926
        %v6928 = vrot.slane %v6927, 2
        %v6929 = vmax.f32 %v6927, %v6928
        %v6930 = vrot.slane %v6929, 1
        %v6931 = vmax.f32 %v6929, %v6930
        %v6932 = vsel %vm6091, %v5936, -inf
        %v6933 = vrot.slane %v6932, 4
        %v6934 = vmax.f32 %v6932, %v6933
        %v6935 = vrot.slane %v6934, 2
        %v6936 = vmax.f32 %v6934, %v6935
        %v6937 = vrot.slane %v6936, 1
        %v6938 = vmax.f32 %v6936, %v6937
        %v6939 = vsel %vm6091, %v5944, -inf
        %v6940 = vrot.slane %v6939, 4
        %v6941 = vmax.f32 %v6939, %v6940
        %v6942 = vrot.slane %v6941, 2
        %v6943 = vmax.f32 %v6941, %v6942
        %v6944 = vrot.slane %v6943, 1
        %v6945 = vmax.f32 %v6943, %v6944
        %v6946 = vsel %vm6091, %v5943, -inf
        %v6947 = vrot.slane %v6946, 4
        %v6948 = vmax.f32 %v6946, %v6947
        %v6949 = vrot.slane %v6948, 2
        %v6950 = vmax.f32 %v6948, %v6949
        %v6951 = vrot.slane %v6950, 1
        %v6952 = vmax.f32 %v6950, %v6951
        %v6953 = vsel %vm6091, %v5945, -inf
        %v6954 = vrot.slane %v6953, 4
        %v6955 = vmax.f32 %v6953, %v6954
        %v6956 = vrot.slane %v6955, 2
        %v6957 = vmax.f32 %v6955, %v6956
        %v6958 = vrot.slane %v6957, 1
        %v6959 = vmax.f32 %v6957, %v6958
        %v6960 = vsel %vm6091, %v5953, -inf
        %v6961 = vrot.slane %v6960, 4
        %v6962 = vmax.f32 %v6960, %v6961
        %v6963 = vrot.slane %v6962, 2
        %v6964 = vmax.f32 %v6962, %v6963
        %v6965 = vrot.slane %v6964, 1
        %v6966 = vmax.f32 %v6964, %v6965
        %v6967 = vsel %vm6091, %v5961, -inf
        %v6968 = vrot.slane %v6967, 4
        %v6969 = vmax.f32 %v6967, %v6968
        %v6970 = vrot.slane %v6969, 2
        %v6971 = vmax.f32 %v6969, %v6970
        %v6972 = vrot.slane %v6971, 1
        %v6973 = vmax.f32 %v6971, %v6972
        %v6974 = vsel %vm6091, %v5960, -inf
        %v6975 = vrot.slane %v6974, 4
        %v6976 = vmax.f32 %v6974, %v6975
        %v6977 = vrot.slane %v6976, 2
        %v6978 = vmax.f32 %v6976, %v6977
        %v6979 = vrot.slane %v6978, 1
        %v6980 = vmax.f32 %v6978, %v6979
        %v6981 = vsel %vm6091, %v5962, -inf
        %v6982 = vrot.slane %v6981, 4
        %v6983 = vmax.f32 %v6981, %v6982
        %v6984 = vrot.slane %v6983, 2
        %v6985 = vmax.f32 %v6983, %v6984
        %v6986 = vrot.slane %v6985, 1
        %v6987 = vmax.f32 %v6985, %v6986
        %v6988 = vld [vmem:[%s9] sm:$0xff]
        %v6989 = vld [vmem:[%s9 + $0x8] sm:$0xff]
        %v6990 = vld [vmem:[%s9 + $0x10] sm:$0xff]
        %v6991 = vld [vmem:[%s9 + $0x18] sm:$0xff]
        %v6992 = vld [vmem:[%s9 + $0x20] sm:$0xff]
        %v6993 = vld [vmem:[%s9 + $0x28] sm:$0xff]
        %v6994 = vld [vmem:[%s9 + $0x30] sm:$0xff]
        %v6995 = vld [vmem:[%s9 + $0x38] sm:$0xff]
        %v6996 = vld [vmem:[%s9 + $0x40] sm:$0xff]
        %v6997 = vld [vmem:[%s9 + $0x48] sm:$0xff]
        %v6998 = vld [vmem:[%s9 + $0x50] sm:$0xff]
        %v6999 = vld [vmem:[%s9 + $0x58] sm:$0xff]
        %v7000 = vld [vmem:[%s9 + $0x60] sm:$0xff]
        %v7001 = vld [vmem:[%s9 + $0x68] sm:$0xff]
        %v7002 = vld [vmem:[%s9 + $0x70] sm:$0xff]
        %v7003 = vld [vmem:[%s9 + $0x78] sm:$0xff]
        %v7004 = vld [vmem:[%s9 + $0x80] sm:$0xff]
        %v7005 = vld [vmem:[%s9 + $0x88] sm:$0xff]
        %v7006 = vld [vmem:[%s9 + $0x90] sm:$0xff]
        %v7007 = vld [vmem:[%s9 + $0x98] sm:$0xff]
        %v7008 = vld [vmem:[%s9 + $0xa0] sm:$0xff]
        %v7009 = vld [vmem:[%s9 + $0xa8] sm:$0xff]
        %v7010 = vld [vmem:[%s9 + $0xb0] sm:$0xff]
        %v7011 = vld [vmem:[%s9 + $0xb8] sm:$0xff]
        %v7012 = vld [vmem:[%s9 + $0xc0] sm:$0xff]
        %v7013 = vld [vmem:[%s9 + $0xc8] sm:$0xff]
        %v7014 = vld [vmem:[%s9 + $0xd0] sm:$0xff]
        %v7015 = vld [vmem:[%s9 + $0xd8] sm:$0xff]
        %v7016 = vld [vmem:[%s9 + $0xe0] sm:$0xff]
        %v7017 = vld [vmem:[%s9 + $0xe8] sm:$0xff]
        %v7018 = vld [vmem:[%s9 + $0xf0] sm:$0xff]
        %v7019 = vld [vmem:[%s9 + $0xf8] sm:$0xff]
        %v7020 = vld [vmem:[%s9 + $0x100] sm:$0xff]
        %v7021 = vld [vmem:[%s9 + $0x108] sm:$0xff]
        %v7022 = vld [vmem:[%s9 + $0x110] sm:$0xff]
        %v7023 = vld [vmem:[%s9 + $0x118] sm:$0xff]
        %v7024 = vld [vmem:[%s9 + $0x120] sm:$0xff]
        %v7025 = vld [vmem:[%s9 + $0x128] sm:$0xff]
        %v7026 = vld [vmem:[%s9 + $0x130] sm:$0xff]
        %v7027 = vld [vmem:[%s9 + $0x138] sm:$0xff]
        %v7028 = vld [vmem:[%s9 + $0x140] sm:$0xff]
        %v7029 = vld [vmem:[%s9 + $0x148] sm:$0xff]
        %v7030 = vld [vmem:[%s9 + $0x150] sm:$0xff]
        %v7031 = vld [vmem:[%s9 + $0x158] sm:$0xff]
        %v7032 = vld [vmem:[%s9 + $0x160] sm:$0xff]
        %v7033 = vld [vmem:[%s9 + $0x168] sm:$0xff]
        %v7034 = vld [vmem:[%s9 + $0x170] sm:$0xff]
        %v7035 = vld [vmem:[%s9 + $0x178] sm:$0xff]
        %v7036 = vld [vmem:[%s9 + $0x180] sm:$0xff]
        %v7037 = vld [vmem:[%s9 + $0x188] sm:$0xff]
        %v7038 = vld [vmem:[%s9 + $0x190] sm:$0xff]
        %v7039 = vld [vmem:[%s9 + $0x198] sm:$0xff]
        %v7040 = vld [vmem:[%s9 + $0x1a0] sm:$0xff]
        %v7041 = vld [vmem:[%s9 + $0x1a8] sm:$0xff]
        %v7042 = vld [vmem:[%s9 + $0x1b0] sm:$0xff]
        %v7043 = vld [vmem:[%s9 + $0x1b8] sm:$0xff]
        %v7044 = vld [vmem:[%s9 + $0x1c0] sm:$0xff]
        %v7045 = vld [vmem:[%s9 + $0x1c8] sm:$0xff]
        %v7046 = vld [vmem:[%s9 + $0x1d0] sm:$0xff]
        %v7047 = vld [vmem:[%s9 + $0x1d8] sm:$0xff]
        %v7048 = vld [vmem:[%s9 + $0x1e0] sm:$0xff]
        %v7049 = vld [vmem:[%s9 + $0x1e8] sm:$0xff]
        %v7050 = vld [vmem:[%s9 + $0x1f0] sm:$0xff]
        %v7051 = vld [vmem:[%s9 + $0x1f8] sm:$0xff]
        %v7052 = vld [vmem:[%s9 + $0x200] sm:$0xff]
        %v7053 = vld [vmem:[%s9 + $0x208] sm:$0xff]
        %v7054 = vld [vmem:[%s9 + $0x210] sm:$0xff]
        %v7055 = vld [vmem:[%s9 + $0x218] sm:$0xff]
        %v7056 = vld [vmem:[%s9 + $0x220] sm:$0xff]
        %v7057 = vld [vmem:[%s9 + $0x228] sm:$0xff]
        %v7058 = vld [vmem:[%s9 + $0x230] sm:$0xff]
        %v7059 = vld [vmem:[%s9 + $0x238] sm:$0xff]
        %v7060 = vld [vmem:[%s9 + $0x240] sm:$0xff]
        %v7061 = vld [vmem:[%s9 + $0x248] sm:$0xff]
        %v7062 = vld [vmem:[%s9 + $0x250] sm:$0xff]
        %v7063 = vld [vmem:[%s9 + $0x258] sm:$0xff]
        %v7064 = vld [vmem:[%s9 + $0x260] sm:$0xff]
        %v7065 = vld [vmem:[%s9 + $0x268] sm:$0xff]
        %v7066 = vld [vmem:[%s9 + $0x270] sm:$0xff]
        %v7067 = vld [vmem:[%s9 + $0x278] sm:$0xff]
        %v7068 = vld [vmem:[%s9 + $0x280] sm:$0xff]
        %v7069 = vld [vmem:[%s9 + $0x288] sm:$0xff]
        %v7070 = vld [vmem:[%s9 + $0x290] sm:$0xff]
        %v7071 = vld [vmem:[%s9 + $0x298] sm:$0xff]
        %v7072 = vld [vmem:[%s9 + $0x2a0] sm:$0xff]
        %v7073 = vld [vmem:[%s9 + $0x2a8] sm:$0xff]
        %v7074 = vld [vmem:[%s9 + $0x2b0] sm:$0xff]
        %v7075 = vld [vmem:[%s9 + $0x2b8] sm:$0xff]
        %v7076 = vld [vmem:[%s9 + $0x2c0] sm:$0xff]
        %v7077 = vld [vmem:[%s9 + $0x2c8] sm:$0xff]
        %v7078 = vld [vmem:[%s9 + $0x2d0] sm:$0xff]
        %v7079 = vld [vmem:[%s9 + $0x2d8] sm:$0xff]
        %v7080 = vld [vmem:[%s9 + $0x2e0] sm:$0xff]
        %v7081 = vld [vmem:[%s9 + $0x2e8] sm:$0xff]
        %v7082 = vld [vmem:[%s9 + $0x2f0] sm:$0xff]
        %v7083 = vld [vmem:[%s9 + $0x2f8] sm:$0xff]
        %v7084 = vld [vmem:[%s9 + $0x300] sm:$0xff]
        %v7085 = vld [vmem:[%s9 + $0x308] sm:$0xff]
        %v7086 = vld [vmem:[%s9 + $0x310] sm:$0xff]
        %v7087 = vld [vmem:[%s9 + $0x318] sm:$0xff]
        %v7088 = vld [vmem:[%s9 + $0x320] sm:$0xff]
        %v7089 = vld [vmem:[%s9 + $0x328] sm:$0xff]
        %v7090 = vld [vmem:[%s9 + $0x330] sm:$0xff]
        %v7091 = vld [vmem:[%s9 + $0x338] sm:$0xff]
        %v7092 = vld [vmem:[%s9 + $0x340] sm:$0xff]
        %v7093 = vld [vmem:[%s9 + $0x348] sm:$0xff]
        %v7094 = vld [vmem:[%s9 + $0x350] sm:$0xff]
        %v7095 = vld [vmem:[%s9 + $0x358] sm:$0xff]
        %v7096 = vld [vmem:[%s9 + $0x360] sm:$0xff]
        %v7097 = vld [vmem:[%s9 + $0x368] sm:$0xff]
        %v7098 = vld [vmem:[%s9 + $0x370] sm:$0xff]
        %v7099 = vld [vmem:[%s9 + $0x378] sm:$0xff]
        %v7100 = vld [vmem:[%s9 + $0x380] sm:$0xff]
        %v7101 = vld [vmem:[%s9 + $0x388] sm:$0xff]
        %v7102 = vld [vmem:[%s9 + $0x390] sm:$0xff]
        %v7103 = vld [vmem:[%s9 + $0x398] sm:$0xff]
        %v7104 = vld [vmem:[%s9 + $0x3a0] sm:$0xff]
        %v7105 = vld [vmem:[%s9 + $0x3a8] sm:$0xff]
        %v7106 = vld [vmem:[%s9 + $0x3b0] sm:$0xff]
        %v7107 = vld [vmem:[%s9 + $0x3b8] sm:$0xff]
        %v7108 = vld [vmem:[%s9 + $0x3c0] sm:$0xff]
        %v7109 = vld [vmem:[%s9 + $0x3c8] sm:$0xff]
        %v7110 = vld [vmem:[%s9 + $0x3d0] sm:$0xff]
        %v7111 = vld [vmem:[%s9 + $0x3d8] sm:$0xff]
        %v7112 = vld [vmem:[%s9 + $0x3e0] sm:$0xff]
        %v7113 = vld [vmem:[%s9 + $0x3e8] sm:$0xff]
        %v7114 = vld [vmem:[%s9 + $0x3f0] sm:$0xff]
        %v7115 = vld [vmem:[%s9 + $0x3f8] sm:$0xff]
        %vm7244 = vcmask 1041409
        %v7245 = vsel %vm7244, %v6126, %v6098
        %vm7246 = vcmask 1042434
        %v7247 = vsel %vm7246, %v6154, %v7245
        %vm7248 = vcmask 1043459
        %v7249 = vsel %vm7248, %v6182, %v7247
        %vm7250 = vcmask 1044484
        %v7251 = vsel %vm7250, %v6210, %v7249
        %vm7252 = vcmask 1045509
        %v7253 = vsel %vm7252, %v6238, %v7251
        %vm7254 = vcmask 1046534
        %v7255 = vsel %vm7254, %v6266, %v7253
        %vm7256 = vcmask 1047559
        %v7257 = vsel %vm7256, %v6294, %v7255
        %v7258 = vsel %vm7244, %v6133, %v6105
        %v7259 = vsel %vm7246, %v6161, %v7258
        %v7260 = vsel %vm7248, %v6189, %v7259
        %v7261 = vsel %vm7250, %v6217, %v7260
        %v7262 = vsel %vm7252, %v6245, %v7261
        %v7263 = vsel %vm7254, %v6273, %v7262
        %v7264 = vsel %vm7256, %v6301, %v7263
        %v7265 = vsel %vm7244, %v6140, %v6112
        %v7266 = vsel %vm7246, %v6168, %v7265
        %v7267 = vsel %vm7248, %v6196, %v7266
        %v7268 = vsel %vm7250, %v6224, %v7267
        %v7269 = vsel %vm7252, %v6252, %v7268
        %v7270 = vsel %vm7254, %v6280, %v7269
        %v7271 = vsel %vm7256, %v6308, %v7270
        %v7272 = vsel %vm7244, %v6147, %v6119
        %v7273 = vsel %vm7246, %v6175, %v7272
        %v7274 = vsel %vm7248, %v6203, %v7273
        %v7275 = vsel %vm7250, %v6231, %v7274
        %v7276 = vsel %vm7252, %v6259, %v7275
        %v7277 = vsel %vm7254, %v6287, %v7276
        %v7278 = vsel %vm7256, %v6315, %v7277
        %v7279 = vsel %vm7244, %v6350, %v6322
        %v7280 = vsel %vm7246, %v6378, %v7279
        %v7281 = vsel %vm7248, %v6406, %v7280
        %v7282 = vsel %vm7250, %v6434, %v7281
        %v7283 = vsel %vm7252, %v6462, %v7282
        %v7284 = vsel %vm7254, %v6490, %v7283
        %v7285 = vsel %vm7256, %v6518, %v7284
        %v7286 = vsel %vm7244, %v6357, %v6329
        %v7287 = vsel %vm7246, %v6385, %v7286
        %v7288 = vsel %vm7248, %v6413, %v7287
        %v7289 = vsel %vm7250, %v6441, %v7288
        %v7290 = vsel %vm7252, %v6469, %v7289
        %v7291 = vsel %vm7254, %v6497, %v7290
        %v7292 = vsel %vm7256, %v6525, %v7291
        %v7293 = vsel %vm7244, %v6364, %v6336
        %v7294 = vsel %vm7246, %v6392, %v7293
        %v7295 = vsel %vm7248, %v6420, %v7294
        %v7296 = vsel %vm7250, %v6448, %v7295
        %v7297 = vsel %vm7252, %v6476, %v7296
        %v7298 = vsel %vm7254, %v6504, %v7297
        %v7299 = vsel %vm7256, %v6532, %v7298
        %v7300 = vsel %vm7244, %v6371, %v6343
        %v7301 = vsel %vm7246, %v6399, %v7300
        %v7302 = vsel %vm7248, %v6427, %v7301
        %v7303 = vsel %vm7250, %v6455, %v7302
        %v7304 = vsel %vm7252, %v6483, %v7303
        %v7305 = vsel %vm7254, %v6511, %v7304
        %v7306 = vsel %vm7256, %v6539, %v7305
        %v7307 = vsel %vm7244, %v6574, %v6546
        %v7308 = vsel %vm7246, %v6602, %v7307
        %v7309 = vsel %vm7248, %v6630, %v7308
        %v7310 = vsel %vm7250, %v6658, %v7309
        %v7311 = vsel %vm7252, %v6686, %v7310
        %v7312 = vsel %vm7254, %v6714, %v7311
        %v7313 = vsel %vm7256, %v6742, %v7312
        %v7314 = vsel %vm7244, %v6581, %v6553
        %v7315 = vsel %vm7246, %v6609, %v7314
        %v7316 = vsel %vm7248, %v6637, %v7315
        %v7317 = vsel %vm7250, %v6665, %v7316
        %v7318 = vsel %vm7252, %v6693, %v7317
        %v7319 = vsel %vm7254, %v6721, %v7318
        %v7320 = vsel %vm7256, %v6749, %v7319
        %v7321 = vsel %vm7244, %v6588, %v6560
        %v7322 = vsel %vm7246, %v6616, %v7321
        %v7323 = vsel %vm7248, %v6644, %v7322
        %v7324 = vsel %vm7250, %v6672, %v7323
        %v7325 = vsel %vm7252, %v6700, %v7324
        %v7326 = vsel %vm7254, %v6728, %v7325
        %v7327 = vsel %vm7256, %v6756, %v7326
        %v7328 = vsel %vm7244, %v6595, %v6567
        %v7329 = vsel %vm7246, %v6623, %v7328
        %v7330 = vsel %vm7248, %v6651, %v7329
        %v7331 = vsel %vm7250, %v6679, %v7330
        %v7332 = vsel %vm7252, %v6707, %v7331
        %v7333 = vsel %vm7254, %v6735, %v7332
        %v7334 = vsel %vm7256, %v6763, %v7333
        %v7335 = vsel %vm7244, %v6798, %v6770
        %v7336 = vsel %vm7246, %v6826, %v7335
        %v7337 = vsel %vm7248, %v6854, %v7336
        %v7338 = vsel %vm7250, %v6882, %v7337
        %v7339 = vsel %vm7252, %v6910, %v7338
        %v7340 = vsel %vm7254, %v6938, %v7339
        %v7341 = vsel %vm7256, %v6966, %v7340
        %v7342 = vsel %vm7244, %v6805, %v6777
        %v7343 = vsel %vm7246, %v6833, %v7342
        %v7344 = vsel %vm7248, %v6861, %v7343
        %v7345 = vsel %vm7250, %v6889, %v7344
        %v7346 = vsel %vm7252, %v6917, %v7345
        %v7347 = vsel %vm7254, %v6945, %v7346
        %v7348 = vsel %vm7256, %v6973, %v7347
        %v7349 = vsel %vm7244, %v6812, %v6784
        %v7350 = vsel %vm7246, %v6840, %v7349
        %v7351 = vsel %vm7248, %v6868, %v7350
        %v7352 = vsel %vm7250, %v6896, %v7351
        %v7353 = vsel %vm7252, %v6924, %v7352
        %v7354 = vsel %vm7254, %v6952, %v7353
        %v7355 = vsel %vm7256, %v6980, %v7354
        %v7356 = vsel %vm7244, %v6819, %v6791
        %v7357 = vsel %vm7246, %v6847, %v7356
        %v7358 = vsel %vm7248, %v6875, %v7357
        %v7359 = vsel %vm7250, %v6903, %v7358
        %v7360 = vsel %vm7252, %v6931, %v7359
        %v7361 = vsel %vm7254, %v6959, %v7360
        %v7362 = vsel %vm7256, %v6987, %v7361
        %7379 = vmatprep.subr.mxu0 %v6989
        %7380 = vmatpush1.msra.mxu0 %v6988
        %7381 = vmatprep.subr.mxu0 %v6991
        %7382 = vmatpush1.msra.mxu0 %v6990
        %7383 = vmatprep.subr.mxu0 %v6993
        %7384 = vmatpush1.msra.mxu0 %v6992
        %7385 = vmatprep.subr.mxu0 %v6995
        %7386 = vmatpush1.msra.mxu0 %v6994
        %7387 = vmatprep.subr.mxu0 %v6997
        %7388 = vmatpush1.msra.mxu0 %v6996
        %7389 = vmatprep.subr.mxu0 %v6999
        %7390 = vmatpush1.msra.mxu0 %v6998
        %7391 = vmatprep.subr.mxu0 %v7001
        %7392 = vmatpush1.msra.mxu0 %v7000
        %7393 = vmatprep.subr.mxu0 %v7003
        %7394 = vmatpush1.msra.mxu0 %v7002
        %7395 = vmatprep.subr.mxu0 %v7005
        %7396 = vmatpush1.msra.mxu0 %v7004
        %7397 = vmatprep.subr.mxu0 %v7007
        %7398 = vmatpush1.msra.mxu0 %v7006
        %7399 = vmatprep.subr.mxu0 %v7009
        %7400 = vmatpush1.msra.mxu0 %v7008
        %7401 = vmatprep.subr.mxu0 %v7011
        %7402 = vmatpush1.msra.mxu0 %v7010
        %7403 = vmatprep.subr.mxu0 %v7013
        %7404 = vmatpush1.msra.mxu0 %v7012
        %7405 = vmatprep.subr.mxu0 %v7015
        %7406 = vmatpush1.msra.mxu0 %v7014
        %7407 = vmatprep.subr.mxu0 %v7017
        %7408 = vmatpush1.msra.mxu0 %v7016
        %7409 = vmatprep.subr.mxu0 %v7019
        %7410 = vmatpush1.msra.mxu0 %v7018
        %7411 = vmatprep.subr.mxu0 %v7021
        %7412 = vmatpush1.msra.mxu0 %v7020
        %7413 = vmatprep.subr.mxu0 %v7023
        %7414 = vmatpush1.msra.mxu0 %v7022
        %7415 = vmatprep.subr.mxu0 %v7025
        %7416 = vmatpush1.msra.mxu0 %v7024
        %7417 = vmatprep.subr.mxu0 %v7027
        %7418 = vmatpush1.msra.mxu0 %v7026
        %7419 = vmatprep.subr.mxu0 %v7029
        %7420 = vmatpush1.msra.mxu0 %v7028
        %7421 = vmatprep.subr.mxu0 %v7031
        %7422 = vmatpush1.msra.mxu0 %v7030
        %7423 = vmatprep.subr.mxu0 %v7033
        %7424 = vmatpush1.msra.mxu0 %v7032
        %7425 = vmatprep.subr.mxu0 %v7035
        %7426 = vmatpush1.msra.mxu0 %v7034
        %7427 = vmatprep.subr.mxu0 %v7037
        %7428 = vmatpush1.msra.mxu0 %v7036
        %7429 = vmatprep.subr.mxu0 %v7039
        %7430 = vmatpush1.msra.mxu0 %v7038
        %7431 = vmatprep.subr.mxu0 %v7041
        %7432 = vmatpush1.msra.mxu0 %v7040
        %7433 = vmatprep.subr.mxu0 %v7043
        %7434 = vmatpush1.msra.mxu0 %v7042
        %7435 = vmatprep.subr.mxu0 %v7045
        %7436 = vmatpush1.msra.mxu0 %v7044
        %7437 = vmatprep.subr.mxu0 %v7047
        %7438 = vmatpush1.msra.mxu0 %v7046
        %7439 = vmatprep.subr.mxu0 %v7049
        %7440 = vmatpush1.msra.mxu0 %v7048
        %7441 = vmatprep.subr.mxu0 %v7051
        %7442 = vmatpush1.msra.mxu0 %v7050
        %7443 = vmatprep.mubr.f32.mxu0 %v7264
        %7444 = vmatmul.mubr.f32.gmra.mrb[0].mxu0 %v7257
        %v7445 = vpop.f32.mrb[0].mxu0
        %v7446 = vadd.f32 0.0, %v7445
        %v7447 = vpop.f32.mrb[0].mxu0
        %v7448 = vadd.f32 0.0, %v7447
        %7449 = vmatprep.mubr.f32.mxu0 %v7292
        %7450 = vmatmul.mubr.f32.gmra.mrb[0].mxu0 %v7285
        %v7451 = vpop.f32.mrb[0].mxu0
        %v7452 = vadd.f32 0.0, %v7451
        %v7453 = vpop.f32.mrb[0].mxu0
        %v7454 = vadd.f32 0.0, %v7453
        %7455 = vmatprep.mubr.f32.mxu0 %v7320
        %7456 = vmatmul.mubr.f32.gmra.mrb[0].mxu0 %v7313
        %v7457 = vpop.f32.mrb[0].mxu0
        %v7458 = vadd.f32 0.0, %v7457
        %v7459 = vpop.f32.mrb[0].mxu0
        %v7460 = vadd.f32 0.0, %v7459
        %7461 = vmatprep.mubr.f32.mxu0 %v7348
        %7462 = vmatmul.mubr.f32.gmra.mrb[0].mxu0 %v7341
        %v7463 = vpop.f32.mrb[0].mxu0
        %v7464 = vadd.f32 0.0, %v7463
        %v7465 = vpop.f32.mrb[0].mxu0
        %v7466 = vadd.f32 0.0, %v7465
        %7467 = vdwg.mxu0
        %7468 = vmatprep.subr.mxu0 %v7053
        %7469 = vmatpush1.msra.mxu0 %v7052
        %7470 = vmatprep.subr.mxu0 %v7055
        %7471 = vmatpush1.msra.mxu0 %v7054
        %7472 = vmatprep.subr.mxu0 %v7057
        %7473 = vmatpush1.msra.mxu0 %v7056
        %7474 = vmatprep.subr.mxu0 %v7059
        %7475 = vmatpush1.msra.mxu0 %v7058
        %7476 = vmatprep.subr.mxu0 %v7061
        %7477 = vmatpush1.msra.mxu0 %v7060
        %7478 = vmatprep.subr.mxu0 %v7063
        %7479 = vmatpush1.msra.mxu0 %v7062
        %7480 = vmatprep.subr.mxu0 %v7065
        %7481 = vmatpush1.msra.mxu0 %v7064
        %7482 = vmatprep.subr.mxu0 %v7067
        %7483 = vmatpush1.msra.mxu0 %v7066
        %7484 = vmatprep.subr.mxu0 %v7069
        %7485 = vmatpush1.msra.mxu0 %v7068
        %7486 = vmatprep.subr.mxu0 %v7071
        %7487 = vmatpush1.msra.mxu0 %v7070
        %7488 = vmatprep.subr.mxu0 %v7073
        %7489 = vmatpush1.msra.mxu0 %v7072
        %7490 = vmatprep.subr.mxu0 %v7075
        %7491 = vmatpush1.msra.mxu0 %v7074
        %7492 = vmatprep.subr.mxu0 %v7077
        %7493 = vmatpush1.msra.mxu0 %v7076
        %7494 = vmatprep.subr.mxu0 %v7079
        %7495 = vmatpush1.msra.mxu0 %v7078
        %7496 = vmatprep.subr.mxu0 %v7081
        %7497 = vmatpush1.msra.mxu0 %v7080
        %7498 = vmatprep.subr.mxu0 %v7083
        %7499 = vmatpush1.msra.mxu0 %v7082
        %7500 = vmatprep.subr.mxu0 %v7085
        %7501 = vmatpush1.msra.mxu0 %v7084
        %7502 = vmatprep.subr.mxu0 %v7087
        %7503 = vmatpush1.msra.mxu0 %v7086
        %7504 = vmatprep.subr.mxu0 %v7089
        %7505 = vmatpush1.msra.mxu0 %v7088
        %7506 = vmatprep.subr.mxu0 %v7091
        %7507 = vmatpush1.msra.mxu0 %v7090
        %7508 = vmatprep.subr.mxu0 %v7093
        %7509 = vmatpush1.msra.mxu0 %v7092
        %7510 = vmatprep.subr.mxu0 %v7095
        %7511 = vmatpush1.msra.mxu0 %v7094
        %7512 = vmatprep.subr.mxu0 %v7097
        %7513 = vmatpush1.msra.mxu0 %v7096
        %7514 = vmatprep.subr.mxu0 %v7099
        %7515 = vmatpush1.msra.mxu0 %v7098
        %7516 = vmatprep.subr.mxu0 %v7101
        %7517 = vmatpush1.msra.mxu0 %v7100
        %7518 = vmatprep.subr.mxu0 %v7103
        %7519 = vmatpush1.msra.mxu0 %v7102
        %7520 = vmatprep.subr.mxu0 %v7105
        %7521 = vmatpush1.msra.mxu0 %v7104
        %7522 = vmatprep.subr.mxu0 %v7107
        %7523 = vmatpush1.msra.mxu0 %v7106
        %7524 = vmatprep.subr.mxu0 %v7109
        %7525 = vmatpush1.msra.mxu0 %v7108
        %7526 = vmatprep.subr.mxu0 %v7111
        %7527 = vmatpush1.msra.mxu0 %v7110
        %7528 = vmatprep.subr.mxu0 %v7113
        %7529 = vmatpush1.msra.mxu0 %v7112
        %7530 = vmatprep.subr.mxu0 %v7115
        %7531 = vmatpush1.msra.mxu0 %v7114
        %7532 = vmatprep.mubr.f32.mxu0 %v7278
        %7533 = vmatmul.mubr.f32.gmra.mrb[0].mxu0 %v7271
        %v7534 = vpop.f32.mrb[0].mxu0
        %v7535 = vadd.f32 %v7446, %v7534
        %v7536 = vpop.f32.mrb[0].mxu0
        %v7537 = vadd.f32 %v7448, %v7536
        %7538 = vmatprep.mubr.f32.mxu0 %v7306
        %7539 = vmatmul.mubr.f32.gmra.mrb[0].mxu0 %v7299
        %v7540 = vpop.f32.mrb[0].mxu0
        %v7541 = vadd.f32 %v7452, %v7540
        %v7542 = vpop.f32.mrb[0].mxu0
        %v7543 = vadd.f32 %v7454, %v7542
        %7544 = vmatprep.mubr.f32.mxu0 %v7334
        %7545 = vmatmul.mubr.f32.gmra.mrb[0].mxu0 %v7327
        %v7546 = vpop.f32.mrb[0].mxu0
        %v7547 = vadd.f32 %v7458, %v7546
        %v7548 = vpop.f32.mrb[0].mxu0
        %v7549 = vadd.f32 %v7460, %v7548
        %7550 = vmatprep.mubr.f32.mxu0 %v7362
        %7551 = vmatmul.mubr.f32.gmra.mrb[0].mxu0 %v7355
        %v7552 = vpop.f32.mrb[0].mxu0
        %v7553 = vadd.f32 %v7464, %v7552
        %v7554 = vpop.f32.mrb[0].mxu0
        %v7555 = vadd.f32 %v7466, %v7554
        %7556 = vdwg.mxu0
        %v7557 = vld [vmem:[%s10] sm:$0xff]
        %v7558 = vld [vmem:[%s10 + $0x8] sm:$0xff]
        %v7559 = vld [vmem:[%s10 + $0x10] sm:$0xff]
        %v7560 = vld [vmem:[%s10 + $0x18] sm:$0xff]
        %v7561 = vld [vmem:[%s10 + $0x20] sm:$0xff]
        %v7562 = vld [vmem:[%s10 + $0x28] sm:$0xff]
        %v7563 = vld [vmem:[%s10 + $0x30] sm:$0xff]
        %v7564 = vld [vmem:[%s10 + $0x38] sm:$0xff]
        %v7565 = vld [vmem:[%s10 + $0x40] sm:$0xff]
        %v7566 = vld [vmem:[%s10 + $0x48] sm:$0xff]
        %v7567 = vld [vmem:[%s10 + $0x50] sm:$0xff]
        %v7568 = vld [vmem:[%s10 + $0x58] sm:$0xff]
        %v7569 = vld [vmem:[%s10 + $0x60] sm:$0xff]
        %v7570 = vld [vmem:[%s10 + $0x68] sm:$0xff]
        %v7571 = vld [vmem:[%s10 + $0x70] sm:$0xff]
        %v7572 = vld [vmem:[%s10 + $0x78] sm:$0xff]
        %v7573 = vld [vmem:[%s10 + $0x80] sm:$0xff]
        %v7574 = vld [vmem:[%s10 + $0x88] sm:$0xff]
        %v7575 = vld [vmem:[%s10 + $0x90] sm:$0xff]
        %v7576 = vld [vmem:[%s10 + $0x98] sm:$0xff]
        %v7577 = vld [vmem:[%s10 + $0xa0] sm:$0xff]
        %v7578 = vld [vmem:[%s10 + $0xa8] sm:$0xff]
        %v7579 = vld [vmem:[%s10 + $0xb0] sm:$0xff]
        %v7580 = vld [vmem:[%s10 + $0xb8] sm:$0xff]
        %v7581 = vld [vmem:[%s10 + $0xc0] sm:$0xff]
        %v7582 = vld [vmem:[%s10 + $0xc8] sm:$0xff]
        %v7583 = vld [vmem:[%s10 + $0xd0] sm:$0xff]
        %v7584 = vld [vmem:[%s10 + $0xd8] sm:$0xff]
        %v7585 = vld [vmem:[%s10 + $0xe0] sm:$0xff]
        %v7586 = vld [vmem:[%s10 + $0xe8] sm:$0xff]
        %v7587 = vld [vmem:[%s10 + $0xf0] sm:$0xff]
        %v7588 = vld [vmem:[%s10 + $0xf8] sm:$0xff]
        %v7589 = vld [vmem:[%s10 + $0x100] sm:$0xff]
        %v7590 = vld [vmem:[%s10 + $0x108] sm:$0xff]
        %v7591 = vld [vmem:[%s10 + $0x110] sm:$0xff]
        %v7592 = vld [vmem:[%s10 + $0x118] sm:$0xff]
        %v7593 = vld [vmem:[%s10 + $0x120] sm:$0xff]
        %v7594 = vld [vmem:[%s10 + $0x128] sm:$0xff]
        %v7595 = vld [vmem:[%s10 + $0x130] sm:$0xff]
        %v7596 = vld [vmem:[%s10 + $0x138] sm:$0xff]
        %v7597 = vld [vmem:[%s10 + $0x140] sm:$0xff]
        %v7598 = vld [vmem:[%s10 + $0x148] sm:$0xff]
        %v7599 = vld [vmem:[%s10 + $0x150] sm:$0xff]
        %v7600 = vld [vmem:[%s10 + $0x158] sm:$0xff]
        %v7601 = vld [vmem:[%s10 + $0x160] sm:$0xff]
        %v7602 = vld [vmem:[%s10 + $0x168] sm:$0xff]
        %v7603 = vld [vmem:[%s10 + $0x170] sm:$0xff]
        %v7604 = vld [vmem:[%s10 + $0x178] sm:$0xff]
        %v7605 = vld [vmem:[%s10 + $0x180] sm:$0xff]
        %v7606 = vld [vmem:[%s10 + $0x188] sm:$0xff]
        %v7607 = vld [vmem:[%s10 + $0x190] sm:$0xff]
        %v7608 = vld [vmem:[%s10 + $0x198] sm:$0xff]
        %v7609 = vld [vmem:[%s10 + $0x1a0] sm:$0xff]
        %v7610 = vld [vmem:[%s10 + $0x1a8] sm:$0xff]
        %v7611 = vld [vmem:[%s10 + $0x1b0] sm:$0xff]
        %v7612 = vld [vmem:[%s10 + $0x1b8] sm:$0xff]
        %v7613 = vld [vmem:[%s10 + $0x1c0] sm:$0xff]
        %v7614 = vld [vmem:[%s10 + $0x1c8] sm:$0xff]
        %v7615 = vld [vmem:[%s10 + $0x1d0] sm:$0xff]
        %v7616 = vld [vmem:[%s10 + $0x1d8] sm:$0xff]
        %v7617 = vld [vmem:[%s10 + $0x1e0] sm:$0xff]
        %v7618 = vld [vmem:[%s10 + $0x1e8] sm:$0xff]
        %v7619 = vld [vmem:[%s10 + $0x1f0] sm:$0xff]
        %v7620 = vld [vmem:[%s10 + $0x1f8] sm:$0xff]
        %v7621 = vld [vmem:[%s10 + $0x200] sm:$0xff]
        %v7622 = vld [vmem:[%s10 + $0x208] sm:$0xff]
        %v7623 = vld [vmem:[%s10 + $0x210] sm:$0xff]
        %v7624 = vld [vmem:[%s10 + $0x218] sm:$0xff]
        %v7625 = vld [vmem:[%s10 + $0x220] sm:$0xff]
        %v7626 = vld [vmem:[%s10 + $0x228] sm:$0xff]
        %v7627 = vld [vmem:[%s10 + $0x230] sm:$0xff]
        %v7628 = vld [vmem:[%s10 + $0x238] sm:$0xff]
        %v7629 = vld [vmem:[%s10 + $0x240] sm:$0xff]
        %v7630 = vld [vmem:[%s10 + $0x248] sm:$0xff]
        %v7631 = vld [vmem:[%s10 + $0x250] sm:$0xff]
        %v7632 = vld [vmem:[%s10 + $0x258] sm:$0xff]
        %v7633 = vld [vmem:[%s10 + $0x260] sm:$0xff]
        %v7634 = vld [vmem:[%s10 + $0x268] sm:$0xff]
        %v7635 = vld [vmem:[%s10 + $0x270] sm:$0xff]
        %v7636 = vld [vmem:[%s10 + $0x278] sm:$0xff]
        %v7637 = vld [vmem:[%s10 + $0x280] sm:$0xff]
        %v7638 = vld [vmem:[%s10 + $0x288] sm:$0xff]
        %v7639 = vld [vmem:[%s10 + $0x290] sm:$0xff]
        %v7640 = vld [vmem:[%s10 + $0x298] sm:$0xff]
        %v7641 = vld [vmem:[%s10 + $0x2a0] sm:$0xff]
        %v7642 = vld [vmem:[%s10 + $0x2a8] sm:$0xff]
        %v7643 = vld [vmem:[%s10 + $0x2b0] sm:$0xff]
        %v7644 = vld [vmem:[%s10 + $0x2b8] sm:$0xff]
        %v7645 = vld [vmem:[%s10 + $0x2c0] sm:$0xff]
        %v7646 = vld [vmem:[%s10 + $0x2c8] sm:$0xff]
        %v7647 = vld [vmem:[%s10 + $0x2d0] sm:$0xff]
        %v7648 = vld [vmem:[%s10 + $0x2d8] sm:$0xff]
        %v7649 = vld [vmem:[%s10 + $0x2e0] sm:$0xff]
        %v7650 = vld [vmem:[%s10 + $0x2e8] sm:$0xff]
        %v7651 = vld [vmem:[%s10 + $0x2f0] sm:$0xff]
        %v7652 = vld [vmem:[%s10 + $0x2f8] sm:$0xff]
        %v7653 = vld [vmem:[%s10 + $0x300] sm:$0xff]
        %v7654 = vld [vmem:[%s10 + $0x308] sm:$0xff]
        %v7655 = vld [vmem:[%s10 + $0x310] sm:$0xff]
        %v7656 = vld [vmem:[%s10 + $0x318] sm:$0xff]
        %v7657 = vld [vmem:[%s10 + $0x320] sm:$0xff]
        %v7658 = vld [vmem:[%s10 + $0x328] sm:$0xff]
        %v7659 = vld [vmem:[%s10 + $0x330] sm:$0xff]
        %v7660 = vld [vmem:[%s10 + $0x338] sm:$0xff]
        %v7661 = vld [vmem:[%s10 + $0x340] sm:$0xff]
        %v7662 = vld [vmem:[%s10 + $0x348] sm:$0xff]
        %v7663 = vld [vmem:[%s10 + $0x350] sm:$0xff]
        %v7664 = vld [vmem:[%s10 + $0x358] sm:$0xff]
        %v7665 = vld [vmem:[%s10 + $0x360] sm:$0xff]
        %v7666 = vld [vmem:[%s10 + $0x368] sm:$0xff]
        %v7667 = vld [vmem:[%s10 + $0x370] sm:$0xff]
        %v7668 = vld [vmem:[%s10 + $0x378] sm:$0xff]
        %v7669 = vld [vmem:[%s10 + $0x380] sm:$0xff]
        %v7670 = vld [vmem:[%s10 + $0x388] sm:$0xff]
        %v7671 = vld [vmem:[%s10 + $0x390] sm:$0xff]
        %v7672 = vld [vmem:[%s10 + $0x398] sm:$0xff]
        %v7673 = vld [vmem:[%s10 + $0x3a0] sm:$0xff]
        %v7674 = vld [vmem:[%s10 + $0x3a8] sm:$0xff]
        %v7675 = vld [vmem:[%s10 + $0x3b0] sm:$0xff]
        %v7676 = vld [vmem:[%s10 + $0x3b8] sm:$0xff]
        %v7677 = vld [vmem:[%s10 + $0x3c0] sm:$0xff]
        %v7678 = vld [vmem:[%s10 + $0x3c8] sm:$0xff]
        %v7679 = vld [vmem:[%s10 + $0x3d0] sm:$0xff]
        %v7680 = vld [vmem:[%s10 + $0x3d8] sm:$0xff]
        %v7681 = vld [vmem:[%s10 + $0x3e0] sm:$0xff]
        %v7682 = vld [vmem:[%s10 + $0x3e8] sm:$0xff]
        %v7683 = vld [vmem:[%s10 + $0x3f0] sm:$0xff]
        %v7684 = vld [vmem:[%s10 + $0x3f8] sm:$0xff]
        %7685 = vmatprep.subr.mxu0 %v7558
        %7686 = vmatpush1.msra.mxu0 %v7557
        %7687 = vmatprep.subr.mxu0 %v7560
        %7688 = vmatpush1.msra.mxu0 %v7559
        %7689 = vmatprep.subr.mxu0 %v7562
        %7690 = vmatpush1.msra.mxu0 %v7561
        %7691 = vmatprep.subr.mxu0 %v7564
        %7692 = vmatpush1.msra.mxu0 %v7563
        %7693 = vmatprep.subr.mxu0 %v7566
        %7694 = vmatpush1.msra.mxu0 %v7565
        %7695 = vmatprep.subr.mxu0 %v7568
        %7696 = vmatpush1.msra.mxu0 %v7567
        %7697 = vmatprep.subr.mxu0 %v7570
        %7698 = vmatpush1.msra.mxu0 %v7569
        %7699 = vmatprep.subr.mxu0 %v7572
        %7700 = vmatpush1.msra.mxu0 %v7571
        %7701 = vmatprep.subr.mxu0 %v7574
        %7702 = vmatpush1.msra.mxu0 %v7573
        %7703 = vmatprep.subr.mxu0 %v7576
        %7704 = vmatpush1.msra.mxu0 %v7575
        %7705 = vmatprep.subr.mxu0 %v7578
        %7706 = vmatpush1.msra.mxu0 %v7577
        %7707 = vmatprep.subr.mxu0 %v7580
        %7708 = vmatpush1.msra.mxu0 %v7579
        %7709 = vmatprep.subr.mxu0 %v7582
        %7710 = vmatpush1.msra.mxu0 %v7581
        %7711 = vmatprep.subr.mxu0 %v7584
        %7712 = vmatpush1.msra.mxu0 %v7583
        %7713 = vmatprep.subr.mxu0 %v7586
        %7714 = vmatpush1.msra.mxu0 %v7585
        %7715 = vmatprep.subr.mxu0 %v7588
        %7716 = vmatpush1.msra.mxu0 %v7587
        %7717 = vmatprep.subr.mxu0 %v7590
        %7718 = vmatpush1.msra.mxu0 %v7589
        %7719 = vmatprep.subr.mxu0 %v7592
        %7720 = vmatpush1.msra.mxu0 %v7591
        %7721 = vmatprep.subr.mxu0 %v7594
        %7722 = vmatpush1.msra.mxu0 %v7593
        %7723 = vmatprep.subr.mxu0 %v7596
        %7724 = vmatpush1.msra.mxu0 %v7595
        %7725 = vmatprep.subr.mxu0 %v7598
        %7726 = vmatpush1.msra.mxu0 %v7597
        %7727 = vmatprep.subr.mxu0 %v7600
        %7728 = vmatpush1.msra.mxu0 %v7599
        %7729 = vmatprep.subr.mxu0 %v7602
        %7730 = vmatpush1.msra.mxu0 %v7601
        %7731 = vmatprep.subr.mxu0 %v7604
        %7732 = vmatpush1.msra.mxu0 %v7603
        %7733 = vmatprep.subr.mxu0 %v7606
        %7734 = vmatpush1.msra.mxu0 %v7605
        %7735 = vmatprep.subr.mxu0 %v7608
        %7736 = vmatpush1.msra.mxu0 %v7607
        %7737 = vmatprep.subr.mxu0 %v7610
        %7738 = vmatpush1.msra.mxu0 %v7609
        %7739 = vmatprep.subr.mxu0 %v7612
        %7740 = vmatpush1.msra.mxu0 %v7611
        %7741 = vmatprep.subr.mxu0 %v7614
        %7742 = vmatpush1.msra.mxu0 %v7613
        %7743 = vmatprep.subr.mxu0 %v7616
        %7744 = vmatpush1.msra.mxu0 %v7615
        %7745 = vmatprep.subr.mxu0 %v7618
        %7746 = vmatpush1.msra.mxu0 %v7617
        %7747 = vmatprep.subr.mxu0 %v7620
        %7748 = vmatpush1.msra.mxu0 %v7619
        %7749 = vmatprep.mubr.f32.mxu0 %v7264
        %7750 = vmatmul.mubr.f32.gmra.mrb[0].mxu0 %v7257
        %v7751 = vpop.f32.mrb[0].mxu0
        %v7752 = vadd.f32 0.0, %v7751
        %v7753 = vpop.f32.mrb[0].mxu0
        %v7754 = vadd.f32 0.0, %v7753
        %7755 = vmatprep.mubr.f32.mxu0 %v7292
        %7756 = vmatmul.mubr.f32.gmra.mrb[0].mxu0 %v7285
        %v7757 = vpop.f32.mrb[0].mxu0
        %v7758 = vadd.f32 0.0, %v7757
        %v7759 = vpop.f32.mrb[0].mxu0
        %v7760 = vadd.f32 0.0, %v7759
        %7761 = vmatprep.mubr.f32.mxu0 %v7320
        %7762 = vmatmul.mubr.f32.gmra.mrb[0].mxu0 %v7313
        %v7763 = vpop.f32.mrb[0].mxu0
        %v7764 = vadd.f32 0.0, %v7763
        %v7765 = vpop.f32.mrb[0].mxu0
        %v7766 = vadd.f32 0.0, %v7765
        %7767 = vmatprep.mubr.f32.mxu0 %v7348
        %7768 = vmatmul.mubr.f32.gmra.mrb[0].mxu0 %v7341
        %v7769 = vpop.f32.mrb[0].mxu0
        %v7770 = vadd.f32 0.0, %v7769
        %v7771 = vpop.f32.mrb[0].mxu0
        %v7772 = vadd.f32 0.0, %v7771
        %7773 = vdwg.mxu0
        %7774 = vmatprep.subr.mxu0 %v7622
        %7775 = vmatpush1.msra.mxu0 %v7621
        %7776 = vmatprep.subr.mxu0 %v7624
        %7777 = vmatpush1.msra.mxu0 %v7623
        %7778 = vmatprep.subr.mxu0 %v7626
        %7779 = vmatpush1.msra.mxu0 %v7625
        %7780 = vmatprep.subr.mxu0 %v7628
        %7781 = vmatpush1.msra.mxu0 %v7627
        %7782 = vmatprep.subr.mxu0 %v7630
        %7783 = vmatpush1.msra.mxu0 %v7629
        %7784 = vmatprep.subr.mxu0 %v7632
        %7785 = vmatpush1.msra.mxu0 %v7631
        %7786 = vmatprep.subr.mxu0 %v7634
        %7787 = vmatpush1.msra.mxu0 %v7633
        %7788 = vmatprep.subr.mxu0 %v7636
        %7789 = vmatpush1.msra.mxu0 %v7635
        %7790 = vmatprep.subr.mxu0 %v7638
        %7791 = vmatpush1.msra.mxu0 %v7637
        %7792 = vmatprep.subr.mxu0 %v7640
        %7793 = vmatpush1.msra.mxu0 %v7639
        %7794 = vmatprep.subr.mxu0 %v7642
        %7795 = vmatpush1.msra.mxu0 %v7641
        %7796 = vmatprep.subr.mxu0 %v7644
        %7797 = vmatpush1.msra.mxu0 %v7643
        %7798 = vmatprep.subr.mxu0 %v7646
        %7799 = vmatpush1.msra.mxu0 %v7645
        %7800 = vmatprep.subr.mxu0 %v7648
        %7801 = vmatpush1.msra.mxu0 %v7647
        %7802 = vmatprep.subr.mxu0 %v7650
        %7803 = vmatpush1.msra.mxu0 %v7649
        %7804 = vmatprep.subr.mxu0 %v7652
        %7805 = vmatpush1.msra.mxu0 %v7651
        %7806 = vmatprep.subr.mxu0 %v7654
        %7807 = vmatpush1.msra.mxu0 %v7653
        %7808 = vmatprep.subr.mxu0 %v7656
        %7809 = vmatpush1.msra.mxu0 %v7655
        %7810 = vmatprep.subr.mxu0 %v7658
        %7811 = vmatpush1.msra.mxu0 %v7657
        %7812 = vmatprep.subr.mxu0 %v7660
        %7813 = vmatpush1.msra.mxu0 %v7659
        %7814 = vmatprep.subr.mxu0 %v7662
        %7815 = vmatpush1.msra.mxu0 %v7661
        %7816 = vmatprep.subr.mxu0 %v7664
        %7817 = vmatpush1.msra.mxu0 %v7663
        %7818 = vmatprep.subr.mxu0 %v7666
        %7819 = vmatpush1.msra.mxu0 %v7665
        %7820 = vmatprep.subr.mxu0 %v7668
        %7821 = vmatpush1.msra.mxu0 %v7667
        %7822 = vmatprep.subr.mxu0 %v7670
        %7823 = vmatpush1.msra.mxu0 %v7669
        %7824 = vmatprep.subr.mxu0 %v7672
        %7825 = vmatpush1.msra.mxu0 %v7671
        %7826 = vmatprep.subr.mxu0 %v7674
        %7827 = vmatpush1.msra.mxu0 %v7673
        %7828 = vmatprep.subr.mxu0 %v7676
        %7829 = vmatpush1.msra.mxu0 %v7675
        %7830 = vmatprep.subr.mxu0 %v7678
        %7831 = vmatpush1.msra.mxu0 %v7677
        %7832 = vmatprep.subr.mxu0 %v7680
        %7833 = vmatpush1.msra.mxu0 %v7679
        %7834 = vmatprep.subr.mxu0 %v7682
        %7835 = vmatpush1.msra.mxu0 %v7681
        %7836 = vmatprep.subr.mxu0 %v7684
        %7837 = vmatpush1.msra.mxu0 %v7683
        %7838 = vmatprep.mubr.f32.mxu0 %v7278
        %7839 = vmatmul.mubr.f32.gmra.mrb[0].mxu0 %v7271
        %v7840 = vpop.f32.mrb[0].mxu0
        %v7841 = vadd.f32 %v7752, %v7840
        %v7842 = vpop.f32.mrb[0].mxu0
        %v7843 = vadd.f32 %v7754, %v7842
        %7844 = vmatprep.mubr.f32.mxu0 %v7306
        %7845 = vmatmul.mubr.f32.gmra.mrb[0].mxu0 %v7299
        %v7846 = vpop.f32.mrb[0].mxu0
        %v7847 = vadd.f32 %v7758, %v7846
        %v7848 = vpop.f32.mrb[0].mxu0
        %v7849 = vadd.f32 %v7760, %v7848
        %7850 = vmatprep.mubr.f32.mxu0 %v7334
        %7851 = vmatmul.mubr.f32.gmra.mrb[0].mxu0 %v7327
        %v7852 = vpop.f32.mrb[0].mxu0
        %v7853 = vadd.f32 %v7764, %v7852
        %v7854 = vpop.f32.mrb[0].mxu0
        %v7855 = vadd.f32 %v7766, %v7854
        %7856 = vmatprep.mubr.f32.mxu0 %v7362
        %7857 = vmatmul.mubr.f32.gmra.mrb[0].mxu0 %v7355
        %v7858 = vpop.f32.mrb[0].mxu0
        %v7859 = vadd.f32 %v7770, %v7858
        %v7860 = vpop.f32.mrb[0].mxu0
        %v7861 = vadd.f32 %v7772, %v7860
        %7862 = vdwg.mxu0
        %v7863 = vmax.f32 %v7535, %v7841
        %v7864 = vmax.f32 %v7537, %v7843
        %v7865 = vmax.f32 %v7541, %v7847
        %v7866 = vmax.f32 %v7543, %v7849
        %v7867 = vmax.f32 %v7547, %v7853
        %v7868 = vmax.f32 %v7549, %v7855
        %v7869 = vmax.f32 %v7553, %v7859
        %v7870 = vmax.f32 %v7555, %v7861
        %7871 = vst [vmem:[#allocation3] sm:$0xff] 0.0
        %7872 = vst [vmem:[#allocation3 + $0x8] sm:$0xff] 0.0
        %7873 = vst.msk [vmem:[#allocation3 + $0x10] sm:$0xff] %vm630, 0.0
        %7874 = vst [vmem:[#allocation3 + $0x18] sm:$0xff] 0.0
        %7875 = vst [vmem:[#allocation3 + $0x20] sm:$0xff] 0.0
        %7876 = vst.msk [vmem:[#allocation3 + $0x28] sm:$0xff] %vm630, 0.0
        %7877 = vst [vmem:[#allocation3 + $0x30] sm:$0xff] 0.0
        %7878 = vst [vmem:[#allocation3 + $0x38] sm:$0xff] 0.0
        %7879 = vst.msk [vmem:[#allocation3 + $0x40] sm:$0xff] %vm630, 0.0
        %7880 = vst [vmem:[#allocation3 + $0x48] sm:$0xff] 0.0
        %7881 = vst [vmem:[#allocation3 + $0x50] sm:$0xff] 0.0
        %7882 = vst.msk [vmem:[#allocation3 + $0x58] sm:$0xff] %vm630, 0.0
        %7883 = vst [vmem:[#allocation3 + $0x60] sm:$0x3] 0.0
        %7884 = vst [vmem:[#allocation3 + $0x68] sm:$0x3] 0.0
        %7885 = vst.msk [vmem:[#allocation3 + $0x70] sm:$0x3] %vm2674, 0.0
        %v7894 = vrot.slane %v7863, 7
        %v7895 = vrot.slane %v7864, 7
        %v7896 = vrot.slane %v7865, 7
        %v7897 = vsel %vm2708, %v7894, %v7896
        %v7898 = vrot.slane %v7866, 7
        %v7899 = vsel %vm2708, %v7895, %v7898
        %v7900 = vrot.slane %v7867, 7
        %v7901 = vsel %vm2708, %v7896, %v7900
        %v7902 = vrot.slane %v7868, 7
        %v7903 = vsel %vm2708, %v7898, %v7902
        %v7904 = vrot.slane %v7869, 7
        %v7905 = vsel %vm2708, %v7900, %v7904
        %v7906 = vrot.slane %v7870, 7
        %v7907 = vsel %vm2708, %v7902, %v7906
        %7908 = vrot.lane.b32.xlu0 %v7894, 8
        %v7909 = vpop.permute.xlu0 %7908
        %7910 = vrot.lane.b32.xlu0 %v7895, 8
        %v7911 = vpop.permute.xlu0 %7910
        %7912 = vrot.lane.b32.xlu0 %v7897, 8
        %v7913 = vpop.permute.xlu0 %7912
        %7914 = vrot.lane.b32.xlu0 %v7899, 8
        %v7915 = vpop.permute.xlu0 %7914
        %7916 = vrot.lane.b32.xlu0 %v7901, 8
        %v7917 = vpop.permute.xlu0 %7916
        %7918 = vrot.lane.b32.xlu0 %v7903, 8
        %v7919 = vpop.permute.xlu0 %7918
        %7920 = vrot.lane.b32.xlu0 %v7905, 8
        %v7921 = vpop.permute.xlu0 %7920
        %7922 = vrot.lane.b32.xlu0 %v7907, 8
        %v7923 = vpop.permute.xlu0 %7922
        %7924 = vrot.lane.b32.xlu0 %v7904, 8
        %v7925 = vpop.permute.xlu0 %7924
        %7926 = vrot.lane.b32.xlu0 %v7906, 8
        %v7927 = vpop.permute.xlu0 %7926
        %v7928 = vsel %vm2841, %v7909, %v7911
        %v7929 = vsel %vm2841, %v7913, %v7915
        %v7930 = vsel %vm2841, %v7917, %v7919
        %v7931 = vsel %vm2841, %v7921, %v7923
        %v7932 = vsel %vm2841, %v7925, %v7927
        %7948 = vst.msk [vmem:[#allocation3] sm:$0xfe] %vm2914, %v7909
        %7949 = vst [vmem:[#allocation3 + $0x8] sm:$0xfe] %v7928
        %7950 = vst.msk [vmem:[#allocation3 + $0x10] sm:$0xfe] %vm2919, %v7911
        %7951 = vst.msk [vmem:[#allocation3 + $0x18] sm:$0xff] %vm2921, %v7913
        %7952 = vst [vmem:[#allocation3 + $0x20] sm:$0xff] %v7929
        %7953 = vst.msk [vmem:[#allocation3 + $0x28] sm:$0xff] %vm2841, %v7915
        %7954 = vst.msk [vmem:[#allocation3 + $0x30] sm:$0xff] %vm2921, %v7917
        %7955 = vst [vmem:[#allocation3 + $0x38] sm:$0xff] %v7930
        %7956 = vst.msk [vmem:[#allocation3 + $0x40] sm:$0xff] %vm2841, %v7919
        %7957 = vst.msk [vmem:[#allocation3 + $0x48] sm:$0xff] %vm2921, %v7921
        %7958 = vst [vmem:[#allocation3 + $0x50] sm:$0xff] %v7931
        %7959 = vst.msk [vmem:[#allocation3 + $0x58] sm:$0xff] %vm2841, %v7923
        %7960 = vst.msk [vmem:[#allocation3 + $0x60] sm:$0x1] %vm2957, %v7925
        %7961 = vst [vmem:[#allocation3 + $0x68] sm:$0x1] %v7932
        %7962 = vst.msk [vmem:[#allocation3 + $0x70] sm:$0x1] %vm2962, %v7927
        %v7963 = vld [vmem:[%s6] sm:$0x1]
        %v7964 = vld [vmem:[%s5] sm:$0xff]
        %v7965 = vld [vmem:[%s5 + $0x8] sm:$0xff]
        %v7966 = vld [vmem:[%s5 + $0x10] sm:$0xff]
        %v7967 = vld [vmem:[%s5 + $0x18] sm:$0xff]
        %v7968 = vld [vmem:[%s5 + $0x20] sm:$0xff]
        %v7969 = vld [vmem:[%s5 + $0x28] sm:$0xff]
        %v7970 = vld [vmem:[%s5 + $0x30] sm:$0xff]
        %v7971 = vld [vmem:[%s5 + $0x38] sm:$0xff]
        %v7972 = vld [vmem:[%s5 + $0x40] sm:$0xff]
        %v7973 = vld [vmem:[%s5 + $0x48] sm:$0xff]
        %v7974 = vld [vmem:[%s5 + $0x50] sm:$0xff]
        %v7975 = vld [vmem:[%s5 + $0x58] sm:$0xff]
        %v7976 = vld [vmem:[%s5 + $0x60] sm:$0xff]
        %v7977 = vld [vmem:[%s5 + $0x68] sm:$0xff]
        %v7978 = vld [vmem:[%s5 + $0x70] sm:$0xff]
        %v7979 = vld [vmem:[%s5 + $0x78] sm:$0xff]
        %v7980 = vld [vmem:[%s5 + $0x80] sm:$0xff]
        %v7981 = vld [vmem:[%s5 + $0x88] sm:$0xff]
        %s7982 = scalar_lea.vmem %s5, 144
        %v7983 = vld [vmem:[%s7982] sm:$0xff]
        %v7984 = vld [vmem:[%s7982 + $0x8] sm:$0xff]
        %v7985 = vld [vmem:[%s7982 + $0x10] sm:$0xff]
        %v7986 = vld [vmem:[%s7982 + $0x18] sm:$0xff]
        %v7987 = vld [vmem:[%s7982 + $0x20] sm:$0xff]
        %v7988 = vld [vmem:[%s7982 + $0x28] sm:$0xff]
        %v7989 = vld [vmem:[%s7982 + $0x30] sm:$0xff]
        %v7990 = vld [vmem:[%s7982 + $0x38] sm:$0xff]
        %v7991 = vld [vmem:[%s7982 + $0x40] sm:$0xff]
        %v7992 = vld [vmem:[%s7982 + $0x48] sm:$0xff]
        %v7993 = vld [vmem:[%s7982 + $0x50] sm:$0xff]
        %v7994 = vld [vmem:[%s7982 + $0x58] sm:$0xff]
        %v7995 = vld [vmem:[%s7982 + $0x60] sm:$0xff]
        %v7996 = vld [vmem:[%s7982 + $0x68] sm:$0xff]
        %v7997 = vld [vmem:[%s7982 + $0x70] sm:$0xff]
        %v7998 = vld [vmem:[%s7982 + $0x78] sm:$0xff]
        %v7999 = vld [vmem:[%s7982 + $0x80] sm:$0xff]
        %v8000 = vld [vmem:[%s7982 + $0x88] sm:$0xff]
        %s8001 = scalar_lea.vmem %s5, 288
        %v8002 = vld [vmem:[%s8001] sm:$0xff]
        %v8003 = vld [vmem:[%s8001 + $0x8] sm:$0xff]
        %v8004 = vld [vmem:[%s8001 + $0x10] sm:$0xff]
        %v8005 = vld [vmem:[%s8001 + $0x18] sm:$0xff]
        %v8006 = vld [vmem:[%s8001 + $0x20] sm:$0xff]
        %v8007 = vld [vmem:[%s8001 + $0x28] sm:$0xff]
        %v8008 = vld [vmem:[%s8001 + $0x30] sm:$0xff]
        %v8009 = vld [vmem:[%s8001 + $0x38] sm:$0xff]
        %v8010 = vld [vmem:[%s8001 + $0x40] sm:$0xff]
        %v8011 = vld [vmem:[%s8001 + $0x48] sm:$0xff]
        %v8012 = vld [vmem:[%s8001 + $0x50] sm:$0xff]
        %v8013 = vld [vmem:[%s8001 + $0x58] sm:$0xff]
        %v8014 = vld [vmem:[%s8001 + $0x60] sm:$0xff]
        %v8015 = vld [vmem:[%s8001 + $0x68] sm:$0xff]
        %v8016 = vld [vmem:[%s8001 + $0x70] sm:$0xff]
        %v8017 = vld [vmem:[%s8001 + $0x78] sm:$0xff]
        %v8018 = vld [vmem:[%s8001 + $0x80] sm:$0xff]
        %v8019 = vld [vmem:[%s8001 + $0x88] sm:$0xff]
        %v8020 = vld [vmem:[#allocation3] sm:$0xff]
        %v8021 = vld [vmem:[#allocation3 + $0x8] sm:$0xff]
        %v8022 = vld [vmem:[#allocation3 + $0x18] sm:$0xff]
        %v8023 = vld [vmem:[#allocation3 + $0x20] sm:$0xff]
        %v8024 = vld [vmem:[#allocation3 + $0x30] sm:$0xff]
        %v8025 = vld [vmem:[#allocation3 + $0x38] sm:$0xff]
        %v8026 = vld [vmem:[#allocation3 + $0x48] sm:$0xff]
        %v8027 = vld [vmem:[#allocation3 + $0x50] sm:$0xff]
        %v8028 = vld [vmem:[#allocation3] sm:$0xfe]
        %v8029 = vld [vmem:[#allocation3 + $0x8] sm:$0xfe]
        %v8030 = vld [vmem:[#allocation3 + $0x60] sm:$0x1]
        %v8031 = vld [vmem:[#allocation3 + $0x68] sm:$0x1]
        %v8042 = vrot.slane %v8028, 1
        %v8043 = vrot.slane %v8022, 1
        %v8044 = vsel %vm587, %v8042, %v8043
        %v8045 = vrot.slane %v8029, 1
        %v8046 = vrot.slane %v8023, 1
        %v8047 = vsel %vm587, %v8045, %v8046
        %v8048 = vrot.slane %v8024, 1
        %v8049 = vsel %vm587, %v8043, %v8048
        %v8050 = vrot.slane %v8025, 1
        %v8051 = vsel %vm587, %v8046, %v8050
        %v8052 = vrot.slane %v8026, 1
        %v8053 = vsel %vm587, %v8048, %v8052
        %v8054 = vrot.slane %v8027, 1
        %v8055 = vsel %vm587, %v8050, %v8054
        %v8056 = vrot.slane %v8030, 1
        %v8057 = vsel %vm587, %v8052, %v8056
        %v8058 = vrot.slane %v8031, 1
        %v8059 = vsel %vm587, %v8054, %v8058
        %v8064 = vsel %vm630, %v8047, 0
        %v8066 = vsel %vm630, %v8051, 0
        %v8068 = vsel %vm630, %v8055, 0
        %v8070 = vsel %vm630, %v8059, 0
        %8072 = vmatprep.subr.mxu0 0.0
        %8073 = vmatpush1.msra.mxu0 %v7983
        %8074 = vmatprep.subr.mxu0 0.0
        %8075 = vmatpush1.msra.mxu0 %v7984
        %8076 = vmatprep.subr.mxu0 0.0
        %8077 = vmatpush1.msra.mxu0 %v7985
        %8078 = vmatprep.subr.mxu0 0.0
        %8079 = vmatpush1.msra.mxu0 %v7986
        %8080 = vmatprep.subr.mxu0 0.0
        %8081 = vmatpush1.msra.mxu0 %v7987
        %8082 = vmatprep.subr.mxu0 0.0
        %8083 = vmatpush1.msra.mxu0 %v7988
        %8084 = vmatprep.subr.mxu0 0.0
        %8085 = vmatpush1.msra.mxu0 %v7989
        %8086 = vmatprep.subr.mxu0 0.0
        %8087 = vmatpush1.msra.mxu0 %v7990
        %8088 = vmatprep.subr.mxu0 0.0
        %8089 = vmatpush1.msra.mxu0 %v7991
        %8090 = vmatprep.subr.mxu0 0.0
        %8091 = vmatpush1.msra.mxu0 %v7992
        %8092 = vmatprep.subr.mxu0 0.0
        %8093 = vmatpush1.msra.mxu0 %v7993
        %8094 = vmatprep.subr.mxu0 0.0
        %8095 = vmatpush1.msra.mxu0 %v7994
        %8096 = vmatprep.subr.mxu0 0.0
        %8097 = vmatpush1.msra.mxu0 %v7995
        %8098 = vmatprep.subr.mxu0 0.0
        %8099 = vmatpush1.msra.mxu0 %v7996
        %8100 = vmatprep.subr.mxu0 0.0
        %8101 = vmatpush1.msra.mxu0 %v7997
        %8102 = vmatprep.subr.mxu0 0.0
        %8103 = vmatpush1.msra.mxu0 %v7998
        %8104 = vmatprep.subr.mxu0 0.0
        %8105 = vmatpush1.msra.mxu0 %v7999
        %8106 = vmatprep.subr.mxu0 0.0
        %8107 = vmatpush1.msra.mxu0 %v8000
        %8108 = vmatprep.subr.mxu0 0.0
        %8109 = vmatpush1.msra.mxu0 0.0
        %8110 = vmatprep.subr.mxu0 0.0
        %8111 = vmatpush1.msra.mxu0 0.0
        %8112 = vmatprep.subr.mxu0 0.0
        %8113 = vmatpush1.msra.mxu0 0.0
        %8114 = vmatprep.subr.mxu0 0.0
        %8115 = vmatpush1.msra.mxu0 0.0
        %8116 = vmatprep.subr.mxu0 0.0
        %8117 = vmatpush1.msra.mxu0 0.0
        %8118 = vmatprep.subr.mxu0 0.0
        %8119 = vmatpush1.msra.mxu0 0.0
        %8120 = vmatprep.subr.mxu0 0.0
        %8121 = vmatpush1.msra.mxu0 0.0
        %8122 = vmatprep.subr.mxu0 0.0
        %8123 = vmatpush1.msra.mxu0 0.0
        %8124 = vmatprep.subr.mxu0 0.0
        %8125 = vmatpush1.msra.mxu0 0.0
        %8126 = vmatprep.subr.mxu0 0.0
        %8127 = vmatpush1.msra.mxu0 0.0
        %8128 = vmatprep.subr.mxu0 0.0
        %8129 = vmatpush1.msra.mxu0 0.0
        %8130 = vmatprep.subr.mxu0 0.0
        %8131 = vmatpush1.msra.mxu0 0.0
        %8132 = vmatprep.subr.mxu0 0.0
        %8133 = vmatpush1.msra.mxu0 0.0
        %8134 = vmatprep.subr.mxu0 0.0
        %8135 = vmatpush1.msra.mxu0 0.0
        %8136 = vmatprep.mubr.f32.mxu0 %v8064
        %8137 = vmatmul.mubr.f32.gmra.mrb[0].mxu0 %v8044
        %v8138 = vpop.f32.mrb[0].mxu0
        %v8139 = vadd.f32 0.0, %v8138
        %v8140 = vpop.f32.mrb[0].mxu0
        %8141 = vmatprep.mubr.f32.mxu0 %v8066
        %8142 = vmatmul.mubr.f32.gmra.mrb[0].mxu0 %v8049
        %v8143 = vpop.f32.mrb[0].mxu0
        %v8144 = vadd.f32 0.0, %v8143
        %v8145 = vpop.f32.mrb[0].mxu0
        %8146 = vmatprep.mubr.f32.mxu0 %v8068
        %8147 = vmatmul.mubr.f32.gmra.mrb[0].mxu0 %v8053
        %v8148 = vpop.f32.mrb[0].mxu0
        %v8149 = vadd.f32 0.0, %v8148
        %v8150 = vpop.f32.mrb[0].mxu0
        %8151 = vmatprep.mubr.f32.mxu0 %v8070
        %8152 = vmatmul.mubr.f32.gmra.mrb[0].mxu0 %v8057
        %v8153 = vpop.f32.mrb[0].mxu0
        %v8154 = vadd.f32 0.0, %v8153
        %v8155 = vpop.f32.mrb[0].mxu0
        %8156 = vdwg.mxu0
        %v8158 = vsel %vm630, %v8021, 0
        %v8160 = vsel %vm630, %v8023, 0
        %v8162 = vsel %vm630, %v8025, 0
        %v8164 = vsel %vm630, %v8027, 0
        %8166 = vmatprep.subr.mxu0 0.0
        %8167 = vmatpush1.msra.mxu0 %v7964
        %8168 = vmatprep.subr.mxu0 0.0
        %8169 = vmatpush1.msra.mxu0 %v7965
        %8170 = vmatprep.subr.mxu0 0.0
        %8171 = vmatpush1.msra.mxu0 %v7966
        %8172 = vmatprep.subr.mxu0 0.0
        %8173 = vmatpush1.msra.mxu0 %v7967
        %8174 = vmatprep.subr.mxu0 0.0
        %8175 = vmatpush1.msra.mxu0 %v7968
        %8176 = vmatprep.subr.mxu0 0.0
        %8177 = vmatpush1.msra.mxu0 %v7969
        %8178 = vmatprep.subr.mxu0 0.0
        %8179 = vmatpush1.msra.mxu0 %v7970
        %8180 = vmatprep.subr.mxu0 0.0
        %8181 = vmatpush1.msra.mxu0 %v7971
        %8182 = vmatprep.subr.mxu0 0.0
        %8183 = vmatpush1.msra.mxu0 %v7972
        %8184 = vmatprep.subr.mxu0 0.0
        %8185 = vmatpush1.msra.mxu0 %v7973
        %8186 = vmatprep.subr.mxu0 0.0
        %8187 = vmatpush1.msra.mxu0 %v7974
        %8188 = vmatprep.subr.mxu0 0.0
        %8189 = vmatpush1.msra.mxu0 %v7975
        %8190 = vmatprep.subr.mxu0 0.0
        %8191 = vmatpush1.msra.mxu0 %v7976
        %8192 = vmatprep.subr.mxu0 0.0
        %8193 = vmatpush1.msra.mxu0 %v7977
        %8194 = vmatprep.subr.mxu0 0.0
        %8195 = vmatpush1.msra.mxu0 %v7978
        %8196 = vmatprep.subr.mxu0 0.0
        %8197 = vmatpush1.msra.mxu0 %v7979
        %8198 = vmatprep.subr.mxu0 0.0
        %8199 = vmatpush1.msra.mxu0 %v7980
        %8200 = vmatprep.subr.mxu0 0.0
        %8201 = vmatpush1.msra.mxu0 %v7981
        %8202 = vmatprep.subr.mxu0 0.0
        %8203 = vmatpush1.msra.mxu0 0.0
        %8204 = vmatprep.subr.mxu0 0.0
        %8205 = vmatpush1.msra.mxu0 0.0
        %8206 = vmatprep.subr.mxu0 0.0
        %8207 = vmatpush1.msra.mxu0 0.0
        %8208 = vmatprep.subr.mxu0 0.0
        %8209 = vmatpush1.msra.mxu0 0.0
        %8210 = vmatprep.subr.mxu0 0.0
        %8211 = vmatpush1.msra.mxu0 0.0
        %8212 = vmatprep.subr.mxu0 0.0
        %8213 = vmatpush1.msra.mxu0 0.0
        %8214 = vmatprep.subr.mxu0 0.0
        %8215 = vmatpush1.msra.mxu0 0.0
        %8216 = vmatprep.subr.mxu0 0.0
        %8217 = vmatpush1.msra.mxu0 0.0
        %8218 = vmatprep.subr.mxu0 0.0
        %8219 = vmatpush1.msra.mxu0 0.0
        %8220 = vmatprep.subr.mxu0 0.0
        %8221 = vmatpush1.msra.mxu0 0.0
        %8222 = vmatprep.subr.mxu0 0.0
        %8223 = vmatpush1.msra.mxu0 0.0
        %8224 = vmatprep.subr.mxu0 0.0
        %8225 = vmatpush1.msra.mxu0 0.0
        %8226 = vmatprep.subr.mxu0 0.0
        %8227 = vmatpush1.msra.mxu0 0.0
        %8228 = vmatprep.subr.mxu0 0.0
        %8229 = vmatpush1.msra.mxu0 0.0
        %8230 = vmatprep.mubr.f32.mxu0 %v8158
        %8231 = vmatmul.mubr.f32.gmra.mrb[0].mxu0 %v8020
        %v8232 = vpop.f32.mrb[0].mxu0
        %v8233 = vadd.f32 %v8139, %v8232
        %v8234 = vpop.f32.mrb[0].mxu0
        %8235 = vmatprep.mubr.f32.mxu0 %v8160
        %8236 = vmatmul.mubr.f32.gmra.mrb[0].mxu0 %v8022
        %v8237 = vpop.f32.mrb[0].mxu0
        %v8238 = vadd.f32 %v8144, %v8237
        %v8239 = vpop.f32.mrb[0].mxu0
        %8240 = vmatprep.mubr.f32.mxu0 %v8162
        %8241 = vmatmul.mubr.f32.gmra.mrb[0].mxu0 %v8024
        %v8242 = vpop.f32.mrb[0].mxu0
        %v8243 = vadd.f32 %v8149, %v8242
        %v8244 = vpop.f32.mrb[0].mxu0
        %8245 = vmatprep.mubr.f32.mxu0 %v8164
        %8246 = vmatmul.mubr.f32.gmra.mrb[0].mxu0 %v8026
        %v8247 = vpop.f32.mrb[0].mxu0
        %v8248 = vadd.f32 %v8154, %v8247
        %v8249 = vpop.f32.mrb[0].mxu0
        %8250 = vdwg.mxu0
        %v8251 = vld [vmem:[#allocation3] sm:$0xfc]
        %v8252 = vld [vmem:[#allocation3 + $0x8] sm:$0xfc]
        %v8253 = vld [vmem:[#allocation3 + $0x60] sm:$0x3]
        %v8254 = vld [vmem:[#allocation3 + $0x68] sm:$0x3]
        %v8259 = vrot.slane %v8251, 2
        %v8260 = vrot.slane %v8022, 2
        %v8261 = vsel %vm882, %v8259, %v8260
        %v8262 = vrot.slane %v8252, 2
        %v8263 = vrot.slane %v8023, 2
        %v8264 = vsel %vm882, %v8262, %v8263
        %v8265 = vrot.slane %v8024, 2
        %v8266 = vsel %vm882, %v8260, %v8265
        %v8267 = vrot.slane %v8025, 2
        %v8268 = vsel %vm882, %v8263, %v8267
        %v8269 = vrot.slane %v8026, 2
        %v8270 = vsel %vm882, %v8265, %v8269
        %v8271 = vrot.slane %v8027, 2
        %v8272 = vsel %vm882, %v8267, %v8271
        %v8273 = vrot.slane %v8253, 2
        %v8274 = vsel %vm882, %v8269, %v8273
        %v8275 = vrot.slane %v8254, 2
        %v8276 = vsel %vm882, %v8271, %v8275
        %v8281 = vsel %vm630, %v8264, 0
        %v8283 = vsel %vm630, %v8268, 0
        %v8285 = vsel %vm630, %v8272, 0
        %v8287 = vsel %vm630, %v8276, 0
        %8289 = vmatprep.subr.mxu0 0.0
        %8290 = vmatpush1.msra.mxu0 %v8002
        %8291 = vmatprep.subr.mxu0 0.0
        %8292 = vmatpush1.msra.mxu0 %v8003
        %8293 = vmatprep.subr.mxu0 0.0
        %8294 = vmatpush1.msra.mxu0 %v8004
        %8295 = vmatprep.subr.mxu0 0.0
        %8296 = vmatpush1.msra.mxu0 %v8005
        %8297 = vmatprep.subr.mxu0 0.0
        %8298 = vmatpush1.msra.mxu0 %v8006
        %8299 = vmatprep.subr.mxu0 0.0
        %8300 = vmatpush1.msra.mxu0 %v8007
        %8301 = vmatprep.subr.mxu0 0.0
        %8302 = vmatpush1.msra.mxu0 %v8008
        %8303 = vmatprep.subr.mxu0 0.0
        %8304 = vmatpush1.msra.mxu0 %v8009
        %8305 = vmatprep.subr.mxu0 0.0
        %8306 = vmatpush1.msra.mxu0 %v8010
        %8307 = vmatprep.subr.mxu0 0.0
        %8308 = vmatpush1.msra.mxu0 %v8011
        %8309 = vmatprep.subr.mxu0 0.0
        %8310 = vmatpush1.msra.mxu0 %v8012
        %8311 = vmatprep.subr.mxu0 0.0
        %8312 = vmatpush1.msra.mxu0 %v8013
        %8313 = vmatprep.subr.mxu0 0.0
        %8314 = vmatpush1.msra.mxu0 %v8014
        %8315 = vmatprep.subr.mxu0 0.0
        %8316 = vmatpush1.msra.mxu0 %v8015
        %8317 = vmatprep.subr.mxu0 0.0
        %8318 = vmatpush1.msra.mxu0 %v8016
        %8319 = vmatprep.subr.mxu0 0.0
        %8320 = vmatpush1.msra.mxu0 %v8017
        %8321 = vmatprep.subr.mxu0 0.0
        %8322 = vmatpush1.msra.mxu0 %v8018
        %8323 = vmatprep.subr.mxu0 0.0
        %8324 = vmatpush1.msra.mxu0 %v8019
        %8325 = vmatprep.subr.mxu0 0.0
        %8326 = vmatpush1.msra.mxu0 0.0
        %8327 = vmatprep.subr.mxu0 0.0
        %8328 = vmatpush1.msra.mxu0 0.0
        %8329 = vmatprep.subr.mxu0 0.0
        %8330 = vmatpush1.msra.mxu0 0.0
        %8331 = vmatprep.subr.mxu0 0.0
        %8332 = vmatpush1.msra.mxu0 0.0
        %8333 = vmatprep.subr.mxu0 0.0
        %8334 = vmatpush1.msra.mxu0 0.0
        %8335 = vmatprep.subr.mxu0 0.0
        %8336 = vmatpush1.msra.mxu0 0.0
        %8337 = vmatprep.subr.mxu0 0.0
        %8338 = vmatpush1.msra.mxu0 0.0
        %8339 = vmatprep.subr.mxu0 0.0
        %8340 = vmatpush1.msra.mxu0 0.0
        %8341 = vmatprep.subr.mxu0 0.0
        %8342 = vmatpush1.msra.mxu0 0.0
        %8343 = vmatprep.subr.mxu0 0.0
        %8344 = vmatpush1.msra.mxu0 0.0
        %8345 = vmatprep.subr.mxu0 0.0
        %8346 = vmatpush1.msra.mxu0 0.0
        %8347 = vmatprep.subr.mxu0 0.0
        %8348 = vmatpush1.msra.mxu0 0.0
        %8349 = vmatprep.subr.mxu0 0.0
        %8350 = vmatpush1.msra.mxu0 0.0
        %8351 = vmatprep.subr.mxu0 0.0
        %8352 = vmatpush1.msra.mxu0 0.0
        %8353 = vmatprep.mubr.f32.mxu0 %v8281
        %8354 = vmatmul.mubr.f32.gmra.mrb[0].mxu0 %v8261
        %v8355 = vpop.f32.mrb[0].mxu0
        %v8356 = vadd.f32 0.0, %v8355
        %v8357 = vpop.f32.mrb[0].mxu0
        %8358 = vmatprep.mubr.f32.mxu0 %v8283
        %8359 = vmatmul.mubr.f32.gmra.mrb[0].mxu0 %v8266
        %v8360 = vpop.f32.mrb[0].mxu0
        %v8361 = vadd.f32 0.0, %v8360
        %v8362 = vpop.f32.mrb[0].mxu0
        %8363 = vmatprep.mubr.f32.mxu0 %v8285
        %8364 = vmatmul.mubr.f32.gmra.mrb[0].mxu0 %v8270
        %v8365 = vpop.f32.mrb[0].mxu0
        %v8366 = vadd.f32 0.0, %v8365
        %v8367 = vpop.f32.mrb[0].mxu0
        %8368 = vmatprep.mubr.f32.mxu0 %v8287
        %8369 = vmatmul.mubr.f32.gmra.mrb[0].mxu0 %v8274
        %v8370 = vpop.f32.mrb[0].mxu0
        %v8371 = vadd.f32 0.0, %v8370
        %v8372 = vpop.f32.mrb[0].mxu0
        %8373 = vdwg.mxu0
        %v8374 = vadd.f32 %v8233, %v8356
        %v8375 = vadd.f32 %v8238, %v8361
        %v8376 = vadd.f32 %v8243, %v8366
        %v8377 = vadd.f32 %v8248, %v8371
        %v8379 = vlaneseq
        %v8380 = vshrl.u32 %v8379, 7
        %v8381 = vsub.s32 0, %v8380
        %v8382 = vrot.slane %v7963, %v8381
        %v8384 = vadd.f32 %v8374, %v8382
        %v8385 = vadd.f32 %v8375, %v8382
        %v8386 = vadd.f32 %v8376, %v8382
        %v8387 = vadd.f32 %v8377, %v8382
        %v8388 = vmax.f32 %v8384, 0.0
        %v8389 = vmax.f32 %v8385, 0.0
        %v8390 = vmax.f32 %v8386, 0.0
        %v8391 = vmax.f32 %v8387, 0.0
        %v8392 = vld [vmem:[#allocation3 + $0x8] sm:$0xff]
        %v8393 = vld [vmem:[#allocation3 + $0x10] sm:$0xff]
        %v8394 = vld [vmem:[#allocation3 + $0x20] sm:$0xff]
        %v8395 = vld [vmem:[#allocation3 + $0x28] sm:$0xff]
        %v8396 = vld [vmem:[#allocation3 + $0x38] sm:$0xff]
        %v8397 = vld [vmem:[#allocation3 + $0x40] sm:$0xff]
        %v8398 = vld [vmem:[#allocation3 + $0x50] sm:$0xff]
        %v8399 = vld [vmem:[#allocation3 + $0x58] sm:$0xff]
        %v8400 = vld [vmem:[#allocation3 + $0x8] sm:$0xfe]
        %v8401 = vld [vmem:[#allocation3 + $0x10] sm:$0xfe]
        %v8402 = vld [vmem:[#allocation3 + $0x68] sm:$0x1]
        %v8403 = vld [vmem:[#allocation3 + $0x70] sm:$0x1]
        %v8414 = vrot.slane %v8400, 1
        %v8415 = vrot.slane %v8394, 1
        %v8416 = vsel %vm587, %v8414, %v8415
        %v8417 = vrot.slane %v8401, 1
        %v8418 = vrot.slane %v8395, 1
        %v8419 = vsel %vm587, %v8417, %v8418
        %v8420 = vrot.slane %v8396, 1
        %v8421 = vsel %vm587, %v8415, %v8420
        %v8422 = vrot.slane %v8397, 1
        %v8423 = vsel %vm587, %v8418, %v8422
        %v8424 = vrot.slane %v8398, 1
        %v8425 = vsel %vm587, %v8420, %v8424
        %v8426 = vrot.slane %v8399, 1
        %v8427 = vsel %vm587, %v8422, %v8426
        %v8428 = vrot.slane %v8402, 1
        %v8429 = vsel %vm587, %v8424, %v8428
        %v8430 = vrot.slane %v8403, 1
        %v8431 = vsel %vm587, %v8426, %v8430
        %v8436 = vsel %vm630, %v8419, 0
        %v8438 = vsel %vm630, %v8423, 0
        %v8440 = vsel %vm630, %v8427, 0
        %v8442 = vsel %vm630, %v8431, 0
        %8444 = vmatprep.subr.mxu0 0.0
        %8445 = vmatpush1.msra.mxu0 %v7983
        %8446 = vmatprep.subr.mxu0 0.0
        %8447 = vmatpush1.msra.mxu0 %v7984
        %8448 = vmatprep.subr.mxu0 0.0
        %8449 = vmatpush1.msra.mxu0 %v7985
        %8450 = vmatprep.subr.mxu0 0.0
        %8451 = vmatpush1.msra.mxu0 %v7986
        %8452 = vmatprep.subr.mxu0 0.0
        %8453 = vmatpush1.msra.mxu0 %v7987
        %8454 = vmatprep.subr.mxu0 0.0
        %8455 = vmatpush1.msra.mxu0 %v7988
        %8456 = vmatprep.subr.mxu0 0.0
        %8457 = vmatpush1.msra.mxu0 %v7989
        %8458 = vmatprep.subr.mxu0 0.0
        %8459 = vmatpush1.msra.mxu0 %v7990
        %8460 = vmatprep.subr.mxu0 0.0
        %8461 = vmatpush1.msra.mxu0 %v7991
        %8462 = vmatprep.subr.mxu0 0.0
        %8463 = vmatpush1.msra.mxu0 %v7992
        %8464 = vmatprep.subr.mxu0 0.0
        %8465 = vmatpush1.msra.mxu0 %v7993
        %8466 = vmatprep.subr.mxu0 0.0
        %8467 = vmatpush1.msra.mxu0 %v7994
        %8468 = vmatprep.subr.mxu0 0.0
        %8469 = vmatpush1.msra.mxu0 %v7995
        %8470 = vmatprep.subr.mxu0 0.0
        %8471 = vmatpush1.msra.mxu0 %v7996
        %8472 = vmatprep.subr.mxu0 0.0
        %8473 = vmatpush1.msra.mxu0 %v7997
        %8474 = vmatprep.subr.mxu0 0.0
        %8475 = vmatpush1.msra.mxu0 %v7998
        %8476 = vmatprep.subr.mxu0 0.0
        %8477 = vmatpush1.msra.mxu0 %v7999
        %8478 = vmatprep.subr.mxu0 0.0
        %8479 = vmatpush1.msra.mxu0 %v8000
        %8480 = vmatprep.subr.mxu0 0.0
        %8481 = vmatpush1.msra.mxu0 0.0
        %8482 = vmatprep.subr.mxu0 0.0
        %8483 = vmatpush1.msra.mxu0 0.0
        %8484 = vmatprep.subr.mxu0 0.0
        %8485 = vmatpush1.msra.mxu0 0.0
        %8486 = vmatprep.subr.mxu0 0.0
        %8487 = vmatpush1.msra.mxu0 0.0
        %8488 = vmatprep.subr.mxu0 0.0
        %8489 = vmatpush1.msra.mxu0 0.0
        %8490 = vmatprep.subr.mxu0 0.0
        %8491 = vmatpush1.msra.mxu0 0.0
        %8492 = vmatprep.subr.mxu0 0.0
        %8493 = vmatpush1.msra.mxu0 0.0
        %8494 = vmatprep.subr.mxu0 0.0
        %8495 = vmatpush1.msra.mxu0 0.0
        %8496 = vmatprep.subr.mxu0 0.0
        %8497 = vmatpush1.msra.mxu0 0.0
        %8498 = vmatprep.subr.mxu0 0.0
        %8499 = vmatpush1.msra.mxu0 0.0
        %8500 = vmatprep.subr.mxu0 0.0
        %8501 = vmatpush1.msra.mxu0 0.0
        %8502 = vmatprep.subr.mxu0 0.0
        %8503 = vmatpush1.msra.mxu0 0.0
        %8504 = vmatprep.subr.mxu0 0.0
        %8505 = vmatpush1.msra.mxu0 0.0
        %8506 = vmatprep.subr.mxu0 0.0
        %8507 = vmatpush1.msra.mxu0 0.0
        %8508 = vmatprep.mubr.f32.mxu0 %v8436
        %8509 = vmatmul.mubr.f32.gmra.mrb[0].mxu0 %v8416
        %v8510 = vpop.f32.mrb[0].mxu0
        %v8511 = vadd.f32 0.0, %v8510
        %v8512 = vpop.f32.mrb[0].mxu0
        %8513 = vmatprep.mubr.f32.mxu0 %v8438
        %8514 = vmatmul.mubr.f32.gmra.mrb[0].mxu0 %v8421
        %v8515 = vpop.f32.mrb[0].mxu0
        %v8516 = vadd.f32 0.0, %v8515
        %v8517 = vpop.f32.mrb[0].mxu0
        %8518 = vmatprep.mubr.f32.mxu0 %v8440
        %8519 = vmatmul.mubr.f32.gmra.mrb[0].mxu0 %v8425
        %v8520 = vpop.f32.mrb[0].mxu0
        %v8521 = vadd.f32 0.0, %v8520
        %v8522 = vpop.f32.mrb[0].mxu0
        %8523 = vmatprep.mubr.f32.mxu0 %v8442
        %8524 = vmatmul.mubr.f32.gmra.mrb[0].mxu0 %v8429
        %v8525 = vpop.f32.mrb[0].mxu0
        %v8526 = vadd.f32 0.0, %v8525
        %v8527 = vpop.f32.mrb[0].mxu0
        %8528 = vdwg.mxu0
        %v8530 = vsel %vm630, %v8393, 0
        %v8532 = vsel %vm630, %v8395, 0
        %v8534 = vsel %vm630, %v8397, 0
        %v8536 = vsel %vm630, %v8399, 0
        %8538 = vmatprep.subr.mxu0 0.0
        %8539 = vmatpush1.msra.mxu0 %v7964
        %8540 = vmatprep.subr.mxu0 0.0
        %8541 = vmatpush1.msra.mxu0 %v7965
        %8542 = vmatprep.subr.mxu0 0.0
        %8543 = vmatpush1.msra.mxu0 %v7966
        %8544 = vmatprep.subr.mxu0 0.0
        %8545 = vmatpush1.msra.mxu0 %v7967
        %8546 = vmatprep.subr.mxu0 0.0
        %8547 = vmatpush1.msra.mxu0 %v7968
        %8548 = vmatprep.subr.mxu0 0.0
        %8549 = vmatpush1.msra.mxu0 %v7969
        %8550 = vmatprep.subr.mxu0 0.0
        %8551 = vmatpush1.msra.mxu0 %v7970
        %8552 = vmatprep.subr.mxu0 0.0
        %8553 = vmatpush1.msra.mxu0 %v7971
        %8554 = vmatprep.subr.mxu0 0.0
        %8555 = vmatpush1.msra.mxu0 %v7972
        %8556 = vmatprep.subr.mxu0 0.0
        %8557 = vmatpush1.msra.mxu0 %v7973
        %8558 = vmatprep.subr.mxu0 0.0
        %8559 = vmatpush1.msra.mxu0 %v7974
        %8560 = vmatprep.subr.mxu0 0.0
        %8561 = vmatpush1.msra.mxu0 %v7975
        %8562 = vmatprep.subr.mxu0 0.0
        %8563 = vmatpush1.msra.mxu0 %v7976
        %8564 = vmatprep.subr.mxu0 0.0
        %8565 = vmatpush1.msra.mxu0 %v7977
        %8566 = vmatprep.subr.mxu0 0.0
        %8567 = vmatpush1.msra.mxu0 %v7978
        %8568 = vmatprep.subr.mxu0 0.0
        %8569 = vmatpush1.msra.mxu0 %v7979
        %8570 = vmatprep.subr.mxu0 0.0
        %8571 = vmatpush1.msra.mxu0 %v7980
        %8572 = vmatprep.subr.mxu0 0.0
        %8573 = vmatpush1.msra.mxu0 %v7981
        %8574 = vmatprep.subr.mxu0 0.0
        %8575 = vmatpush1.msra.mxu0 0.0
        %8576 = vmatprep.subr.mxu0 0.0
        %8577 = vmatpush1.msra.mxu0 0.0
        %8578 = vmatprep.subr.mxu0 0.0
        %8579 = vmatpush1.msra.mxu0 0.0
        %8580 = vmatprep.subr.mxu0 0.0
        %8581 = vmatpush1.msra.mxu0 0.0
        %8582 = vmatprep.subr.mxu0 0.0
        %8583 = vmatpush1.msra.mxu0 0.0
        %8584 = vmatprep.subr.mxu0 0.0
        %8585 = vmatpush1.msra.mxu0 0.0
        %8586 = vmatprep.subr.mxu0 0.0
        %8587 = vmatpush1.msra.mxu0 0.0
        %8588 = vmatprep.subr.mxu0 0.0
        %8589 = vmatpush1.msra.mxu0 0.0
        %8590 = vmatprep.subr.mxu0 0.0
        %8591 = vmatpush1.msra.mxu0 0.0
        %8592 = vmatprep.subr.mxu0 0.0
        %8593 = vmatpush1.msra.mxu0 0.0
        %8594 = vmatprep.subr.mxu0 0.0
        %8595 = vmatpush1.msra.mxu0 0.0
        %8596 = vmatprep.subr.mxu0 0.0
        %8597 = vmatpush1.msra.mxu0 0.0
        %8598 = vmatprep.subr.mxu0 0.0
        %8599 = vmatpush1.msra.mxu0 0.0
        %8600 = vmatprep.subr.mxu0 0.0
        %8601 = vmatpush1.msra.mxu0 0.0
        %8602 = vmatprep.mubr.f32.mxu0 %v8530
        %8603 = vmatmul.mubr.f32.gmra.mrb[0].mxu0 %v8392
        %v8604 = vpop.f32.mrb[0].mxu0
        %v8605 = vadd.f32 %v8511, %v8604
        %v8606 = vpop.f32.mrb[0].mxu0
        %8607 = vmatprep.mubr.f32.mxu0 %v8532
        %8608 = vmatmul.mubr.f32.gmra.mrb[0].mxu0 %v8394
        %v8609 = vpop.f32.mrb[0].mxu0
        %v8610 = vadd.f32 %v8516, %v8609
        %v8611 = vpop.f32.mrb[0].mxu0
        %8612 = vmatprep.mubr.f32.mxu0 %v8534
        %8613 = vmatmul.mubr.f32.gmra.mrb[0].mxu0 %v8396
        %v8614 = vpop.f32.mrb[0].mxu0
        %v8615 = vadd.f32 %v8521, %v8614
        %v8616 = vpop.f32.mrb[0].mxu0
        %8617 = vmatprep.mubr.f32.mxu0 %v8536
        %8618 = vmatmul.mubr.f32.gmra.mrb[0].mxu0 %v8398
        %v8619 = vpop.f32.mrb[0].mxu0
        %v8620 = vadd.f32 %v8526, %v8619
        %v8621 = vpop.f32.mrb[0].mxu0
        %8622 = vdwg.mxu0
        %v8623 = vld [vmem:[#allocation3 + $0x8] sm:$0xfc]
        %v8624 = vld [vmem:[#allocation3 + $0x10] sm:$0xfc]
        %v8625 = vld [vmem:[#allocation3 + $0x68] sm:$0x3]
        %v8626 = vld [vmem:[#allocation3 + $0x70] sm:$0x3]
        %v8631 = vrot.slane %v8623, 2
        %v8632 = vrot.slane %v8394, 2
        %v8633 = vsel %vm882, %v8631, %v8632
        %v8634 = vrot.slane %v8624, 2
        %v8635 = vrot.slane %v8395, 2
        %v8636 = vsel %vm882, %v8634, %v8635
        %v8637 = vrot.slane %v8396, 2
        %v8638 = vsel %vm882, %v8632, %v8637
        %v8639 = vrot.slane %v8397, 2
        %v8640 = vsel %vm882, %v8635, %v8639
        %v8641 = vrot.slane %v8398, 2
        %v8642 = vsel %vm882, %v8637, %v8641
        %v8643 = vrot.slane %v8399, 2
        %v8644 = vsel %vm882, %v8639, %v8643
        %v8645 = vrot.slane %v8625, 2
        %v8646 = vsel %vm882, %v8641, %v8645
        %v8647 = vrot.slane %v8626, 2
        %v8648 = vsel %vm882, %v8643, %v8647
        %v8653 = vsel %vm630, %v8636, 0
        %v8655 = vsel %vm630, %v8640, 0
        %v8657 = vsel %vm630, %v8644, 0
        %v8659 = vsel %vm630, %v8648, 0
        %8661 = vmatprep.subr.mxu0 0.0
        %8662 = vmatpush1.msra.mxu0 %v8002
        %8663 = vmatprep.subr.mxu0 0.0
        %8664 = vmatpush1.msra.mxu0 %v8003
        %8665 = vmatprep.subr.mxu0 0.0
        %8666 = vmatpush1.msra.mxu0 %v8004
        %8667 = vmatprep.subr.mxu0 0.0
        %8668 = vmatpush1.msra.mxu0 %v8005
        %8669 = vmatprep.subr.mxu0 0.0
        %8670 = vmatpush1.msra.mxu0 %v8006
        %8671 = vmatprep.subr.mxu0 0.0
        %8672 = vmatpush1.msra.mxu0 %v8007
        %8673 = vmatprep.subr.mxu0 0.0
        %8674 = vmatpush1.msra.mxu0 %v8008
        %8675 = vmatprep.subr.mxu0 0.0
        %8676 = vmatpush1.msra.mxu0 %v8009
        %8677 = vmatprep.subr.mxu0 0.0
        %8678 = vmatpush1.msra.mxu0 %v8010
        %8679 = vmatprep.subr.mxu0 0.0
        %8680 = vmatpush1.msra.mxu0 %v8011
        %8681 = vmatprep.subr.mxu0 0.0
        %8682 = vmatpush1.msra.mxu0 %v8012
        %8683 = vmatprep.subr.mxu0 0.0
        %8684 = vmatpush1.msra.mxu0 %v8013
        %8685 = vmatprep.subr.mxu0 0.0
        %8686 = vmatpush1.msra.mxu0 %v8014
        %8687 = vmatprep.subr.mxu0 0.0
        %8688 = vmatpush1.msra.mxu0 %v8015
        %8689 = vmatprep.subr.mxu0 0.0
        %8690 = vmatpush1.msra.mxu0 %v8016
        %8691 = vmatprep.subr.mxu0 0.0
        %8692 = vmatpush1.msra.mxu0 %v8017
        %8693 = vmatprep.subr.mxu0 0.0
        %8694 = vmatpush1.msra.mxu0 %v8018
        %8695 = vmatprep.subr.mxu0 0.0
        %8696 = vmatpush1.msra.mxu0 %v8019
        %8697 = vmatprep.subr.mxu0 0.0
        %8698 = vmatpush1.msra.mxu0 0.0
        %8699 = vmatprep.subr.mxu0 0.0
        %8700 = vmatpush1.msra.mxu0 0.0
        %8701 = vmatprep.subr.mxu0 0.0
        %8702 = vmatpush1.msra.mxu0 0.0
        %8703 = vmatprep.subr.mxu0 0.0
        %8704 = vmatpush1.msra.mxu0 0.0
        %8705 = vmatprep.subr.mxu0 0.0
        %8706 = vmatpush1.msra.mxu0 0.0
        %8707 = vmatprep.subr.mxu0 0.0
        %8708 = vmatpush1.msra.mxu0 0.0
        %8709 = vmatprep.subr.mxu0 0.0
        %8710 = vmatpush1.msra.mxu0 0.0
        %8711 = vmatprep.subr.mxu0 0.0
        %8712 = vmatpush1.msra.mxu0 0.0
        %8713 = vmatprep.subr.mxu0 0.0
        %8714 = vmatpush1.msra.mxu0 0.0
        %8715 = vmatprep.subr.mxu0 0.0
        %8716 = vmatpush1.msra.mxu0 0.0
        %8717 = vmatprep.subr.mxu0 0.0
        %8718 = vmatpush1.msra.mxu0 0.0
        %8719 = vmatprep.subr.mxu0 0.0
        %8720 = vmatpush1.msra.mxu0 0.0
        %8721 = vmatprep.subr.mxu0 0.0
        %8722 = vmatpush1.msra.mxu0 0.0
        %8723 = vmatprep.subr.mxu0 0.0
        %8724 = vmatpush1.msra.mxu0 0.0
        %8725 = vmatprep.mubr.f32.mxu0 %v8653
        %8726 = vmatmul.mubr.f32.gmra.mrb[0].mxu0 %v8633
        %v8727 = vpop.f32.mrb[0].mxu0
        %v8728 = vadd.f32 0.0, %v8727
        %v8729 = vpop.f32.mrb[0].mxu0
        %8730 = vmatprep.mubr.f32.mxu0 %v8655
        %8731 = vmatmul.mubr.f32.gmra.mrb[0].mxu0 %v8638
        %v8732 = vpop.f32.mrb[0].mxu0
        %v8733 = vadd.f32 0.0, %v8732
        %v8734 = vpop.f32.mrb[0].mxu0
        %8735 = vmatprep.mubr.f32.mxu0 %v8657
        %8736 = vmatmul.mubr.f32.gmra.mrb[0].mxu0 %v8642
        %v8737 = vpop.f32.mrb[0].mxu0
        %v8738 = vadd.f32 0.0, %v8737
        %v8739 = vpop.f32.mrb[0].mxu0
        %8740 = vmatprep.mubr.f32.mxu0 %v8659
        %8741 = vmatmul.mubr.f32.gmra.mrb[0].mxu0 %v8646
        %v8742 = vpop.f32.mrb[0].mxu0
        %v8743 = vadd.f32 0.0, %v8742
        %v8744 = vpop.f32.mrb[0].mxu0
        %8745 = vdwg.mxu0
        %v8746 = vadd.f32 %v8605, %v8728
        %v8747 = vadd.f32 %v8610, %v8733
        %v8748 = vadd.f32 %v8615, %v8738
        %v8749 = vadd.f32 %v8620, %v8743
        %v8750 = vadd.f32 %v8746, %v8382
        %v8751 = vadd.f32 %v8747, %v8382
        %v8752 = vadd.f32 %v8748, %v8382
        %v8753 = vadd.f32 %v8749, %v8382
        %v8754 = vmax.f32 %v8750, 0.0
        %v8755 = vmax.f32 %v8751, 0.0
        %v8756 = vmax.f32 %v8752, 0.0
        %v8757 = vmax.f32 %v8753, 0.0
        %8758 = vst [vmem:[#allocation4] sm:$0xff] 0.0
        %8759 = vst [vmem:[#allocation4 + $0x8] sm:$0xff] 0.0
        %8760 = vst.msk [vmem:[#allocation4 + $0x10] sm:$0xff] %vm630, 0.0
        %8761 = vst [vmem:[#allocation4 + $0x18] sm:$0xff] 0.0
        %8762 = vst [vmem:[#allocation4 + $0x20] sm:$0xff] 0.0
        %8763 = vst.msk [vmem:[#allocation4 + $0x28] sm:$0xff] %vm630, 0.0
        %8764 = vst [vmem:[#allocation4 + $0x30] sm:$0xff] 0.0
        %8765 = vst [vmem:[#allocation4 + $0x38] sm:$0xff] 0.0
        %8766 = vst.msk [vmem:[#allocation4 + $0x40] sm:$0xff] %vm630, 0.0
        %8767 = vst [vmem:[#allocation4 + $0x48] sm:$0xff] 0.0
        %8768 = vst [vmem:[#allocation4 + $0x50] sm:$0xff] 0.0
        %8769 = vst.msk [vmem:[#allocation4 + $0x58] sm:$0xff] %vm630, 0.0
        %8770 = vst [vmem:[#allocation4 + $0x60] sm:$0x3] 0.0
        %8771 = vst [vmem:[#allocation4 + $0x68] sm:$0x3] 0.0
        %8772 = vst.msk [vmem:[#allocation4 + $0x70] sm:$0x3] %vm2674, 0.0
        %v8781 = vrot.slane %v8388, 7
        %v8782 = vrot.slane %v8754, 7
        %v8783 = vrot.slane %v8389, 7
        %v8784 = vsel %vm2708, %v8781, %v8783
        %v8785 = vrot.slane %v8755, 7
        %v8786 = vsel %vm2708, %v8782, %v8785
        %v8787 = vrot.slane %v8390, 7
        %v8788 = vsel %vm2708, %v8783, %v8787
        %v8789 = vrot.slane %v8756, 7
        %v8790 = vsel %vm2708, %v8785, %v8789
        %v8791 = vrot.slane %v8391, 7
        %v8792 = vsel %vm2708, %v8787, %v8791
        %v8793 = vrot.slane %v8757, 7
        %v8794 = vsel %vm2708, %v8789, %v8793
        %8795 = vrot.lane.b32.xlu0 %v8781, 8
        %v8796 = vpop.permute.xlu0 %8795
        %8797 = vrot.lane.b32.xlu0 %v8782, 8
        %v8798 = vpop.permute.xlu0 %8797
        %8799 = vrot.lane.b32.xlu0 %v8784, 8
        %v8800 = vpop.permute.xlu0 %8799
        %8801 = vrot.lane.b32.xlu0 %v8786, 8
        %v8802 = vpop.permute.xlu0 %8801
        %8803 = vrot.lane.b32.xlu0 %v8788, 8
        %v8804 = vpop.permute.xlu0 %8803
        %8805 = vrot.lane.b32.xlu0 %v8790, 8
        %v8806 = vpop.permute.xlu0 %8805
        %8807 = vrot.lane.b32.xlu0 %v8792, 8
        %v8808 = vpop.permute.xlu0 %8807
        %8809 = vrot.lane.b32.xlu0 %v8794, 8
        %v8810 = vpop.permute.xlu0 %8809
        %8811 = vrot.lane.b32.xlu0 %v8791, 8
        %v8812 = vpop.permute.xlu0 %8811
        %8813 = vrot.lane.b32.xlu0 %v8793, 8
        %v8814 = vpop.permute.xlu0 %8813
        %v8815 = vsel %vm2841, %v8796, %v8798
        %v8816 = vsel %vm2841, %v8800, %v8802
        %v8817 = vsel %vm2841, %v8804, %v8806
        %v8818 = vsel %vm2841, %v8808, %v8810
        %v8819 = vsel %vm2841, %v8812, %v8814
        %8835 = vst.msk [vmem:[#allocation4] sm:$0xfe] %vm2914, %v8796
        %8836 = vst [vmem:[#allocation4 + $0x8] sm:$0xfe] %v8815
        %8837 = vst.msk [vmem:[#allocation4 + $0x10] sm:$0xfe] %vm2919, %v8798
        %8838 = vst.msk [vmem:[#allocation4 + $0x18] sm:$0xff] %vm2921, %v8800
        %8839 = vst [vmem:[#allocation4 + $0x20] sm:$0xff] %v8816
        %8840 = vst.msk [vmem:[#allocation4 + $0x28] sm:$0xff] %vm2841, %v8802
        %8841 = vst.msk [vmem:[#allocation4 + $0x30] sm:$0xff] %vm2921, %v8804
        %8842 = vst [vmem:[#allocation4 + $0x38] sm:$0xff] %v8817
        %8843 = vst.msk [vmem:[#allocation4 + $0x40] sm:$0xff] %vm2841, %v8806
        %8844 = vst.msk [vmem:[#allocation4 + $0x48] sm:$0xff] %vm2921, %v8808
        %8845 = vst [vmem:[#allocation4 + $0x50] sm:$0xff] %v8818
        %8846 = vst.msk [vmem:[#allocation4 + $0x58] sm:$0xff] %vm2841, %v8810
        %8847 = vst.msk [vmem:[#allocation4 + $0x60] sm:$0x1] %vm2957, %v8812
        %8848 = vst [vmem:[#allocation4 + $0x68] sm:$0x1] %v8819
        %8849 = vst.msk [vmem:[#allocation4 + $0x70] sm:$0x1] %vm2962, %v8814
        %v8850 = vld [vmem:[%s8] sm:$0x1]
        %v8851 = vld [vmem:[%s7] sm:$0xff]
        %v8852 = vld [vmem:[%s7 + $0x8] sm:$0xff]
        %v8853 = vld [vmem:[%s7 + $0x10] sm:$0xff]
        %v8854 = vld [vmem:[%s7 + $0x18] sm:$0xff]
        %v8855 = vld [vmem:[%s7 + $0x20] sm:$0xff]
        %v8856 = vld [vmem:[%s7 + $0x28] sm:$0xff]
        %v8857 = vld [vmem:[%s7 + $0x30] sm:$0xff]
        %v8858 = vld [vmem:[%s7 + $0x38] sm:$0xff]
        %v8859 = vld [vmem:[%s7 + $0x40] sm:$0xff]
        %v8860 = vld [vmem:[%s7 + $0x48] sm:$0xff]
        %v8861 = vld [vmem:[%s7 + $0x50] sm:$0xff]
        %v8862 = vld [vmem:[%s7 + $0x58] sm:$0xff]
        %v8863 = vld [vmem:[%s7 + $0x60] sm:$0xff]
        %v8864 = vld [vmem:[%s7 + $0x68] sm:$0xff]
        %v8865 = vld [vmem:[%s7 + $0x70] sm:$0xff]
        %v8866 = vld [vmem:[%s7 + $0x78] sm:$0xff]
        %v8867 = vld [vmem:[%s7 + $0x80] sm:$0xff]
        %v8868 = vld [vmem:[%s7 + $0x88] sm:$0xff]
        %s8869 = scalar_lea.vmem %s7, 144
        %v8870 = vld [vmem:[%s8869] sm:$0xff]
        %v8871 = vld [vmem:[%s8869 + $0x8] sm:$0xff]
        %v8872 = vld [vmem:[%s8869 + $0x10] sm:$0xff]
        %v8873 = vld [vmem:[%s8869 + $0x18] sm:$0xff]
        %v8874 = vld [vmem:[%s8869 + $0x20] sm:$0xff]
        %v8875 = vld [vmem:[%s8869 + $0x28] sm:$0xff]
        %v8876 = vld [vmem:[%s8869 + $0x30] sm:$0xff]
        %v8877 = vld [vmem:[%s8869 + $0x38] sm:$0xff]
        %v8878 = vld [vmem:[%s8869 + $0x40] sm:$0xff]
        %v8879 = vld [vmem:[%s8869 + $0x48] sm:$0xff]
        %v8880 = vld [vmem:[%s8869 + $0x50] sm:$0xff]
        %v8881 = vld [vmem:[%s8869 + $0x58] sm:$0xff]
        %v8882 = vld [vmem:[%s8869 + $0x60] sm:$0xff]
        %v8883 = vld [vmem:[%s8869 + $0x68] sm:$0xff]
        %v8884 = vld [vmem:[%s8869 + $0x70] sm:$0xff]
        %v8885 = vld [vmem:[%s8869 + $0x78] sm:$0xff]
        %v8886 = vld [vmem:[%s8869 + $0x80] sm:$0xff]
        %v8887 = vld [vmem:[%s8869 + $0x88] sm:$0xff]
        %s8888 = scalar_lea.vmem %s7, 288
        %v8889 = vld [vmem:[%s8888] sm:$0xff]
        %v8890 = vld [vmem:[%s8888 + $0x8] sm:$0xff]
        %v8891 = vld [vmem:[%s8888 + $0x10] sm:$0xff]
        %v8892 = vld [vmem:[%s8888 + $0x18] sm:$0xff]
        %v8893 = vld [vmem:[%s8888 + $0x20] sm:$0xff]
        %v8894 = vld [vmem:[%s8888 + $0x28] sm:$0xff]
        %v8895 = vld [vmem:[%s8888 + $0x30] sm:$0xff]
        %v8896 = vld [vmem:[%s8888 + $0x38] sm:$0xff]
        %v8897 = vld [vmem:[%s8888 + $0x40] sm:$0xff]
        %v8898 = vld [vmem:[%s8888 + $0x48] sm:$0xff]
        %v8899 = vld [vmem:[%s8888 + $0x50] sm:$0xff]
        %v8900 = vld [vmem:[%s8888 + $0x58] sm:$0xff]
        %v8901 = vld [vmem:[%s8888 + $0x60] sm:$0xff]
        %v8902 = vld [vmem:[%s8888 + $0x68] sm:$0xff]
        %v8903 = vld [vmem:[%s8888 + $0x70] sm:$0xff]
        %v8904 = vld [vmem:[%s8888 + $0x78] sm:$0xff]
        %v8905 = vld [vmem:[%s8888 + $0x80] sm:$0xff]
        %v8906 = vld [vmem:[%s8888 + $0x88] sm:$0xff]
        %v8907 = vld [vmem:[#allocation4] sm:$0xff]
        %v8908 = vld [vmem:[#allocation4 + $0x8] sm:$0xff]
        %v8909 = vld [vmem:[#allocation4 + $0x18] sm:$0xff]
        %v8910 = vld [vmem:[#allocation4 + $0x20] sm:$0xff]
        %v8911 = vld [vmem:[#allocation4 + $0x30] sm:$0xff]
        %v8912 = vld [vmem:[#allocation4 + $0x38] sm:$0xff]
        %v8913 = vld [vmem:[#allocation4 + $0x48] sm:$0xff]
        %v8914 = vld [vmem:[#allocation4 + $0x50] sm:$0xff]
        %v8915 = vld [vmem:[#allocation4] sm:$0xfe]
        %v8916 = vld [vmem:[#allocation4 + $0x8] sm:$0xfe]
        %v8917 = vld [vmem:[#allocation4 + $0x60] sm:$0x1]
        %v8918 = vld [vmem:[#allocation4 + $0x68] sm:$0x1]
        %v8929 = vrot.slane %v8915, 1
        %v8930 = vrot.slane %v8909, 1
        %v8931 = vsel %vm587, %v8929, %v8930
        %v8932 = vrot.slane %v8916, 1
        %v8933 = vrot.slane %v8910, 1
        %v8934 = vsel %vm587, %v8932, %v8933
        %v8935 = vrot.slane %v8911, 1
        %v8936 = vsel %vm587, %v8930, %v8935
        %v8937 = vrot.slane %v8912, 1
        %v8938 = vsel %vm587, %v8933, %v8937
        %v8939 = vrot.slane %v8913, 1
        %v8940 = vsel %vm587, %v8935, %v8939
        %v8941 = vrot.slane %v8914, 1
        %v8942 = vsel %vm587, %v8937, %v8941
        %v8943 = vrot.slane %v8917, 1
        %v8944 = vsel %vm587, %v8939, %v8943
        %v8945 = vrot.slane %v8918, 1
        %v8946 = vsel %vm587, %v8941, %v8945
        %v8951 = vsel %vm630, %v8934, 0
        %v8953 = vsel %vm630, %v8938, 0
        %v8955 = vsel %vm630, %v8942, 0
        %v8957 = vsel %vm630, %v8946, 0
        %8959 = vmatprep.subr.mxu0 0.0
        %8960 = vmatpush1.msra.mxu0 %v8870
        %8961 = vmatprep.subr.mxu0 0.0
        %8962 = vmatpush1.msra.mxu0 %v8871
        %8963 = vmatprep.subr.mxu0 0.0
        %8964 = vmatpush1.msra.mxu0 %v8872
        %8965 = vmatprep.subr.mxu0 0.0
        %8966 = vmatpush1.msra.mxu0 %v8873
        %8967 = vmatprep.subr.mxu0 0.0
        %8968 = vmatpush1.msra.mxu0 %v8874
        %8969 = vmatprep.subr.mxu0 0.0
        %8970 = vmatpush1.msra.mxu0 %v8875
        %8971 = vmatprep.subr.mxu0 0.0
        %8972 = vmatpush1.msra.mxu0 %v8876
        %8973 = vmatprep.subr.mxu0 0.0
        %8974 = vmatpush1.msra.mxu0 %v8877
        %8975 = vmatprep.subr.mxu0 0.0
        %8976 = vmatpush1.msra.mxu0 %v8878
        %8977 = vmatprep.subr.mxu0 0.0
        %8978 = vmatpush1.msra.mxu0 %v8879
        %8979 = vmatprep.subr.mxu0 0.0
        %8980 = vmatpush1.msra.mxu0 %v8880
        %8981 = vmatprep.subr.mxu0 0.0
        %8982 = vmatpush1.msra.mxu0 %v8881
        %8983 = vmatprep.subr.mxu0 0.0
        %8984 = vmatpush1.msra.mxu0 %v8882
        %8985 = vmatprep.subr.mxu0 0.0
        %8986 = vmatpush1.msra.mxu0 %v8883
        %8987 = vmatprep.subr.mxu0 0.0
        %8988 = vmatpush1.msra.mxu0 %v8884
        %8989 = vmatprep.subr.mxu0 0.0
        %8990 = vmatpush1.msra.mxu0 %v8885
        %8991 = vmatprep.subr.mxu0 0.0
        %8992 = vmatpush1.msra.mxu0 %v8886
        %8993 = vmatprep.subr.mxu0 0.0
        %8994 = vmatpush1.msra.mxu0 %v8887
        %8995 = vmatprep.subr.mxu0 0.0
        %8996 = vmatpush1.msra.mxu0 0.0
        %8997 = vmatprep.subr.mxu0 0.0
        %8998 = vmatpush1.msra.mxu0 0.0
        %8999 = vmatprep.subr.mxu0 0.0
        %9000 = vmatpush1.msra.mxu0 0.0
        %9001 = vmatprep.subr.mxu0 0.0
        %9002 = vmatpush1.msra.mxu0 0.0
        %9003 = vmatprep.subr.mxu0 0.0
        %9004 = vmatpush1.msra.mxu0 0.0
        %9005 = vmatprep.subr.mxu0 0.0
        %9006 = vmatpush1.msra.mxu0 0.0
        %9007 = vmatprep.subr.mxu0 0.0
        %9008 = vmatpush1.msra.mxu0 0.0
        %9009 = vmatprep.subr.mxu0 0.0
        %9010 = vmatpush1.msra.mxu0 0.0
        %9011 = vmatprep.subr.mxu0 0.0
        %9012 = vmatpush1.msra.mxu0 0.0
        %9013 = vmatprep.subr.mxu0 0.0
        %9014 = vmatpush1.msra.mxu0 0.0
        %9015 = vmatprep.subr.mxu0 0.0
        %9016 = vmatpush1.msra.mxu0 0.0
        %9017 = vmatprep.subr.mxu0 0.0
        %9018 = vmatpush1.msra.mxu0 0.0
        %9019 = vmatprep.subr.mxu0 0.0
        %9020 = vmatpush1.msra.mxu0 0.0
        %9021 = vmatprep.subr.mxu0 0.0
        %9022 = vmatpush1.msra.mxu0 0.0
        %9023 = vmatprep.mubr.f32.mxu0 %v8951
        %9024 = vmatmul.mubr.f32.gmra.mrb[0].mxu0 %v8931
        %v9025 = vpop.f32.mrb[0].mxu0
        %v9026 = vadd.f32 0.0, %v9025
        %v9027 = vpop.f32.mrb[0].mxu0
        %9028 = vmatprep.mubr.f32.mxu0 %v8953
        %9029 = vmatmul.mubr.f32.gmra.mrb[0].mxu0 %v8936
        %v9030 = vpop.f32.mrb[0].mxu0
        %v9031 = vadd.f32 0.0, %v9030
        %v9032 = vpop.f32.mrb[0].mxu0
        %9033 = vmatprep.mubr.f32.mxu0 %v8955
        %9034 = vmatmul.mubr.f32.gmra.mrb[0].mxu0 %v8940
        %v9035 = vpop.f32.mrb[0].mxu0
        %v9036 = vadd.f32 0.0, %v9035
        %v9037 = vpop.f32.mrb[0].mxu0
        %9038 = vmatprep.mubr.f32.mxu0 %v8957
        %9039 = vmatmul.mubr.f32.gmra.mrb[0].mxu0 %v8944
        %v9040 = vpop.f32.mrb[0].mxu0
        %v9041 = vadd.f32 0.0, %v9040
        %v9042 = vpop.f32.mrb[0].mxu0
        %9043 = vdwg.mxu0
        %v9045 = vsel %vm630, %v8908, 0
        %v9047 = vsel %vm630, %v8910, 0
        %v9049 = vsel %vm630, %v8912, 0
        %v9051 = vsel %vm630, %v8914, 0
        %9053 = vmatprep.subr.mxu0 0.0
        %9054 = vmatpush1.msra.mxu0 %v8851
        %9055 = vmatprep.subr.mxu0 0.0
        %9056 = vmatpush1.msra.mxu0 %v8852
        %9057 = vmatprep.subr.mxu0 0.0
        %9058 = vmatpush1.msra.mxu0 %v8853
        %9059 = vmatprep.subr.mxu0 0.0
        %9060 = vmatpush1.msra.mxu0 %v8854
        %9061 = vmatprep.subr.mxu0 0.0
        %9062 = vmatpush1.msra.mxu0 %v8855
        %9063 = vmatprep.subr.mxu0 0.0
        %9064 = vmatpush1.msra.mxu0 %v8856
        %9065 = vmatprep.subr.mxu0 0.0
        %9066 = vmatpush1.msra.mxu0 %v8857
        %9067 = vmatprep.subr.mxu0 0.0
        %9068 = vmatpush1.msra.mxu0 %v8858
        %9069 = vmatprep.subr.mxu0 0.0
        %9070 = vmatpush1.msra.mxu0 %v8859
        %9071 = vmatprep.subr.mxu0 0.0
        %9072 = vmatpush1.msra.mxu0 %v8860
        %9073 = vmatprep.subr.mxu0 0.0
        %9074 = vmatpush1.msra.mxu0 %v8861
        %9075 = vmatprep.subr.mxu0 0.0
        %9076 = vmatpush1.msra.mxu0 %v8862
        %9077 = vmatprep.subr.mxu0 0.0
        %9078 = vmatpush1.msra.mxu0 %v8863
        %9079 = vmatprep.subr.mxu0 0.0
        %9080 = vmatpush1.msra.mxu0 %v8864
        %9081 = vmatprep.subr.mxu0 0.0
        %9082 = vmatpush1.msra.mxu0 %v8865
        %9083 = vmatprep.subr.mxu0 0.0
        %9084 = vmatpush1.msra.mxu0 %v8866
        %9085 = vmatprep.subr.mxu0 0.0
        %9086 = vmatpush1.msra.mxu0 %v8867
        %9087 = vmatprep.subr.mxu0 0.0
        %9088 = vmatpush1.msra.mxu0 %v8868
        %9089 = vmatprep.subr.mxu0 0.0
        %9090 = vmatpush1.msra.mxu0 0.0
        %9091 = vmatprep.subr.mxu0 0.0
        %9092 = vmatpush1.msra.mxu0 0.0
        %9093 = vmatprep.subr.mxu0 0.0
        %9094 = vmatpush1.msra.mxu0 0.0
        %9095 = vmatprep.subr.mxu0 0.0
        %9096 = vmatpush1.msra.mxu0 0.0
        %9097 = vmatprep.subr.mxu0 0.0
        %9098 = vmatpush1.msra.mxu0 0.0
        %9099 = vmatprep.subr.mxu0 0.0
        %9100 = vmatpush1.msra.mxu0 0.0
        %9101 = vmatprep.subr.mxu0 0.0
        %9102 = vmatpush1.msra.mxu0 0.0
        %9103 = vmatprep.subr.mxu0 0.0
        %9104 = vmatpush1.msra.mxu0 0.0
        %9105 = vmatprep.subr.mxu0 0.0
        %9106 = vmatpush1.msra.mxu0 0.0
        %9107 = vmatprep.subr.mxu0 0.0
        %9108 = vmatpush1.msra.mxu0 0.0
        %9109 = vmatprep.subr.mxu0 0.0
        %9110 = vmatpush1.msra.mxu0 0.0
        %9111 = vmatprep.subr.mxu0 0.0
        %9112 = vmatpush1.msra.mxu0 0.0
        %9113 = vmatprep.subr.mxu0 0.0
        %9114 = vmatpush1.msra.mxu0 0.0
        %9115 = vmatprep.subr.mxu0 0.0
        %9116 = vmatpush1.msra.mxu0 0.0
        %9117 = vmatprep.mubr.f32.mxu0 %v9045
        %9118 = vmatmul.mubr.f32.gmra.mrb[0].mxu0 %v8907
        %v9119 = vpop.f32.mrb[0].mxu0
        %v9120 = vadd.f32 %v9026, %v9119
        %v9121 = vpop.f32.mrb[0].mxu0
        %9122 = vmatprep.mubr.f32.mxu0 %v9047
        %9123 = vmatmul.mubr.f32.gmra.mrb[0].mxu0 %v8909
        %v9124 = vpop.f32.mrb[0].mxu0
        %v9125 = vadd.f32 %v9031, %v9124
        %v9126 = vpop.f32.mrb[0].mxu0
        %9127 = vmatprep.mubr.f32.mxu0 %v9049
        %9128 = vmatmul.mubr.f32.gmra.mrb[0].mxu0 %v8911
        %v9129 = vpop.f32.mrb[0].mxu0
        %v9130 = vadd.f32 %v9036, %v9129
        %v9131 = vpop.f32.mrb[0].mxu0
        %9132 = vmatprep.mubr.f32.mxu0 %v9051
        %9133 = vmatmul.mubr.f32.gmra.mrb[0].mxu0 %v8913
        %v9134 = vpop.f32.mrb[0].mxu0
        %v9135 = vadd.f32 %v9041, %v9134
        %v9136 = vpop.f32.mrb[0].mxu0
        %9137 = vdwg.mxu0
        %v9138 = vld [vmem:[#allocation4] sm:$0xfc]
        %v9139 = vld [vmem:[#allocation4 + $0x8] sm:$0xfc]
        %v9140 = vld [vmem:[#allocation4 + $0x60] sm:$0x3]
        %v9141 = vld [vmem:[#allocation4 + $0x68] sm:$0x3]
        %v9146 = vrot.slane %v9138, 2
        %v9147 = vrot.slane %v8909, 2
        %v9148 = vsel %vm882, %v9146, %v9147
        %v9149 = vrot.slane %v9139, 2
        %v9150 = vrot.slane %v8910, 2
        %v9151 = vsel %vm882, %v9149, %v9150
        %v9152 = vrot.slane %v8911, 2
        %v9153 = vsel %vm882, %v9147, %v9152
        %v9154 = vrot.slane %v8912, 2
        %v9155 = vsel %vm882, %v9150, %v9154
        %v9156 = vrot.slane %v8913, 2
        %v9157 = vsel %vm882, %v9152, %v9156
        %v9158 = vrot.slane %v8914, 2
        %v9159 = vsel %vm882, %v9154, %v9158
        %v9160 = vrot.slane %v9140, 2
        %v9161 = vsel %vm882, %v9156, %v9160
        %v9162 = vrot.slane %v9141, 2
        %v9163 = vsel %vm882, %v9158, %v9162
        %v9168 = vsel %vm630, %v9151, 0
        %v9170 = vsel %vm630, %v9155, 0
        %v9172 = vsel %vm630, %v9159, 0
        %v9174 = vsel %vm630, %v9163, 0
        %9176 = vmatprep.subr.mxu0 0.0
        %9177 = vmatpush1.msra.mxu0 %v8889
        %9178 = vmatprep.subr.mxu0 0.0
        %9179 = vmatpush1.msra.mxu0 %v8890
        %9180 = vmatprep.subr.mxu0 0.0
        %9181 = vmatpush1.msra.mxu0 %v8891
        %9182 = vmatprep.subr.mxu0 0.0
        %9183 = vmatpush1.msra.mxu0 %v8892
        %9184 = vmatprep.subr.mxu0 0.0
        %9185 = vmatpush1.msra.mxu0 %v8893
        %9186 = vmatprep.subr.mxu0 0.0
        %9187 = vmatpush1.msra.mxu0 %v8894
        %9188 = vmatprep.subr.mxu0 0.0
        %9189 = vmatpush1.msra.mxu0 %v8895
        %9190 = vmatprep.subr.mxu0 0.0
        %9191 = vmatpush1.msra.mxu0 %v8896
        %9192 = vmatprep.subr.mxu0 0.0
        %9193 = vmatpush1.msra.mxu0 %v8897
        %9194 = vmatprep.subr.mxu0 0.0
        %9195 = vmatpush1.msra.mxu0 %v8898
        %9196 = vmatprep.subr.mxu0 0.0
        %9197 = vmatpush1.msra.mxu0 %v8899
        %9198 = vmatprep.subr.mxu0 0.0
        %9199 = vmatpush1.msra.mxu0 %v8900
        %9200 = vmatprep.subr.mxu0 0.0
        %9201 = vmatpush1.msra.mxu0 %v8901
        %9202 = vmatprep.subr.mxu0 0.0
        %9203 = vmatpush1.msra.mxu0 %v8902
        %9204 = vmatprep.subr.mxu0 0.0
        %9205 = vmatpush1.msra.mxu0 %v8903
        %9206 = vmatprep.subr.mxu0 0.0
        %9207 = vmatpush1.msra.mxu0 %v8904
        %9208 = vmatprep.subr.mxu0 0.0
        %9209 = vmatpush1.msra.mxu0 %v8905
        %9210 = vmatprep.subr.mxu0 0.0
        %9211 = vmatpush1.msra.mxu0 %v8906
        %9212 = vmatprep.subr.mxu0 0.0
        %9213 = vmatpush1.msra.mxu0 0.0
        %9214 = vmatprep.subr.mxu0 0.0
        %9215 = vmatpush1.msra.mxu0 0.0
        %9216 = vmatprep.subr.mxu0 0.0
        %9217 = vmatpush1.msra.mxu0 0.0
        %9218 = vmatprep.subr.mxu0 0.0
        %9219 = vmatpush1.msra.mxu0 0.0
        %9220 = vmatprep.subr.mxu0 0.0
        %9221 = vmatpush1.msra.mxu0 0.0
        %9222 = vmatprep.subr.mxu0 0.0
        %9223 = vmatpush1.msra.mxu0 0.0
        %9224 = vmatprep.subr.mxu0 0.0
        %9225 = vmatpush1.msra.mxu0 0.0
        %9226 = vmatprep.subr.mxu0 0.0
        %9227 = vmatpush1.msra.mxu0 0.0
        %9228 = vmatprep.subr.mxu0 0.0
        %9229 = vmatpush1.msra.mxu0 0.0
        %9230 = vmatprep.subr.mxu0 0.0
        %9231 = vmatpush1.msra.mxu0 0.0
        %9232 = vmatprep.subr.mxu0 0.0
        %9233 = vmatpush1.msra.mxu0 0.0
        %9234 = vmatprep.subr.mxu0 0.0
        %9235 = vmatpush1.msra.mxu0 0.0
        %9236 = vmatprep.subr.mxu0 0.0
        %9237 = vmatpush1.msra.mxu0 0.0
        %9238 = vmatprep.subr.mxu0 0.0
        %9239 = vmatpush1.msra.mxu0 0.0
        %9240 = vmatprep.mubr.f32.mxu0 %v9168
        %9241 = vmatmul.mubr.f32.gmra.mrb[0].mxu0 %v9148
        %v9242 = vpop.f32.mrb[0].mxu0
        %v9243 = vadd.f32 0.0, %v9242
        %v9244 = vpop.f32.mrb[0].mxu0
        %9245 = vmatprep.mubr.f32.mxu0 %v9170
        %9246 = vmatmul.mubr.f32.gmra.mrb[0].mxu0 %v9153
        %v9247 = vpop.f32.mrb[0].mxu0
        %v9248 = vadd.f32 0.0, %v9247
        %v9249 = vpop.f32.mrb[0].mxu0
        %9250 = vmatprep.mubr.f32.mxu0 %v9172
        %9251 = vmatmul.mubr.f32.gmra.mrb[0].mxu0 %v9157
        %v9252 = vpop.f32.mrb[0].mxu0
        %v9253 = vadd.f32 0.0, %v9252
        %v9254 = vpop.f32.mrb[0].mxu0
        %9255 = vmatprep.mubr.f32.mxu0 %v9174
        %9256 = vmatmul.mubr.f32.gmra.mrb[0].mxu0 %v9161
        %v9257 = vpop.f32.mrb[0].mxu0
        %v9258 = vadd.f32 0.0, %v9257
        %v9259 = vpop.f32.mrb[0].mxu0
        %9260 = vdwg.mxu0
        %v9261 = vadd.f32 %v9120, %v9243
        %v9262 = vadd.f32 %v9125, %v9248
        %v9263 = vadd.f32 %v9130, %v9253
        %v9264 = vadd.f32 %v9135, %v9258
        %v9266 = vlaneseq
        %v9267 = vshrl.u32 %v9266, 7
        %v9268 = vsub.s32 0, %v9267
        %v9269 = vrot.slane %v8850, %v9268
        %v9271 = vadd.f32 %v9261, %v9269
        %v9272 = vadd.f32 %v9262, %v9269
        %v9273 = vadd.f32 %v9263, %v9269
        %v9274 = vadd.f32 %v9264, %v9269
        %v9275 = vmax.f32 %v9271, 0.0
        %v9276 = vmax.f32 %v9272, 0.0
        %v9277 = vmax.f32 %v9273, 0.0
        %v9278 = vmax.f32 %v9274, 0.0
        %v9279 = vld [vmem:[#allocation4 + $0x8] sm:$0xff]
        %v9280 = vld [vmem:[#allocation4 + $0x10] sm:$0xff]
        %v9281 = vld [vmem:[#allocation4 + $0x20] sm:$0xff]
        %v9282 = vld [vmem:[#allocation4 + $0x28] sm:$0xff]
        %v9283 = vld [vmem:[#allocation4 + $0x38] sm:$0xff]
        %v9284 = vld [vmem:[#allocation4 + $0x40] sm:$0xff]
        %v9285 = vld [vmem:[#allocation4 + $0x50] sm:$0xff]
        %v9286 = vld [vmem:[#allocation4 + $0x58] sm:$0xff]
        %v9287 = vld [vmem:[#allocation4 + $0x8] sm:$0xfe]
        %v9288 = vld [vmem:[#allocation4 + $0x10] sm:$0xfe]
        %v9289 = vld [vmem:[#allocation4 + $0x68] sm:$0x1]
        %v9290 = vld [vmem:[#allocation4 + $0x70] sm:$0x1]
        %v9301 = vrot.slane %v9287, 1
        %v9302 = vrot.slane %v9281, 1
        %v9303 = vsel %vm587, %v9301, %v9302
        %v9304 = vrot.slane %v9288, 1
        %v9305 = vrot.slane %v9282, 1
        %v9306 = vsel %vm587, %v9304, %v9305
        %v9307 = vrot.slane %v9283, 1
        %v9308 = vsel %vm587, %v9302, %v9307
        %v9309 = vrot.slane %v9284, 1
        %v9310 = vsel %vm587, %v9305, %v9309
        %v9311 = vrot.slane %v9285, 1
        %v9312 = vsel %vm587, %v9307, %v9311
        %v9313 = vrot.slane %v9286, 1
        %v9314 = vsel %vm587, %v9309, %v9313
        %v9315 = vrot.slane %v9289, 1
        %v9316 = vsel %vm587, %v9311, %v9315
        %v9317 = vrot.slane %v9290, 1
        %v9318 = vsel %vm587, %v9313, %v9317
        %v9323 = vsel %vm630, %v9306, 0
        %v9325 = vsel %vm630, %v9310, 0
        %v9327 = vsel %vm630, %v9314, 0
        %v9329 = vsel %vm630, %v9318, 0
        %9331 = vmatprep.subr.mxu0 0.0
        %9332 = vmatpush1.msra.mxu0 %v8870
        %9333 = vmatprep.subr.mxu0 0.0
        %9334 = vmatpush1.msra.mxu0 %v8871
        %9335 = vmatprep.subr.mxu0 0.0
        %9336 = vmatpush1.msra.mxu0 %v8872
        %9337 = vmatprep.subr.mxu0 0.0
        %9338 = vmatpush1.msra.mxu0 %v8873
        %9339 = vmatprep.subr.mxu0 0.0
        %9340 = vmatpush1.msra.mxu0 %v8874
        %9341 = vmatprep.subr.mxu0 0.0
        %9342 = vmatpush1.msra.mxu0 %v8875
        %9343 = vmatprep.subr.mxu0 0.0
        %9344 = vmatpush1.msra.mxu0 %v8876
        %9345 = vmatprep.subr.mxu0 0.0
        %9346 = vmatpush1.msra.mxu0 %v8877
        %9347 = vmatprep.subr.mxu0 0.0
        %9348 = vmatpush1.msra.mxu0 %v8878
        %9349 = vmatprep.subr.mxu0 0.0
        %9350 = vmatpush1.msra.mxu0 %v8879
        %9351 = vmatprep.subr.mxu0 0.0
        %9352 = vmatpush1.msra.mxu0 %v8880
        %9353 = vmatprep.subr.mxu0 0.0
        %9354 = vmatpush1.msra.mxu0 %v8881
        %9355 = vmatprep.subr.mxu0 0.0
        %9356 = vmatpush1.msra.mxu0 %v8882
        %9357 = vmatprep.subr.mxu0 0.0
        %9358 = vmatpush1.msra.mxu0 %v8883
        %9359 = vmatprep.subr.mxu0 0.0
        %9360 = vmatpush1.msra.mxu0 %v8884
        %9361 = vmatprep.subr.mxu0 0.0
        %9362 = vmatpush1.msra.mxu0 %v8885
        %9363 = vmatprep.subr.mxu0 0.0
        %9364 = vmatpush1.msra.mxu0 %v8886
        %9365 = vmatprep.subr.mxu0 0.0
        %9366 = vmatpush1.msra.mxu0 %v8887
        %9367 = vmatprep.subr.mxu0 0.0
        %9368 = vmatpush1.msra.mxu0 0.0
        %9369 = vmatprep.subr.mxu0 0.0
        %9370 = vmatpush1.msra.mxu0 0.0
        %9371 = vmatprep.subr.mxu0 0.0
        %9372 = vmatpush1.msra.mxu0 0.0
        %9373 = vmatprep.subr.mxu0 0.0
        %9374 = vmatpush1.msra.mxu0 0.0
        %9375 = vmatprep.subr.mxu0 0.0
        %9376 = vmatpush1.msra.mxu0 0.0
        %9377 = vmatprep.subr.mxu0 0.0
        %9378 = vmatpush1.msra.mxu0 0.0
        %9379 = vmatprep.subr.mxu0 0.0
        %9380 = vmatpush1.msra.mxu0 0.0
        %9381 = vmatprep.subr.mxu0 0.0
        %9382 = vmatpush1.msra.mxu0 0.0
        %9383 = vmatprep.subr.mxu0 0.0
        %9384 = vmatpush1.msra.mxu0 0.0
        %9385 = vmatprep.subr.mxu0 0.0
        %9386 = vmatpush1.msra.mxu0 0.0
        %9387 = vmatprep.subr.mxu0 0.0
        %9388 = vmatpush1.msra.mxu0 0.0
        %9389 = vmatprep.subr.mxu0 0.0
        %9390 = vmatpush1.msra.mxu0 0.0
        %9391 = vmatprep.subr.mxu0 0.0
        %9392 = vmatpush1.msra.mxu0 0.0
        %9393 = vmatprep.subr.mxu0 0.0
        %9394 = vmatpush1.msra.mxu0 0.0
        %9395 = vmatprep.mubr.f32.mxu0 %v9323
        %9396 = vmatmul.mubr.f32.gmra.mrb[0].mxu0 %v9303
        %v9397 = vpop.f32.mrb[0].mxu0
        %v9398 = vadd.f32 0.0, %v9397
        %v9399 = vpop.f32.mrb[0].mxu0
        %9400 = vmatprep.mubr.f32.mxu0 %v9325
        %9401 = vmatmul.mubr.f32.gmra.mrb[0].mxu0 %v9308
        %v9402 = vpop.f32.mrb[0].mxu0
        %v9403 = vadd.f32 0.0, %v9402
        %v9404 = vpop.f32.mrb[0].mxu0
        %9405 = vmatprep.mubr.f32.mxu0 %v9327
        %9406 = vmatmul.mubr.f32.gmra.mrb[0].mxu0 %v9312
        %v9407 = vpop.f32.mrb[0].mxu0
        %v9408 = vadd.f32 0.0, %v9407
        %v9409 = vpop.f32.mrb[0].mxu0
        %9410 = vmatprep.mubr.f32.mxu0 %v9329
        %9411 = vmatmul.mubr.f32.gmra.mrb[0].mxu0 %v9316
        %v9412 = vpop.f32.mrb[0].mxu0
        %v9413 = vadd.f32 0.0, %v9412
        %v9414 = vpop.f32.mrb[0].mxu0
        %9415 = vdwg.mxu0
        %v9417 = vsel %vm630, %v9280, 0
        %v9419 = vsel %vm630, %v9282, 0
        %v9421 = vsel %vm630, %v9284, 0
        %v9423 = vsel %vm630, %v9286, 0
        %9425 = vmatprep.subr.mxu0 0.0
        %9426 = vmatpush1.msra.mxu0 %v8851
        %9427 = vmatprep.subr.mxu0 0.0
        %9428 = vmatpush1.msra.mxu0 %v8852
        %9429 = vmatprep.subr.mxu0 0.0
        %9430 = vmatpush1.msra.mxu0 %v8853
        %9431 = vmatprep.subr.mxu0 0.0
        %9432 = vmatpush1.msra.mxu0 %v8854
        %9433 = vmatprep.subr.mxu0 0.0
        %9434 = vmatpush1.msra.mxu0 %v8855
        %9435 = vmatprep.subr.mxu0 0.0
        %9436 = vmatpush1.msra.mxu0 %v8856
        %9437 = vmatprep.subr.mxu0 0.0
        %9438 = vmatpush1.msra.mxu0 %v8857
        %9439 = vmatprep.subr.mxu0 0.0
        %9440 = vmatpush1.msra.mxu0 %v8858
        %9441 = vmatprep.subr.mxu0 0.0
        %9442 = vmatpush1.msra.mxu0 %v8859
        %9443 = vmatprep.subr.mxu0 0.0
        %9444 = vmatpush1.msra.mxu0 %v8860
        %9445 = vmatprep.subr.mxu0 0.0
        %9446 = vmatpush1.msra.mxu0 %v8861
        %9447 = vmatprep.subr.mxu0 0.0
        %9448 = vmatpush1.msra.mxu0 %v8862
        %9449 = vmatprep.subr.mxu0 0.0
        %9450 = vmatpush1.msra.mxu0 %v8863
        %9451 = vmatprep.subr.mxu0 0.0
        %9452 = vmatpush1.msra.mxu0 %v8864
        %9453 = vmatprep.subr.mxu0 0.0
        %9454 = vmatpush1.msra.mxu0 %v8865
        %9455 = vmatprep.subr.mxu0 0.0
        %9456 = vmatpush1.msra.mxu0 %v8866
        %9457 = vmatprep.subr.mxu0 0.0
        %9458 = vmatpush1.msra.mxu0 %v8867
        %9459 = vmatprep.subr.mxu0 0.0
        %9460 = vmatpush1.msra.mxu0 %v8868
        %9461 = vmatprep.subr.mxu0 0.0
        %9462 = vmatpush1.msra.mxu0 0.0
        %9463 = vmatprep.subr.mxu0 0.0
        %9464 = vmatpush1.msra.mxu0 0.0
        %9465 = vmatprep.subr.mxu0 0.0
        %9466 = vmatpush1.msra.mxu0 0.0
        %9467 = vmatprep.subr.mxu0 0.0
        %9468 = vmatpush1.msra.mxu0 0.0
        %9469 = vmatprep.subr.mxu0 0.0
        %9470 = vmatpush1.msra.mxu0 0.0
        %9471 = vmatprep.subr.mxu0 0.0
        %9472 = vmatpush1.msra.mxu0 0.0
        %9473 = vmatprep.subr.mxu0 0.0
        %9474 = vmatpush1.msra.mxu0 0.0
        %9475 = vmatprep.subr.mxu0 0.0
        %9476 = vmatpush1.msra.mxu0 0.0
        %9477 = vmatprep.subr.mxu0 0.0
        %9478 = vmatpush1.msra.mxu0 0.0
        %9479 = vmatprep.subr.mxu0 0.0
        %9480 = vmatpush1.msra.mxu0 0.0
        %9481 = vmatprep.subr.mxu0 0.0
        %9482 = vmatpush1.msra.mxu0 0.0
        %9483 = vmatprep.subr.mxu0 0.0
        %9484 = vmatpush1.msra.mxu0 0.0
        %9485 = vmatprep.subr.mxu0 0.0
        %9486 = vmatpush1.msra.mxu0 0.0
        %9487 = vmatprep.subr.mxu0 0.0
        %9488 = vmatpush1.msra.mxu0 0.0
        %9489 = vmatprep.mubr.f32.mxu0 %v9417
        %9490 = vmatmul.mubr.f32.gmra.mrb[0].mxu0 %v9279
        %v9491 = vpop.f32.mrb[0].mxu0
        %v9492 = vadd.f32 %v9398, %v9491
        %v9493 = vpop.f32.mrb[0].mxu0
        %9494 = vmatprep.mubr.f32.mxu0 %v9419
        %9495 = vmatmul.mubr.f32.gmra.mrb[0].mxu0 %v9281
        %v9496 = vpop.f32.mrb[0].mxu0
        %v9497 = vadd.f32 %v9403, %v9496
        %v9498 = vpop.f32.mrb[0].mxu0
        %9499 = vmatprep.mubr.f32.mxu0 %v9421
        %9500 = vmatmul.mubr.f32.gmra.mrb[0].mxu0 %v9283
        %v9501 = vpop.f32.mrb[0].mxu0
        %v9502 = vadd.f32 %v9408, %v9501
        %v9503 = vpop.f32.mrb[0].mxu0
        %9504 = vmatprep.mubr.f32.mxu0 %v9423
        %9505 = vmatmul.mubr.f32.gmra.mrb[0].mxu0 %v9285
        %v9506 = vpop.f32.mrb[0].mxu0
        %v9507 = vadd.f32 %v9413, %v9506
        %v9508 = vpop.f32.mrb[0].mxu0
        %9509 = vdwg.mxu0
        %v9510 = vld [vmem:[#allocation4 + $0x8] sm:$0xfc]
        %v9511 = vld [vmem:[#allocation4 + $0x10] sm:$0xfc]
        %v9512 = vld [vmem:[#allocation4 + $0x68] sm:$0x3]
        %v9513 = vld [vmem:[#allocation4 + $0x70] sm:$0x3]
        %v9518 = vrot.slane %v9510, 2
        %v9519 = vrot.slane %v9281, 2
        %v9520 = vsel %vm882, %v9518, %v9519
        %v9521 = vrot.slane %v9511, 2
        %v9522 = vrot.slane %v9282, 2
        %v9523 = vsel %vm882, %v9521, %v9522
        %v9524 = vrot.slane %v9283, 2
        %v9525 = vsel %vm882, %v9519, %v9524
        %v9526 = vrot.slane %v9284, 2
        %v9527 = vsel %vm882, %v9522, %v9526
        %v9528 = vrot.slane %v9285, 2
        %v9529 = vsel %vm882, %v9524, %v9528
        %v9530 = vrot.slane %v9286, 2
        %v9531 = vsel %vm882, %v9526, %v9530
        %v9532 = vrot.slane %v9512, 2
        %v9533 = vsel %vm882, %v9528, %v9532
        %v9534 = vrot.slane %v9513, 2
        %v9535 = vsel %vm882, %v9530, %v9534
        %v9540 = vsel %vm630, %v9523, 0
        %v9542 = vsel %vm630, %v9527, 0
        %v9544 = vsel %vm630, %v9531, 0
        %v9546 = vsel %vm630, %v9535, 0
        %9548 = vmatprep.subr.mxu0 0.0
        %9549 = vmatpush1.msra.mxu0 %v8889
        %9550 = vmatprep.subr.mxu0 0.0
        %9551 = vmatpush1.msra.mxu0 %v8890
        %9552 = vmatprep.subr.mxu0 0.0
        %9553 = vmatpush1.msra.mxu0 %v8891
        %9554 = vmatprep.subr.mxu0 0.0
        %9555 = vmatpush1.msra.mxu0 %v8892
        %9556 = vmatprep.subr.mxu0 0.0
        %9557 = vmatpush1.msra.mxu0 %v8893
        %9558 = vmatprep.subr.mxu0 0.0
        %9559 = vmatpush1.msra.mxu0 %v8894
        %9560 = vmatprep.subr.mxu0 0.0
        %9561 = vmatpush1.msra.mxu0 %v8895
        %9562 = vmatprep.subr.mxu0 0.0
        %9563 = vmatpush1.msra.mxu0 %v8896
        %9564 = vmatprep.subr.mxu0 0.0
        %9565 = vmatpush1.msra.mxu0 %v8897
        %9566 = vmatprep.subr.mxu0 0.0
        %9567 = vmatpush1.msra.mxu0 %v8898
        %9568 = vmatprep.subr.mxu0 0.0
        %9569 = vmatpush1.msra.mxu0 %v8899
        %9570 = vmatprep.subr.mxu0 0.0
        %9571 = vmatpush1.msra.mxu0 %v8900
        %9572 = vmatprep.subr.mxu0 0.0
        %9573 = vmatpush1.msra.mxu0 %v8901
        %9574 = vmatprep.subr.mxu0 0.0
        %9575 = vmatpush1.msra.mxu0 %v8902
        %9576 = vmatprep.subr.mxu0 0.0
        %9577 = vmatpush1.msra.mxu0 %v8903
        %9578 = vmatprep.subr.mxu0 0.0
        %9579 = vmatpush1.msra.mxu0 %v8904
        %9580 = vmatprep.subr.mxu0 0.0
        %9581 = vmatpush1.msra.mxu0 %v8905
        %9582 = vmatprep.subr.mxu0 0.0
        %9583 = vmatpush1.msra.mxu0 %v8906
        %9584 = vmatprep.subr.mxu0 0.0
        %9585 = vmatpush1.msra.mxu0 0.0
        %9586 = vmatprep.subr.mxu0 0.0
        %9587 = vmatpush1.msra.mxu0 0.0
        %9588 = vmatprep.subr.mxu0 0.0
        %9589 = vmatpush1.msra.mxu0 0.0
        %9590 = vmatprep.subr.mxu0 0.0
        %9591 = vmatpush1.msra.mxu0 0.0
        %9592 = vmatprep.subr.mxu0 0.0
        %9593 = vmatpush1.msra.mxu0 0.0
        %9594 = vmatprep.subr.mxu0 0.0
        %9595 = vmatpush1.msra.mxu0 0.0
        %9596 = vmatprep.subr.mxu0 0.0
        %9597 = vmatpush1.msra.mxu0 0.0
        %9598 = vmatprep.subr.mxu0 0.0
        %9599 = vmatpush1.msra.mxu0 0.0
        %9600 = vmatprep.subr.mxu0 0.0
        %9601 = vmatpush1.msra.mxu0 0.0
        %9602 = vmatprep.subr.mxu0 0.0
        %9603 = vmatpush1.msra.mxu0 0.0
        %9604 = vmatprep.subr.mxu0 0.0
        %9605 = vmatpush1.msra.mxu0 0.0
        %9606 = vmatprep.subr.mxu0 0.0
        %9607 = vmatpush1.msra.mxu0 0.0
        %9608 = vmatprep.subr.mxu0 0.0
        %9609 = vmatpush1.msra.mxu0 0.0
        %9610 = vmatprep.subr.mxu0 0.0
        %9611 = vmatpush1.msra.mxu0 0.0
        %9612 = vmatprep.mubr.f32.mxu0 %v9540
        %9613 = vmatmul.mubr.f32.gmra.mrb[0].mxu0 %v9520
        %v9614 = vpop.f32.mrb[0].mxu0
        %v9615 = vadd.f32 0.0, %v9614
        %v9616 = vpop.f32.mrb[0].mxu0
        %9617 = vmatprep.mubr.f32.mxu0 %v9542
        %9618 = vmatmul.mubr.f32.gmra.mrb[0].mxu0 %v9525
        %v9619 = vpop.f32.mrb[0].mxu0
        %v9620 = vadd.f32 0.0, %v9619
        %v9621 = vpop.f32.mrb[0].mxu0
        %9622 = vmatprep.mubr.f32.mxu0 %v9544
        %9623 = vmatmul.mubr.f32.gmra.mrb[0].mxu0 %v9529
        %v9624 = vpop.f32.mrb[0].mxu0
        %v9625 = vadd.f32 0.0, %v9624
        %v9626 = vpop.f32.mrb[0].mxu0
        %9627 = vmatprep.mubr.f32.mxu0 %v9546
        %9628 = vmatmul.mubr.f32.gmra.mrb[0].mxu0 %v9533
        %v9629 = vpop.f32.mrb[0].mxu0
        %v9630 = vadd.f32 0.0, %v9629
        %v9631 = vpop.f32.mrb[0].mxu0
        %9632 = vdwg.mxu0
        %v9633 = vadd.f32 %v9492, %v9615
        %v9634 = vadd.f32 %v9497, %v9620
        %v9635 = vadd.f32 %v9502, %v9625
        %v9636 = vadd.f32 %v9507, %v9630
        %v9637 = vadd.f32 %v9633, %v9269
        %v9638 = vadd.f32 %v9634, %v9269
        %v9639 = vadd.f32 %v9635, %v9269
        %v9640 = vadd.f32 %v9636, %v9269
        %v9641 = vmax.f32 %v9637, 0.0
        %v9642 = vmax.f32 %v9638, 0.0
        %v9643 = vmax.f32 %v9639, 0.0
        %v9644 = vmax.f32 %v9640, 0.0
        %v9653 = vcombine.low %v9275, %v9641
        %v9654 = vcombine.high %v9275, %v9641
        %v9656 = vunpack.c.l.s4 1983009808
        %v9657 = vunpack.c.0.s8 %v9656
        %v9658 = vlaneseq
        %v9659 = vshrl.u32 %v9658, 7
        %v9660 = vsub.s32 %v9657, %v9659
        %v9661 = vrot.slane %v9653, %v9660
        %v9663 = vunpack.c.l.s4 1983009808
        %v9664 = vunpack.c.0.s8 %v9663
        %v9665 = vlaneseq
        %v9666 = vshrl.u32 %v9665, 7
        %v9667 = vsub.s32 %v9664, %v9666
        %v9668 = vrot.slane %v9654, %v9667
        %v9669 = vcombine.high %v9661, %v9661
        %v9670 = vcombine.high %v9668, %v9668
        %v9671 = vcombine.low %v9276, %v9642
        %v9672 = vcombine.high %v9276, %v9642
        %v9674 = vunpack.c.l.s4 1983009808
        %v9675 = vunpack.c.0.s8 %v9674
        %v9676 = vlaneseq
        %v9677 = vshrl.u32 %v9676, 7
        %v9678 = vsub.s32 %v9675, %v9677
        %v9679 = vrot.slane %v9671, %v9678
        %v9681 = vunpack.c.l.s4 1983009808
        %v9682 = vunpack.c.0.s8 %v9681
        %v9683 = vlaneseq
        %v9684 = vshrl.u32 %v9683, 7
        %v9685 = vsub.s32 %v9682, %v9684
        %v9686 = vrot.slane %v9672, %v9685
        %v9687 = vcombine.high %v9679, %v9679
        %v9688 = vcombine.high %v9686, %v9686
        %v9689 = vcombine.low %v9277, %v9643
        %v9690 = vcombine.high %v9277, %v9643
        %v9692 = vunpack.c.l.s4 1983009808
        %v9693 = vunpack.c.0.s8 %v9692
        %v9694 = vlaneseq
        %v9695 = vshrl.u32 %v9694, 7
        %v9696 = vsub.s32 %v9693, %v9695
        %v9697 = vrot.slane %v9689, %v9696
        %v9699 = vunpack.c.l.s4 1983009808
        %v9700 = vunpack.c.0.s8 %v9699
        %v9701 = vlaneseq
        %v9702 = vshrl.u32 %v9701, 7
        %v9703 = vsub.s32 %v9700, %v9702
        %v9704 = vrot.slane %v9690, %v9703
        %v9705 = vcombine.high %v9697, %v9697
        %v9706 = vcombine.high %v9704, %v9704
        %v9707 = vcombine.low %v9278, %v9644
        %v9708 = vcombine.high %v9278, %v9644
        %v9710 = vunpack.c.l.s4 1983009808
        %v9711 = vunpack.c.0.s8 %v9710
        %v9712 = vlaneseq
        %v9713 = vshrl.u32 %v9712, 7
        %v9714 = vsub.s32 %v9711, %v9713
        %v9715 = vrot.slane %v9707, %v9714
        %v9717 = vunpack.c.l.s4 1983009808
        %v9718 = vunpack.c.0.s8 %v9717
        %v9719 = vlaneseq
        %v9720 = vshrl.u32 %v9719, 7
        %v9721 = vsub.s32 %v9718, %v9720
        %v9722 = vrot.slane %v9708, %v9721
        %v9723 = vcombine.high %v9715, %v9715
        %v9724 = vcombine.high %v9722, %v9722
        %v9726 = vunpack.c.l.s4 1983009808
        %v9727 = vunpack.c.0.s8 %v9726
        %v9728 = vlaneseq
        %v9729 = vshrl.u32 %v9728, 7
        %v9730 = vsub.s32 %v9727, %v9729
        %v9731 = vrot.slane %v9661, %v9730
        %v9732 = vcombine.high %v9731, %v9731
        %v9734 = vunpack.c.l.s4 1983009808
        %v9735 = vunpack.c.0.s8 %v9734
        %v9736 = vlaneseq
        %v9737 = vshrl.u32 %v9736, 7
        %v9738 = vsub.s32 %v9735, %v9737
        %v9739 = vrot.slane %v9669, %v9738
        %v9740 = vcombine.high %v9739, %v9739
        %v9742 = vunpack.c.l.s4 1983009808
        %v9743 = vunpack.c.0.s8 %v9742
        %v9744 = vlaneseq
        %v9745 = vshrl.u32 %v9744, 7
        %v9746 = vsub.s32 %v9743, %v9745
        %v9747 = vrot.slane %v9668, %v9746
        %v9748 = vcombine.high %v9747, %v9747
        %v9750 = vunpack.c.l.s4 1983009808
        %v9751 = vunpack.c.0.s8 %v9750
        %v9752 = vlaneseq
        %v9753 = vshrl.u32 %v9752, 7
        %v9754 = vsub.s32 %v9751, %v9753
        %v9755 = vrot.slane %v9670, %v9754
        %v9756 = vcombine.high %v9755, %v9755
        %v9758 = vunpack.c.l.s4 1983009808
        %v9759 = vunpack.c.0.s8 %v9758
        %v9760 = vlaneseq
        %v9761 = vshrl.u32 %v9760, 7
        %v9762 = vsub.s32 %v9759, %v9761
        %v9763 = vrot.slane %v9679, %v9762
        %v9764 = vcombine.high %v9763, %v9763
        %v9766 = vunpack.c.l.s4 1983009808
        %v9767 = vunpack.c.0.s8 %v9766
        %v9768 = vlaneseq
        %v9769 = vshrl.u32 %v9768, 7
        %v9770 = vsub.s32 %v9767, %v9769
        %v9771 = vrot.slane %v9687, %v9770
        %v9772 = vcombine.high %v9771, %v9771
        %v9774 = vunpack.c.l.s4 1983009808
        %v9775 = vunpack.c.0.s8 %v9774
        %v9776 = vlaneseq
        %v9777 = vshrl.u32 %v9776, 7
        %v9778 = vsub.s32 %v9775, %v9777
        %v9779 = vrot.slane %v9686, %v9778
        %v9780 = vcombine.high %v9779, %v9779
        %v9782 = vunpack.c.l.s4 1983009808
        %v9783 = vunpack.c.0.s8 %v9782
        %v9784 = vlaneseq
        %v9785 = vshrl.u32 %v9784, 7
        %v9786 = vsub.s32 %v9783, %v9785
        %v9787 = vrot.slane %v9688, %v9786
        %v9788 = vcombine.high %v9787, %v9787
        %v9790 = vunpack.c.l.s4 1983009808
        %v9791 = vunpack.c.0.s8 %v9790
        %v9792 = vlaneseq
        %v9793 = vshrl.u32 %v9792, 7
        %v9794 = vsub.s32 %v9791, %v9793
        %v9795 = vrot.slane %v9697, %v9794
        %v9796 = vcombine.high %v9795, %v9795
        %v9798 = vunpack.c.l.s4 1983009808
        %v9799 = vunpack.c.0.s8 %v9798
        %v9800 = vlaneseq
        %v9801 = vshrl.u32 %v9800, 7
        %v9802 = vsub.s32 %v9799, %v9801
        %v9803 = vrot.slane %v9705, %v9802
        %v9804 = vcombine.high %v9803, %v9803
        %v9806 = vunpack.c.l.s4 1983009808
        %v9807 = vunpack.c.0.s8 %v9806
        %v9808 = vlaneseq
        %v9809 = vshrl.u32 %v9808, 7
        %v9810 = vsub.s32 %v9807, %v9809
        %v9811 = vrot.slane %v9704, %v9810
        %v9812 = vcombine.high %v9811, %v9811
        %v9814 = vunpack.c.l.s4 1983009808
        %v9815 = vunpack.c.0.s8 %v9814
        %v9816 = vlaneseq
        %v9817 = vshrl.u32 %v9816, 7
        %v9818 = vsub.s32 %v9815, %v9817
        %v9819 = vrot.slane %v9706, %v9818
        %v9820 = vcombine.high %v9819, %v9819
        %v9822 = vunpack.c.l.s4 1983009808
        %v9823 = vunpack.c.0.s8 %v9822
        %v9824 = vlaneseq
        %v9825 = vshrl.u32 %v9824, 7
        %v9826 = vsub.s32 %v9823, %v9825
        %v9827 = vrot.slane %v9715, %v9826
        %v9828 = vcombine.high %v9827, %v9827
        %v9830 = vunpack.c.l.s4 1983009808
        %v9831 = vunpack.c.0.s8 %v9830
        %v9832 = vlaneseq
        %v9833 = vshrl.u32 %v9832, 7
        %v9834 = vsub.s32 %v9831, %v9833
        %v9835 = vrot.slane %v9723, %v9834
        %v9836 = vcombine.high %v9835, %v9835
        %v9838 = vunpack.c.l.s4 1983009808
        %v9839 = vunpack.c.0.s8 %v9838
        %v9840 = vlaneseq
        %v9841 = vshrl.u32 %v9840, 7
        %v9842 = vsub.s32 %v9839, %v9841
        %v9843 = vrot.slane %v9722, %v9842
        %v9844 = vcombine.high %v9843, %v9843
        %v9846 = vunpack.c.l.s4 1983009808
        %v9847 = vunpack.c.0.s8 %v9846
        %v9848 = vlaneseq
        %v9849 = vshrl.u32 %v9848, 7
        %v9850 = vsub.s32 %v9847, %v9849
        %v9851 = vrot.slane %v9724, %v9850
        %v9852 = vcombine.high %v9851, %v9851
        %v9885 = vsel %vm6091, %v9731, -inf
        %v9886 = vrot.slane %v9885, 4
        %v9887 = vmax.f32 %v9885, %v9886
        %v9888 = vrot.slane %v9887, 2
        %v9889 = vmax.f32 %v9887, %v9888
        %v9890 = vrot.slane %v9889, 1
        %v9891 = vmax.f32 %v9889, %v9890
        %v9892 = vsel %vm6091, %v9732, -inf
        %v9893 = vrot.slane %v9892, 4
        %v9894 = vmax.f32 %v9892, %v9893
        %v9895 = vrot.slane %v9894, 2
        %v9896 = vmax.f32 %v9894, %v9895
        %v9897 = vrot.slane %v9896, 1
        %v9898 = vmax.f32 %v9896, %v9897
        %v9899 = vsel %vm6091, %v9739, -inf
        %v9900 = vrot.slane %v9899, 4
        %v9901 = vmax.f32 %v9899, %v9900
        %v9902 = vrot.slane %v9901, 2
        %v9903 = vmax.f32 %v9901, %v9902
        %v9904 = vrot.slane %v9903, 1
        %v9905 = vmax.f32 %v9903, %v9904
        %v9906 = vsel %vm6091, %v9740, -inf
        %v9907 = vrot.slane %v9906, 4
        %v9908 = vmax.f32 %v9906, %v9907
        %v9909 = vrot.slane %v9908, 2
        %v9910 = vmax.f32 %v9908, %v9909
        %v9911 = vrot.slane %v9910, 1
        %v9912 = vmax.f32 %v9910, %v9911
        %v9913 = vsel %vm6091, %v9747, -inf
        %v9914 = vrot.slane %v9913, 4
        %v9915 = vmax.f32 %v9913, %v9914
        %v9916 = vrot.slane %v9915, 2
        %v9917 = vmax.f32 %v9915, %v9916
        %v9918 = vrot.slane %v9917, 1
        %v9919 = vmax.f32 %v9917, %v9918
        %v9920 = vsel %vm6091, %v9748, -inf
        %v9921 = vrot.slane %v9920, 4
        %v9922 = vmax.f32 %v9920, %v9921
        %v9923 = vrot.slane %v9922, 2
        %v9924 = vmax.f32 %v9922, %v9923
        %v9925 = vrot.slane %v9924, 1
        %v9926 = vmax.f32 %v9924, %v9925
        %v9927 = vsel %vm6091, %v9755, -inf
        %v9928 = vrot.slane %v9927, 4
        %v9929 = vmax.f32 %v9927, %v9928
        %v9930 = vrot.slane %v9929, 2
        %v9931 = vmax.f32 %v9929, %v9930
        %v9932 = vrot.slane %v9931, 1
        %v9933 = vmax.f32 %v9931, %v9932
        %v9934 = vsel %vm6091, %v9756, -inf
        %v9935 = vrot.slane %v9934, 4
        %v9936 = vmax.f32 %v9934, %v9935
        %v9937 = vrot.slane %v9936, 2
        %v9938 = vmax.f32 %v9936, %v9937
        %v9939 = vrot.slane %v9938, 1
        %v9940 = vmax.f32 %v9938, %v9939
        %v9941 = vsel %vm6091, %v9763, -inf
        %v9942 = vrot.slane %v9941, 4
        %v9943 = vmax.f32 %v9941, %v9942
        %v9944 = vrot.slane %v9943, 2
        %v9945 = vmax.f32 %v9943, %v9944
        %v9946 = vrot.slane %v9945, 1
        %v9947 = vmax.f32 %v9945, %v9946
        %v9948 = vsel %vm6091, %v9764, -inf
        %v9949 = vrot.slane %v9948, 4
        %v9950 = vmax.f32 %v9948, %v9949
        %v9951 = vrot.slane %v9950, 2
        %v9952 = vmax.f32 %v9950, %v9951
        %v9953 = vrot.slane %v9952, 1
        %v9954 = vmax.f32 %v9952, %v9953
        %v9955 = vsel %vm6091, %v9771, -inf
        %v9956 = vrot.slane %v9955, 4
        %v9957 = vmax.f32 %v9955, %v9956
        %v9958 = vrot.slane %v9957, 2
        %v9959 = vmax.f32 %v9957, %v9958
        %v9960 = vrot.slane %v9959, 1
        %v9961 = vmax.f32 %v9959, %v9960
        %v9962 = vsel %vm6091, %v9772, -inf
        %v9963 = vrot.slane %v9962, 4
        %v9964 = vmax.f32 %v9962, %v9963
        %v9965 = vrot.slane %v9964, 2
        %v9966 = vmax.f32 %v9964, %v9965
        %v9967 = vrot.slane %v9966, 1
        %v9968 = vmax.f32 %v9966, %v9967
        %v9969 = vsel %vm6091, %v9779, -inf
        %v9970 = vrot.slane %v9969, 4
        %v9971 = vmax.f32 %v9969, %v9970
        %v9972 = vrot.slane %v9971, 2
        %v9973 = vmax.f32 %v9971, %v9972
        %v9974 = vrot.slane %v9973, 1
        %v9975 = vmax.f32 %v9973, %v9974
        %v9976 = vsel %vm6091, %v9780, -inf
        %v9977 = vrot.slane %v9976, 4
        %v9978 = vmax.f32 %v9976, %v9977
        %v9979 = vrot.slane %v9978, 2
        %v9980 = vmax.f32 %v9978, %v9979
        %v9981 = vrot.slane %v9980, 1
        %v9982 = vmax.f32 %v9980, %v9981
        %v9983 = vsel %vm6091, %v9787, -inf
        %v9984 = vrot.slane %v9983, 4
        %v9985 = vmax.f32 %v9983, %v9984
        %v9986 = vrot.slane %v9985, 2
        %v9987 = vmax.f32 %v9985, %v9986
        %v9988 = vrot.slane %v9987, 1
        %v9989 = vmax.f32 %v9987, %v9988
        %v9990 = vsel %vm6091, %v9788, -inf
        %v9991 = vrot.slane %v9990, 4
        %v9992 = vmax.f32 %v9990, %v9991
        %v9993 = vrot.slane %v9992, 2
        %v9994 = vmax.f32 %v9992, %v9993
        %v9995 = vrot.slane %v9994, 1
        %v9996 = vmax.f32 %v9994, %v9995
        %v9997 = vsel %vm6091, %v9795, -inf
        %v9998 = vrot.slane %v9997, 4
        %v9999 = vmax.f32 %v9997, %v9998
        %v10000 = vrot.slane %v9999, 2
        %v10001 = vmax.f32 %v9999, %v10000
        %v10002 = vrot.slane %v10001, 1
        %v10003 = vmax.f32 %v10001, %v10002
        %v10004 = vsel %vm6091, %v9796, -inf
        %v10005 = vrot.slane %v10004, 4
        %v10006 = vmax.f32 %v10004, %v10005
        %v10007 = vrot.slane %v10006, 2
        %v10008 = vmax.f32 %v10006, %v10007
        %v10009 = vrot.slane %v10008, 1
        %v10010 = vmax.f32 %v10008, %v10009
        %v10011 = vsel %vm6091, %v9803, -inf
        %v10012 = vrot.slane %v10011, 4
        %v10013 = vmax.f32 %v10011, %v10012
        %v10014 = vrot.slane %v10013, 2
        %v10015 = vmax.f32 %v10013, %v10014
        %v10016 = vrot.slane %v10015, 1
        %v10017 = vmax.f32 %v10015, %v10016
        %v10018 = vsel %vm6091, %v9804, -inf
        %v10019 = vrot.slane %v10018, 4
        %v10020 = vmax.f32 %v10018, %v10019
        %v10021 = vrot.slane %v10020, 2
        %v10022 = vmax.f32 %v10020, %v10021
        %v10023 = vrot.slane %v10022, 1
        %v10024 = vmax.f32 %v10022, %v10023
        %v10025 = vsel %vm6091, %v9811, -inf
        %v10026 = vrot.slane %v10025, 4
        %v10027 = vmax.f32 %v10025, %v10026
        %v10028 = vrot.slane %v10027, 2
        %v10029 = vmax.f32 %v10027, %v10028
        %v10030 = vrot.slane %v10029, 1
        %v10031 = vmax.f32 %v10029, %v10030
        %v10032 = vsel %vm6091, %v9812, -inf
        %v10033 = vrot.slane %v10032, 4
        %v10034 = vmax.f32 %v10032, %v10033
        %v10035 = vrot.slane %v10034, 2
        %v10036 = vmax.f32 %v10034, %v10035
        %v10037 = vrot.slane %v10036, 1
        %v10038 = vmax.f32 %v10036, %v10037
        %v10039 = vsel %vm6091, %v9819, -inf
        %v10040 = vrot.slane %v10039, 4
        %v10041 = vmax.f32 %v10039, %v10040
        %v10042 = vrot.slane %v10041, 2
        %v10043 = vmax.f32 %v10041, %v10042
        %v10044 = vrot.slane %v10043, 1
        %v10045 = vmax.f32 %v10043, %v10044
        %v10046 = vsel %vm6091, %v9820, -inf
        %v10047 = vrot.slane %v10046, 4
        %v10048 = vmax.f32 %v10046, %v10047
        %v10049 = vrot.slane %v10048, 2
        %v10050 = vmax.f32 %v10048, %v10049
        %v10051 = vrot.slane %v10050, 1
        %v10052 = vmax.f32 %v10050, %v10051
        %v10053 = vsel %vm6091, %v9827, -inf
        %v10054 = vrot.slane %v10053, 4
        %v10055 = vmax.f32 %v10053, %v10054
        %v10056 = vrot.slane %v10055, 2
        %v10057 = vmax.f32 %v10055, %v10056
        %v10058 = vrot.slane %v10057, 1
        %v10059 = vmax.f32 %v10057, %v10058
        %v10060 = vsel %vm6091, %v9828, -inf
        %v10061 = vrot.slane %v10060, 4
        %v10062 = vmax.f32 %v10060, %v10061
        %v10063 = vrot.slane %v10062, 2
        %v10064 = vmax.f32 %v10062, %v10063
        %v10065 = vrot.slane %v10064, 1
        %v10066 = vmax.f32 %v10064, %v10065
        %v10067 = vsel %vm6091, %v9835, -inf
        %v10068 = vrot.slane %v10067, 4
        %v10069 = vmax.f32 %v10067, %v10068
        %v10070 = vrot.slane %v10069, 2
        %v10071 = vmax.f32 %v10069, %v10070
        %v10072 = vrot.slane %v10071, 1
        %v10073 = vmax.f32 %v10071, %v10072
        %v10074 = vsel %vm6091, %v9836, -inf
        %v10075 = vrot.slane %v10074, 4
        %v10076 = vmax.f32 %v10074, %v10075
        %v10077 = vrot.slane %v10076, 2
        %v10078 = vmax.f32 %v10076, %v10077
        %v10079 = vrot.slane %v10078, 1
        %v10080 = vmax.f32 %v10078, %v10079
        %v10081 = vsel %vm6091, %v9843, -inf
        %v10082 = vrot.slane %v10081, 4
        %v10083 = vmax.f32 %v10081, %v10082
        %v10084 = vrot.slane %v10083, 2
        %v10085 = vmax.f32 %v10083, %v10084
        %v10086 = vrot.slane %v10085, 1
        %v10087 = vmax.f32 %v10085, %v10086
        %v10088 = vsel %vm6091, %v9844, -inf
        %v10089 = vrot.slane %v10088, 4
        %v10090 = vmax.f32 %v10088, %v10089
        %v10091 = vrot.slane %v10090, 2
        %v10092 = vmax.f32 %v10090, %v10091
        %v10093 = vrot.slane %v10092, 1
        %v10094 = vmax.f32 %v10092, %v10093
        %v10095 = vsel %vm6091, %v9851, -inf
        %v10096 = vrot.slane %v10095, 4
        %v10097 = vmax.f32 %v10095, %v10096
        %v10098 = vrot.slane %v10097, 2
        %v10099 = vmax.f32 %v10097, %v10098
        %v10100 = vrot.slane %v10099, 1
        %v10101 = vmax.f32 %v10099, %v10100
        %v10102 = vsel %vm6091, %v9852, -inf
        %v10103 = vrot.slane %v10102, 4
        %v10104 = vmax.f32 %v10102, %v10103
        %v10105 = vrot.slane %v10104, 2
        %v10106 = vmax.f32 %v10104, %v10105
        %v10107 = vrot.slane %v10106, 1
        %v10108 = vmax.f32 %v10106, %v10107
        %v10109 = vld [vmem:[%s11] sm:$0xff]
        %v10110 = vld [vmem:[%s11 + $0x8] sm:$0xff]
        %v10111 = vld [vmem:[%s11 + $0x10] sm:$0xff]
        %v10112 = vld [vmem:[%s11 + $0x18] sm:$0xff]
        %v10113 = vld [vmem:[%s11 + $0x20] sm:$0xff]
        %v10114 = vld [vmem:[%s11 + $0x28] sm:$0xff]
        %v10115 = vld [vmem:[%s11 + $0x30] sm:$0xff]
        %v10116 = vld [vmem:[%s11 + $0x38] sm:$0xff]
        %v10117 = vld [vmem:[%s11 + $0x40] sm:$0xff]
        %v10118 = vld [vmem:[%s11 + $0x48] sm:$0xff]
        %v10119 = vld [vmem:[%s11 + $0x50] sm:$0xff]
        %v10120 = vld [vmem:[%s11 + $0x58] sm:$0xff]
        %v10121 = vld [vmem:[%s11 + $0x60] sm:$0xff]
        %v10122 = vld [vmem:[%s11 + $0x68] sm:$0xff]
        %v10123 = vld [vmem:[%s11 + $0x70] sm:$0xff]
        %v10124 = vld [vmem:[%s11 + $0x78] sm:$0xff]
        %v10125 = vld [vmem:[%s11 + $0x80] sm:$0xff]
        %v10126 = vld [vmem:[%s11 + $0x88] sm:$0xff]
        %v10127 = vld [vmem:[%s11 + $0x90] sm:$0xff]
        %v10128 = vld [vmem:[%s11 + $0x98] sm:$0xff]
        %v10129 = vld [vmem:[%s11 + $0xa0] sm:$0xff]
        %v10130 = vld [vmem:[%s11 + $0xa8] sm:$0xff]
        %v10131 = vld [vmem:[%s11 + $0xb0] sm:$0xff]
        %v10132 = vld [vmem:[%s11 + $0xb8] sm:$0xff]
        %v10133 = vld [vmem:[%s11 + $0xc0] sm:$0xff]
        %v10134 = vld [vmem:[%s11 + $0xc8] sm:$0xff]
        %v10135 = vld [vmem:[%s11 + $0xd0] sm:$0xff]
        %v10136 = vld [vmem:[%s11 + $0xd8] sm:$0xff]
        %v10137 = vld [vmem:[%s11 + $0xe0] sm:$0xff]
        %v10138 = vld [vmem:[%s11 + $0xe8] sm:$0xff]
        %v10139 = vld [vmem:[%s11 + $0xf0] sm:$0xff]
        %v10140 = vld [vmem:[%s11 + $0xf8] sm:$0xff]
        %v10173 = vsel %vm7244, %v9905, %v9891
        %v10174 = vsel %vm7246, %v9919, %v10173
        %v10175 = vsel %vm7248, %v9933, %v10174
        %v10176 = vsel %vm7250, %v9947, %v10175
        %v10177 = vsel %vm7252, %v9961, %v10176
        %v10178 = vsel %vm7254, %v9975, %v10177
        %v10179 = vsel %vm7256, %v9989, %v10178
        %v10180 = vsel %vm7244, %v9912, %v9898
        %v10181 = vsel %vm7246, %v9926, %v10180
        %v10182 = vsel %vm7248, %v9940, %v10181
        %v10183 = vsel %vm7250, %v9954, %v10182
        %v10184 = vsel %vm7252, %v9968, %v10183
        %v10185 = vsel %vm7254, %v9982, %v10184
        %v10186 = vsel %vm7256, %v9996, %v10185
        %v10187 = vsel %vm7244, %v10017, %v10003
        %v10188 = vsel %vm7246, %v10031, %v10187
        %v10189 = vsel %vm7248, %v10045, %v10188
        %v10190 = vsel %vm7250, %v10059, %v10189
        %v10191 = vsel %vm7252, %v10073, %v10190
        %v10192 = vsel %vm7254, %v10087, %v10191
        %v10193 = vsel %vm7256, %v10101, %v10192
        %v10194 = vsel %vm7244, %v10024, %v10010
        %v10195 = vsel %vm7246, %v10038, %v10194
        %v10196 = vsel %vm7248, %v10052, %v10195
        %v10197 = vsel %vm7250, %v10066, %v10196
        %v10198 = vsel %vm7252, %v10080, %v10197
        %v10199 = vsel %vm7254, %v10094, %v10198
        %v10200 = vsel %vm7256, %v10108, %v10199
        %10205 = vmatprep.subr.mxu0 0.0
        %10206 = vmatpush1.msra.mxu0 %v10109
        %10207 = vmatprep.subr.mxu0 0.0
        %10208 = vmatpush1.msra.mxu0 %v10110
        %10209 = vmatprep.subr.mxu0 0.0
        %10210 = vmatpush1.msra.mxu0 %v10111
        %10211 = vmatprep.subr.mxu0 0.0
        %10212 = vmatpush1.msra.mxu0 %v10112
        %10213 = vmatprep.subr.mxu0 0.0
        %10214 = vmatpush1.msra.mxu0 %v10113
        %10215 = vmatprep.subr.mxu0 0.0
        %10216 = vmatpush1.msra.mxu0 %v10114
        %10217 = vmatprep.subr.mxu0 0.0
        %10218 = vmatpush1.msra.mxu0 %v10115
        %10219 = vmatprep.subr.mxu0 0.0
        %10220 = vmatpush1.msra.mxu0 %v10116
        %10221 = vmatprep.subr.mxu0 0.0
        %10222 = vmatpush1.msra.mxu0 %v10117
        %10223 = vmatprep.subr.mxu0 0.0
        %10224 = vmatpush1.msra.mxu0 %v10118
        %10225 = vmatprep.subr.mxu0 0.0
        %10226 = vmatpush1.msra.mxu0 %v10119
        %10227 = vmatprep.subr.mxu0 0.0
        %10228 = vmatpush1.msra.mxu0 %v10120
        %10229 = vmatprep.subr.mxu0 0.0
        %10230 = vmatpush1.msra.mxu0 %v10121
        %10231 = vmatprep.subr.mxu0 0.0
        %10232 = vmatpush1.msra.mxu0 %v10122
        %10233 = vmatprep.subr.mxu0 0.0
        %10234 = vmatpush1.msra.mxu0 %v10123
        %10235 = vmatprep.subr.mxu0 0.0
        %10236 = vmatpush1.msra.mxu0 %v10124
        %10237 = vmatprep.subr.mxu0 0.0
        %10238 = vmatpush1.msra.mxu0 %v10125
        %10239 = vmatprep.subr.mxu0 0.0
        %10240 = vmatpush1.msra.mxu0 %v10126
        %10241 = vmatprep.subr.mxu0 0.0
        %10242 = vmatpush1.msra.mxu0 %v10127
        %10243 = vmatprep.subr.mxu0 0.0
        %10244 = vmatpush1.msra.mxu0 %v10128
        %10245 = vmatprep.subr.mxu0 0.0
        %10246 = vmatpush1.msra.mxu0 %v10129
        %10247 = vmatprep.subr.mxu0 0.0
        %10248 = vmatpush1.msra.mxu0 %v10130
        %10249 = vmatprep.subr.mxu0 0.0
        %10250 = vmatpush1.msra.mxu0 %v10131
        %10251 = vmatprep.subr.mxu0 0.0
        %10252 = vmatpush1.msra.mxu0 %v10132
        %10253 = vmatprep.subr.mxu0 0.0
        %10254 = vmatpush1.msra.mxu0 %v10133
        %10255 = vmatprep.subr.mxu0 0.0
        %10256 = vmatpush1.msra.mxu0 %v10134
        %10257 = vmatprep.subr.mxu0 0.0
        %10258 = vmatpush1.msra.mxu0 %v10135
        %10259 = vmatprep.subr.mxu0 0.0
        %10260 = vmatpush1.msra.mxu0 %v10136
        %10261 = vmatprep.subr.mxu0 0.0
        %10262 = vmatpush1.msra.mxu0 %v10137
        %10263 = vmatprep.subr.mxu0 0.0
        %10264 = vmatpush1.msra.mxu0 %v10138
        %10265 = vmatprep.subr.mxu0 0.0
        %10266 = vmatpush1.msra.mxu0 %v10139
        %10267 = vmatprep.subr.mxu0 0.0
        %10268 = vmatpush1.msra.mxu0 %v10140
        %10269 = vmatprep.mubr.f32.mxu0 %v10186
        %10270 = vmatmul.mubr.f32.gmra.mrb[0].mxu0 %v10179
        %v10271 = vpop.f32.mrb[0].mxu0
        %v10272 = vadd.f32 0.0, %v10271
        %v10273 = vpop.f32.mrb[0].mxu0
        %10274 = vmatprep.mubr.f32.mxu0 %v10200
        %10275 = vmatmul.mubr.f32.gmra.mrb[0].mxu0 %v10193
        %v10276 = vpop.f32.mrb[0].mxu0
        %v10277 = vadd.f32 0.0, %v10276
        %v10278 = vpop.f32.mrb[0].mxu0
        %10279 = vdwg.mxu0
        %v10280 = vld [vmem:[%s12] sm:$0xff]
        %v10281 = vld [vmem:[%s12 + $0x8] sm:$0xff]
        %v10282 = vld [vmem:[%s12 + $0x10] sm:$0xff]
        %v10283 = vld [vmem:[%s12 + $0x18] sm:$0xff]
        %v10284 = vld [vmem:[%s12 + $0x20] sm:$0xff]
        %v10285 = vld [vmem:[%s12 + $0x28] sm:$0xff]
        %v10286 = vld [vmem:[%s12 + $0x30] sm:$0xff]
        %v10287 = vld [vmem:[%s12 + $0x38] sm:$0xff]
        %v10288 = vld [vmem:[%s12 + $0x40] sm:$0xff]
        %v10289 = vld [vmem:[%s12 + $0x48] sm:$0xff]
        %v10290 = vld [vmem:[%s12 + $0x50] sm:$0xff]
        %v10291 = vld [vmem:[%s12 + $0x58] sm:$0xff]
        %v10292 = vld [vmem:[%s12 + $0x60] sm:$0xff]
        %v10293 = vld [vmem:[%s12 + $0x68] sm:$0xff]
        %v10294 = vld [vmem:[%s12 + $0x70] sm:$0xff]
        %v10295 = vld [vmem:[%s12 + $0x78] sm:$0xff]
        %v10296 = vld [vmem:[%s12 + $0x80] sm:$0xff]
        %v10297 = vld [vmem:[%s12 + $0x88] sm:$0xff]
        %v10298 = vld [vmem:[%s12 + $0x90] sm:$0xff]
        %v10299 = vld [vmem:[%s12 + $0x98] sm:$0xff]
        %v10300 = vld [vmem:[%s12 + $0xa0] sm:$0xff]
        %v10301 = vld [vmem:[%s12 + $0xa8] sm:$0xff]
        %v10302 = vld [vmem:[%s12 + $0xb0] sm:$0xff]
        %v10303 = vld [vmem:[%s12 + $0xb8] sm:$0xff]
        %v10304 = vld [vmem:[%s12 + $0xc0] sm:$0xff]
        %v10305 = vld [vmem:[%s12 + $0xc8] sm:$0xff]
        %v10306 = vld [vmem:[%s12 + $0xd0] sm:$0xff]
        %v10307 = vld [vmem:[%s12 + $0xd8] sm:$0xff]
        %v10308 = vld [vmem:[%s12 + $0xe0] sm:$0xff]
        %v10309 = vld [vmem:[%s12 + $0xe8] sm:$0xff]
        %v10310 = vld [vmem:[%s12 + $0xf0] sm:$0xff]
        %v10311 = vld [vmem:[%s12 + $0xf8] sm:$0xff]
        %10312 = vmatprep.subr.mxu0 0.0
        %10313 = vmatpush1.msra.mxu0 %v10280
        %10314 = vmatprep.subr.mxu0 0.0
        %10315 = vmatpush1.msra.mxu0 %v10281
        %10316 = vmatprep.subr.mxu0 0.0
        %10317 = vmatpush1.msra.mxu0 %v10282
        %10318 = vmatprep.subr.mxu0 0.0
        %10319 = vmatpush1.msra.mxu0 %v10283
        %10320 = vmatprep.subr.mxu0 0.0
        %10321 = vmatpush1.msra.mxu0 %v10284
        %10322 = vmatprep.subr.mxu0 0.0
        %10323 = vmatpush1.msra.mxu0 %v10285
        %10324 = vmatprep.subr.mxu0 0.0
        %10325 = vmatpush1.msra.mxu0 %v10286
        %10326 = vmatprep.subr.mxu0 0.0
        %10327 = vmatpush1.msra.mxu0 %v10287
        %10328 = vmatprep.subr.mxu0 0.0
        %10329 = vmatpush1.msra.mxu0 %v10288
        %10330 = vmatprep.subr.mxu0 0.0
        %10331 = vmatpush1.msra.mxu0 %v10289
        %10332 = vmatprep.subr.mxu0 0.0
        %10333 = vmatpush1.msra.mxu0 %v10290
        %10334 = vmatprep.subr.mxu0 0.0
        %10335 = vmatpush1.msra.mxu0 %v10291
        %10336 = vmatprep.subr.mxu0 0.0
        %10337 = vmatpush1.msra.mxu0 %v10292
        %10338 = vmatprep.subr.mxu0 0.0
        %10339 = vmatpush1.msra.mxu0 %v10293
        %10340 = vmatprep.subr.mxu0 0.0
        %10341 = vmatpush1.msra.mxu0 %v10294
        %10342 = vmatprep.subr.mxu0 0.0
        %10343 = vmatpush1.msra.mxu0 %v10295
        %10344 = vmatprep.subr.mxu0 0.0
        %10345 = vmatpush1.msra.mxu0 %v10296
        %10346 = vmatprep.subr.mxu0 0.0
        %10347 = vmatpush1.msra.mxu0 %v10297
        %10348 = vmatprep.subr.mxu0 0.0
        %10349 = vmatpush1.msra.mxu0 %v10298
        %10350 = vmatprep.subr.mxu0 0.0
        %10351 = vmatpush1.msra.mxu0 %v10299
        %10352 = vmatprep.subr.mxu0 0.0
        %10353 = vmatpush1.msra.mxu0 %v10300
        %10354 = vmatprep.subr.mxu0 0.0
        %10355 = vmatpush1.msra.mxu0 %v10301
        %10356 = vmatprep.subr.mxu0 0.0
        %10357 = vmatpush1.msra.mxu0 %v10302
        %10358 = vmatprep.subr.mxu0 0.0
        %10359 = vmatpush1.msra.mxu0 %v10303
        %10360 = vmatprep.subr.mxu0 0.0
        %10361 = vmatpush1.msra.mxu0 %v10304
        %10362 = vmatprep.subr.mxu0 0.0
        %10363 = vmatpush1.msra.mxu0 %v10305
        %10364 = vmatprep.subr.mxu0 0.0
        %10365 = vmatpush1.msra.mxu0 %v10306
        %10366 = vmatprep.subr.mxu0 0.0
        %10367 = vmatpush1.msra.mxu0 %v10307
        %10368 = vmatprep.subr.mxu0 0.0
        %10369 = vmatpush1.msra.mxu0 %v10308
        %10370 = vmatprep.subr.mxu0 0.0
        %10371 = vmatpush1.msra.mxu0 %v10309
        %10372 = vmatprep.subr.mxu0 0.0
        %10373 = vmatpush1.msra.mxu0 %v10310
        %10374 = vmatprep.subr.mxu0 0.0
        %10375 = vmatpush1.msra.mxu0 %v10311
        %10376 = vmatprep.mubr.f32.mxu0 %v10186
        %10377 = vmatmul.mubr.f32.gmra.mrb[0].mxu0 %v10179
        %v10378 = vpop.f32.mrb[0].mxu0
        %v10379 = vadd.f32 0.0, %v10378
        %v10380 = vpop.f32.mrb[0].mxu0
        %10381 = vmatprep.mubr.f32.mxu0 %v10200
        %10382 = vmatmul.mubr.f32.gmra.mrb[0].mxu0 %v10193
        %v10383 = vpop.f32.mrb[0].mxu0
        %v10384 = vadd.f32 0.0, %v10383
        %v10385 = vpop.f32.mrb[0].mxu0
        %10386 = vdwg.mxu0
        %v10387 = vmax.f32 %v10272, %v10379
        %v10388 = vmax.f32 %v10277, %v10384
        %v10389 = vld [vmem:[%s13] sm:$0xff]
        %v10390 = vld [vmem:[%s13 + $0x8] sm:$0xff]
        %v10391 = vld [vmem:[%s13 + $0x10] sm:$0xff]
        %v10392 = vld [vmem:[%s13 + $0x18] sm:$0xff]
        %v10393 = vld [vmem:[%s13 + $0x20] sm:$0xff]
        %v10394 = vld [vmem:[%s13 + $0x28] sm:$0xff]
        %v10395 = vld [vmem:[%s13 + $0x30] sm:$0xff]
        %v10396 = vld [vmem:[%s13 + $0x38] sm:$0xff]
        %v10397 = vld [vmem:[%s13 + $0x40] sm:$0xff]
        %v10398 = vld [vmem:[%s13 + $0x48] sm:$0xff]
        %v10399 = vld [vmem:[%s13 + $0x50] sm:$0xff]
        %v10400 = vld [vmem:[%s13 + $0x58] sm:$0xff]
        %v10401 = vld [vmem:[%s13 + $0x60] sm:$0xff]
        %v10402 = vld [vmem:[%s13 + $0x68] sm:$0xff]
        %v10403 = vld [vmem:[%s13 + $0x70] sm:$0xff]
        %v10404 = vld [vmem:[%s13 + $0x78] sm:$0xff]
        %v10405 = vld [vmem:[%s13 + $0x80] sm:$0xff]
        %v10406 = vld [vmem:[%s13 + $0x88] sm:$0xff]
        %v10407 = vld [vmem:[%s13 + $0x90] sm:$0xff]
        %v10408 = vld [vmem:[%s13 + $0x98] sm:$0xff]
        %v10409 = vld [vmem:[%s13 + $0xa0] sm:$0xff]
        %v10410 = vld [vmem:[%s13 + $0xa8] sm:$0xff]
        %v10411 = vld [vmem:[%s13 + $0xb0] sm:$0xff]
        %v10412 = vld [vmem:[%s13 + $0xb8] sm:$0xff]
        %v10413 = vld [vmem:[%s13 + $0xc0] sm:$0xff]
        %v10414 = vld [vmem:[%s13 + $0xc8] sm:$0xff]
        %v10415 = vld [vmem:[%s13 + $0xd0] sm:$0xff]
        %v10416 = vld [vmem:[%s13 + $0xd8] sm:$0xff]
        %v10417 = vld [vmem:[%s13 + $0xe0] sm:$0xff]
        %v10418 = vld [vmem:[%s13 + $0xe8] sm:$0xff]
        %v10419 = vld [vmem:[%s13 + $0xf0] sm:$0xff]
        %v10420 = vld [vmem:[%s13 + $0xf8] sm:$0xff]
        %v10421 = vld [vmem:[%s13 + $0x100] sm:$0xff]
        %v10422 = vld [vmem:[%s13 + $0x108] sm:$0xff]
        %v10423 = vld [vmem:[%s13 + $0x110] sm:$0xff]
        %v10424 = vld [vmem:[%s13 + $0x118] sm:$0xff]
        %v10425 = vld [vmem:[%s13 + $0x120] sm:$0xff]
        %v10426 = vld [vmem:[%s13 + $0x128] sm:$0xff]
        %v10427 = vld [vmem:[%s13 + $0x130] sm:$0xff]
        %v10428 = vld [vmem:[%s13 + $0x138] sm:$0xff]
        %v10429 = vld [vmem:[%s13 + $0x140] sm:$0xff]
        %v10430 = vld [vmem:[%s13 + $0x148] sm:$0xff]
        %v10431 = vld [vmem:[%s13 + $0x150] sm:$0xff]
        %v10432 = vld [vmem:[%s13 + $0x158] sm:$0xff]
        %v10433 = vld [vmem:[%s13 + $0x160] sm:$0xff]
        %v10434 = vld [vmem:[%s13 + $0x168] sm:$0xff]
        %v10435 = vld [vmem:[%s13 + $0x170] sm:$0xff]
        %v10436 = vld [vmem:[%s13 + $0x178] sm:$0xff]
        %v10437 = vld [vmem:[%s13 + $0x180] sm:$0xff]
        %v10438 = vld [vmem:[%s13 + $0x188] sm:$0xff]
        %v10439 = vld [vmem:[%s13 + $0x190] sm:$0xff]
        %v10440 = vld [vmem:[%s13 + $0x198] sm:$0xff]
        %v10441 = vld [vmem:[%s13 + $0x1a0] sm:$0xff]
        %v10442 = vld [vmem:[%s13 + $0x1a8] sm:$0xff]
        %v10443 = vld [vmem:[%s13 + $0x1b0] sm:$0xff]
        %v10444 = vld [vmem:[%s13 + $0x1b8] sm:$0xff]
        %v10445 = vld [vmem:[%s13 + $0x1c0] sm:$0xff]
        %v10446 = vld [vmem:[%s13 + $0x1c8] sm:$0xff]
        %v10447 = vld [vmem:[%s13 + $0x1d0] sm:$0xff]
        %v10448 = vld [vmem:[%s13 + $0x1d8] sm:$0xff]
        %v10449 = vld [vmem:[%s13 + $0x1e0] sm:$0xff]
        %v10450 = vld [vmem:[%s13 + $0x1e8] sm:$0xff]
        %v10451 = vld [vmem:[%s13 + $0x1f0] sm:$0xff]
        %v10452 = vld [vmem:[%s13 + $0x1f8] sm:$0xff]
        %v10453 = vld [vmem:[%s13 + $0x200] sm:$0xff]
        %v10454 = vld [vmem:[%s13 + $0x208] sm:$0xff]
        %v10455 = vld [vmem:[%s13 + $0x210] sm:$0xff]
        %v10456 = vld [vmem:[%s13 + $0x218] sm:$0xff]
        %v10457 = vld [vmem:[%s13 + $0x220] sm:$0xff]
        %v10458 = vld [vmem:[%s13 + $0x228] sm:$0xff]
        %v10459 = vld [vmem:[%s13 + $0x230] sm:$0xff]
        %v10460 = vld [vmem:[%s13 + $0x238] sm:$0xff]
        %v10461 = vld [vmem:[%s13 + $0x240] sm:$0xff]
        %v10462 = vld [vmem:[%s13 + $0x248] sm:$0xff]
        %v10463 = vld [vmem:[%s13 + $0x250] sm:$0xff]
        %v10464 = vld [vmem:[%s13 + $0x258] sm:$0xff]
        %v10465 = vld [vmem:[%s13 + $0x260] sm:$0xff]
        %v10466 = vld [vmem:[%s13 + $0x268] sm:$0xff]
        %v10467 = vld [vmem:[%s13 + $0x270] sm:$0xff]
        %v10468 = vld [vmem:[%s13 + $0x278] sm:$0xff]
        %v10469 = vld [vmem:[%s13 + $0x280] sm:$0xff]
        %v10470 = vld [vmem:[%s13 + $0x288] sm:$0xff]
        %v10471 = vld [vmem:[%s13 + $0x290] sm:$0xff]
        %v10472 = vld [vmem:[%s13 + $0x298] sm:$0xff]
        %v10473 = vld [vmem:[%s13 + $0x2a0] sm:$0xff]
        %v10474 = vld [vmem:[%s13 + $0x2a8] sm:$0xff]
        %v10475 = vld [vmem:[%s13 + $0x2b0] sm:$0xff]
        %v10476 = vld [vmem:[%s13 + $0x2b8] sm:$0xff]
        %v10477 = vld [vmem:[%s13 + $0x2c0] sm:$0xff]
        %v10478 = vld [vmem:[%s13 + $0x2c8] sm:$0xff]
        %v10479 = vld [vmem:[%s13 + $0x2d0] sm:$0xff]
        %v10480 = vld [vmem:[%s13 + $0x2d8] sm:$0xff]
        %v10481 = vld [vmem:[%s13 + $0x2e0] sm:$0xff]
        %v10482 = vld [vmem:[%s13 + $0x2e8] sm:$0xff]
        %v10483 = vld [vmem:[%s13 + $0x2f0] sm:$0xff]
        %v10484 = vld [vmem:[%s13 + $0x2f8] sm:$0xff]
        %v10485 = vld [vmem:[%s13 + $0x300] sm:$0xff]
        %v10486 = vld [vmem:[%s13 + $0x308] sm:$0xff]
        %v10487 = vld [vmem:[%s13 + $0x310] sm:$0xff]
        %v10488 = vld [vmem:[%s13 + $0x318] sm:$0xff]
        %v10489 = vld [vmem:[%s13 + $0x320] sm:$0xff]
        %v10490 = vld [vmem:[%s13 + $0x328] sm:$0xff]
        %v10491 = vld [vmem:[%s13 + $0x330] sm:$0xff]
        %v10492 = vld [vmem:[%s13 + $0x338] sm:$0xff]
        %v10493 = vld [vmem:[%s13 + $0x340] sm:$0xff]
        %v10494 = vld [vmem:[%s13 + $0x348] sm:$0xff]
        %v10495 = vld [vmem:[%s13 + $0x350] sm:$0xff]
        %v10496 = vld [vmem:[%s13 + $0x358] sm:$0xff]
        %v10497 = vld [vmem:[%s13 + $0x360] sm:$0xff]
        %v10498 = vld [vmem:[%s13 + $0x368] sm:$0xff]
        %v10499 = vld [vmem:[%s13 + $0x370] sm:$0xff]
        %v10500 = vld [vmem:[%s13 + $0x378] sm:$0xff]
        %v10501 = vld [vmem:[%s13 + $0x380] sm:$0xff]
        %v10502 = vld [vmem:[%s13 + $0x388] sm:$0xff]
        %v10503 = vld [vmem:[%s13 + $0x390] sm:$0xff]
        %v10504 = vld [vmem:[%s13 + $0x398] sm:$0xff]
        %v10505 = vld [vmem:[%s13 + $0x3a0] sm:$0xff]
        %v10506 = vld [vmem:[%s13 + $0x3a8] sm:$0xff]
        %v10507 = vld [vmem:[%s13 + $0x3b0] sm:$0xff]
        %v10508 = vld [vmem:[%s13 + $0x3b8] sm:$0xff]
        %v10509 = vld [vmem:[%s13 + $0x3c0] sm:$0xff]
        %v10510 = vld [vmem:[%s13 + $0x3c8] sm:$0xff]
        %v10511 = vld [vmem:[%s13 + $0x3d0] sm:$0xff]
        %v10512 = vld [vmem:[%s13 + $0x3d8] sm:$0xff]
        %v10513 = vld [vmem:[%s13 + $0x3e0] sm:$0xff]
        %v10514 = vld [vmem:[%s13 + $0x3e8] sm:$0xff]
        %v10515 = vld [vmem:[%s13 + $0x3f0] sm:$0xff]
        %v10516 = vld [vmem:[%s13 + $0x3f8] sm:$0xff]
        %v10517 = vld [vmem:[%s13 + $0x400] sm:$0xff]
        %v10518 = vld [vmem:[%s13 + $0x408] sm:$0xff]
        %v10519 = vld [vmem:[%s13 + $0x410] sm:$0xff]
        %v10520 = vld [vmem:[%s13 + $0x418] sm:$0xff]
        %v10521 = vld [vmem:[%s13 + $0x420] sm:$0xff]
        %v10522 = vld [vmem:[%s13 + $0x428] sm:$0xff]
        %v10523 = vld [vmem:[%s13 + $0x430] sm:$0xff]
        %v10524 = vld [vmem:[%s13 + $0x438] sm:$0xff]
        %v10525 = vld [vmem:[%s13 + $0x440] sm:$0xff]
        %v10526 = vld [vmem:[%s13 + $0x448] sm:$0xff]
        %v10527 = vld [vmem:[%s13 + $0x450] sm:$0xff]
        %v10528 = vld [vmem:[%s13 + $0x458] sm:$0xff]
        %v10529 = vld [vmem:[%s13 + $0x460] sm:$0xff]
        %v10530 = vld [vmem:[%s13 + $0x468] sm:$0xff]
        %v10531 = vld [vmem:[%s13 + $0x470] sm:$0xff]
        %v10532 = vld [vmem:[%s13 + $0x478] sm:$0xff]
        %v10533 = vld [vmem:[%s13 + $0x480] sm:$0xff]
        %v10534 = vld [vmem:[%s13 + $0x488] sm:$0xff]
        %v10535 = vld [vmem:[%s13 + $0x490] sm:$0xff]
        %v10536 = vld [vmem:[%s13 + $0x498] sm:$0xff]
        %v10537 = vld [vmem:[%s13 + $0x4a0] sm:$0xff]
        %v10538 = vld [vmem:[%s13 + $0x4a8] sm:$0xff]
        %v10539 = vld [vmem:[%s13 + $0x4b0] sm:$0xff]
        %v10540 = vld [vmem:[%s13 + $0x4b8] sm:$0xff]
        %v10541 = vld [vmem:[%s13 + $0x4c0] sm:$0xff]
        %v10542 = vld [vmem:[%s13 + $0x4c8] sm:$0xff]
        %v10543 = vld [vmem:[%s13 + $0x4d0] sm:$0xff]
        %v10544 = vld [vmem:[%s13 + $0x4d8] sm:$0xff]
        %v10545 = vld [vmem:[%s13 + $0x4e0] sm:$0xff]
        %v10546 = vld [vmem:[%s13 + $0x4e8] sm:$0xff]
        %v10547 = vld [vmem:[%s13 + $0x4f0] sm:$0xff]
        %v10548 = vld [vmem:[%s13 + $0x4f8] sm:$0xff]
        %v10549 = vld [vmem:[%s13 + $0x500] sm:$0xff]
        %v10550 = vld [vmem:[%s13 + $0x508] sm:$0xff]
        %v10551 = vld [vmem:[%s13 + $0x510] sm:$0xff]
        %v10552 = vld [vmem:[%s13 + $0x518] sm:$0xff]
        %v10553 = vld [vmem:[%s13 + $0x520] sm:$0xff]
        %v10554 = vld [vmem:[%s13 + $0x528] sm:$0xff]
        %v10555 = vld [vmem:[%s13 + $0x530] sm:$0xff]
        %v10556 = vld [vmem:[%s13 + $0x538] sm:$0xff]
        %v10557 = vld [vmem:[%s13 + $0x540] sm:$0xff]
        %v10558 = vld [vmem:[%s13 + $0x548] sm:$0xff]
        %v10559 = vld [vmem:[%s13 + $0x550] sm:$0xff]
        %v10560 = vld [vmem:[%s13 + $0x558] sm:$0xff]
        %v10561 = vld [vmem:[%s13 + $0x560] sm:$0xff]
        %v10562 = vld [vmem:[%s13 + $0x568] sm:$0xff]
        %v10563 = vld [vmem:[%s13 + $0x570] sm:$0xff]
        %v10564 = vld [vmem:[%s13 + $0x578] sm:$0xff]
        %v10565 = vld [vmem:[%s13 + $0x580] sm:$0xff]
        %v10566 = vld [vmem:[%s13 + $0x588] sm:$0xff]
        %v10567 = vld [vmem:[%s13 + $0x590] sm:$0xff]
        %v10568 = vld [vmem:[%s13 + $0x598] sm:$0xff]
        %v10569 = vld [vmem:[%s13 + $0x5a0] sm:$0xff]
        %v10570 = vld [vmem:[%s13 + $0x5a8] sm:$0xff]
        %v10571 = vld [vmem:[%s13 + $0x5b0] sm:$0xff]
        %v10572 = vld [vmem:[%s13 + $0x5b8] sm:$0xff]
        %v10573 = vld [vmem:[%s13 + $0x5c0] sm:$0xff]
        %v10574 = vld [vmem:[%s13 + $0x5c8] sm:$0xff]
        %v10575 = vld [vmem:[%s13 + $0x5d0] sm:$0xff]
        %v10576 = vld [vmem:[%s13 + $0x5d8] sm:$0xff]
        %v10577 = vld [vmem:[%s13 + $0x5e0] sm:$0xff]
        %v10578 = vld [vmem:[%s13 + $0x5e8] sm:$0xff]
        %v10579 = vld [vmem:[%s13 + $0x5f0] sm:$0xff]
        %v10580 = vld [vmem:[%s13 + $0x5f8] sm:$0xff]
        %v10581 = vld [vmem:[%s13 + $0x600] sm:$0xff]
        %v10582 = vld [vmem:[%s13 + $0x608] sm:$0xff]
        %v10583 = vld [vmem:[%s13 + $0x610] sm:$0xff]
        %v10584 = vld [vmem:[%s13 + $0x618] sm:$0xff]
        %v10585 = vld [vmem:[%s13 + $0x620] sm:$0xff]
        %v10586 = vld [vmem:[%s13 + $0x628] sm:$0xff]
        %v10587 = vld [vmem:[%s13 + $0x630] sm:$0xff]
        %v10588 = vld [vmem:[%s13 + $0x638] sm:$0xff]
        %v10589 = vld [vmem:[%s13 + $0x640] sm:$0xff]
        %v10590 = vld [vmem:[%s13 + $0x648] sm:$0xff]
        %v10591 = vld [vmem:[%s13 + $0x650] sm:$0xff]
        %v10592 = vld [vmem:[%s13 + $0x658] sm:$0xff]
        %v10593 = vld [vmem:[%s13 + $0x660] sm:$0xff]
        %v10594 = vld [vmem:[%s13 + $0x668] sm:$0xff]
        %v10595 = vld [vmem:[%s13 + $0x670] sm:$0xff]
        %v10596 = vld [vmem:[%s13 + $0x678] sm:$0xff]
        %v10597 = vld [vmem:[%s13 + $0x680] sm:$0xff]
        %v10598 = vld [vmem:[%s13 + $0x688] sm:$0xff]
        %v10599 = vld [vmem:[%s13 + $0x690] sm:$0xff]
        %v10600 = vld [vmem:[%s13 + $0x698] sm:$0xff]
        %v10601 = vld [vmem:[%s13 + $0x6a0] sm:$0xff]
        %v10602 = vld [vmem:[%s13 + $0x6a8] sm:$0xff]
        %v10603 = vld [vmem:[%s13 + $0x6b0] sm:$0xff]
        %v10604 = vld [vmem:[%s13 + $0x6b8] sm:$0xff]
        %v10605 = vld [vmem:[%s13 + $0x6c0] sm:$0xff]
        %v10606 = vld [vmem:[%s13 + $0x6c8] sm:$0xff]
        %v10607 = vld [vmem:[%s13 + $0x6d0] sm:$0xff]
        %v10608 = vld [vmem:[%s13 + $0x6d8] sm:$0xff]
        %v10609 = vld [vmem:[%s13 + $0x6e0] sm:$0xff]
        %v10610 = vld [vmem:[%s13 + $0x6e8] sm:$0xff]
        %v10611 = vld [vmem:[%s13 + $0x6f0] sm:$0xff]
        %v10612 = vld [vmem:[%s13 + $0x6f8] sm:$0xff]
        %v10613 = vld [vmem:[%s13 + $0x700] sm:$0xff]
        %v10614 = vld [vmem:[%s13 + $0x708] sm:$0xff]
        %v10615 = vld [vmem:[%s13 + $0x710] sm:$0xff]
        %v10616 = vld [vmem:[%s13 + $0x718] sm:$0xff]
        %v10617 = vld [vmem:[%s13 + $0x720] sm:$0xff]
        %v10618 = vld [vmem:[%s13 + $0x728] sm:$0xff]
        %v10619 = vld [vmem:[%s13 + $0x730] sm:$0xff]
        %v10620 = vld [vmem:[%s13 + $0x738] sm:$0xff]
        %v10621 = vld [vmem:[%s13 + $0x740] sm:$0xff]
        %v10622 = vld [vmem:[%s13 + $0x748] sm:$0xff]
        %v10623 = vld [vmem:[%s13 + $0x750] sm:$0xff]
        %v10624 = vld [vmem:[%s13 + $0x758] sm:$0xff]
        %v10625 = vld [vmem:[%s13 + $0x760] sm:$0xff]
        %v10626 = vld [vmem:[%s13 + $0x768] sm:$0xff]
        %v10627 = vld [vmem:[%s13 + $0x770] sm:$0xff]
        %v10628 = vld [vmem:[%s13 + $0x778] sm:$0xff]
        %v10629 = vld [vmem:[%s13 + $0x780] sm:$0xff]
        %v10630 = vld [vmem:[%s13 + $0x788] sm:$0xff]
        %v10631 = vld [vmem:[%s13 + $0x790] sm:$0xff]
        %v10632 = vld [vmem:[%s13 + $0x798] sm:$0xff]
        %v10633 = vld [vmem:[%s13 + $0x7a0] sm:$0xff]
        %v10634 = vld [vmem:[%s13 + $0x7a8] sm:$0xff]
        %v10635 = vld [vmem:[%s13 + $0x7b0] sm:$0xff]
        %v10636 = vld [vmem:[%s13 + $0x7b8] sm:$0xff]
        %v10637 = vld [vmem:[%s13 + $0x7c0] sm:$0xff]
        %v10638 = vld [vmem:[%s13 + $0x7c8] sm:$0xff]
        %v10639 = vld [vmem:[%s13 + $0x7d0] sm:$0xff]
        %v10640 = vld [vmem:[%s13 + $0x7d8] sm:$0xff]
        %v10641 = vld [vmem:[%s13 + $0x7e0] sm:$0xff]
        %v10642 = vld [vmem:[%s13 + $0x7e8] sm:$0xff]
        %v10643 = vld [vmem:[%s13 + $0x7f0] sm:$0xff]
        %v10644 = vld [vmem:[%s13 + $0x7f8] sm:$0xff]
        %v10645 = vld [vmem:[%s14] sm:$0x1]
        %v10648 = vlaneseq
        %v10649 = vshrl.u32 %v10648, 7
        %v10650 = vsub.s32 0, %v10649
        %v10651 = vrot.slane %v10387, %v10650
        %v10652 = vlaneseq
        %v10653 = vshrl.u32 %v10652, 7
        %v10654 = vsub.s32 1, %v10653
        %v10655 = vrot.slane %v10387, %v10654
        %v10656 = vlaneseq
        %v10657 = vshrl.u32 %v10656, 7
        %v10658 = vsub.s32 2, %v10657
        %v10659 = vrot.slane %v10387, %v10658
        %v10660 = vlaneseq
        %v10661 = vshrl.u32 %v10660, 7
        %v10662 = vsub.s32 3, %v10661
        %v10663 = vrot.slane %v10387, %v10662
        %v10664 = vlaneseq
        %v10665 = vshrl.u32 %v10664, 7
        %v10666 = vsub.s32 4, %v10665
        %v10667 = vrot.slane %v10387, %v10666
        %v10668 = vlaneseq
        %v10669 = vshrl.u32 %v10668, 7
        %v10670 = vsub.s32 5, %v10669
        %v10671 = vrot.slane %v10387, %v10670
        %v10672 = vlaneseq
        %v10673 = vshrl.u32 %v10672, 7
        %v10674 = vsub.s32 6, %v10673
        %v10675 = vrot.slane %v10387, %v10674
        %v10676 = vlaneseq
        %v10677 = vshrl.u32 %v10676, 7
        %v10678 = vsub.s32 7, %v10677
        %v10679 = vrot.slane %v10387, %v10678
        %v10680 = vlaneseq
        %v10681 = vshrl.u32 %v10680, 7
        %v10682 = vsub.s32 0, %v10681
        %v10683 = vrot.slane %v10388, %v10682
        %v10684 = vlaneseq
        %v10685 = vshrl.u32 %v10684, 7
        %v10686 = vsub.s32 1, %v10685
        %v10687 = vrot.slane %v10388, %v10686
        %v10688 = vlaneseq
        %v10689 = vshrl.u32 %v10688, 7
        %v10690 = vsub.s32 2, %v10689
        %v10691 = vrot.slane %v10388, %v10690
        %v10692 = vlaneseq
        %v10693 = vshrl.u32 %v10692, 7
        %v10694 = vsub.s32 3, %v10693
        %v10695 = vrot.slane %v10388, %v10694
        %v10696 = vlaneseq
        %v10697 = vshrl.u32 %v10696, 7
        %v10698 = vsub.s32 4, %v10697
        %v10699 = vrot.slane %v10388, %v10698
        %v10700 = vlaneseq
        %v10701 = vshrl.u32 %v10700, 7
        %v10702 = vsub.s32 5, %v10701
        %v10703 = vrot.slane %v10388, %v10702
        %v10704 = vlaneseq
        %v10705 = vshrl.u32 %v10704, 7
        %v10706 = vsub.s32 6, %v10705
        %v10707 = vrot.slane %v10388, %v10706
        %v10708 = vlaneseq
        %v10709 = vshrl.u32 %v10708, 7
        %v10710 = vsub.s32 7, %v10709
        %v10711 = vrot.slane %v10388, %v10710
        %10728 = vmatprep.subr.mxu0 0.0
        %10729 = vmatpush1.msra.mxu0 %v10389
        %10730 = vmatprep.subr.mxu0 0.0
        %10731 = vmatpush1.msra.mxu0 %v10390
        %10732 = vmatprep.subr.mxu0 0.0
        %10733 = vmatpush1.msra.mxu0 %v10391
        %10734 = vmatprep.subr.mxu0 0.0
        %10735 = vmatpush1.msra.mxu0 %v10392
        %10736 = vmatprep.subr.mxu0 0.0
        %10737 = vmatpush1.msra.mxu0 %v10393
        %10738 = vmatprep.subr.mxu0 0.0
        %10739 = vmatpush1.msra.mxu0 %v10394
        %10740 = vmatprep.subr.mxu0 0.0
        %10741 = vmatpush1.msra.mxu0 %v10395
        %10742 = vmatprep.subr.mxu0 0.0
        %10743 = vmatpush1.msra.mxu0 %v10396
        %10744 = vmatprep.subr.mxu0 0.0
        %10745 = vmatpush1.msra.mxu0 %v10397
        %10746 = vmatprep.subr.mxu0 0.0
        %10747 = vmatpush1.msra.mxu0 %v10398
        %10748 = vmatprep.subr.mxu0 0.0
        %10749 = vmatpush1.msra.mxu0 %v10399
        %10750 = vmatprep.subr.mxu0 0.0
        %10751 = vmatpush1.msra.mxu0 %v10400
        %10752 = vmatprep.subr.mxu0 0.0
        %10753 = vmatpush1.msra.mxu0 %v10401
        %10754 = vmatprep.subr.mxu0 0.0
        %10755 = vmatpush1.msra.mxu0 %v10402
        %10756 = vmatprep.subr.mxu0 0.0
        %10757 = vmatpush1.msra.mxu0 %v10403
        %10758 = vmatprep.subr.mxu0 0.0
        %10759 = vmatpush1.msra.mxu0 %v10404
        %10760 = vmatprep.subr.mxu0 0.0
        %10761 = vmatpush1.msra.mxu0 %v10405
        %10762 = vmatprep.subr.mxu0 0.0
        %10763 = vmatpush1.msra.mxu0 %v10406
        %10764 = vmatprep.subr.mxu0 0.0
        %10765 = vmatpush1.msra.mxu0 %v10407
        %10766 = vmatprep.subr.mxu0 0.0
        %10767 = vmatpush1.msra.mxu0 %v10408
        %10768 = vmatprep.subr.mxu0 0.0
        %10769 = vmatpush1.msra.mxu0 %v10409
        %10770 = vmatprep.subr.mxu0 0.0
        %10771 = vmatpush1.msra.mxu0 %v10410
        %10772 = vmatprep.subr.mxu0 0.0
        %10773 = vmatpush1.msra.mxu0 %v10411
        %10774 = vmatprep.subr.mxu0 0.0
        %10775 = vmatpush1.msra.mxu0 %v10412
        %10776 = vmatprep.subr.mxu0 0.0
        %10777 = vmatpush1.msra.mxu0 %v10413
        %10778 = vmatprep.subr.mxu0 0.0
        %10779 = vmatpush1.msra.mxu0 %v10414
        %10780 = vmatprep.subr.mxu0 0.0
        %10781 = vmatpush1.msra.mxu0 %v10415
        %10782 = vmatprep.subr.mxu0 0.0
        %10783 = vmatpush1.msra.mxu0 %v10416
        %10784 = vmatprep.subr.mxu0 0.0
        %10785 = vmatpush1.msra.mxu0 %v10417
        %10786 = vmatprep.subr.mxu0 0.0
        %10787 = vmatpush1.msra.mxu0 %v10418
        %10788 = vmatprep.subr.mxu0 0.0
        %10789 = vmatpush1.msra.mxu0 %v10419
        %10790 = vmatprep.subr.mxu0 0.0
        %10791 = vmatpush1.msra.mxu0 %v10420
        %10792 = vmatprep.mubr.f32.mxu0 %v10655
        %10793 = vmatmul.mubr.f32.gmra.mrb[0].mxu0 %v10651
        %v10794 = vpop.f32.mrb[0].mxu0
        %v10795 = vadd.f32 %v10645, %v10794
        %v10796 = vpop.f32.mrb[0].mxu0
        %10797 = vdwg.mxu0
        %10798 = vmatprep.subr.mxu0 0.0
        %10799 = vmatpush1.msra.mxu0 %v10421
        %10800 = vmatprep.subr.mxu0 0.0
        %10801 = vmatpush1.msra.mxu0 %v10422
        %10802 = vmatprep.subr.mxu0 0.0
        %10803 = vmatpush1.msra.mxu0 %v10423
        %10804 = vmatprep.subr.mxu0 0.0
        %10805 = vmatpush1.msra.mxu0 %v10424
        %10806 = vmatprep.subr.mxu0 0.0
        %10807 = vmatpush1.msra.mxu0 %v10425
        %10808 = vmatprep.subr.mxu0 0.0
        %10809 = vmatpush1.msra.mxu0 %v10426
        %10810 = vmatprep.subr.mxu0 0.0
        %10811 = vmatpush1.msra.mxu0 %v10427
        %10812 = vmatprep.subr.mxu0 0.0
        %10813 = vmatpush1.msra.mxu0 %v10428
        %10814 = vmatprep.subr.mxu0 0.0
        %10815 = vmatpush1.msra.mxu0 %v10429
        %10816 = vmatprep.subr.mxu0 0.0
        %10817 = vmatpush1.msra.mxu0 %v10430
        %10818 = vmatprep.subr.mxu0 0.0
        %10819 = vmatpush1.msra.mxu0 %v10431
        %10820 = vmatprep.subr.mxu0 0.0
        %10821 = vmatpush1.msra.mxu0 %v10432
        %10822 = vmatprep.subr.mxu0 0.0
        %10823 = vmatpush1.msra.mxu0 %v10433
        %10824 = vmatprep.subr.mxu0 0.0
        %10825 = vmatpush1.msra.mxu0 %v10434
        %10826 = vmatprep.subr.mxu0 0.0
        %10827 = vmatpush1.msra.mxu0 %v10435
        %10828 = vmatprep.subr.mxu0 0.0
        %10829 = vmatpush1.msra.mxu0 %v10436
        %10830 = vmatprep.subr.mxu0 0.0
        %10831 = vmatpush1.msra.mxu0 %v10437
        %10832 = vmatprep.subr.mxu0 0.0
        %10833 = vmatpush1.msra.mxu0 %v10438
        %10834 = vmatprep.subr.mxu0 0.0
        %10835 = vmatpush1.msra.mxu0 %v10439
        %10836 = vmatprep.subr.mxu0 0.0
        %10837 = vmatpush1.msra.mxu0 %v10440
        %10838 = vmatprep.subr.mxu0 0.0
        %10839 = vmatpush1.msra.mxu0 %v10441
        %10840 = vmatprep.subr.mxu0 0.0
        %10841 = vmatpush1.msra.mxu0 %v10442
        %10842 = vmatprep.subr.mxu0 0.0
        %10843 = vmatpush1.msra.mxu0 %v10443
        %10844 = vmatprep.subr.mxu0 0.0
        %10845 = vmatpush1.msra.mxu0 %v10444
        %10846 = vmatprep.subr.mxu0 0.0
        %10847 = vmatpush1.msra.mxu0 %v10445
        %10848 = vmatprep.subr.mxu0 0.0
        %10849 = vmatpush1.msra.mxu0 %v10446
        %10850 = vmatprep.subr.mxu0 0.0
        %10851 = vmatpush1.msra.mxu0 %v10447
        %10852 = vmatprep.subr.mxu0 0.0
        %10853 = vmatpush1.msra.mxu0 %v10448
        %10854 = vmatprep.subr.mxu0 0.0
        %10855 = vmatpush1.msra.mxu0 %v10449
        %10856 = vmatprep.subr.mxu0 0.0
        %10857 = vmatpush1.msra.mxu0 %v10450
        %10858 = vmatprep.subr.mxu0 0.0
        %10859 = vmatpush1.msra.mxu0 %v10451
        %10860 = vmatprep.subr.mxu0 0.0
        %10861 = vmatpush1.msra.mxu0 %v10452
        %10862 = vmatprep.mubr.f32.mxu0 %v10663
        %10863 = vmatmul.mubr.f32.gmra.mrb[0].mxu0 %v10659
        %v10864 = vpop.f32.mrb[0].mxu0
        %v10865 = vadd.f32 %v10795, %v10864
        %v10866 = vpop.f32.mrb[0].mxu0
        %10867 = vdwg.mxu0
        %10868 = vmatprep.subr.mxu0 0.0
        %10869 = vmatpush1.msra.mxu0 %v10453
        %10870 = vmatprep.subr.mxu0 0.0
        %10871 = vmatpush1.msra.mxu0 %v10454
        %10872 = vmatprep.subr.mxu0 0.0
        %10873 = vmatpush1.msra.mxu0 %v10455
        %10874 = vmatprep.subr.mxu0 0.0
        %10875 = vmatpush1.msra.mxu0 %v10456
        %10876 = vmatprep.subr.mxu0 0.0
        %10877 = vmatpush1.msra.mxu0 %v10457
        %10878 = vmatprep.subr.mxu0 0.0
        %10879 = vmatpush1.msra.mxu0 %v10458
        %10880 = vmatprep.subr.mxu0 0.0
        %10881 = vmatpush1.msra.mxu0 %v10459
        %10882 = vmatprep.subr.mxu0 0.0
        %10883 = vmatpush1.msra.mxu0 %v10460
        %10884 = vmatprep.subr.mxu0 0.0
        %10885 = vmatpush1.msra.mxu0 %v10461
        %10886 = vmatprep.subr.mxu0 0.0
        %10887 = vmatpush1.msra.mxu0 %v10462
        %10888 = vmatprep.subr.mxu0 0.0
        %10889 = vmatpush1.msra.mxu0 %v10463
        %10890 = vmatprep.subr.mxu0 0.0
        %10891 = vmatpush1.msra.mxu0 %v10464
        %10892 = vmatprep.subr.mxu0 0.0
        %10893 = vmatpush1.msra.mxu0 %v10465
        %10894 = vmatprep.subr.mxu0 0.0
        %10895 = vmatpush1.msra.mxu0 %v10466
        %10896 = vmatprep.subr.mxu0 0.0
        %10897 = vmatpush1.msra.mxu0 %v10467
        %10898 = vmatprep.subr.mxu0 0.0
        %10899 = vmatpush1.msra.mxu0 %v10468
        %10900 = vmatprep.subr.mxu0 0.0
        %10901 = vmatpush1.msra.mxu0 %v10469
        %10902 = vmatprep.subr.mxu0 0.0
        %10903 = vmatpush1.msra.mxu0 %v10470
        %10904 = vmatprep.subr.mxu0 0.0
        %10905 = vmatpush1.msra.mxu0 %v10471
        %10906 = vmatprep.subr.mxu0 0.0
        %10907 = vmatpush1.msra.mxu0 %v10472
        %10908 = vmatprep.subr.mxu0 0.0
        %10909 = vmatpush1.msra.mxu0 %v10473
        %10910 = vmatprep.subr.mxu0 0.0
        %10911 = vmatpush1.msra.mxu0 %v10474
        %10912 = vmatprep.subr.mxu0 0.0
        %10913 = vmatpush1.msra.mxu0 %v10475
        %10914 = vmatprep.subr.mxu0 0.0
        %10915 = vmatpush1.msra.mxu0 %v10476
        %10916 = vmatprep.subr.mxu0 0.0
        %10917 = vmatpush1.msra.mxu0 %v10477
        %10918 = vmatprep.subr.mxu0 0.0
        %10919 = vmatpush1.msra.mxu0 %v10478
        %10920 = vmatprep.subr.mxu0 0.0
        %10921 = vmatpush1.msra.mxu0 %v10479
        %10922 = vmatprep.subr.mxu0 0.0
        %10923 = vmatpush1.msra.mxu0 %v10480
        %10924 = vmatprep.subr.mxu0 0.0
        %10925 = vmatpush1.msra.mxu0 %v10481
        %10926 = vmatprep.subr.mxu0 0.0
        %10927 = vmatpush1.msra.mxu0 %v10482
        %10928 = vmatprep.subr.mxu0 0.0
        %10929 = vmatpush1.msra.mxu0 %v10483
        %10930 = vmatprep.subr.mxu0 0.0
        %10931 = vmatpush1.msra.mxu0 %v10484
        %10932 = vmatprep.mubr.f32.mxu0 %v10671
        %10933 = vmatmul.mubr.f32.gmra.mrb[0].mxu0 %v10667
        %v10934 = vpop.f32.mrb[0].mxu0
        %v10935 = vadd.f32 %v10865, %v10934
        %v10936 = vpop.f32.mrb[0].mxu0
        %10937 = vdwg.mxu0
        %10938 = vmatprep.subr.mxu0 0.0
        %10939 = vmatpush1.msra.mxu0 %v10485
        %10940 = vmatprep.subr.mxu0 0.0
        %10941 = vmatpush1.msra.mxu0 %v10486
        %10942 = vmatprep.subr.mxu0 0.0
        %10943 = vmatpush1.msra.mxu0 %v10487
        %10944 = vmatprep.subr.mxu0 0.0
        %10945 = vmatpush1.msra.mxu0 %v10488
        %10946 = vmatprep.subr.mxu0 0.0
        %10947 = vmatpush1.msra.mxu0 %v10489
        %10948 = vmatprep.subr.mxu0 0.0
        %10949 = vmatpush1.msra.mxu0 %v10490
        %10950 = vmatprep.subr.mxu0 0.0
        %10951 = vmatpush1.msra.mxu0 %v10491
        %10952 = vmatprep.subr.mxu0 0.0
        %10953 = vmatpush1.msra.mxu0 %v10492
        %10954 = vmatprep.subr.mxu0 0.0
        %10955 = vmatpush1.msra.mxu0 %v10493
        %10956 = vmatprep.subr.mxu0 0.0
        %10957 = vmatpush1.msra.mxu0 %v10494
        %10958 = vmatprep.subr.mxu0 0.0
        %10959 = vmatpush1.msra.mxu0 %v10495
        %10960 = vmatprep.subr.mxu0 0.0
        %10961 = vmatpush1.msra.mxu0 %v10496
        %10962 = vmatprep.subr.mxu0 0.0
        %10963 = vmatpush1.msra.mxu0 %v10497
        %10964 = vmatprep.subr.mxu0 0.0
        %10965 = vmatpush1.msra.mxu0 %v10498
        %10966 = vmatprep.subr.mxu0 0.0
        %10967 = vmatpush1.msra.mxu0 %v10499
        %10968 = vmatprep.subr.mxu0 0.0
        %10969 = vmatpush1.msra.mxu0 %v10500
        %10970 = vmatprep.subr.mxu0 0.0
        %10971 = vmatpush1.msra.mxu0 %v10501
        %10972 = vmatprep.subr.mxu0 0.0
        %10973 = vmatpush1.msra.mxu0 %v10502
        %10974 = vmatprep.subr.mxu0 0.0
        %10975 = vmatpush1.msra.mxu0 %v10503
        %10976 = vmatprep.subr.mxu0 0.0
        %10977 = vmatpush1.msra.mxu0 %v10504
        %10978 = vmatprep.subr.mxu0 0.0
        %10979 = vmatpush1.msra.mxu0 %v10505
        %10980 = vmatprep.subr.mxu0 0.0
        %10981 = vmatpush1.msra.mxu0 %v10506
        %10982 = vmatprep.subr.mxu0 0.0
        %10983 = vmatpush1.msra.mxu0 %v10507
        %10984 = vmatprep.subr.mxu0 0.0
        %10985 = vmatpush1.msra.mxu0 %v10508
        %10986 = vmatprep.subr.mxu0 0.0
        %10987 = vmatpush1.msra.mxu0 %v10509
        %10988 = vmatprep.subr.mxu0 0.0
        %10989 = vmatpush1.msra.mxu0 %v10510
        %10990 = vmatprep.subr.mxu0 0.0
        %10991 = vmatpush1.msra.mxu0 %v10511
        %10992 = vmatprep.subr.mxu0 0.0
        %10993 = vmatpush1.msra.mxu0 %v10512
        %10994 = vmatprep.subr.mxu0 0.0
        %10995 = vmatpush1.msra.mxu0 %v10513
        %10996 = vmatprep.subr.mxu0 0.0
        %10997 = vmatpush1.msra.mxu0 %v10514
        %10998 = vmatprep.subr.mxu0 0.0
        %10999 = vmatpush1.msra.mxu0 %v10515
        %11000 = vmatprep.subr.mxu0 0.0
        %11001 = vmatpush1.msra.mxu0 %v10516
        %11002 = vmatprep.mubr.f32.mxu0 %v10679
        %11003 = vmatmul.mubr.f32.gmra.mrb[0].mxu0 %v10675
        %v11004 = vpop.f32.mrb[0].mxu0
        %v11005 = vadd.f32 %v10935, %v11004
        %v11006 = vpop.f32.mrb[0].mxu0
        %11007 = vdwg.mxu0
        %11008 = vmatprep.subr.mxu0 0.0
        %11009 = vmatpush1.msra.mxu0 %v10517
        %11010 = vmatprep.subr.mxu0 0.0
        %11011 = vmatpush1.msra.mxu0 %v10518
        %11012 = vmatprep.subr.mxu0 0.0
        %11013 = vmatpush1.msra.mxu0 %v10519
        %11014 = vmatprep.subr.mxu0 0.0
        %11015 = vmatpush1.msra.mxu0 %v10520
        %11016 = vmatprep.subr.mxu0 0.0
        %11017 = vmatpush1.msra.mxu0 %v10521
        %11018 = vmatprep.subr.mxu0 0.0
        %11019 = vmatpush1.msra.mxu0 %v10522
        %11020 = vmatprep.subr.mxu0 0.0
        %11021 = vmatpush1.msra.mxu0 %v10523
        %11022 = vmatprep.subr.mxu0 0.0
        %11023 = vmatpush1.msra.mxu0 %v10524
        %11024 = vmatprep.subr.mxu0 0.0
        %11025 = vmatpush1.msra.mxu0 %v10525
        %11026 = vmatprep.subr.mxu0 0.0
        %11027 = vmatpush1.msra.mxu0 %v10526
        %11028 = vmatprep.subr.mxu0 0.0
        %11029 = vmatpush1.msra.mxu0 %v10527
        %11030 = vmatprep.subr.mxu0 0.0
        %11031 = vmatpush1.msra.mxu0 %v10528
        %11032 = vmatprep.subr.mxu0 0.0
        %11033 = vmatpush1.msra.mxu0 %v10529
        %11034 = vmatprep.subr.mxu0 0.0
        %11035 = vmatpush1.msra.mxu0 %v10530
        %11036 = vmatprep.subr.mxu0 0.0
        %11037 = vmatpush1.msra.mxu0 %v10531
        %11038 = vmatprep.subr.mxu0 0.0
        %11039 = vmatpush1.msra.mxu0 %v10532
        %11040 = vmatprep.subr.mxu0 0.0
        %11041 = vmatpush1.msra.mxu0 %v10533
        %11042 = vmatprep.subr.mxu0 0.0
        %11043 = vmatpush1.msra.mxu0 %v10534
        %11044 = vmatprep.subr.mxu0 0.0
        %11045 = vmatpush1.msra.mxu0 %v10535
        %11046 = vmatprep.subr.mxu0 0.0
        %11047 = vmatpush1.msra.mxu0 %v10536
        %11048 = vmatprep.subr.mxu0 0.0
        %11049 = vmatpush1.msra.mxu0 %v10537
        %11050 = vmatprep.subr.mxu0 0.0
        %11051 = vmatpush1.msra.mxu0 %v10538
        %11052 = vmatprep.subr.mxu0 0.0
        %11053 = vmatpush1.msra.mxu0 %v10539
        %11054 = vmatprep.subr.mxu0 0.0
        %11055 = vmatpush1.msra.mxu0 %v10540
        %11056 = vmatprep.subr.mxu0 0.0
        %11057 = vmatpush1.msra.mxu0 %v10541
        %11058 = vmatprep.subr.mxu0 0.0
        %11059 = vmatpush1.msra.mxu0 %v10542
        %11060 = vmatprep.subr.mxu0 0.0
        %11061 = vmatpush1.msra.mxu0 %v10543
        %11062 = vmatprep.subr.mxu0 0.0
        %11063 = vmatpush1.msra.mxu0 %v10544
        %11064 = vmatprep.subr.mxu0 0.0
        %11065 = vmatpush1.msra.mxu0 %v10545
        %11066 = vmatprep.subr.mxu0 0.0
        %11067 = vmatpush1.msra.mxu0 %v10546
        %11068 = vmatprep.subr.mxu0 0.0
        %11069 = vmatpush1.msra.mxu0 %v10547
        %11070 = vmatprep.subr.mxu0 0.0
        %11071 = vmatpush1.msra.mxu0 %v10548
        %11072 = vmatprep.mubr.f32.mxu0 %v10687
        %11073 = vmatmul.mubr.f32.gmra.mrb[0].mxu0 %v10683
        %v11074 = vpop.f32.mrb[0].mxu0
        %v11075 = vadd.f32 %v11005, %v11074
        %v11076 = vpop.f32.mrb[0].mxu0
        %11077 = vdwg.mxu0
        %11078 = vmatprep.subr.mxu0 0.0
        %11079 = vmatpush1.msra.mxu0 %v10549
        %11080 = vmatprep.subr.mxu0 0.0
        %11081 = vmatpush1.msra.mxu0 %v10550
        %11082 = vmatprep.subr.mxu0 0.0
        %11083 = vmatpush1.msra.mxu0 %v10551
        %11084 = vmatprep.subr.mxu0 0.0
        %11085 = vmatpush1.msra.mxu0 %v10552
        %11086 = vmatprep.subr.mxu0 0.0
        %11087 = vmatpush1.msra.mxu0 %v10553
        %11088 = vmatprep.subr.mxu0 0.0
        %11089 = vmatpush1.msra.mxu0 %v10554
        %11090 = vmatprep.subr.mxu0 0.0
        %11091 = vmatpush1.msra.mxu0 %v10555
        %11092 = vmatprep.subr.mxu0 0.0
        %11093 = vmatpush1.msra.mxu0 %v10556
        %11094 = vmatprep.subr.mxu0 0.0
        %11095 = vmatpush1.msra.mxu0 %v10557
        %11096 = vmatprep.subr.mxu0 0.0
        %11097 = vmatpush1.msra.mxu0 %v10558
        %11098 = vmatprep.subr.mxu0 0.0
        %11099 = vmatpush1.msra.mxu0 %v10559
        %11100 = vmatprep.subr.mxu0 0.0
        %11101 = vmatpush1.msra.mxu0 %v10560
        %11102 = vmatprep.subr.mxu0 0.0
        %11103 = vmatpush1.msra.mxu0 %v10561
        %11104 = vmatprep.subr.mxu0 0.0
        %11105 = vmatpush1.msra.mxu0 %v10562
        %11106 = vmatprep.subr.mxu0 0.0
        %11107 = vmatpush1.msra.mxu0 %v10563
        %11108 = vmatprep.subr.mxu0 0.0
        %11109 = vmatpush1.msra.mxu0 %v10564
        %11110 = vmatprep.subr.mxu0 0.0
        %11111 = vmatpush1.msra.mxu0 %v10565
        %11112 = vmatprep.subr.mxu0 0.0
        %11113 = vmatpush1.msra.mxu0 %v10566
        %11114 = vmatprep.subr.mxu0 0.0
        %11115 = vmatpush1.msra.mxu0 %v10567
        %11116 = vmatprep.subr.mxu0 0.0
        %11117 = vmatpush1.msra.mxu0 %v10568
        %11118 = vmatprep.subr.mxu0 0.0
        %11119 = vmatpush1.msra.mxu0 %v10569
        %11120 = vmatprep.subr.mxu0 0.0
        %11121 = vmatpush1.msra.mxu0 %v10570
        %11122 = vmatprep.subr.mxu0 0.0
        %11123 = vmatpush1.msra.mxu0 %v10571
        %11124 = vmatprep.subr.mxu0 0.0
        %11125 = vmatpush1.msra.mxu0 %v10572
        %11126 = vmatprep.subr.mxu0 0.0
        %11127 = vmatpush1.msra.mxu0 %v10573
        %11128 = vmatprep.subr.mxu0 0.0
        %11129 = vmatpush1.msra.mxu0 %v10574
        %11130 = vmatprep.subr.mxu0 0.0
        %11131 = vmatpush1.msra.mxu0 %v10575
        %11132 = vmatprep.subr.mxu0 0.0
        %11133 = vmatpush1.msra.mxu0 %v10576
        %11134 = vmatprep.subr.mxu0 0.0
        %11135 = vmatpush1.msra.mxu0 %v10577
        %11136 = vmatprep.subr.mxu0 0.0
        %11137 = vmatpush1.msra.mxu0 %v10578
        %11138 = vmatprep.subr.mxu0 0.0
        %11139 = vmatpush1.msra.mxu0 %v10579
        %11140 = vmatprep.subr.mxu0 0.0
        %11141 = vmatpush1.msra.mxu0 %v10580
        %11142 = vmatprep.mubr.f32.mxu0 %v10695
        %11143 = vmatmul.mubr.f32.gmra.mrb[0].mxu0 %v10691
        %v11144 = vpop.f32.mrb[0].mxu0
        %v11145 = vadd.f32 %v11075, %v11144
        %v11146 = vpop.f32.mrb[0].mxu0
        %11147 = vdwg.mxu0
        %11148 = vmatprep.subr.mxu0 0.0
        %11149 = vmatpush1.msra.mxu0 %v10581
        %11150 = vmatprep.subr.mxu0 0.0
        %11151 = vmatpush1.msra.mxu0 %v10582
        %11152 = vmatprep.subr.mxu0 0.0
        %11153 = vmatpush1.msra.mxu0 %v10583
        %11154 = vmatprep.subr.mxu0 0.0
        %11155 = vmatpush1.msra.mxu0 %v10584
        %11156 = vmatprep.subr.mxu0 0.0
        %11157 = vmatpush1.msra.mxu0 %v10585
        %11158 = vmatprep.subr.mxu0 0.0
        %11159 = vmatpush1.msra.mxu0 %v10586
        %11160 = vmatprep.subr.mxu0 0.0
        %11161 = vmatpush1.msra.mxu0 %v10587
        %11162 = vmatprep.subr.mxu0 0.0
        %11163 = vmatpush1.msra.mxu0 %v10588
        %11164 = vmatprep.subr.mxu0 0.0
        %11165 = vmatpush1.msra.mxu0 %v10589
        %11166 = vmatprep.subr.mxu0 0.0
        %11167 = vmatpush1.msra.mxu0 %v10590
        %11168 = vmatprep.subr.mxu0 0.0
        %11169 = vmatpush1.msra.mxu0 %v10591
        %11170 = vmatprep.subr.mxu0 0.0
        %11171 = vmatpush1.msra.mxu0 %v10592
        %11172 = vmatprep.subr.mxu0 0.0
        %11173 = vmatpush1.msra.mxu0 %v10593
        %11174 = vmatprep.subr.mxu0 0.0
        %11175 = vmatpush1.msra.mxu0 %v10594
        %11176 = vmatprep.subr.mxu0 0.0
        %11177 = vmatpush1.msra.mxu0 %v10595
        %11178 = vmatprep.subr.mxu0 0.0
        %11179 = vmatpush1.msra.mxu0 %v10596
        %11180 = vmatprep.subr.mxu0 0.0
        %11181 = vmatpush1.msra.mxu0 %v10597
        %11182 = vmatprep.subr.mxu0 0.0
        %11183 = vmatpush1.msra.mxu0 %v10598
        %11184 = vmatprep.subr.mxu0 0.0
        %11185 = vmatpush1.msra.mxu0 %v10599
        %11186 = vmatprep.subr.mxu0 0.0
        %11187 = vmatpush1.msra.mxu0 %v10600
        %11188 = vmatprep.subr.mxu0 0.0
        %11189 = vmatpush1.msra.mxu0 %v10601
        %11190 = vmatprep.subr.mxu0 0.0
        %11191 = vmatpush1.msra.mxu0 %v10602
        %11192 = vmatprep.subr.mxu0 0.0
        %11193 = vmatpush1.msra.mxu0 %v10603
        %11194 = vmatprep.subr.mxu0 0.0
        %11195 = vmatpush1.msra.mxu0 %v10604
        %11196 = vmatprep.subr.mxu0 0.0
        %11197 = vmatpush1.msra.mxu0 %v10605
        %11198 = vmatprep.subr.mxu0 0.0
        %11199 = vmatpush1.msra.mxu0 %v10606
        %11200 = vmatprep.subr.mxu0 0.0
        %11201 = vmatpush1.msra.mxu0 %v10607
        %11202 = vmatprep.subr.mxu0 0.0
        %11203 = vmatpush1.msra.mxu0 %v10608
        %11204 = vmatprep.subr.mxu0 0.0
        %11205 = vmatpush1.msra.mxu0 %v10609
        %11206 = vmatprep.subr.mxu0 0.0
        %11207 = vmatpush1.msra.mxu0 %v10610
        %11208 = vmatprep.subr.mxu0 0.0
        %11209 = vmatpush1.msra.mxu0 %v10611
        %11210 = vmatprep.subr.mxu0 0.0
        %11211 = vmatpush1.msra.mxu0 %v10612
        %11212 = vmatprep.mubr.f32.mxu0 %v10703
        %11213 = vmatmul.mubr.f32.gmra.mrb[0].mxu0 %v10699
        %v11214 = vpop.f32.mrb[0].mxu0
        %v11215 = vadd.f32 %v11145, %v11214
        %v11216 = vpop.f32.mrb[0].mxu0
        %11217 = vdwg.mxu0
        %11218 = vmatprep.subr.mxu0 0.0
        %11219 = vmatpush1.msra.mxu0 %v10613
        %11220 = vmatprep.subr.mxu0 0.0
        %11221 = vmatpush1.msra.mxu0 %v10614
        %11222 = vmatprep.subr.mxu0 0.0
        %11223 = vmatpush1.msra.mxu0 %v10615
        %11224 = vmatprep.subr.mxu0 0.0
        %11225 = vmatpush1.msra.mxu0 %v10616
        %11226 = vmatprep.subr.mxu0 0.0
        %11227 = vmatpush1.msra.mxu0 %v10617
        %11228 = vmatprep.subr.mxu0 0.0
        %11229 = vmatpush1.msra.mxu0 %v10618
        %11230 = vmatprep.subr.mxu0 0.0
        %11231 = vmatpush1.msra.mxu0 %v10619
        %11232 = vmatprep.subr.mxu0 0.0
        %11233 = vmatpush1.msra.mxu0 %v10620
        %11234 = vmatprep.subr.mxu0 0.0
        %11235 = vmatpush1.msra.mxu0 %v10621
        %11236 = vmatprep.subr.mxu0 0.0
        %11237 = vmatpush1.msra.mxu0 %v10622
        %11238 = vmatprep.subr.mxu0 0.0
        %11239 = vmatpush1.msra.mxu0 %v10623
        %11240 = vmatprep.subr.mxu0 0.0
        %11241 = vmatpush1.msra.mxu0 %v10624
        %11242 = vmatprep.subr.mxu0 0.0
        %11243 = vmatpush1.msra.mxu0 %v10625
        %11244 = vmatprep.subr.mxu0 0.0
        %11245 = vmatpush1.msra.mxu0 %v10626
        %11246 = vmatprep.subr.mxu0 0.0
        %11247 = vmatpush1.msra.mxu0 %v10627
        %11248 = vmatprep.subr.mxu0 0.0
        %11249 = vmatpush1.msra.mxu0 %v10628
        %11250 = vmatprep.subr.mxu0 0.0
        %11251 = vmatpush1.msra.mxu0 %v10629
        %11252 = vmatprep.subr.mxu0 0.0
        %11253 = vmatpush1.msra.mxu0 %v10630
        %11254 = vmatprep.subr.mxu0 0.0
        %11255 = vmatpush1.msra.mxu0 %v10631
        %11256 = vmatprep.subr.mxu0 0.0
        %11257 = vmatpush1.msra.mxu0 %v10632
        %11258 = vmatprep.subr.mxu0 0.0
        %11259 = vmatpush1.msra.mxu0 %v10633
        %11260 = vmatprep.subr.mxu0 0.0
        %11261 = vmatpush1.msra.mxu0 %v10634
        %11262 = vmatprep.subr.mxu0 0.0
        %11263 = vmatpush1.msra.mxu0 %v10635
        %11264 = vmatprep.subr.mxu0 0.0
        %11265 = vmatpush1.msra.mxu0 %v10636
        %11266 = vmatprep.subr.mxu0 0.0
        %11267 = vmatpush1.msra.mxu0 %v10637
        %11268 = vmatprep.subr.mxu0 0.0
        %11269 = vmatpush1.msra.mxu0 %v10638
        %11270 = vmatprep.subr.mxu0 0.0
        %11271 = vmatpush1.msra.mxu0 %v10639
        %11272 = vmatprep.subr.mxu0 0.0
        %11273 = vmatpush1.msra.mxu0 %v10640
        %11274 = vmatprep.subr.mxu0 0.0
        %11275 = vmatpush1.msra.mxu0 %v10641
        %11276 = vmatprep.subr.mxu0 0.0
        %11277 = vmatpush1.msra.mxu0 %v10642
        %11278 = vmatprep.subr.mxu0 0.0
        %11279 = vmatpush1.msra.mxu0 %v10643
        %11280 = vmatprep.subr.mxu0 0.0
        %11281 = vmatpush1.msra.mxu0 %v10644
        %11282 = vmatprep.mubr.f32.mxu0 %v10711
        %11283 = vmatmul.mubr.f32.gmra.mrb[0].mxu0 %v10707
        %v11284 = vpop.f32.mrb[0].mxu0
        %v11285 = vadd.f32 %v11215, %v11284
        %v11286 = vpop.f32.mrb[0].mxu0
        %11287 = vdwg.mxu0
        %vm11288 = vcmask 73728
        %11289 = vst.msk [vmem:[%s486] sm:$0x1] %vm11288, %v11285
        %s11290 = sand.u32 %s357, 1
        %s11291 = scalar_lea.sflag [#allocation6], %s11290
        %s11292 = sand.u32 %s357, 1
        %s11293 = scalar_lea.vmem [#allocation5], %s11292
        // Predicated region
        $region81: #{tiny_vgg_forward.1} parent=79 // pred_check
          %p11294 = pneg %p367
        $region82: #{tiny_vgg_forward.1} parent=79 // pred_check_branch
          %11296 = sbr.rel (%p11294) target = $region84
        $region83: #{tiny_vgg_forward.1} parent=79 // pred_region
          %s11298 = ssub.s32 16, 16
          %11299 = vsyncadd %s11291, %s11298
          %s11300 = smul.addr %s29, 16
          %s11301 = scalar_lea.hbm %s15, %s11300
          %s11303 = sshll.u32 %s11293, 4
          %s11304 = int_to_ptr.vmem [resolvable:$true] %s11303
          %11306 = dma.vmem_to_hbm [thread:$0]  %s11304, 16, %s11301, %s11291
        $region84: #{tiny_vgg_forward.1} parent=79 // pred_fallthru
          _
      $region80: #{tiny_vgg_forward.1} parent=5 // pred_fallthru
        _
      %p11307 = scmp.le.s32.totalorder 2, %s24
      // Predicated region
      $region85: #{tiny_vgg_forward.1} parent=5 // pred_check
        %p11308 = pneg %p11307
      $region86: #{tiny_vgg_forward.1} parent=5 // pred_check_branch
        %11310 = sbr.rel (%p11308) target = $region88
      $region87: #{tiny_vgg_forward.1} parent=5 // pred_region
        %s11311 = ssub.s32 %s24, 2
        // Predicated region
        $region89: #{tiny_vgg_forward.1} parent=87 // pred_check
          %p11312 = pneg %p373
        $region90: #{tiny_vgg_forward.1} parent=87 // pred_check_branch
          %11314 = sbr.rel (%p11312) target = $region92
        $region91: #{tiny_vgg_forward.1} parent=87 // pred_region
          %s11315 = sand.u32 %s358, 1
          %s11316 = scalar_lea.sflag [#allocation6], %s11315
          %s11317 = sand.u32 %s358, 1
          %s11318 = scalar_lea.vmem [#allocation5], %s11317
          %11319 = dma.done %s11316, 16
        $region92: #{tiny_vgg_forward.1} parent=87 // pred_fallthru
          _
      $region88: #{tiny_vgg_forward.1} parent=5 // pred_fallthru
        _
    $region6: #{tiny_vgg_forward.1} parent=1 // loop_footer
      %s28 = sadd.s32 1, %s24
    $region7: #{tiny_vgg_forward.1} parent=1 // loop_footer_branch
      %23 = sbr.rel target = $region3
    $region8: #{tiny_vgg_forward.1} parent=1 // loop_exit
      _
    %11320 = vsyncpa [#allocation6], 1
    %s11321 = scalar_lea.sflag [#allocation6], 1
    %11322 = vsyncpa %s11321, 1

</llo_original>
